<compile_context>
chip_gen: v7x
topology: tpu7x:2x2x1
jax: 0.10.0
libtpu: 0.0.40
codegen_flags: <defaults>
</compile_context>

<pallas_src>
import math
import functools

import jax
import jax.numpy as jnp
from jax.experimental import pallas as pl
from jax.experimental.pallas import tpu as pltpu


def _attentive_reducer_kernel(params_ref, x_ref, mask_ref, out_ref, att_ref,
                              *, inv_att_norm, eps):
    # Per-grid-step shapes:
    #   params_ref: (8, H) f32   row 0 = q (fc.weight), row 1 = gamma, row 2 = beta
    #   x_ref:      (TB, S, H)   token embeddings, native HBM dtype (f32/bf16)
    #   mask_ref:   (TB, 1, S)   attention mask (nonzero = keep), f32
    #   out_ref:    (TB, 1, H)   normalized attended embedding, f32
    #   att_ref:    (TB, 1, S)   softmax attention weights, f32
    x = x_ref[...]                                   # native dtype, no f32 copy
    tb, s, h = x.shape

    q = params_ref[0:1, :]                           # (1, H) f32
    gamma = params_ref[1:2, :][None, :, :]           # (1, 1, H) f32
    beta = params_ref[2:3, :][None, :, :]            # (1, 1, H) f32

    # ---- scores: one learned query vs every token (MXU, batched over TB) ----
    q_b = jnp.broadcast_to(q.astype(x.dtype)[None, :, :], (tb, 1, h))  # (TB,1,H)
    scores = jnp.einsum('bqh,bkh->bqk', q_b, x,
                        preferred_element_type=jnp.float32,
                        precision=jax.lax.Precision.HIGHEST)           # (TB,1,S) f32
    scores = scores * inv_att_norm                   # constant multiply, not a divide

    mask = mask_ref[...]                             # (TB, 1, S) f32
    scores = jnp.where(mask == 0.0, jnp.float32(-1e9), scores)

    # ---- numerically-stable softmax over S ----------------------------------
    m = jnp.max(scores, axis=-1, keepdims=True)      # (TB, 1, 1)
    p = jnp.exp(scores - m)                          # EUP
    denom = jnp.sum(p, axis=-1, keepdims=True)       # (TB, 1, 1)
    attn = p * pl.reciprocal(denom, approx=False)    # (TB, 1, S) f32
    att_ref[...] = attn.astype(att_ref.dtype)

    # ---- attended embedding (MXU, batched): emb[b] = attn[b] @ x[b] ---------
    emb = jnp.einsum('bqk,bkh->bqh', attn.astype(x.dtype), x,
                     preferred_element_type=jnp.float32,
                     precision=jax.lax.Precision.HIGHEST)              # (TB,1,H) f32

    # ---- LayerNorm (annotated-transformer variant): unbiased std, /(std+eps)
    mean = jnp.mean(emb, axis=-1, keepdims=True)
    centered = emb - mean
    var_unbiased = jnp.sum(centered * centered, axis=-1, keepdims=True) * (1.0 / (h - 1))
    inv_std = pl.reciprocal(jnp.sqrt(var_unbiased) + eps, approx=False)  # (TB,1,1)
    normed = gamma * centered * inv_std + beta

    # TODO(synk): nn.Dropout(p=0.1) is applied in eval/inference mode (identity); no RNG.
    out_ref[...] = normed.astype(out_ref.dtype)


def _round_up(v, m):
    return (v + m - 1) // m * m


def attentive_reducer(batch_token_emb, fc_weight, ln_gamma, ln_beta,
                      masks=None, keepdim=False, eps=1e-6, block_b=None):
    """Pallas implementation of AttentiveReducer.forward.

    batch_token_emb: (B, S, H) float32 or bfloat16 (kept in its native dtype in HBM)
    fc_weight:       (1, H)  (nn.Linear(H, 1, bias=False).weight)
    ln_gamma:        (H,)
    ln_beta:         (H,)
    masks:           (B, S) or None  (nonzero = keep)
    returns: (out, att)  with out (B, H) (or (B, 1, H) if keepdim), att (B, 1, S) f32
    """
    B, S, H = batch_token_emb.shape
    if H < 2:
        raise ValueError("hidden_size must be >= 2 (unbiased LayerNorm std divides by H-1)")
    x = batch_token_emb                      # no up-cast: DMA native dtype from HBM
    itemsize = jnp.dtype(x.dtype).itemsize

    if masks is None:
        mask = jnp.ones((B, 1, S), dtype=jnp.float32)
    else:
        mask = masks.astype(jnp.float32).reshape(B, S)[:, None, :]

    # ---- generation-aware tile selection ------------------------------------
    try:
        vmem_cap = int(pltpu.get_tpu_info().vmem_capacity_bytes)
    except Exception:
        vmem_cap = 64 * 1024 * 1024          # conservative (v7x-sized) fallback
    budget = int(vmem_cap * 0.6)
    # bigger x tiles where VMEM allows (v5e/v6e: 128 MiB), smaller on v7x (64 MiB)
    target_x_bytes = (16 << 20) if vmem_cap >= (100 << 20) else (8 << 20)

    h_pad = _round_up(H, 128)
    s_lane = _round_up(S, 128)               # S on the lane axis (scores/att/mask)
    s_sub = _round_up(S, 8)                  # S on the sublane axis (x tile)

    def vmem_need(tb):
        x_blk = tb * s_sub * h_pad * itemsize
        mask_blk = tb * 8 * s_lane * 4       # (tb,1,S) blocks pad sublane 1 -> 8
        att_blk = tb * 8 * s_lane * 4
        out_blk = tb * 8 * h_pad * 4
        params_blk = 8 * h_pad * 4
        dbuf = 2 * (x_blk + mask_blk + att_blk + out_blk + params_blk)
        # live in-kernel f32 values: scores / p / attn (+ cast) and emb / centered
        temps = tb * 8 * (4 * s_lane + 3 * h_pad) * 4
        return dbuf + temps + (2 << 20)

    row_x_bytes = max(S * H * itemsize, 1)
    if block_b is not None:
        tb = max(8, (int(block_b) // 8) * 8)
    else:
        tb_tgt = max(8, (target_x_bytes // row_x_bytes) // 8 * 8)
        tb_depth = max(8, (B // 4) // 8 * 8)  # keep >= ~4 grid steps when B allows
        tb = int(min(tb_tgt, tb_depth, 256))
    tb = min(tb, _round_up(B, 8))            # don't pad a tiny batch up to the tile
    tb = max(8, (tb // 8) * 8)
    while vmem_need(tb) > budget and tb > 8:  # robustness: honor the VMEM budget
        tb = max(8, (tb // 2) // 8 * 8)

    b_pad = pl.cdiv(B, tb) * tb
    if b_pad != B:
        pad = b_pad - B
        x = jnp.pad(x, ((0, pad), (0, 0), (0, 0)))
        mask = jnp.pad(mask, ((0, pad), (0, 0), (0, 0)), constant_values=1.0)

    # ---- pack q / gamma / beta into one VMEM-resident (8, H) parameter block
    params = jnp.zeros((8, H), dtype=jnp.float32)
    params = params.at[0].set(fc_weight.reshape(H).astype(jnp.float32))
    params = params.at[1].set(ln_gamma.reshape(H).astype(jnp.float32))
    params = params.at[2].set(ln_beta.reshape(H).astype(jnp.float32))

    vmem_limit = int(min(int(vmem_cap * 0.9),
                         max(32 * 1024 * 1024, int(vmem_need(tb) * 1.2))))

    kernel = functools.partial(_attentive_reducer_kernel,
                               inv_att_norm=1.0 / math.sqrt(H), eps=eps)

    out3, att3 = pl.pallas_call(
        kernel,
        out_shape=(
            jax.ShapeDtypeStruct((b_pad, 1, H), jnp.float32),
            jax.ShapeDtypeStruct((b_pad, 1, S), jnp.float32),
        ),
        grid_spec=pltpu.PrefetchScalarGridSpec(
            num_scalar_prefetch=0,
            grid=(b_pad // tb,),
            in_specs=[
                pl.BlockSpec((8, H), lambda b: (0, 0)),          # packed params (shared)
                pl.BlockSpec((tb, S, H), lambda b: (b, 0, 0)),   # x, TB batch rows
                pl.BlockSpec((tb, 1, S), lambda b: (b, 0, 0)),   # mask, TB batch rows
            ],
            out_specs=[
                pl.BlockSpec((tb, 1, H), lambda b: (b, 0, 0)),   # LayerNorm'd embedding
                pl.BlockSpec((tb, 1, S), lambda b: (b, 0, 0)),   # attention weights
            ],
        ),
        compiler_params=pltpu.CompilerParams(
            dimension_semantics=("parallel",),   # shards the batch grid across TCs on v7x
            vmem_limit_bytes=vmem_limit,
        ),
    )(params, x, mask)

    att = att3[:B]                               # (B, 1, S) == self.att
    out = out3[:B]                               # (B, 1, H)
    if not keepdim:
        out = out[:, 0, :]                       # squeeze(-2) -> (B, H)
    return out, att


def _reference(batch_token_emb, fc_weight, ln_gamma, ln_beta, masks=None, eps=1e-6):
    """Pure-JAX reference mirroring the PyTorch code path (f32-exact matmuls)."""
    x = batch_token_emb.astype(jnp.float32)
    H = x.shape[-1]
    q = fc_weight.reshape(1, H).astype(jnp.float32)
    scores = jnp.einsum('oh,bsh->bos', q, x,
                        precision=jax.lax.Precision.HIGHEST) / math.sqrt(H)
    if masks is not None:
        scores = jnp.where(masks[:, None, :] == 0, jnp.float32(-1e9), scores)
    attn = jax.nn.softmax(scores, axis=-1)                      # (B, 1, S)
    emb = jnp.einsum('bos,bsh->boh', attn, x,
                     precision=jax.lax.Precision.HIGHEST)       # (B, 1, H)
    mean = emb.mean(-1, keepdims=True)
    centered = emb - mean
    std = jnp.sqrt(jnp.sum(centered * centered, -1, keepdims=True) / (H - 1))
    out = ln_gamma * centered / (std + eps) + ln_beta
    return out[:, 0, :], attn


if __name__ == "__main__":
    B, S, H = 2, 8, 32

    key = jax.random.PRNGKey(0)
    kx, kq, km = jax.random.split(key, 3)

    x = jax.random.normal(kx, (B, S, H), dtype=jnp.float32)
    # nn.Linear(H, 1, bias=False) default init: U(-1/sqrt(H), 1/sqrt(H))
    fc_weight = jax.random.uniform(kq, (1, H), dtype=jnp.float32,
                                   minval=-1.0 / math.sqrt(H),
                                   maxval=1.0 / math.sqrt(H))
    # transformer.LayerNorm default init: a_2 = ones, b_2 = zeros
    ln_gamma = jnp.ones((H,), dtype=jnp.float32)
    ln_beta = jnp.zeros((H,), dtype=jnp.float32)

    # Deterministic mask with some masked-out positions (always keep position 0).
    masks = (jax.random.uniform(km, (B, S)) > 0.3).astype(jnp.float32)
    masks = masks.at[:, 0].set(1.0)

    out, att = attentive_reducer(x, fc_weight, ln_gamma, ln_beta, masks=masks,
                                 keepdim=False)
    out = jax.block_until_ready(out)
    att = jax.block_until_ready(att)

    ref_out, ref_att = _reference(x, fc_weight, ln_gamma, ln_beta, masks=masks)

    assert out.shape == (B, H)
    assert att.shape == (B, 1, S)
    assert jnp.allclose(out, ref_out, atol=2e-5, rtol=2e-5), \
        float(jnp.max(jnp.abs(out - ref_out)))
    assert jnp.allclose(att, ref_att, atol=2e-5, rtol=2e-5), \
        float(jnp.max(jnp.abs(att - ref_att)))

    print("KERNEL_OK")
</pallas_src>

<mosaic_0001>
module attributes {stable_mosaic.version = 11 : i64} {
  func.func @_attentive_reducer_kernel(%arg0: i32, %arg1: memref<8x32xf32, #tpu.memory_space<vmem>>, %arg2: memref<8x8x32xf32, #tpu.memory_space<vmem>>, %arg3: memref<8x1x8xf32, #tpu.memory_space<vmem>>, %arg4: memref<8x1x32xf32, #tpu.memory_space<vmem>>, %arg5: memref<8x1x8xf32, #tpu.memory_space<vmem>>) attributes {dimension_semantics = [#tpu.dimension_semantics<parallel>], iteration_bounds = array<i64: 1>, scalar_prefetch = 0 : i64, scratch_operands = 0 : i64, tpu.core_type = #tpu.core_type<tc>, window_params = [{pipeline_mode = #tpu.pipeline_mode<synchronous>, transform_indices = @transform_0, window_bounds = array<i64: 8, 32>}, {transform_indices = @transform_1, window_bounds = array<i64: 8, 8, 32>}, {transform_indices = @transform_2, window_bounds = array<i64: 8, 1, 8>}, {transform_indices = @transform_3, window_bounds = array<i64: 8, 1, 32>}, {transform_indices = @transform_4, window_bounds = array<i64: 8, 1, 8>}]} {
    %c0 = arith.constant 0 : index
    %c0_0 = arith.constant 0 : index
    %c0_1 = arith.constant 0 : index
    %0 = vector.load %arg2[%c0, %c0_0, %c0_1] : memref<8x8x32xf32, #tpu.memory_space<vmem>>, vector<8x8x32xf32>
    %c0_2 = arith.constant 0 : index
    %c0_3 = arith.constant 0 : index
    %1 = vector.load %arg1[%c0_2, %c0_3] : memref<8x32xf32, #tpu.memory_space<vmem>>, vector<1x32xf32>
    %c1 = arith.constant 1 : index
    %c0_4 = arith.constant 0 : index
    %2 = vector.load %arg1[%c1, %c0_4] : memref<8x32xf32, #tpu.memory_space<vmem>>, vector<1x32xf32>
    %3 = vector.shape_cast %2 : vector<1x32xf32> to vector<1x1x32xf32>
    %c2 = arith.constant 2 : index
    %c0_5 = arith.constant 0 : index
    %4 = vector.load %arg1[%c2, %c0_5] : memref<8x32xf32, #tpu.memory_space<vmem>>, vector<1x32xf32>
    %5 = vector.shape_cast %4 : vector<1x32xf32> to vector<1x1x32xf32>
    %6 = vector.shape_cast %1 : vector<1x32xf32> to vector<1x1x32xf32>
    %7 = vector.shape_cast %6 : vector<1x1x32xf32> to vector<1x1x32xf32>
    %8 = vector.broadcast %7 : vector<1x1x32xf32> to vector<8x1x32xf32>
    "tpu.trace_start"() <{level = 10 : i32, message = "bqh,bkh->bqk"}> : () -> ()
    %cst = arith.constant dense<0.000000e+00> : vector<8x1x8xf32>
    %9 = tpu.matmul %8, %0, %cst {dimension_numbers = #tpu.dot_dimension_numbers<[2], [2], [1], [1], [0, 0, 0, 1, 1, 1], [0], [0]>, precision = #tpu.contract_precision<fp32>} : vector<8x1x32xf32>, vector<8x8x32xf32>, vector<8x1x8xf32> -> vector<8x1x8xf32>
    "tpu.trace_stop"() : () -> ()
    %cst_6 = arith.constant 0.176776692 : f32
    %10 = vector.broadcast %cst_6 : f32 to vector<8x1x8xf32>
    %11 = arith.mulf %9, %10 : vector<8x1x8xf32>
    %c0_7 = arith.constant 0 : index
    %c0_8 = arith.constant 0 : index
    %c0_9 = arith.constant 0 : index
    %12 = vector.load %arg3[%c0_7, %c0_8, %c0_9] : memref<8x1x8xf32, #tpu.memory_space<vmem>>, vector<8x1x8xf32>
    %cst_10 = arith.constant 0.000000e+00 : f32
    %13 = vector.broadcast %cst_10 : f32 to vector<8x1x8xf32>
    %14 = arith.cmpf oeq, %12, %13 : vector<8x1x8xf32>
    %cst_11 = arith.constant -1.000000e+09 : f32
    %15 = vector.broadcast %cst_11 : f32 to vector<8x1x8xf32>
    %16 = arith.select %14, %15, %11 : vector<8x1x8xi1>, vector<8x1x8xf32>
    %cst_12 = arith.constant dense<0xFF800000> : vector<8x1xf32>
    %17 = vector.multi_reduction <maximumf>, %16, %cst_12 [2] : vector<8x1x8xf32> to vector<8x1xf32>
    %18 = vector.shape_cast %17 : vector<8x1xf32> to vector<8x1x1xf32>
    %19 = vector.broadcast %18 : vector<8x1x1xf32> to vector<8x1x8xf32>
    %20 = arith.subf %16, %19 : vector<8x1x8xf32>
    %21 = math.exp %20 : vector<8x1x8xf32>
    %cst_13 = arith.constant dense<0.000000e+00> : vector<8x1xf32>
    %22 = vector.multi_reduction <add>, %21, %cst_13 [2] : vector<8x1x8xf32> to vector<8x1xf32>
    %23 = vector.shape_cast %22 : vector<8x1xf32> to vector<8x1x1xf32>
    %24 = tpu.reciprocal %23 : vector<8x1x1xf32> -> vector<8x1x1xf32>
    %25 = vector.broadcast %24 : vector<8x1x1xf32> to vector<8x1x8xf32>
    %26 = arith.mulf %21, %25 : vector<8x1x8xf32>
    %c0_14 = arith.constant 0 : index
    %c0_15 = arith.constant 0 : index
    %c0_16 = arith.constant 0 : index
    %27 = vector.load %arg5[%c0_14, %c0_15, %c0_16] : memref<8x1x8xf32, #tpu.memory_space<vmem>>, vector<8x1x8xf32>
    tpu.vector_store %arg5[%c0_14, %c0_15, %c0_16], %26 {strides = array<i32>} : memref<8x1x8xf32, #tpu.memory_space<vmem>>, vector<8x1x8xf32>,
    "tpu.trace_start"() <{level = 10 : i32, message = "bqk,bkh->bqh"}> : () -> ()
    %cst_17 = arith.constant dense<0.000000e+00> : vector<8x1x32xf32>
    %28 = tpu.matmul %26, %0, %cst_17 {dimension_numbers = #tpu.dot_dimension_numbers<[2], [1], [1], [2], [0, 0, 0, 1, 1, 2], [0], [0]>, precision = #tpu.contract_precision<fp32>} : vector<8x1x8xf32>, vector<8x8x32xf32>, vector<8x1x32xf32> -> vector<8x1x32xf32>
    "tpu.trace_stop"() : () -> ()
    %cst_18 = arith.constant dense<0.000000e+00> : vector<8x1xf32>
    %29 = vector.multi_reduction <add>, %28, %cst_18 [2] : vector<8x1x32xf32> to vector<8x1xf32>
    %30 = vector.shape_cast %29 : vector<8x1xf32> to vector<8x1x1xf32>
    %cst_19 = arith.constant 3.200000e+01 : f32
    %31 = vector.broadcast %cst_19 : f32 to vector<8x1x1xf32>
    %32 = arith.divf %30, %31 : vector<8x1x1xf32>
    %33 = vector.broadcast %32 : vector<8x1x1xf32> to vector<8x1x32xf32>
    %34 = arith.subf %28, %33 : vector<8x1x32xf32>
    %35 = arith.mulf %34, %34 : vector<8x1x32xf32>
    %cst_20 = arith.constant dense<0.000000e+00> : vector<8x1xf32>
    %36 = vector.multi_reduction <add>, %35, %cst_20 [2] : vector<8x1x32xf32> to vector<8x1xf32>
    %37 = vector.shape_cast %36 : vector<8x1xf32> to vector<8x1x1xf32>
    %cst_21 = arith.constant 0.0322580636 : f32
    %38 = vector.broadcast %cst_21 : f32 to vector<8x1x1xf32>
    %39 = arith.mulf %37, %38 : vector<8x1x1xf32>
    %40 = math.sqrt %39 : vector<8x1x1xf32>
    %cst_22 = arith.constant 9.99999997E-7 : f32
    %41 = vector.broadcast %cst_22 : f32 to vector<8x1x1xf32>
    %42 = arith.addf %40, %41 : vector<8x1x1xf32>
    %43 = tpu.reciprocal %42 : vector<8x1x1xf32> -> vector<8x1x1xf32>
    %44 = vector.broadcast %3 : vector<1x1x32xf32> to vector<8x1x32xf32>
    %45 = arith.mulf %44, %34 : vector<8x1x32xf32>
    %46 = vector.broadcast %43 : vector<8x1x1xf32> to vector<8x1x32xf32>
    %47 = arith.mulf %45, %46 : vector<8x1x32xf32>
    %48 = vector.broadcast %5 : vector<1x1x32xf32> to vector<8x1x32xf32>
    %49 = arith.addf %47, %48 : vector<8x1x32xf32>
    %c0_23 = arith.constant 0 : index
    %c0_24 = arith.constant 0 : index
    %c0_25 = arith.constant 0 : index
    %50 = vector.load %arg4[%c0_23, %c0_24, %c0_25] : memref<8x1x32xf32, #tpu.memory_space<vmem>>, vector<8x1x32xf32>
    tpu.vector_store %arg4[%c0_23, %c0_24, %c0_25], %49 {strides = array<i32>} : memref<8x1x32xf32, #tpu.memory_space<vmem>>, vector<8x1x32xf32>,
    return
  }
  func.func @transform_0(%arg0: i32) -> (i32, i32) {
    %c0_i32 = arith.constant 0 : i32
    %c0_i32_0 = arith.constant 0 : i32
    %c0_i32_1 = arith.constant 0 : i32
    return %c0_i32, %c0_i32_0 : i32, i32
  }
  func.func @transform_1(%arg0: i32) -> (i32, i32, i32) {
    %c0_i32 = arith.constant 0 : i32
    %c0_i32_0 = arith.constant 0 : i32
    %c0_i32_1 = arith.constant 0 : i32
    return %arg0, %c0_i32, %c0_i32_0 : i32, i32, i32
  }
  func.func @transform_2(%arg0: i32) -> (i32, i32, i32) {
    %c0_i32 = arith.constant 0 : i32
    %c0_i32_0 = arith.constant 0 : i32
    %c0_i32_1 = arith.constant 0 : i32
    return %arg0, %c0_i32, %c0_i32_0 : i32, i32, i32
  }
  func.func @transform_3(%arg0: i32) -> (i32, i32, i32) {
    %c0_i32 = arith.constant 0 : i32
    %c0_i32_0 = arith.constant 0 : i32
    %c0_i32_1 = arith.constant 0 : i32
    return %arg0, %c0_i32, %c0_i32_0 : i32, i32, i32
  }
  func.func @transform_4(%arg0: i32) -> (i32, i32, i32) {
    %c0_i32 = arith.constant 0 : i32
    %c0_i32_0 = arith.constant 0 : i32
    %c0_i32_1 = arith.constant 0 : i32
    return %arg0, %c0_i32, %c0_i32_0 : i32, i32, i32
  }
}

</mosaic_0001>

<llo_original>
// kernel: tpu_custom_call.1
$region0: #{tpu_custom_call.1}
  #allocation0 [shape = 'u32[]', space=smem, size = 0x4, offset = 0x4, fixed_abs, tag = 'smem constant byte address 0x4 - core index']
  #allocation1 [shape = 'u32[144,128]{1,0:T(1,128)}', space=vmem, size = 0x12000, scoped, tag = 'internal scratch']
  %s0 = inlined_call_operand.hbm [shape: f32[8,32], index: 0, kind: input, shape index: {}]
  %s1 = inlined_call_operand.hbm [shape: f32[8,8,32], index: 1, kind: input, shape index: {}]
  %s2 = inlined_call_operand.hbm [shape: f32[8,1,8], index: 2, kind: input, shape index: {}]
  %s3 = inlined_call_operand.hbm [shape: f32[8,1,32], index: 3, kind: output, shape index: {0}]
  %s4 = inlined_call_operand.hbm [shape: f32[8,1,8], index: 4, kind: output, shape index: {1}]
  %5 = xla_tuple %s3, %s4
  %s6 = sld [smem:[#allocation0]]
  $region42: #{tpu_custom_call.1} parent=0
    _
  %s8 = ssub.s32 1, %s6
  %s9 = scalar_select 0, %s8, %s6
  $region1: #{tpu_custom_call.1} parent=0
    #allocation2 [shape = 'u8[4096]{0}', space=vmem, size = 0x1000, scoped, tag = 'input window, operand 0, single buffered']
    #allocation3 [shape = 's32[1]{0}', space=sflag, size = 0x4, scoped, tag = 'scoped memory for tpu_custom_call.1']
    #allocation4 [shape = 's32[1]{0}', space=sflag, size = 0x4, scoped, tag = 'scoped memory for tpu_custom_call.1']
    #allocation5 [shape = 'u8[32768]{0}', space=vmem, size = 0x8000, scoped, tag = 'input window, operand 1, single buffered']
    #allocation6 [shape = 's32[1]{0}', space=sflag, size = 0x4, scoped, tag = 'scoped memory for tpu_custom_call.1']
    #allocation7 [shape = 'u8[4096]{0}', space=vmem, size = 0x1000, scoped, tag = 'input window, operand 2, single buffered']
    #allocation8 [shape = 'u8[4096]{0}', space=vmem, size = 0x1000, scoped, tag = 'output window, operand 0, single buffered']
    #allocation9 [shape = 'u8[4096]{0}', space=vmem, size = 0x1000, scoped, tag = 'output window, operand 1, single buffered']
    #allocation10 [shape = 's32[1]{0}', space=sflag, size = 0x4, scoped, tag = 'scoped memory for tpu_custom_call.1']
    %10 = vsyncpa [#allocation3], 0
    %11 = vsyncpa [#allocation6], 0
    %12 = vsyncpa [#allocation4], 0
    %13 = vsyncpa [#allocation10], 0
    // Predicated region
    $region2: #{tpu_custom_call.1} parent=1 // pred_check
      _
    $region3: #{tpu_custom_call.1} parent=1 // pred_check_branch
      %15 = sbr.rel (0) target = $region5
    $region4: #{tpu_custom_call.1} parent=1 // pred_region
      %s17 = ssub.s32 128, 128
      %18 = vsyncadd [#allocation3], %s17
      %s20 = sshll.u32 [#allocation2], 4
      %s21 = int_to_ptr.vmem [resolvable:$true] %s20
      %23 = dma.hbm_to_vmem [thread:$0]  %s0, 128, %s21, [#allocation3]
    $region5: #{tpu_custom_call.1} parent=1 // pred_fallthru
      _
    // Predicated region
    $region6: #{tpu_custom_call.1} parent=1 // pred_check
      _
    $region7: #{tpu_custom_call.1} parent=1 // pred_check_branch
      %25 = sbr.rel (0) target = $region9
    $region8: #{tpu_custom_call.1} parent=1 // pred_region
      %s27 = ssub.s32 1024, 1024
      %28 = vsyncadd [#allocation6], %s27
      %s29 = sshll.u32 [#allocation5], 4
      %s30 = int_to_ptr.vmem [resolvable:$true] %s29
      %35 = dma.hbm_to_vmem [thread:$0]  %s1, 1024, %s30, [#allocation6], 128, 128, 8
    $region9: #{tpu_custom_call.1} parent=1 // pred_fallthru
      _
    // Predicated region
    $region10: #{tpu_custom_call.1} parent=1 // pred_check
      _
    $region11: #{tpu_custom_call.1} parent=1 // pred_check_branch
      %37 = sbr.rel (0) target = $region13
    $region12: #{tpu_custom_call.1} parent=1 // pred_region
      %s39 = ssub.s32 128, 128
      %40 = vsyncadd [#allocation6], %s39
      %s41 = sshll.u32 [#allocation7], 4
      %s42 = int_to_ptr.vmem [resolvable:$true] %s41
      %47 = dma.hbm_to_vmem [thread:$0]  %s2, 128, %s42, [#allocation6], 16, 16, 1
    $region13: #{tpu_custom_call.1} parent=1 // pred_fallthru
      _
    // Predicated region
    $region14: #{tpu_custom_call.1} parent=1 // pred_check
      _
    $region15: #{tpu_custom_call.1} parent=1 // pred_check_branch
      %49 = sbr.rel (0) target = $region17
    $region16: #{tpu_custom_call.1} parent=1 // pred_region
      %50 = dma.done [#allocation3], 128
    $region17: #{tpu_custom_call.1} parent=1 // pred_fallthru
      _
    // Predicated region
    $region18: #{tpu_custom_call.1} parent=1 // pred_check
      _
    $region19: #{tpu_custom_call.1} parent=1 // pred_check_branch
      %52 = sbr.rel (0) target = $region21
    $region20: #{tpu_custom_call.1} parent=1 // pred_region
      %53 = dma.done [#allocation6], 1024
    $region21: #{tpu_custom_call.1} parent=1 // pred_fallthru
      _
    // Predicated region
    $region22: #{tpu_custom_call.1} parent=1 // pred_check
      _
    $region23: #{tpu_custom_call.1} parent=1 // pred_check_branch
      %55 = sbr.rel (0) target = $region25
    $region24: #{tpu_custom_call.1} parent=1 // pred_region
      %56 = dma.done [#allocation6], 128
    $region25: #{tpu_custom_call.1} parent=1 // pred_fallthru
      _
    %v57 = vld [vmem:[#allocation5] sm:$0xff]
    %v58 = vld [vmem:[#allocation5 + $0x8] sm:$0xff]
    %v59 = vld [vmem:[#allocation5 + $0x10] sm:$0xff]
    %v60 = vld [vmem:[#allocation5 + $0x18] sm:$0xff]
    %v61 = vld [vmem:[#allocation5 + $0x20] sm:$0xff]
    %v62 = vld [vmem:[#allocation5 + $0x28] sm:$0xff]
    %v63 = vld [vmem:[#allocation5 + $0x30] sm:$0xff]
    %v64 = vld [vmem:[#allocation5 + $0x38] sm:$0xff]
    %v65 = vld [vmem:[#allocation2] sm:$0x1]
    %v66 = vld [vmem:[#allocation2 + $0x1] sm:$0x1]
    %v67 = vld [vmem:[#allocation2 + $0x2] sm:$0x1]
    %vm68 = vcmask 261120
    %v70 = vsel %vm68, %v65, 0
    %v73 = vsel %vm68, %v57, 0
    %75 = vmatprep.subr.mxu0 0.0
    %v76 = vand.u32 %v73, 4294901760
    %77 = vmatpush1.xpose.msra.mxu0 %v76
    %78 = vmatprep.subr.mxu0 0.0
    %79 = vmatpush1.xpose.msra.mxu0 0.0
    %80 = vmatprep.subr.mxu0 0.0
    %81 = vmatpush1.xpose.msra.mxu0 0.0
    %82 = vmatprep.subr.mxu0 0.0
    %83 = vmatpush1.xpose.msra.mxu0 0.0
    %84 = vmatprep.subr.mxu0 0.0
    %85 = vmatpush1.xpose.msra.mxu0 0.0
    %86 = vmatprep.subr.mxu0 0.0
    %87 = vmatpush1.xpose.msra.mxu0 0.0
    %88 = vmatprep.subr.mxu0 0.0
    %89 = vmatpush1.xpose.msra.mxu0 0.0
    %90 = vmatprep.subr.mxu0 0.0
    %91 = vmatpush1.xpose.msra.mxu0 0.0
    %92 = vmatprep.subr.mxu0 0.0
    %93 = vmatpush1.xpose.msra.mxu0 0.0
    %94 = vmatprep.subr.mxu0 0.0
    %95 = vmatpush1.xpose.msra.mxu0 0.0
    %96 = vmatprep.subr.mxu0 0.0
    %97 = vmatpush1.xpose.msra.mxu0 0.0
    %98 = vmatprep.subr.mxu0 0.0
    %99 = vmatpush1.xpose.msra.mxu0 0.0
    %100 = vmatprep.subr.mxu0 0.0
    %101 = vmatpush1.xpose.msra.mxu0 0.0
    %102 = vmatprep.subr.mxu0 0.0
    %103 = vmatpush1.xpose.msra.mxu0 0.0
    %104 = vmatprep.subr.mxu0 0.0
    %105 = vmatpush1.xpose.msra.mxu0 0.0
    %106 = vmatprep.subr.mxu0 0.0
    %107 = vmatpush1.xpose.msra.mxu0 0.0
    %108 = vmatprep.subr.mxu0 0.0
    %109 = vmatpush1.xpose.msra.mxu0 0.0
    %110 = vmatprep.subr.mxu0 0.0
    %111 = vmatpush1.xpose.msra.mxu0 0.0
    %112 = vmatprep.subr.mxu0 0.0
    %113 = vmatpush1.xpose.msra.mxu0 0.0
    %114 = vmatprep.subr.mxu0 0.0
    %115 = vmatpush1.xpose.msra.mxu0 0.0
    %116 = vmatprep.subr.mxu0 0.0
    %117 = vmatpush1.xpose.msra.mxu0 0.0
    %118 = vmatprep.subr.mxu0 0.0
    %119 = vmatpush1.xpose.msra.mxu0 0.0
    %120 = vmatprep.subr.mxu0 0.0
    %121 = vmatpush1.xpose.msra.mxu0 0.0
    %122 = vmatprep.subr.mxu0 0.0
    %123 = vmatpush1.xpose.msra.mxu0 0.0
    %124 = vmatprep.subr.mxu0 0.0
    %125 = vmatpush1.xpose.msra.mxu0 0.0
    %126 = vmatprep.subr.mxu0 0.0
    %127 = vmatpush1.xpose.msra.mxu0 0.0
    %128 = vmatprep.subr.mxu0 0.0
    %129 = vmatpush1.xpose.msra.mxu0 0.0
    %130 = vmatprep.subr.mxu0 0.0
    %131 = vmatpush1.xpose.msra.mxu0 0.0
    %132 = vmatprep.subr.mxu0 0.0
    %133 = vmatpush1.xpose.msra.mxu0 0.0
    %134 = vmatprep.subr.mxu0 0.0
    %135 = vmatpush1.xpose.msra.mxu0 0.0
    %136 = vmatprep.subr.mxu0 0.0
    %137 = vmatpush1.xpose.msra.mxu0 0.0
    %138 = vmatprep.subr.mxu0 0.0
    %139 = vmatpush1.xpose.msra.mxu0 0.0
    %140 = vmatprep.mubr.f32.mxu0 0.0
    %v141 = vand.u32 %v70, 4294901760
    %v142 = vsub.f32 %v70, %v141
    %v143 = vand.u32 %v142, 4294901760
    %v144 = vsub.f32 %v142, %v143
    %v145 = vand.u32 %v144, 4294901760
    %146 = vmatmul.mubr.f32.gmra.mrb[0].mxu0 %v145
    %v147 = vpop.f32.mrb[0].mxu0
    %v148 = vadd.f32 0.0, %v147
    %v149 = vpop.f32.mrb[0].mxu0
    %150 = vdwg.mxu0
    %151 = vmatprep.subr.mxu0 0.0
    %v152 = vand.u32 %v73, 4294901760
    %v153 = vsub.f32 %v73, %v152
    %v154 = vand.u32 %v153, 4294901760
    %v155 = vsub.f32 %v153, %v154
    %v156 = vand.u32 %v155, 4294901760
    %157 = vmatpush1.xpose.msra.mxu0 %v156
    %158 = vmatprep.subr.mxu0 0.0
    %159 = vmatpush1.xpose.msra.mxu0 0.0
    %160 = vmatprep.subr.mxu0 0.0
    %161 = vmatpush1.xpose.msra.mxu0 0.0
    %162 = vmatprep.subr.mxu0 0.0
    %163 = vmatpush1.xpose.msra.mxu0 0.0
    %164 = vmatprep.subr.mxu0 0.0
    %165 = vmatpush1.xpose.msra.mxu0 0.0
    %166 = vmatprep.subr.mxu0 0.0
    %167 = vmatpush1.xpose.msra.mxu0 0.0
    %168 = vmatprep.subr.mxu0 0.0
    %169 = vmatpush1.xpose.msra.mxu0 0.0
    %170 = vmatprep.subr.mxu0 0.0
    %171 = vmatpush1.xpose.msra.mxu0 0.0
    %172 = vmatprep.subr.mxu0 0.0
    %173 = vmatpush1.xpose.msra.mxu0 0.0
    %174 = vmatprep.subr.mxu0 0.0
    %175 = vmatpush1.xpose.msra.mxu0 0.0
    %176 = vmatprep.subr.mxu0 0.0
    %177 = vmatpush1.xpose.msra.mxu0 0.0
    %178 = vmatprep.subr.mxu0 0.0
    %179 = vmatpush1.xpose.msra.mxu0 0.0
    %180 = vmatprep.subr.mxu0 0.0
    %181 = vmatpush1.xpose.msra.mxu0 0.0
    %182 = vmatprep.subr.mxu0 0.0
    %183 = vmatpush1.xpose.msra.mxu0 0.0
    %184 = vmatprep.subr.mxu0 0.0
    %185 = vmatpush1.xpose.msra.mxu0 0.0
    %186 = vmatprep.subr.mxu0 0.0
    %187 = vmatpush1.xpose.msra.mxu0 0.0
    %188 = vmatprep.subr.mxu0 0.0
    %189 = vmatpush1.xpose.msra.mxu0 0.0
    %190 = vmatprep.subr.mxu0 0.0
    %191 = vmatpush1.xpose.msra.mxu0 0.0
    %192 = vmatprep.subr.mxu0 0.0
    %193 = vmatpush1.xpose.msra.mxu0 0.0
    %194 = vmatprep.subr.mxu0 0.0
    %195 = vmatpush1.xpose.msra.mxu0 0.0
    %196 = vmatprep.subr.mxu0 0.0
    %197 = vmatpush1.xpose.msra.mxu0 0.0
    %198 = vmatprep.subr.mxu0 0.0
    %199 = vmatpush1.xpose.msra.mxu0 0.0
    %200 = vmatprep.subr.mxu0 0.0
    %201 = vmatpush1.xpose.msra.mxu0 0.0
    %202 = vmatprep.subr.mxu0 0.0
    %203 = vmatpush1.xpose.msra.mxu0 0.0
    %204 = vmatprep.subr.mxu0 0.0
    %205 = vmatpush1.xpose.msra.mxu0 0.0
    %206 = vmatprep.subr.mxu0 0.0
    %207 = vmatpush1.xpose.msra.mxu0 0.0
    %208 = vmatprep.subr.mxu0 0.0
    %209 = vmatpush1.xpose.msra.mxu0 0.0
    %210 = vmatprep.subr.mxu0 0.0
    %211 = vmatpush1.xpose.msra.mxu0 0.0
    %212 = vmatprep.subr.mxu0 0.0
    %213 = vmatpush1.xpose.msra.mxu0 0.0
    %214 = vmatprep.subr.mxu0 0.0
    %215 = vmatpush1.xpose.msra.mxu0 0.0
    %216 = vmatprep.subr.mxu0 0.0
    %217 = vmatpush1.xpose.msra.mxu0 0.0
    %218 = vmatprep.subr.mxu0 0.0
    %219 = vmatpush1.xpose.msra.mxu0 0.0
    %220 = vmatprep.mubr.f32.mxu0 0.0
    %v221 = vand.u32 %v70, 4294901760
    %222 = vmatmul.mubr.f32.gmra.mrb[0].mxu0 %v221
    %v223 = vpop.f32.mrb[0].mxu0
    %v224 = vadd.f32 %v148, %v223
    %v225 = vpop.f32.mrb[0].mxu0
    %226 = vdwg.mxu0
    %227 = vmatprep.subr.mxu0 0.0
    %v228 = vand.u32 %v73, 4294901760
    %v229 = vsub.f32 %v73, %v228
    %230 = vmatpush1.xpose.msra.mxu0 %v229
    %231 = vmatprep.subr.mxu0 0.0
    %232 = vmatpush1.xpose.msra.mxu0 0.0
    %233 = vmatprep.subr.mxu0 0.0
    %234 = vmatpush1.xpose.msra.mxu0 0.0
    %235 = vmatprep.subr.mxu0 0.0
    %236 = vmatpush1.xpose.msra.mxu0 0.0
    %237 = vmatprep.subr.mxu0 0.0
    %238 = vmatpush1.xpose.msra.mxu0 0.0
    %239 = vmatprep.subr.mxu0 0.0
    %240 = vmatpush1.xpose.msra.mxu0 0.0
    %241 = vmatprep.subr.mxu0 0.0
    %242 = vmatpush1.xpose.msra.mxu0 0.0
    %243 = vmatprep.subr.mxu0 0.0
    %244 = vmatpush1.xpose.msra.mxu0 0.0
    %245 = vmatprep.subr.mxu0 0.0
    %246 = vmatpush1.xpose.msra.mxu0 0.0
    %247 = vmatprep.subr.mxu0 0.0
    %248 = vmatpush1.xpose.msra.mxu0 0.0
    %249 = vmatprep.subr.mxu0 0.0
    %250 = vmatpush1.xpose.msra.mxu0 0.0
    %251 = vmatprep.subr.mxu0 0.0
    %252 = vmatpush1.xpose.msra.mxu0 0.0
    %253 = vmatprep.subr.mxu0 0.0
    %254 = vmatpush1.xpose.msra.mxu0 0.0
    %255 = vmatprep.subr.mxu0 0.0
    %256 = vmatpush1.xpose.msra.mxu0 0.0
    %257 = vmatprep.subr.mxu0 0.0
    %258 = vmatpush1.xpose.msra.mxu0 0.0
    %259 = vmatprep.subr.mxu0 0.0
    %260 = vmatpush1.xpose.msra.mxu0 0.0
    %261 = vmatprep.subr.mxu0 0.0
    %262 = vmatpush1.xpose.msra.mxu0 0.0
    %263 = vmatprep.subr.mxu0 0.0
    %264 = vmatpush1.xpose.msra.mxu0 0.0
    %265 = vmatprep.subr.mxu0 0.0
    %266 = vmatpush1.xpose.msra.mxu0 0.0
    %267 = vmatprep.subr.mxu0 0.0
    %268 = vmatpush1.xpose.msra.mxu0 0.0
    %269 = vmatprep.subr.mxu0 0.0
    %270 = vmatpush1.xpose.msra.mxu0 0.0
    %271 = vmatprep.subr.mxu0 0.0
    %272 = vmatpush1.xpose.msra.mxu0 0.0
    %273 = vmatprep.subr.mxu0 0.0
    %274 = vmatpush1.xpose.msra.mxu0 0.0
    %275 = vmatprep.subr.mxu0 0.0
    %276 = vmatpush1.xpose.msra.mxu0 0.0
    %277 = vmatprep.subr.mxu0 0.0
    %278 = vmatpush1.xpose.msra.mxu0 0.0
    %279 = vmatprep.subr.mxu0 0.0
    %280 = vmatpush1.xpose.msra.mxu0 0.0
    %281 = vmatprep.subr.mxu0 0.0
    %282 = vmatpush1.xpose.msra.mxu0 0.0
    %283 = vmatprep.subr.mxu0 0.0
    %284 = vmatpush1.xpose.msra.mxu0 0.0
    %285 = vmatprep.subr.mxu0 0.0
    %286 = vmatpush1.xpose.msra.mxu0 0.0
    %287 = vmatprep.subr.mxu0 0.0
    %288 = vmatpush1.xpose.msra.mxu0 0.0
    %289 = vmatprep.subr.mxu0 0.0
    %290 = vmatpush1.xpose.msra.mxu0 0.0
    %291 = vmatprep.subr.mxu0 0.0
    %292 = vmatpush1.xpose.msra.mxu0 0.0
    %293 = vmatprep.mubr.f32.mxu0 0.0
    %v294 = vand.u32 %v70, 4294901760
    %v295 = vsub.f32 %v70, %v294
    %296 = vmatmul.mubr.f32.gmra.mrb[0].mxu0 %v295
    %v297 = vpop.f32.mrb[0].mxu0
    %v298 = vadd.f32 %v224, %v297
    %v299 = vpop.f32.mrb[0].mxu0
    %300 = vdwg.mxu0
    %301 = vmatprep.subr.mxu0 0.0
    %v302 = vand.u32 %v73, 4294901760
    %303 = vmatpush1.xpose.msra.mxu0 %v302
    %304 = vmatprep.subr.mxu0 0.0
    %305 = vmatpush1.xpose.msra.mxu0 0.0
    %306 = vmatprep.subr.mxu0 0.0
    %307 = vmatpush1.xpose.msra.mxu0 0.0
    %308 = vmatprep.subr.mxu0 0.0
    %309 = vmatpush1.xpose.msra.mxu0 0.0
    %310 = vmatprep.subr.mxu0 0.0
    %311 = vmatpush1.xpose.msra.mxu0 0.0
    %312 = vmatprep.subr.mxu0 0.0
    %313 = vmatpush1.xpose.msra.mxu0 0.0
    %314 = vmatprep.subr.mxu0 0.0
    %315 = vmatpush1.xpose.msra.mxu0 0.0
    %316 = vmatprep.subr.mxu0 0.0
    %317 = vmatpush1.xpose.msra.mxu0 0.0
    %318 = vmatprep.subr.mxu0 0.0
    %319 = vmatpush1.xpose.msra.mxu0 0.0
    %320 = vmatprep.subr.mxu0 0.0
    %321 = vmatpush1.xpose.msra.mxu0 0.0
    %322 = vmatprep.subr.mxu0 0.0
    %323 = vmatpush1.xpose.msra.mxu0 0.0
    %324 = vmatprep.subr.mxu0 0.0
    %325 = vmatpush1.xpose.msra.mxu0 0.0
    %326 = vmatprep.subr.mxu0 0.0
    %327 = vmatpush1.xpose.msra.mxu0 0.0
    %328 = vmatprep.subr.mxu0 0.0
    %329 = vmatpush1.xpose.msra.mxu0 0.0
    %330 = vmatprep.subr.mxu0 0.0
    %331 = vmatpush1.xpose.msra.mxu0 0.0
    %332 = vmatprep.subr.mxu0 0.0
    %333 = vmatpush1.xpose.msra.mxu0 0.0
    %334 = vmatprep.subr.mxu0 0.0
    %335 = vmatpush1.xpose.msra.mxu0 0.0
    %336 = vmatprep.subr.mxu0 0.0
    %337 = vmatpush1.xpose.msra.mxu0 0.0
    %338 = vmatprep.subr.mxu0 0.0
    %339 = vmatpush1.xpose.msra.mxu0 0.0
    %340 = vmatprep.subr.mxu0 0.0
    %341 = vmatpush1.xpose.msra.mxu0 0.0
    %342 = vmatprep.subr.mxu0 0.0
    %343 = vmatpush1.xpose.msra.mxu0 0.0
    %344 = vmatprep.subr.mxu0 0.0
    %345 = vmatpush1.xpose.msra.mxu0 0.0
    %346 = vmatprep.subr.mxu0 0.0
    %347 = vmatpush1.xpose.msra.mxu0 0.0
    %348 = vmatprep.subr.mxu0 0.0
    %349 = vmatpush1.xpose.msra.mxu0 0.0
    %350 = vmatprep.subr.mxu0 0.0
    %351 = vmatpush1.xpose.msra.mxu0 0.0
    %352 = vmatprep.subr.mxu0 0.0
    %353 = vmatpush1.xpose.msra.mxu0 0.0
    %354 = vmatprep.subr.mxu0 0.0
    %355 = vmatpush1.xpose.msra.mxu0 0.0
    %356 = vmatprep.subr.mxu0 0.0
    %357 = vmatpush1.xpose.msra.mxu0 0.0
    %358 = vmatprep.subr.mxu0 0.0
    %359 = vmatpush1.xpose.msra.mxu0 0.0
    %360 = vmatprep.subr.mxu0 0.0
    %361 = vmatpush1.xpose.msra.mxu0 0.0
    %362 = vmatprep.subr.mxu0 0.0
    %363 = vmatpush1.xpose.msra.mxu0 0.0
    %364 = vmatprep.subr.mxu0 0.0
    %365 = vmatpush1.xpose.msra.mxu0 0.0
    %366 = vmatprep.mubr.f32.mxu0 0.0
    %v367 = vand.u32 %v70, 4294901760
    %v368 = vsub.f32 %v70, %v367
    %v369 = vand.u32 %v368, 4294901760
    %370 = vmatmul.mubr.f32.gmra.mrb[0].mxu0 %v369
    %v371 = vpop.f32.mrb[0].mxu0
    %v372 = vadd.f32 %v298, %v371
    %v373 = vpop.f32.mrb[0].mxu0
    %374 = vdwg.mxu0
    %375 = vmatprep.subr.mxu0 0.0
    %v376 = vand.u32 %v73, 4294901760
    %v377 = vsub.f32 %v73, %v376
    %v378 = vand.u32 %v377, 4294901760
    %379 = vmatpush1.xpose.msra.mxu0 %v378
    %380 = vmatprep.subr.mxu0 0.0
    %381 = vmatpush1.xpose.msra.mxu0 0.0
    %382 = vmatprep.subr.mxu0 0.0
    %383 = vmatpush1.xpose.msra.mxu0 0.0
    %384 = vmatprep.subr.mxu0 0.0
    %385 = vmatpush1.xpose.msra.mxu0 0.0
    %386 = vmatprep.subr.mxu0 0.0
    %387 = vmatpush1.xpose.msra.mxu0 0.0
    %388 = vmatprep.subr.mxu0 0.0
    %389 = vmatpush1.xpose.msra.mxu0 0.0
    %390 = vmatprep.subr.mxu0 0.0
    %391 = vmatpush1.xpose.msra.mxu0 0.0
    %392 = vmatprep.subr.mxu0 0.0
    %393 = vmatpush1.xpose.msra.mxu0 0.0
    %394 = vmatprep.subr.mxu0 0.0
    %395 = vmatpush1.xpose.msra.mxu0 0.0
    %396 = vmatprep.subr.mxu0 0.0
    %397 = vmatpush1.xpose.msra.mxu0 0.0
    %398 = vmatprep.subr.mxu0 0.0
    %399 = vmatpush1.xpose.msra.mxu0 0.0
    %400 = vmatprep.subr.mxu0 0.0
    %401 = vmatpush1.xpose.msra.mxu0 0.0
    %402 = vmatprep.subr.mxu0 0.0
    %403 = vmatpush1.xpose.msra.mxu0 0.0
    %404 = vmatprep.subr.mxu0 0.0
    %405 = vmatpush1.xpose.msra.mxu0 0.0
    %406 = vmatprep.subr.mxu0 0.0
    %407 = vmatpush1.xpose.msra.mxu0 0.0
    %408 = vmatprep.subr.mxu0 0.0
    %409 = vmatpush1.xpose.msra.mxu0 0.0
    %410 = vmatprep.subr.mxu0 0.0
    %411 = vmatpush1.xpose.msra.mxu0 0.0
    %412 = vmatprep.subr.mxu0 0.0
    %413 = vmatpush1.xpose.msra.mxu0 0.0
    %414 = vmatprep.subr.mxu0 0.0
    %415 = vmatpush1.xpose.msra.mxu0 0.0
    %416 = vmatprep.subr.mxu0 0.0
    %417 = vmatpush1.xpose.msra.mxu0 0.0
    %418 = vmatprep.subr.mxu0 0.0
    %419 = vmatpush1.xpose.msra.mxu0 0.0
    %420 = vmatprep.subr.mxu0 0.0
    %421 = vmatpush1.xpose.msra.mxu0 0.0
    %422 = vmatprep.subr.mxu0 0.0
    %423 = vmatpush1.xpose.msra.mxu0 0.0
    %424 = vmatprep.subr.mxu0 0.0
    %425 = vmatpush1.xpose.msra.mxu0 0.0
    %426 = vmatprep.subr.mxu0 0.0
    %427 = vmatpush1.xpose.msra.mxu0 0.0
    %428 = vmatprep.subr.mxu0 0.0
    %429 = vmatpush1.xpose.msra.mxu0 0.0
    %430 = vmatprep.subr.mxu0 0.0
    %431 = vmatpush1.xpose.msra.mxu0 0.0
    %432 = vmatprep.subr.mxu0 0.0
    %433 = vmatpush1.xpose.msra.mxu0 0.0
    %434 = vmatprep.subr.mxu0 0.0
    %435 = vmatpush1.xpose.msra.mxu0 0.0
    %436 = vmatprep.subr.mxu0 0.0
    %437 = vmatpush1.xpose.msra.mxu0 0.0
    %438 = vmatprep.subr.mxu0 0.0
    %439 = vmatpush1.xpose.msra.mxu0 0.0
    %440 = vmatprep.subr.mxu0 0.0
    %441 = vmatpush1.xpose.msra.mxu0 0.0
    %442 = vmatprep.mubr.f32.mxu0 0.0
    %v443 = vand.u32 %v70, 4294901760
    %444 = vmatmul.mubr.f32.gmra.mrb[0].mxu0 %v443
    %v445 = vpop.f32.mrb[0].mxu0
    %v446 = vadd.f32 %v372, %v445
    %v447 = vpop.f32.mrb[0].mxu0
    %448 = vdwg.mxu0
    %449 = vmatprep.subr.mxu0 0.0
    %v450 = vand.u32 %v73, 4294901760
    %451 = vmatpush1.xpose.msra.mxu0 %v450
    %452 = vmatprep.subr.mxu0 0.0
    %453 = vmatpush1.xpose.msra.mxu0 0.0
    %454 = vmatprep.subr.mxu0 0.0
    %455 = vmatpush1.xpose.msra.mxu0 0.0
    %456 = vmatprep.subr.mxu0 0.0
    %457 = vmatpush1.xpose.msra.mxu0 0.0
    %458 = vmatprep.subr.mxu0 0.0
    %459 = vmatpush1.xpose.msra.mxu0 0.0
    %460 = vmatprep.subr.mxu0 0.0
    %461 = vmatpush1.xpose.msra.mxu0 0.0
    %462 = vmatprep.subr.mxu0 0.0
    %463 = vmatpush1.xpose.msra.mxu0 0.0
    %464 = vmatprep.subr.mxu0 0.0
    %465 = vmatpush1.xpose.msra.mxu0 0.0
    %466 = vmatprep.subr.mxu0 0.0
    %467 = vmatpush1.xpose.msra.mxu0 0.0
    %468 = vmatprep.subr.mxu0 0.0
    %469 = vmatpush1.xpose.msra.mxu0 0.0
    %470 = vmatprep.subr.mxu0 0.0
    %471 = vmatpush1.xpose.msra.mxu0 0.0
    %472 = vmatprep.subr.mxu0 0.0
    %473 = vmatpush1.xpose.msra.mxu0 0.0
    %474 = vmatprep.subr.mxu0 0.0
    %475 = vmatpush1.xpose.msra.mxu0 0.0
    %476 = vmatprep.subr.mxu0 0.0
    %477 = vmatpush1.xpose.msra.mxu0 0.0
    %478 = vmatprep.subr.mxu0 0.0
    %479 = vmatpush1.xpose.msra.mxu0 0.0
    %480 = vmatprep.subr.mxu0 0.0
    %481 = vmatpush1.xpose.msra.mxu0 0.0
    %482 = vmatprep.subr.mxu0 0.0
    %483 = vmatpush1.xpose.msra.mxu0 0.0
    %484 = vmatprep.subr.mxu0 0.0
    %485 = vmatpush1.xpose.msra.mxu0 0.0
    %486 = vmatprep.subr.mxu0 0.0
    %487 = vmatpush1.xpose.msra.mxu0 0.0
    %488 = vmatprep.subr.mxu0 0.0
    %489 = vmatpush1.xpose.msra.mxu0 0.0
    %490 = vmatprep.subr.mxu0 0.0
    %491 = vmatpush1.xpose.msra.mxu0 0.0
    %492 = vmatprep.subr.mxu0 0.0
    %493 = vmatpush1.xpose.msra.mxu0 0.0
    %494 = vmatprep.subr.mxu0 0.0
    %495 = vmatpush1.xpose.msra.mxu0 0.0
    %496 = vmatprep.subr.mxu0 0.0
    %497 = vmatpush1.xpose.msra.mxu0 0.0
    %498 = vmatprep.subr.mxu0 0.0
    %499 = vmatpush1.xpose.msra.mxu0 0.0
    %500 = vmatprep.subr.mxu0 0.0
    %501 = vmatpush1.xpose.msra.mxu0 0.0
    %502 = vmatprep.subr.mxu0 0.0
    %503 = vmatpush1.xpose.msra.mxu0 0.0
    %504 = vmatprep.subr.mxu0 0.0
    %505 = vmatpush1.xpose.msra.mxu0 0.0
    %506 = vmatprep.subr.mxu0 0.0
    %507 = vmatpush1.xpose.msra.mxu0 0.0
    %508 = vmatprep.subr.mxu0 0.0
    %509 = vmatpush1.xpose.msra.mxu0 0.0
    %510 = vmatprep.subr.mxu0 0.0
    %511 = vmatpush1.xpose.msra.mxu0 0.0
    %512 = vmatprep.subr.mxu0 0.0
    %513 = vmatpush1.xpose.msra.mxu0 0.0
    %514 = vmatprep.mubr.f32.mxu0 0.0
    %v515 = vand.u32 %v70, 4294901760
    %516 = vmatmul.mubr.f32.gmra.mrb[0].mxu0 %v515
    %v517 = vpop.f32.mrb[0].mxu0
    %v518 = vadd.f32 %v446, %v517
    %v519 = vpop.f32.mrb[0].mxu0
    %520 = vdwg.mxu0
    %v522 = vsel %vm68, %v58, 0
    %524 = vmatprep.subr.mxu0 0.0
    %v525 = vand.u32 %v522, 4294901760
    %526 = vmatpush1.xpose.msra.mxu0 %v525
    %527 = vmatprep.subr.mxu0 0.0
    %528 = vmatpush1.xpose.msra.mxu0 0.0
    %529 = vmatprep.subr.mxu0 0.0
    %530 = vmatpush1.xpose.msra.mxu0 0.0
    %531 = vmatprep.subr.mxu0 0.0
    %532 = vmatpush1.xpose.msra.mxu0 0.0
    %533 = vmatprep.subr.mxu0 0.0
    %534 = vmatpush1.xpose.msra.mxu0 0.0
    %535 = vmatprep.subr.mxu0 0.0
    %536 = vmatpush1.xpose.msra.mxu0 0.0
    %537 = vmatprep.subr.mxu0 0.0
    %538 = vmatpush1.xpose.msra.mxu0 0.0
    %539 = vmatprep.subr.mxu0 0.0
    %540 = vmatpush1.xpose.msra.mxu0 0.0
    %541 = vmatprep.subr.mxu0 0.0
    %542 = vmatpush1.xpose.msra.mxu0 0.0
    %543 = vmatprep.subr.mxu0 0.0
    %544 = vmatpush1.xpose.msra.mxu0 0.0
    %545 = vmatprep.subr.mxu0 0.0
    %546 = vmatpush1.xpose.msra.mxu0 0.0
    %547 = vmatprep.subr.mxu0 0.0
    %548 = vmatpush1.xpose.msra.mxu0 0.0
    %549 = vmatprep.subr.mxu0 0.0
    %550 = vmatpush1.xpose.msra.mxu0 0.0
    %551 = vmatprep.subr.mxu0 0.0
    %552 = vmatpush1.xpose.msra.mxu0 0.0
    %553 = vmatprep.subr.mxu0 0.0
    %554 = vmatpush1.xpose.msra.mxu0 0.0
    %555 = vmatprep.subr.mxu0 0.0
    %556 = vmatpush1.xpose.msra.mxu0 0.0
    %557 = vmatprep.subr.mxu0 0.0
    %558 = vmatpush1.xpose.msra.mxu0 0.0
    %559 = vmatprep.subr.mxu0 0.0
    %560 = vmatpush1.xpose.msra.mxu0 0.0
    %561 = vmatprep.subr.mxu0 0.0
    %562 = vmatpush1.xpose.msra.mxu0 0.0
    %563 = vmatprep.subr.mxu0 0.0
    %564 = vmatpush1.xpose.msra.mxu0 0.0
    %565 = vmatprep.subr.mxu0 0.0
    %566 = vmatpush1.xpose.msra.mxu0 0.0
    %567 = vmatprep.subr.mxu0 0.0
    %568 = vmatpush1.xpose.msra.mxu0 0.0
    %569 = vmatprep.subr.mxu0 0.0
    %570 = vmatpush1.xpose.msra.mxu0 0.0
    %571 = vmatprep.subr.mxu0 0.0
    %572 = vmatpush1.xpose.msra.mxu0 0.0
    %573 = vmatprep.subr.mxu0 0.0
    %574 = vmatpush1.xpose.msra.mxu0 0.0
    %575 = vmatprep.subr.mxu0 0.0
    %576 = vmatpush1.xpose.msra.mxu0 0.0
    %577 = vmatprep.subr.mxu0 0.0
    %578 = vmatpush1.xpose.msra.mxu0 0.0
    %579 = vmatprep.subr.mxu0 0.0
    %580 = vmatpush1.xpose.msra.mxu0 0.0
    %581 = vmatprep.subr.mxu0 0.0
    %582 = vmatpush1.xpose.msra.mxu0 0.0
    %583 = vmatprep.subr.mxu0 0.0
    %584 = vmatpush1.xpose.msra.mxu0 0.0
    %585 = vmatprep.subr.mxu0 0.0
    %586 = vmatpush1.xpose.msra.mxu0 0.0
    %587 = vmatprep.subr.mxu0 0.0
    %588 = vmatpush1.xpose.msra.mxu0 0.0
    %589 = vmatprep.mubr.f32.mxu0 0.0
    %v590 = vand.u32 %v70, 4294901760
    %v591 = vsub.f32 %v70, %v590
    %v592 = vand.u32 %v591, 4294901760
    %v593 = vsub.f32 %v591, %v592
    %v594 = vand.u32 %v593, 4294901760
    %595 = vmatmul.mubr.f32.gmra.mrb[0].mxu0 %v594
    %v596 = vpop.f32.mrb[0].mxu0
    %v597 = vadd.f32 0.0, %v596
    %v598 = vpop.f32.mrb[0].mxu0
    %599 = vdwg.mxu0
    %600 = vmatprep.subr.mxu0 0.0
    %v601 = vand.u32 %v522, 4294901760
    %v602 = vsub.f32 %v522, %v601
    %v603 = vand.u32 %v602, 4294901760
    %v604 = vsub.f32 %v602, %v603
    %v605 = vand.u32 %v604, 4294901760
    %606 = vmatpush1.xpose.msra.mxu0 %v605
    %607 = vmatprep.subr.mxu0 0.0
    %608 = vmatpush1.xpose.msra.mxu0 0.0
    %609 = vmatprep.subr.mxu0 0.0
    %610 = vmatpush1.xpose.msra.mxu0 0.0
    %611 = vmatprep.subr.mxu0 0.0
    %612 = vmatpush1.xpose.msra.mxu0 0.0
    %613 = vmatprep.subr.mxu0 0.0
    %614 = vmatpush1.xpose.msra.mxu0 0.0
    %615 = vmatprep.subr.mxu0 0.0
    %616 = vmatpush1.xpose.msra.mxu0 0.0
    %617 = vmatprep.subr.mxu0 0.0
    %618 = vmatpush1.xpose.msra.mxu0 0.0
    %619 = vmatprep.subr.mxu0 0.0
    %620 = vmatpush1.xpose.msra.mxu0 0.0
    %621 = vmatprep.subr.mxu0 0.0
    %622 = vmatpush1.xpose.msra.mxu0 0.0
    %623 = vmatprep.subr.mxu0 0.0
    %624 = vmatpush1.xpose.msra.mxu0 0.0
    %625 = vmatprep.subr.mxu0 0.0
    %626 = vmatpush1.xpose.msra.mxu0 0.0
    %627 = vmatprep.subr.mxu0 0.0
    %628 = vmatpush1.xpose.msra.mxu0 0.0
    %629 = vmatprep.subr.mxu0 0.0
    %630 = vmatpush1.xpose.msra.mxu0 0.0
    %631 = vmatprep.subr.mxu0 0.0
    %632 = vmatpush1.xpose.msra.mxu0 0.0
    %633 = vmatprep.subr.mxu0 0.0
    %634 = vmatpush1.xpose.msra.mxu0 0.0
    %635 = vmatprep.subr.mxu0 0.0
    %636 = vmatpush1.xpose.msra.mxu0 0.0
    %637 = vmatprep.subr.mxu0 0.0
    %638 = vmatpush1.xpose.msra.mxu0 0.0
    %639 = vmatprep.subr.mxu0 0.0
    %640 = vmatpush1.xpose.msra.mxu0 0.0
    %641 = vmatprep.subr.mxu0 0.0
    %642 = vmatpush1.xpose.msra.mxu0 0.0
    %643 = vmatprep.subr.mxu0 0.0
    %644 = vmatpush1.xpose.msra.mxu0 0.0
    %645 = vmatprep.subr.mxu0 0.0
    %646 = vmatpush1.xpose.msra.mxu0 0.0
    %647 = vmatprep.subr.mxu0 0.0
    %648 = vmatpush1.xpose.msra.mxu0 0.0
    %649 = vmatprep.subr.mxu0 0.0
    %650 = vmatpush1.xpose.msra.mxu0 0.0
    %651 = vmatprep.subr.mxu0 0.0
    %652 = vmatpush1.xpose.msra.mxu0 0.0
    %653 = vmatprep.subr.mxu0 0.0
    %654 = vmatpush1.xpose.msra.mxu0 0.0
    %655 = vmatprep.subr.mxu0 0.0
    %656 = vmatpush1.xpose.msra.mxu0 0.0
    %657 = vmatprep.subr.mxu0 0.0
    %658 = vmatpush1.xpose.msra.mxu0 0.0
    %659 = vmatprep.subr.mxu0 0.0
    %660 = vmatpush1.xpose.msra.mxu0 0.0
    %661 = vmatprep.subr.mxu0 0.0
    %662 = vmatpush1.xpose.msra.mxu0 0.0
    %663 = vmatprep.subr.mxu0 0.0
    %664 = vmatpush1.xpose.msra.mxu0 0.0
    %665 = vmatprep.subr.mxu0 0.0
    %666 = vmatpush1.xpose.msra.mxu0 0.0
    %667 = vmatprep.subr.mxu0 0.0
    %668 = vmatpush1.xpose.msra.mxu0 0.0
    %669 = vmatprep.mubr.f32.mxu0 0.0
    %v670 = vand.u32 %v70, 4294901760
    %671 = vmatmul.mubr.f32.gmra.mrb[0].mxu0 %v670
    %v672 = vpop.f32.mrb[0].mxu0
    %v673 = vadd.f32 %v597, %v672
    %v674 = vpop.f32.mrb[0].mxu0
    %675 = vdwg.mxu0
    %676 = vmatprep.subr.mxu0 0.0
    %v677 = vand.u32 %v522, 4294901760
    %v678 = vsub.f32 %v522, %v677
    %679 = vmatpush1.xpose.msra.mxu0 %v678
    %680 = vmatprep.subr.mxu0 0.0
    %681 = vmatpush1.xpose.msra.mxu0 0.0
    %682 = vmatprep.subr.mxu0 0.0
    %683 = vmatpush1.xpose.msra.mxu0 0.0
    %684 = vmatprep.subr.mxu0 0.0
    %685 = vmatpush1.xpose.msra.mxu0 0.0
    %686 = vmatprep.subr.mxu0 0.0
    %687 = vmatpush1.xpose.msra.mxu0 0.0
    %688 = vmatprep.subr.mxu0 0.0
    %689 = vmatpush1.xpose.msra.mxu0 0.0
    %690 = vmatprep.subr.mxu0 0.0
    %691 = vmatpush1.xpose.msra.mxu0 0.0
    %692 = vmatprep.subr.mxu0 0.0
    %693 = vmatpush1.xpose.msra.mxu0 0.0
    %694 = vmatprep.subr.mxu0 0.0
    %695 = vmatpush1.xpose.msra.mxu0 0.0
    %696 = vmatprep.subr.mxu0 0.0
    %697 = vmatpush1.xpose.msra.mxu0 0.0
    %698 = vmatprep.subr.mxu0 0.0
    %699 = vmatpush1.xpose.msra.mxu0 0.0
    %700 = vmatprep.subr.mxu0 0.0
    %701 = vmatpush1.xpose.msra.mxu0 0.0
    %702 = vmatprep.subr.mxu0 0.0
    %703 = vmatpush1.xpose.msra.mxu0 0.0
    %704 = vmatprep.subr.mxu0 0.0
    %705 = vmatpush1.xpose.msra.mxu0 0.0
    %706 = vmatprep.subr.mxu0 0.0
    %707 = vmatpush1.xpose.msra.mxu0 0.0
    %708 = vmatprep.subr.mxu0 0.0
    %709 = vmatpush1.xpose.msra.mxu0 0.0
    %710 = vmatprep.subr.mxu0 0.0
    %711 = vmatpush1.xpose.msra.mxu0 0.0
    %712 = vmatprep.subr.mxu0 0.0
    %713 = vmatpush1.xpose.msra.mxu0 0.0
    %714 = vmatprep.subr.mxu0 0.0
    %715 = vmatpush1.xpose.msra.mxu0 0.0
    %716 = vmatprep.subr.mxu0 0.0
    %717 = vmatpush1.xpose.msra.mxu0 0.0
    %718 = vmatprep.subr.mxu0 0.0
    %719 = vmatpush1.xpose.msra.mxu0 0.0
    %720 = vmatprep.subr.mxu0 0.0
    %721 = vmatpush1.xpose.msra.mxu0 0.0
    %722 = vmatprep.subr.mxu0 0.0
    %723 = vmatpush1.xpose.msra.mxu0 0.0
    %724 = vmatprep.subr.mxu0 0.0
    %725 = vmatpush1.xpose.msra.mxu0 0.0
    %726 = vmatprep.subr.mxu0 0.0
    %727 = vmatpush1.xpose.msra.mxu0 0.0
    %728 = vmatprep.subr.mxu0 0.0
    %729 = vmatpush1.xpose.msra.mxu0 0.0
    %730 = vmatprep.subr.mxu0 0.0
    %731 = vmatpush1.xpose.msra.mxu0 0.0
    %732 = vmatprep.subr.mxu0 0.0
    %733 = vmatpush1.xpose.msra.mxu0 0.0
    %734 = vmatprep.subr.mxu0 0.0
    %735 = vmatpush1.xpose.msra.mxu0 0.0
    %736 = vmatprep.subr.mxu0 0.0
    %737 = vmatpush1.xpose.msra.mxu0 0.0
    %738 = vmatprep.subr.mxu0 0.0
    %739 = vmatpush1.xpose.msra.mxu0 0.0
    %740 = vmatprep.subr.mxu0 0.0
    %741 = vmatpush1.xpose.msra.mxu0 0.0
    %742 = vmatprep.mubr.f32.mxu0 0.0
    %v743 = vand.u32 %v70, 4294901760
    %v744 = vsub.f32 %v70, %v743
    %745 = vmatmul.mubr.f32.gmra.mrb[0].mxu0 %v744
    %v746 = vpop.f32.mrb[0].mxu0
    %v747 = vadd.f32 %v673, %v746
    %v748 = vpop.f32.mrb[0].mxu0
    %749 = vdwg.mxu0
    %750 = vmatprep.subr.mxu0 0.0
    %v751 = vand.u32 %v522, 4294901760
    %752 = vmatpush1.xpose.msra.mxu0 %v751
    %753 = vmatprep.subr.mxu0 0.0
    %754 = vmatpush1.xpose.msra.mxu0 0.0
    %755 = vmatprep.subr.mxu0 0.0
    %756 = vmatpush1.xpose.msra.mxu0 0.0
    %757 = vmatprep.subr.mxu0 0.0
    %758 = vmatpush1.xpose.msra.mxu0 0.0
    %759 = vmatprep.subr.mxu0 0.0
    %760 = vmatpush1.xpose.msra.mxu0 0.0
    %761 = vmatprep.subr.mxu0 0.0
    %762 = vmatpush1.xpose.msra.mxu0 0.0
    %763 = vmatprep.subr.mxu0 0.0
    %764 = vmatpush1.xpose.msra.mxu0 0.0
    %765 = vmatprep.subr.mxu0 0.0
    %766 = vmatpush1.xpose.msra.mxu0 0.0
    %767 = vmatprep.subr.mxu0 0.0
    %768 = vmatpush1.xpose.msra.mxu0 0.0
    %769 = vmatprep.subr.mxu0 0.0
    %770 = vmatpush1.xpose.msra.mxu0 0.0
    %771 = vmatprep.subr.mxu0 0.0
    %772 = vmatpush1.xpose.msra.mxu0 0.0
    %773 = vmatprep.subr.mxu0 0.0
    %774 = vmatpush1.xpose.msra.mxu0 0.0
    %775 = vmatprep.subr.mxu0 0.0
    %776 = vmatpush1.xpose.msra.mxu0 0.0
    %777 = vmatprep.subr.mxu0 0.0
    %778 = vmatpush1.xpose.msra.mxu0 0.0
    %779 = vmatprep.subr.mxu0 0.0
    %780 = vmatpush1.xpose.msra.mxu0 0.0
    %781 = vmatprep.subr.mxu0 0.0
    %782 = vmatpush1.xpose.msra.mxu0 0.0
    %783 = vmatprep.subr.mxu0 0.0
    %784 = vmatpush1.xpose.msra.mxu0 0.0
    %785 = vmatprep.subr.mxu0 0.0
    %786 = vmatpush1.xpose.msra.mxu0 0.0
    %787 = vmatprep.subr.mxu0 0.0
    %788 = vmatpush1.xpose.msra.mxu0 0.0
    %789 = vmatprep.subr.mxu0 0.0
    %790 = vmatpush1.xpose.msra.mxu0 0.0
    %791 = vmatprep.subr.mxu0 0.0
    %792 = vmatpush1.xpose.msra.mxu0 0.0
    %793 = vmatprep.subr.mxu0 0.0
    %794 = vmatpush1.xpose.msra.mxu0 0.0
    %795 = vmatprep.subr.mxu0 0.0
    %796 = vmatpush1.xpose.msra.mxu0 0.0
    %797 = vmatprep.subr.mxu0 0.0
    %798 = vmatpush1.xpose.msra.mxu0 0.0
    %799 = vmatprep.subr.mxu0 0.0
    %800 = vmatpush1.xpose.msra.mxu0 0.0
    %801 = vmatprep.subr.mxu0 0.0
    %802 = vmatpush1.xpose.msra.mxu0 0.0
    %803 = vmatprep.subr.mxu0 0.0
    %804 = vmatpush1.xpose.msra.mxu0 0.0
    %805 = vmatprep.subr.mxu0 0.0
    %806 = vmatpush1.xpose.msra.mxu0 0.0
    %807 = vmatprep.subr.mxu0 0.0
    %808 = vmatpush1.xpose.msra.mxu0 0.0
    %809 = vmatprep.subr.mxu0 0.0
    %810 = vmatpush1.xpose.msra.mxu0 0.0
    %811 = vmatprep.subr.mxu0 0.0
    %812 = vmatpush1.xpose.msra.mxu0 0.0
    %813 = vmatprep.subr.mxu0 0.0
    %814 = vmatpush1.xpose.msra.mxu0 0.0
    %815 = vmatprep.mubr.f32.mxu0 0.0
    %v816 = vand.u32 %v70, 4294901760
    %v817 = vsub.f32 %v70, %v816
    %v818 = vand.u32 %v817, 4294901760
    %819 = vmatmul.mubr.f32.gmra.mrb[0].mxu0 %v818
    %v820 = vpop.f32.mrb[0].mxu0
    %v821 = vadd.f32 %v747, %v820
    %v822 = vpop.f32.mrb[0].mxu0
    %823 = vdwg.mxu0
    %824 = vmatprep.subr.mxu0 0.0
    %v825 = vand.u32 %v522, 4294901760
    %v826 = vsub.f32 %v522, %v825
    %v827 = vand.u32 %v826, 4294901760
    %828 = vmatpush1.xpose.msra.mxu0 %v827
    %829 = vmatprep.subr.mxu0 0.0
    %830 = vmatpush1.xpose.msra.mxu0 0.0
    %831 = vmatprep.subr.mxu0 0.0
    %832 = vmatpush1.xpose.msra.mxu0 0.0
    %833 = vmatprep.subr.mxu0 0.0
    %834 = vmatpush1.xpose.msra.mxu0 0.0
    %835 = vmatprep.subr.mxu0 0.0
    %836 = vmatpush1.xpose.msra.mxu0 0.0
    %837 = vmatprep.subr.mxu0 0.0
    %838 = vmatpush1.xpose.msra.mxu0 0.0
    %839 = vmatprep.subr.mxu0 0.0
    %840 = vmatpush1.xpose.msra.mxu0 0.0
    %841 = vmatprep.subr.mxu0 0.0
    %842 = vmatpush1.xpose.msra.mxu0 0.0
    %843 = vmatprep.subr.mxu0 0.0
    %844 = vmatpush1.xpose.msra.mxu0 0.0
    %845 = vmatprep.subr.mxu0 0.0
    %846 = vmatpush1.xpose.msra.mxu0 0.0
    %847 = vmatprep.subr.mxu0 0.0
    %848 = vmatpush1.xpose.msra.mxu0 0.0
    %849 = vmatprep.subr.mxu0 0.0
    %850 = vmatpush1.xpose.msra.mxu0 0.0
    %851 = vmatprep.subr.mxu0 0.0
    %852 = vmatpush1.xpose.msra.mxu0 0.0
    %853 = vmatprep.subr.mxu0 0.0
    %854 = vmatpush1.xpose.msra.mxu0 0.0
    %855 = vmatprep.subr.mxu0 0.0
    %856 = vmatpush1.xpose.msra.mxu0 0.0
    %857 = vmatprep.subr.mxu0 0.0
    %858 = vmatpush1.xpose.msra.mxu0 0.0
    %859 = vmatprep.subr.mxu0 0.0
    %860 = vmatpush1.xpose.msra.mxu0 0.0
    %861 = vmatprep.subr.mxu0 0.0
    %862 = vmatpush1.xpose.msra.mxu0 0.0
    %863 = vmatprep.subr.mxu0 0.0
    %864 = vmatpush1.xpose.msra.mxu0 0.0
    %865 = vmatprep.subr.mxu0 0.0
    %866 = vmatpush1.xpose.msra.mxu0 0.0
    %867 = vmatprep.subr.mxu0 0.0
    %868 = vmatpush1.xpose.msra.mxu0 0.0
    %869 = vmatprep.subr.mxu0 0.0
    %870 = vmatpush1.xpose.msra.mxu0 0.0
    %871 = vmatprep.subr.mxu0 0.0
    %872 = vmatpush1.xpose.msra.mxu0 0.0
    %873 = vmatprep.subr.mxu0 0.0
    %874 = vmatpush1.xpose.msra.mxu0 0.0
    %875 = vmatprep.subr.mxu0 0.0
    %876 = vmatpush1.xpose.msra.mxu0 0.0
    %877 = vmatprep.subr.mxu0 0.0
    %878 = vmatpush1.xpose.msra.mxu0 0.0
    %879 = vmatprep.subr.mxu0 0.0
    %880 = vmatpush1.xpose.msra.mxu0 0.0
    %881 = vmatprep.subr.mxu0 0.0
    %882 = vmatpush1.xpose.msra.mxu0 0.0
    %883 = vmatprep.subr.mxu0 0.0
    %884 = vmatpush1.xpose.msra.mxu0 0.0
    %885 = vmatprep.subr.mxu0 0.0
    %886 = vmatpush1.xpose.msra.mxu0 0.0
    %887 = vmatprep.subr.mxu0 0.0
    %888 = vmatpush1.xpose.msra.mxu0 0.0
    %889 = vmatprep.subr.mxu0 0.0
    %890 = vmatpush1.xpose.msra.mxu0 0.0
    %891 = vmatprep.mubr.f32.mxu0 0.0
    %v892 = vand.u32 %v70, 4294901760
    %893 = vmatmul.mubr.f32.gmra.mrb[0].mxu0 %v892
    %v894 = vpop.f32.mrb[0].mxu0
    %v895 = vadd.f32 %v821, %v894
    %v896 = vpop.f32.mrb[0].mxu0
    %897 = vdwg.mxu0
    %898 = vmatprep.subr.mxu0 0.0
    %v899 = vand.u32 %v522, 4294901760
    %900 = vmatpush1.xpose.msra.mxu0 %v899
    %901 = vmatprep.subr.mxu0 0.0
    %902 = vmatpush1.xpose.msra.mxu0 0.0
    %903 = vmatprep.subr.mxu0 0.0
    %904 = vmatpush1.xpose.msra.mxu0 0.0
    %905 = vmatprep.subr.mxu0 0.0
    %906 = vmatpush1.xpose.msra.mxu0 0.0
    %907 = vmatprep.subr.mxu0 0.0
    %908 = vmatpush1.xpose.msra.mxu0 0.0
    %909 = vmatprep.subr.mxu0 0.0
    %910 = vmatpush1.xpose.msra.mxu0 0.0
    %911 = vmatprep.subr.mxu0 0.0
    %912 = vmatpush1.xpose.msra.mxu0 0.0
    %913 = vmatprep.subr.mxu0 0.0
    %914 = vmatpush1.xpose.msra.mxu0 0.0
    %915 = vmatprep.subr.mxu0 0.0
    %916 = vmatpush1.xpose.msra.mxu0 0.0
    %917 = vmatprep.subr.mxu0 0.0
    %918 = vmatpush1.xpose.msra.mxu0 0.0
    %919 = vmatprep.subr.mxu0 0.0
    %920 = vmatpush1.xpose.msra.mxu0 0.0
    %921 = vmatprep.subr.mxu0 0.0
    %922 = vmatpush1.xpose.msra.mxu0 0.0
    %923 = vmatprep.subr.mxu0 0.0
    %924 = vmatpush1.xpose.msra.mxu0 0.0
    %925 = vmatprep.subr.mxu0 0.0
    %926 = vmatpush1.xpose.msra.mxu0 0.0
    %927 = vmatprep.subr.mxu0 0.0
    %928 = vmatpush1.xpose.msra.mxu0 0.0
    %929 = vmatprep.subr.mxu0 0.0
    %930 = vmatpush1.xpose.msra.mxu0 0.0
    %931 = vmatprep.subr.mxu0 0.0
    %932 = vmatpush1.xpose.msra.mxu0 0.0
    %933 = vmatprep.subr.mxu0 0.0
    %934 = vmatpush1.xpose.msra.mxu0 0.0
    %935 = vmatprep.subr.mxu0 0.0
    %936 = vmatpush1.xpose.msra.mxu0 0.0
    %937 = vmatprep.subr.mxu0 0.0
    %938 = vmatpush1.xpose.msra.mxu0 0.0
    %939 = vmatprep.subr.mxu0 0.0
    %940 = vmatpush1.xpose.msra.mxu0 0.0
    %941 = vmatprep.subr.mxu0 0.0
    %942 = vmatpush1.xpose.msra.mxu0 0.0
    %943 = vmatprep.subr.mxu0 0.0
    %944 = vmatpush1.xpose.msra.mxu0 0.0
    %945 = vmatprep.subr.mxu0 0.0
    %946 = vmatpush1.xpose.msra.mxu0 0.0
    %947 = vmatprep.subr.mxu0 0.0
    %948 = vmatpush1.xpose.msra.mxu0 0.0
    %949 = vmatprep.subr.mxu0 0.0
    %950 = vmatpush1.xpose.msra.mxu0 0.0
    %951 = vmatprep.subr.mxu0 0.0
    %952 = vmatpush1.xpose.msra.mxu0 0.0
    %953 = vmatprep.subr.mxu0 0.0
    %954 = vmatpush1.xpose.msra.mxu0 0.0
    %955 = vmatprep.subr.mxu0 0.0
    %956 = vmatpush1.xpose.msra.mxu0 0.0
    %957 = vmatprep.subr.mxu0 0.0
    %958 = vmatpush1.xpose.msra.mxu0 0.0
    %959 = vmatprep.subr.mxu0 0.0
    %960 = vmatpush1.xpose.msra.mxu0 0.0
    %961 = vmatprep.subr.mxu0 0.0
    %962 = vmatpush1.xpose.msra.mxu0 0.0
    %963 = vmatprep.mubr.f32.mxu0 0.0
    %v964 = vand.u32 %v70, 4294901760
    %965 = vmatmul.mubr.f32.gmra.mrb[0].mxu0 %v964
    %v966 = vpop.f32.mrb[0].mxu0
    %v967 = vadd.f32 %v895, %v966
    %v968 = vpop.f32.mrb[0].mxu0
    %969 = vdwg.mxu0
    %v971 = vsel %vm68, %v59, 0
    %973 = vmatprep.subr.mxu0 0.0
    %v974 = vand.u32 %v971, 4294901760
    %975 = vmatpush1.xpose.msra.mxu0 %v974
    %976 = vmatprep.subr.mxu0 0.0
    %977 = vmatpush1.xpose.msra.mxu0 0.0
    %978 = vmatprep.subr.mxu0 0.0
    %979 = vmatpush1.xpose.msra.mxu0 0.0
    %980 = vmatprep.subr.mxu0 0.0
    %981 = vmatpush1.xpose.msra.mxu0 0.0
    %982 = vmatprep.subr.mxu0 0.0
    %983 = vmatpush1.xpose.msra.mxu0 0.0
    %984 = vmatprep.subr.mxu0 0.0
    %985 = vmatpush1.xpose.msra.mxu0 0.0
    %986 = vmatprep.subr.mxu0 0.0
    %987 = vmatpush1.xpose.msra.mxu0 0.0
    %988 = vmatprep.subr.mxu0 0.0
    %989 = vmatpush1.xpose.msra.mxu0 0.0
    %990 = vmatprep.subr.mxu0 0.0
    %991 = vmatpush1.xpose.msra.mxu0 0.0
    %992 = vmatprep.subr.mxu0 0.0
    %993 = vmatpush1.xpose.msra.mxu0 0.0
    %994 = vmatprep.subr.mxu0 0.0
    %995 = vmatpush1.xpose.msra.mxu0 0.0
    %996 = vmatprep.subr.mxu0 0.0
    %997 = vmatpush1.xpose.msra.mxu0 0.0
    %998 = vmatprep.subr.mxu0 0.0
    %999 = vmatpush1.xpose.msra.mxu0 0.0
    %1000 = vmatprep.subr.mxu0 0.0
    %1001 = vmatpush1.xpose.msra.mxu0 0.0
    %1002 = vmatprep.subr.mxu0 0.0
    %1003 = vmatpush1.xpose.msra.mxu0 0.0
    %1004 = vmatprep.subr.mxu0 0.0
    %1005 = vmatpush1.xpose.msra.mxu0 0.0
    %1006 = vmatprep.subr.mxu0 0.0
    %1007 = vmatpush1.xpose.msra.mxu0 0.0
    %1008 = vmatprep.subr.mxu0 0.0
    %1009 = vmatpush1.xpose.msra.mxu0 0.0
    %1010 = vmatprep.subr.mxu0 0.0
    %1011 = vmatpush1.xpose.msra.mxu0 0.0
    %1012 = vmatprep.subr.mxu0 0.0
    %1013 = vmatpush1.xpose.msra.mxu0 0.0
    %1014 = vmatprep.subr.mxu0 0.0
    %1015 = vmatpush1.xpose.msra.mxu0 0.0
    %1016 = vmatprep.subr.mxu0 0.0
    %1017 = vmatpush1.xpose.msra.mxu0 0.0
    %1018 = vmatprep.subr.mxu0 0.0
    %1019 = vmatpush1.xpose.msra.mxu0 0.0
    %1020 = vmatprep.subr.mxu0 0.0
    %1021 = vmatpush1.xpose.msra.mxu0 0.0
    %1022 = vmatprep.subr.mxu0 0.0
    %1023 = vmatpush1.xpose.msra.mxu0 0.0
    %1024 = vmatprep.subr.mxu0 0.0
    %1025 = vmatpush1.xpose.msra.mxu0 0.0
    %1026 = vmatprep.subr.mxu0 0.0
    %1027 = vmatpush1.xpose.msra.mxu0 0.0
    %1028 = vmatprep.subr.mxu0 0.0
    %1029 = vmatpush1.xpose.msra.mxu0 0.0
    %1030 = vmatprep.subr.mxu0 0.0
    %1031 = vmatpush1.xpose.msra.mxu0 0.0
    %1032 = vmatprep.subr.mxu0 0.0
    %1033 = vmatpush1.xpose.msra.mxu0 0.0
    %1034 = vmatprep.subr.mxu0 0.0
    %1035 = vmatpush1.xpose.msra.mxu0 0.0
    %1036 = vmatprep.subr.mxu0 0.0
    %1037 = vmatpush1.xpose.msra.mxu0 0.0
    %1038 = vmatprep.mubr.f32.mxu0 0.0
    %v1039 = vand.u32 %v70, 4294901760
    %v1040 = vsub.f32 %v70, %v1039
    %v1041 = vand.u32 %v1040, 4294901760
    %v1042 = vsub.f32 %v1040, %v1041
    %v1043 = vand.u32 %v1042, 4294901760
    %1044 = vmatmul.mubr.f32.gmra.mrb[0].mxu0 %v1043
    %v1045 = vpop.f32.mrb[0].mxu0
    %v1046 = vadd.f32 0.0, %v1045
    %v1047 = vpop.f32.mrb[0].mxu0
    %1048 = vdwg.mxu0
    %1049 = vmatprep.subr.mxu0 0.0
    %v1050 = vand.u32 %v971, 4294901760
    %v1051 = vsub.f32 %v971, %v1050
    %v1052 = vand.u32 %v1051, 4294901760
    %v1053 = vsub.f32 %v1051, %v1052
    %v1054 = vand.u32 %v1053, 4294901760
    %1055 = vmatpush1.xpose.msra.mxu0 %v1054
    %1056 = vmatprep.subr.mxu0 0.0
    %1057 = vmatpush1.xpose.msra.mxu0 0.0
    %1058 = vmatprep.subr.mxu0 0.0
    %1059 = vmatpush1.xpose.msra.mxu0 0.0
    %1060 = vmatprep.subr.mxu0 0.0
    %1061 = vmatpush1.xpose.msra.mxu0 0.0
    %1062 = vmatprep.subr.mxu0 0.0
    %1063 = vmatpush1.xpose.msra.mxu0 0.0
    %1064 = vmatprep.subr.mxu0 0.0
    %1065 = vmatpush1.xpose.msra.mxu0 0.0
    %1066 = vmatprep.subr.mxu0 0.0
    %1067 = vmatpush1.xpose.msra.mxu0 0.0
    %1068 = vmatprep.subr.mxu0 0.0
    %1069 = vmatpush1.xpose.msra.mxu0 0.0
    %1070 = vmatprep.subr.mxu0 0.0
    %1071 = vmatpush1.xpose.msra.mxu0 0.0
    %1072 = vmatprep.subr.mxu0 0.0
    %1073 = vmatpush1.xpose.msra.mxu0 0.0
    %1074 = vmatprep.subr.mxu0 0.0
    %1075 = vmatpush1.xpose.msra.mxu0 0.0
    %1076 = vmatprep.subr.mxu0 0.0
    %1077 = vmatpush1.xpose.msra.mxu0 0.0
    %1078 = vmatprep.subr.mxu0 0.0
    %1079 = vmatpush1.xpose.msra.mxu0 0.0
    %1080 = vmatprep.subr.mxu0 0.0
    %1081 = vmatpush1.xpose.msra.mxu0 0.0
    %1082 = vmatprep.subr.mxu0 0.0
    %1083 = vmatpush1.xpose.msra.mxu0 0.0
    %1084 = vmatprep.subr.mxu0 0.0
    %1085 = vmatpush1.xpose.msra.mxu0 0.0
    %1086 = vmatprep.subr.mxu0 0.0
    %1087 = vmatpush1.xpose.msra.mxu0 0.0
    %1088 = vmatprep.subr.mxu0 0.0
    %1089 = vmatpush1.xpose.msra.mxu0 0.0
    %1090 = vmatprep.subr.mxu0 0.0
    %1091 = vmatpush1.xpose.msra.mxu0 0.0
    %1092 = vmatprep.subr.mxu0 0.0
    %1093 = vmatpush1.xpose.msra.mxu0 0.0
    %1094 = vmatprep.subr.mxu0 0.0
    %1095 = vmatpush1.xpose.msra.mxu0 0.0
    %1096 = vmatprep.subr.mxu0 0.0
    %1097 = vmatpush1.xpose.msra.mxu0 0.0
    %1098 = vmatprep.subr.mxu0 0.0
    %1099 = vmatpush1.xpose.msra.mxu0 0.0
    %1100 = vmatprep.subr.mxu0 0.0
    %1101 = vmatpush1.xpose.msra.mxu0 0.0
    %1102 = vmatprep.subr.mxu0 0.0
    %1103 = vmatpush1.xpose.msra.mxu0 0.0
    %1104 = vmatprep.subr.mxu0 0.0
    %1105 = vmatpush1.xpose.msra.mxu0 0.0
    %1106 = vmatprep.subr.mxu0 0.0
    %1107 = vmatpush1.xpose.msra.mxu0 0.0
    %1108 = vmatprep.subr.mxu0 0.0
    %1109 = vmatpush1.xpose.msra.mxu0 0.0
    %1110 = vmatprep.subr.mxu0 0.0
    %1111 = vmatpush1.xpose.msra.mxu0 0.0
    %1112 = vmatprep.subr.mxu0 0.0
    %1113 = vmatpush1.xpose.msra.mxu0 0.0
    %1114 = vmatprep.subr.mxu0 0.0
    %1115 = vmatpush1.xpose.msra.mxu0 0.0
    %1116 = vmatprep.subr.mxu0 0.0
    %1117 = vmatpush1.xpose.msra.mxu0 0.0
    %1118 = vmatprep.mubr.f32.mxu0 0.0
    %v1119 = vand.u32 %v70, 4294901760
    %1120 = vmatmul.mubr.f32.gmra.mrb[0].mxu0 %v1119
    %v1121 = vpop.f32.mrb[0].mxu0
    %v1122 = vadd.f32 %v1046, %v1121
    %v1123 = vpop.f32.mrb[0].mxu0
    %1124 = vdwg.mxu0
    %1125 = vmatprep.subr.mxu0 0.0
    %v1126 = vand.u32 %v971, 4294901760
    %v1127 = vsub.f32 %v971, %v1126
    %1128 = vmatpush1.xpose.msra.mxu0 %v1127
    %1129 = vmatprep.subr.mxu0 0.0
    %1130 = vmatpush1.xpose.msra.mxu0 0.0
    %1131 = vmatprep.subr.mxu0 0.0
    %1132 = vmatpush1.xpose.msra.mxu0 0.0
    %1133 = vmatprep.subr.mxu0 0.0
    %1134 = vmatpush1.xpose.msra.mxu0 0.0
    %1135 = vmatprep.subr.mxu0 0.0
    %1136 = vmatpush1.xpose.msra.mxu0 0.0
    %1137 = vmatprep.subr.mxu0 0.0
    %1138 = vmatpush1.xpose.msra.mxu0 0.0
    %1139 = vmatprep.subr.mxu0 0.0
    %1140 = vmatpush1.xpose.msra.mxu0 0.0
    %1141 = vmatprep.subr.mxu0 0.0
    %1142 = vmatpush1.xpose.msra.mxu0 0.0
    %1143 = vmatprep.subr.mxu0 0.0
    %1144 = vmatpush1.xpose.msra.mxu0 0.0
    %1145 = vmatprep.subr.mxu0 0.0
    %1146 = vmatpush1.xpose.msra.mxu0 0.0
    %1147 = vmatprep.subr.mxu0 0.0
    %1148 = vmatpush1.xpose.msra.mxu0 0.0
    %1149 = vmatprep.subr.mxu0 0.0
    %1150 = vmatpush1.xpose.msra.mxu0 0.0
    %1151 = vmatprep.subr.mxu0 0.0
    %1152 = vmatpush1.xpose.msra.mxu0 0.0
    %1153 = vmatprep.subr.mxu0 0.0
    %1154 = vmatpush1.xpose.msra.mxu0 0.0
    %1155 = vmatprep.subr.mxu0 0.0
    %1156 = vmatpush1.xpose.msra.mxu0 0.0
    %1157 = vmatprep.subr.mxu0 0.0
    %1158 = vmatpush1.xpose.msra.mxu0 0.0
    %1159 = vmatprep.subr.mxu0 0.0
    %1160 = vmatpush1.xpose.msra.mxu0 0.0
    %1161 = vmatprep.subr.mxu0 0.0
    %1162 = vmatpush1.xpose.msra.mxu0 0.0
    %1163 = vmatprep.subr.mxu0 0.0
    %1164 = vmatpush1.xpose.msra.mxu0 0.0
    %1165 = vmatprep.subr.mxu0 0.0
    %1166 = vmatpush1.xpose.msra.mxu0 0.0
    %1167 = vmatprep.subr.mxu0 0.0
    %1168 = vmatpush1.xpose.msra.mxu0 0.0
    %1169 = vmatprep.subr.mxu0 0.0
    %1170 = vmatpush1.xpose.msra.mxu0 0.0
    %1171 = vmatprep.subr.mxu0 0.0
    %1172 = vmatpush1.xpose.msra.mxu0 0.0
    %1173 = vmatprep.subr.mxu0 0.0
    %1174 = vmatpush1.xpose.msra.mxu0 0.0
    %1175 = vmatprep.subr.mxu0 0.0
    %1176 = vmatpush1.xpose.msra.mxu0 0.0
    %1177 = vmatprep.subr.mxu0 0.0
    %1178 = vmatpush1.xpose.msra.mxu0 0.0
    %1179 = vmatprep.subr.mxu0 0.0
    %1180 = vmatpush1.xpose.msra.mxu0 0.0
    %1181 = vmatprep.subr.mxu0 0.0
    %1182 = vmatpush1.xpose.msra.mxu0 0.0
    %1183 = vmatprep.subr.mxu0 0.0
    %1184 = vmatpush1.xpose.msra.mxu0 0.0
    %1185 = vmatprep.subr.mxu0 0.0
    %1186 = vmatpush1.xpose.msra.mxu0 0.0
    %1187 = vmatprep.subr.mxu0 0.0
    %1188 = vmatpush1.xpose.msra.mxu0 0.0
    %1189 = vmatprep.subr.mxu0 0.0
    %1190 = vmatpush1.xpose.msra.mxu0 0.0
    %1191 = vmatprep.mubr.f32.mxu0 0.0
    %v1192 = vand.u32 %v70, 4294901760
    %v1193 = vsub.f32 %v70, %v1192
    %1194 = vmatmul.mubr.f32.gmra.mrb[0].mxu0 %v1193
    %v1195 = vpop.f32.mrb[0].mxu0
    %v1196 = vadd.f32 %v1122, %v1195
    %v1197 = vpop.f32.mrb[0].mxu0
    %1198 = vdwg.mxu0
    %1199 = vmatprep.subr.mxu0 0.0
    %v1200 = vand.u32 %v971, 4294901760
    %1201 = vmatpush1.xpose.msra.mxu0 %v1200
    %1202 = vmatprep.subr.mxu0 0.0
    %1203 = vmatpush1.xpose.msra.mxu0 0.0
    %1204 = vmatprep.subr.mxu0 0.0
    %1205 = vmatpush1.xpose.msra.mxu0 0.0
    %1206 = vmatprep.subr.mxu0 0.0
    %1207 = vmatpush1.xpose.msra.mxu0 0.0
    %1208 = vmatprep.subr.mxu0 0.0
    %1209 = vmatpush1.xpose.msra.mxu0 0.0
    %1210 = vmatprep.subr.mxu0 0.0
    %1211 = vmatpush1.xpose.msra.mxu0 0.0
    %1212 = vmatprep.subr.mxu0 0.0
    %1213 = vmatpush1.xpose.msra.mxu0 0.0
    %1214 = vmatprep.subr.mxu0 0.0
    %1215 = vmatpush1.xpose.msra.mxu0 0.0
    %1216 = vmatprep.subr.mxu0 0.0
    %1217 = vmatpush1.xpose.msra.mxu0 0.0
    %1218 = vmatprep.subr.mxu0 0.0
    %1219 = vmatpush1.xpose.msra.mxu0 0.0
    %1220 = vmatprep.subr.mxu0 0.0
    %1221 = vmatpush1.xpose.msra.mxu0 0.0
    %1222 = vmatprep.subr.mxu0 0.0
    %1223 = vmatpush1.xpose.msra.mxu0 0.0
    %1224 = vmatprep.subr.mxu0 0.0
    %1225 = vmatpush1.xpose.msra.mxu0 0.0
    %1226 = vmatprep.subr.mxu0 0.0
    %1227 = vmatpush1.xpose.msra.mxu0 0.0
    %1228 = vmatprep.subr.mxu0 0.0
    %1229 = vmatpush1.xpose.msra.mxu0 0.0
    %1230 = vmatprep.subr.mxu0 0.0
    %1231 = vmatpush1.xpose.msra.mxu0 0.0
    %1232 = vmatprep.subr.mxu0 0.0
    %1233 = vmatpush1.xpose.msra.mxu0 0.0
    %1234 = vmatprep.subr.mxu0 0.0
    %1235 = vmatpush1.xpose.msra.mxu0 0.0
    %1236 = vmatprep.subr.mxu0 0.0
    %1237 = vmatpush1.xpose.msra.mxu0 0.0
    %1238 = vmatprep.subr.mxu0 0.0
    %1239 = vmatpush1.xpose.msra.mxu0 0.0
    %1240 = vmatprep.subr.mxu0 0.0
    %1241 = vmatpush1.xpose.msra.mxu0 0.0
    %1242 = vmatprep.subr.mxu0 0.0
    %1243 = vmatpush1.xpose.msra.mxu0 0.0
    %1244 = vmatprep.subr.mxu0 0.0
    %1245 = vmatpush1.xpose.msra.mxu0 0.0
    %1246 = vmatprep.subr.mxu0 0.0
    %1247 = vmatpush1.xpose.msra.mxu0 0.0
    %1248 = vmatprep.subr.mxu0 0.0
    %1249 = vmatpush1.xpose.msra.mxu0 0.0
    %1250 = vmatprep.subr.mxu0 0.0
    %1251 = vmatpush1.xpose.msra.mxu0 0.0
    %1252 = vmatprep.subr.mxu0 0.0
    %1253 = vmatpush1.xpose.msra.mxu0 0.0
    %1254 = vmatprep.subr.mxu0 0.0
    %1255 = vmatpush1.xpose.msra.mxu0 0.0
    %1256 = vmatprep.subr.mxu0 0.0
    %1257 = vmatpush1.xpose.msra.mxu0 0.0
    %1258 = vmatprep.subr.mxu0 0.0
    %1259 = vmatpush1.xpose.msra.mxu0 0.0
    %1260 = vmatprep.subr.mxu0 0.0
    %1261 = vmatpush1.xpose.msra.mxu0 0.0
    %1262 = vmatprep.subr.mxu0 0.0
    %1263 = vmatpush1.xpose.msra.mxu0 0.0
    %1264 = vmatprep.mubr.f32.mxu0 0.0
    %v1265 = vand.u32 %v70, 4294901760
    %v1266 = vsub.f32 %v70, %v1265
    %v1267 = vand.u32 %v1266, 4294901760
    %1268 = vmatmul.mubr.f32.gmra.mrb[0].mxu0 %v1267
    %v1269 = vpop.f32.mrb[0].mxu0
    %v1270 = vadd.f32 %v1196, %v1269
    %v1271 = vpop.f32.mrb[0].mxu0
    %1272 = vdwg.mxu0
    %1273 = vmatprep.subr.mxu0 0.0
    %v1274 = vand.u32 %v971, 4294901760
    %v1275 = vsub.f32 %v971, %v1274
    %v1276 = vand.u32 %v1275, 4294901760
    %1277 = vmatpush1.xpose.msra.mxu0 %v1276
    %1278 = vmatprep.subr.mxu0 0.0
    %1279 = vmatpush1.xpose.msra.mxu0 0.0
    %1280 = vmatprep.subr.mxu0 0.0
    %1281 = vmatpush1.xpose.msra.mxu0 0.0
    %1282 = vmatprep.subr.mxu0 0.0
    %1283 = vmatpush1.xpose.msra.mxu0 0.0
    %1284 = vmatprep.subr.mxu0 0.0
    %1285 = vmatpush1.xpose.msra.mxu0 0.0
    %1286 = vmatprep.subr.mxu0 0.0
    %1287 = vmatpush1.xpose.msra.mxu0 0.0
    %1288 = vmatprep.subr.mxu0 0.0
    %1289 = vmatpush1.xpose.msra.mxu0 0.0
    %1290 = vmatprep.subr.mxu0 0.0
    %1291 = vmatpush1.xpose.msra.mxu0 0.0
    %1292 = vmatprep.subr.mxu0 0.0
    %1293 = vmatpush1.xpose.msra.mxu0 0.0
    %1294 = vmatprep.subr.mxu0 0.0
    %1295 = vmatpush1.xpose.msra.mxu0 0.0
    %1296 = vmatprep.subr.mxu0 0.0
    %1297 = vmatpush1.xpose.msra.mxu0 0.0
    %1298 = vmatprep.subr.mxu0 0.0
    %1299 = vmatpush1.xpose.msra.mxu0 0.0
    %1300 = vmatprep.subr.mxu0 0.0
    %1301 = vmatpush1.xpose.msra.mxu0 0.0
    %1302 = vmatprep.subr.mxu0 0.0
    %1303 = vmatpush1.xpose.msra.mxu0 0.0
    %1304 = vmatprep.subr.mxu0 0.0
    %1305 = vmatpush1.xpose.msra.mxu0 0.0
    %1306 = vmatprep.subr.mxu0 0.0
    %1307 = vmatpush1.xpose.msra.mxu0 0.0
    %1308 = vmatprep.subr.mxu0 0.0
    %1309 = vmatpush1.xpose.msra.mxu0 0.0
    %1310 = vmatprep.subr.mxu0 0.0
    %1311 = vmatpush1.xpose.msra.mxu0 0.0
    %1312 = vmatprep.subr.mxu0 0.0
    %1313 = vmatpush1.xpose.msra.mxu0 0.0
    %1314 = vmatprep.subr.mxu0 0.0
    %1315 = vmatpush1.xpose.msra.mxu0 0.0
    %1316 = vmatprep.subr.mxu0 0.0
    %1317 = vmatpush1.xpose.msra.mxu0 0.0
    %1318 = vmatprep.subr.mxu0 0.0
    %1319 = vmatpush1.xpose.msra.mxu0 0.0
    %1320 = vmatprep.subr.mxu0 0.0
    %1321 = vmatpush1.xpose.msra.mxu0 0.0
    %1322 = vmatprep.subr.mxu0 0.0
    %1323 = vmatpush1.xpose.msra.mxu0 0.0
    %1324 = vmatprep.subr.mxu0 0.0
    %1325 = vmatpush1.xpose.msra.mxu0 0.0
    %1326 = vmatprep.subr.mxu0 0.0
    %1327 = vmatpush1.xpose.msra.mxu0 0.0
    %1328 = vmatprep.subr.mxu0 0.0
    %1329 = vmatpush1.xpose.msra.mxu0 0.0
    %1330 = vmatprep.subr.mxu0 0.0
    %1331 = vmatpush1.xpose.msra.mxu0 0.0
    %1332 = vmatprep.subr.mxu0 0.0
    %1333 = vmatpush1.xpose.msra.mxu0 0.0
    %1334 = vmatprep.subr.mxu0 0.0
    %1335 = vmatpush1.xpose.msra.mxu0 0.0
    %1336 = vmatprep.subr.mxu0 0.0
    %1337 = vmatpush1.xpose.msra.mxu0 0.0
    %1338 = vmatprep.subr.mxu0 0.0
    %1339 = vmatpush1.xpose.msra.mxu0 0.0
    %1340 = vmatprep.mubr.f32.mxu0 0.0
    %v1341 = vand.u32 %v70, 4294901760
    %1342 = vmatmul.mubr.f32.gmra.mrb[0].mxu0 %v1341
    %v1343 = vpop.f32.mrb[0].mxu0
    %v1344 = vadd.f32 %v1270, %v1343
    %v1345 = vpop.f32.mrb[0].mxu0
    %1346 = vdwg.mxu0
    %1347 = vmatprep.subr.mxu0 0.0
    %v1348 = vand.u32 %v971, 4294901760
    %1349 = vmatpush1.xpose.msra.mxu0 %v1348
    %1350 = vmatprep.subr.mxu0 0.0
    %1351 = vmatpush1.xpose.msra.mxu0 0.0
    %1352 = vmatprep.subr.mxu0 0.0
    %1353 = vmatpush1.xpose.msra.mxu0 0.0
    %1354 = vmatprep.subr.mxu0 0.0
    %1355 = vmatpush1.xpose.msra.mxu0 0.0
    %1356 = vmatprep.subr.mxu0 0.0
    %1357 = vmatpush1.xpose.msra.mxu0 0.0
    %1358 = vmatprep.subr.mxu0 0.0
    %1359 = vmatpush1.xpose.msra.mxu0 0.0
    %1360 = vmatprep.subr.mxu0 0.0
    %1361 = vmatpush1.xpose.msra.mxu0 0.0
    %1362 = vmatprep.subr.mxu0 0.0
    %1363 = vmatpush1.xpose.msra.mxu0 0.0
    %1364 = vmatprep.subr.mxu0 0.0
    %1365 = vmatpush1.xpose.msra.mxu0 0.0
    %1366 = vmatprep.subr.mxu0 0.0
    %1367 = vmatpush1.xpose.msra.mxu0 0.0
    %1368 = vmatprep.subr.mxu0 0.0
    %1369 = vmatpush1.xpose.msra.mxu0 0.0
    %1370 = vmatprep.subr.mxu0 0.0
    %1371 = vmatpush1.xpose.msra.mxu0 0.0
    %1372 = vmatprep.subr.mxu0 0.0
    %1373 = vmatpush1.xpose.msra.mxu0 0.0
    %1374 = vmatprep.subr.mxu0 0.0
    %1375 = vmatpush1.xpose.msra.mxu0 0.0
    %1376 = vmatprep.subr.mxu0 0.0
    %1377 = vmatpush1.xpose.msra.mxu0 0.0
    %1378 = vmatprep.subr.mxu0 0.0
    %1379 = vmatpush1.xpose.msra.mxu0 0.0
    %1380 = vmatprep.subr.mxu0 0.0
    %1381 = vmatpush1.xpose.msra.mxu0 0.0
    %1382 = vmatprep.subr.mxu0 0.0
    %1383 = vmatpush1.xpose.msra.mxu0 0.0
    %1384 = vmatprep.subr.mxu0 0.0
    %1385 = vmatpush1.xpose.msra.mxu0 0.0
    %1386 = vmatprep.subr.mxu0 0.0
    %1387 = vmatpush1.xpose.msra.mxu0 0.0
    %1388 = vmatprep.subr.mxu0 0.0
    %1389 = vmatpush1.xpose.msra.mxu0 0.0
    %1390 = vmatprep.subr.mxu0 0.0
    %1391 = vmatpush1.xpose.msra.mxu0 0.0
    %1392 = vmatprep.subr.mxu0 0.0
    %1393 = vmatpush1.xpose.msra.mxu0 0.0
    %1394 = vmatprep.subr.mxu0 0.0
    %1395 = vmatpush1.xpose.msra.mxu0 0.0
    %1396 = vmatprep.subr.mxu0 0.0
    %1397 = vmatpush1.xpose.msra.mxu0 0.0
    %1398 = vmatprep.subr.mxu0 0.0
    %1399 = vmatpush1.xpose.msra.mxu0 0.0
    %1400 = vmatprep.subr.mxu0 0.0
    %1401 = vmatpush1.xpose.msra.mxu0 0.0
    %1402 = vmatprep.subr.mxu0 0.0
    %1403 = vmatpush1.xpose.msra.mxu0 0.0
    %1404 = vmatprep.subr.mxu0 0.0
    %1405 = vmatpush1.xpose.msra.mxu0 0.0
    %1406 = vmatprep.subr.mxu0 0.0
    %1407 = vmatpush1.xpose.msra.mxu0 0.0
    %1408 = vmatprep.subr.mxu0 0.0
    %1409 = vmatpush1.xpose.msra.mxu0 0.0
    %1410 = vmatprep.subr.mxu0 0.0
    %1411 = vmatpush1.xpose.msra.mxu0 0.0
    %1412 = vmatprep.mubr.f32.mxu0 0.0
    %v1413 = vand.u32 %v70, 4294901760
    %1414 = vmatmul.mubr.f32.gmra.mrb[0].mxu0 %v1413
    %v1415 = vpop.f32.mrb[0].mxu0
    %v1416 = vadd.f32 %v1344, %v1415
    %v1417 = vpop.f32.mrb[0].mxu0
    %1418 = vdwg.mxu0
    %v1420 = vsel %vm68, %v60, 0
    %1422 = vmatprep.subr.mxu0 0.0
    %v1423 = vand.u32 %v1420, 4294901760
    %1424 = vmatpush1.xpose.msra.mxu0 %v1423
    %1425 = vmatprep.subr.mxu0 0.0
    %1426 = vmatpush1.xpose.msra.mxu0 0.0
    %1427 = vmatprep.subr.mxu0 0.0
    %1428 = vmatpush1.xpose.msra.mxu0 0.0
    %1429 = vmatprep.subr.mxu0 0.0
    %1430 = vmatpush1.xpose.msra.mxu0 0.0
    %1431 = vmatprep.subr.mxu0 0.0
    %1432 = vmatpush1.xpose.msra.mxu0 0.0
    %1433 = vmatprep.subr.mxu0 0.0
    %1434 = vmatpush1.xpose.msra.mxu0 0.0
    %1435 = vmatprep.subr.mxu0 0.0
    %1436 = vmatpush1.xpose.msra.mxu0 0.0
    %1437 = vmatprep.subr.mxu0 0.0
    %1438 = vmatpush1.xpose.msra.mxu0 0.0
    %1439 = vmatprep.subr.mxu0 0.0
    %1440 = vmatpush1.xpose.msra.mxu0 0.0
    %1441 = vmatprep.subr.mxu0 0.0
    %1442 = vmatpush1.xpose.msra.mxu0 0.0
    %1443 = vmatprep.subr.mxu0 0.0
    %1444 = vmatpush1.xpose.msra.mxu0 0.0
    %1445 = vmatprep.subr.mxu0 0.0
    %1446 = vmatpush1.xpose.msra.mxu0 0.0
    %1447 = vmatprep.subr.mxu0 0.0
    %1448 = vmatpush1.xpose.msra.mxu0 0.0
    %1449 = vmatprep.subr.mxu0 0.0
    %1450 = vmatpush1.xpose.msra.mxu0 0.0
    %1451 = vmatprep.subr.mxu0 0.0
    %1452 = vmatpush1.xpose.msra.mxu0 0.0
    %1453 = vmatprep.subr.mxu0 0.0
    %1454 = vmatpush1.xpose.msra.mxu0 0.0
    %1455 = vmatprep.subr.mxu0 0.0
    %1456 = vmatpush1.xpose.msra.mxu0 0.0
    %1457 = vmatprep.subr.mxu0 0.0
    %1458 = vmatpush1.xpose.msra.mxu0 0.0
    %1459 = vmatprep.subr.mxu0 0.0
    %1460 = vmatpush1.xpose.msra.mxu0 0.0
    %1461 = vmatprep.subr.mxu0 0.0
    %1462 = vmatpush1.xpose.msra.mxu0 0.0
    %1463 = vmatprep.subr.mxu0 0.0
    %1464 = vmatpush1.xpose.msra.mxu0 0.0
    %1465 = vmatprep.subr.mxu0 0.0
    %1466 = vmatpush1.xpose.msra.mxu0 0.0
    %1467 = vmatprep.subr.mxu0 0.0
    %1468 = vmatpush1.xpose.msra.mxu0 0.0
    %1469 = vmatprep.subr.mxu0 0.0
    %1470 = vmatpush1.xpose.msra.mxu0 0.0
    %1471 = vmatprep.subr.mxu0 0.0
    %1472 = vmatpush1.xpose.msra.mxu0 0.0
    %1473 = vmatprep.subr.mxu0 0.0
    %1474 = vmatpush1.xpose.msra.mxu0 0.0
    %1475 = vmatprep.subr.mxu0 0.0
    %1476 = vmatpush1.xpose.msra.mxu0 0.0
    %1477 = vmatprep.subr.mxu0 0.0
    %1478 = vmatpush1.xpose.msra.mxu0 0.0
    %1479 = vmatprep.subr.mxu0 0.0
    %1480 = vmatpush1.xpose.msra.mxu0 0.0
    %1481 = vmatprep.subr.mxu0 0.0
    %1482 = vmatpush1.xpose.msra.mxu0 0.0
    %1483 = vmatprep.subr.mxu0 0.0
    %1484 = vmatpush1.xpose.msra.mxu0 0.0
    %1485 = vmatprep.subr.mxu0 0.0
    %1486 = vmatpush1.xpose.msra.mxu0 0.0
    %1487 = vmatprep.mubr.f32.mxu0 0.0
    %v1488 = vand.u32 %v70, 4294901760
    %v1489 = vsub.f32 %v70, %v1488
    %v1490 = vand.u32 %v1489, 4294901760
    %v1491 = vsub.f32 %v1489, %v1490
    %v1492 = vand.u32 %v1491, 4294901760
    %1493 = vmatmul.mubr.f32.gmra.mrb[0].mxu0 %v1492
    %v1494 = vpop.f32.mrb[0].mxu0
    %v1495 = vadd.f32 0.0, %v1494
    %v1496 = vpop.f32.mrb[0].mxu0
    %1497 = vdwg.mxu0
    %1498 = vmatprep.subr.mxu0 0.0
    %v1499 = vand.u32 %v1420, 4294901760
    %v1500 = vsub.f32 %v1420, %v1499
    %v1501 = vand.u32 %v1500, 4294901760
    %v1502 = vsub.f32 %v1500, %v1501
    %v1503 = vand.u32 %v1502, 4294901760
    %1504 = vmatpush1.xpose.msra.mxu0 %v1503
    %1505 = vmatprep.subr.mxu0 0.0
    %1506 = vmatpush1.xpose.msra.mxu0 0.0
    %1507 = vmatprep.subr.mxu0 0.0
    %1508 = vmatpush1.xpose.msra.mxu0 0.0
    %1509 = vmatprep.subr.mxu0 0.0
    %1510 = vmatpush1.xpose.msra.mxu0 0.0
    %1511 = vmatprep.subr.mxu0 0.0
    %1512 = vmatpush1.xpose.msra.mxu0 0.0
    %1513 = vmatprep.subr.mxu0 0.0
    %1514 = vmatpush1.xpose.msra.mxu0 0.0
    %1515 = vmatprep.subr.mxu0 0.0
    %1516 = vmatpush1.xpose.msra.mxu0 0.0
    %1517 = vmatprep.subr.mxu0 0.0
    %1518 = vmatpush1.xpose.msra.mxu0 0.0
    %1519 = vmatprep.subr.mxu0 0.0
    %1520 = vmatpush1.xpose.msra.mxu0 0.0
    %1521 = vmatprep.subr.mxu0 0.0
    %1522 = vmatpush1.xpose.msra.mxu0 0.0
    %1523 = vmatprep.subr.mxu0 0.0
    %1524 = vmatpush1.xpose.msra.mxu0 0.0
    %1525 = vmatprep.subr.mxu0 0.0
    %1526 = vmatpush1.xpose.msra.mxu0 0.0
    %1527 = vmatprep.subr.mxu0 0.0
    %1528 = vmatpush1.xpose.msra.mxu0 0.0
    %1529 = vmatprep.subr.mxu0 0.0
    %1530 = vmatpush1.xpose.msra.mxu0 0.0
    %1531 = vmatprep.subr.mxu0 0.0
    %1532 = vmatpush1.xpose.msra.mxu0 0.0
    %1533 = vmatprep.subr.mxu0 0.0
    %1534 = vmatpush1.xpose.msra.mxu0 0.0
    %1535 = vmatprep.subr.mxu0 0.0
    %1536 = vmatpush1.xpose.msra.mxu0 0.0
    %1537 = vmatprep.subr.mxu0 0.0
    %1538 = vmatpush1.xpose.msra.mxu0 0.0
    %1539 = vmatprep.subr.mxu0 0.0
    %1540 = vmatpush1.xpose.msra.mxu0 0.0
    %1541 = vmatprep.subr.mxu0 0.0
    %1542 = vmatpush1.xpose.msra.mxu0 0.0
    %1543 = vmatprep.subr.mxu0 0.0
    %1544 = vmatpush1.xpose.msra.mxu0 0.0
    %1545 = vmatprep.subr.mxu0 0.0
    %1546 = vmatpush1.xpose.msra.mxu0 0.0
    %1547 = vmatprep.subr.mxu0 0.0
    %1548 = vmatpush1.xpose.msra.mxu0 0.0
    %1549 = vmatprep.subr.mxu0 0.0
    %1550 = vmatpush1.xpose.msra.mxu0 0.0
    %1551 = vmatprep.subr.mxu0 0.0
    %1552 = vmatpush1.xpose.msra.mxu0 0.0
    %1553 = vmatprep.subr.mxu0 0.0
    %1554 = vmatpush1.xpose.msra.mxu0 0.0
    %1555 = vmatprep.subr.mxu0 0.0
    %1556 = vmatpush1.xpose.msra.mxu0 0.0
    %1557 = vmatprep.subr.mxu0 0.0
    %1558 = vmatpush1.xpose.msra.mxu0 0.0
    %1559 = vmatprep.subr.mxu0 0.0
    %1560 = vmatpush1.xpose.msra.mxu0 0.0
    %1561 = vmatprep.subr.mxu0 0.0
    %1562 = vmatpush1.xpose.msra.mxu0 0.0
    %1563 = vmatprep.subr.mxu0 0.0
    %1564 = vmatpush1.xpose.msra.mxu0 0.0
    %1565 = vmatprep.subr.mxu0 0.0
    %1566 = vmatpush1.xpose.msra.mxu0 0.0
    %1567 = vmatprep.mubr.f32.mxu0 0.0
    %v1568 = vand.u32 %v70, 4294901760
    %1569 = vmatmul.mubr.f32.gmra.mrb[0].mxu0 %v1568
    %v1570 = vpop.f32.mrb[0].mxu0
    %v1571 = vadd.f32 %v1495, %v1570
    %v1572 = vpop.f32.mrb[0].mxu0
    %1573 = vdwg.mxu0
    %1574 = vmatprep.subr.mxu0 0.0
    %v1575 = vand.u32 %v1420, 4294901760
    %v1576 = vsub.f32 %v1420, %v1575
    %1577 = vmatpush1.xpose.msra.mxu0 %v1576
    %1578 = vmatprep.subr.mxu0 0.0
    %1579 = vmatpush1.xpose.msra.mxu0 0.0
    %1580 = vmatprep.subr.mxu0 0.0
    %1581 = vmatpush1.xpose.msra.mxu0 0.0
    %1582 = vmatprep.subr.mxu0 0.0
    %1583 = vmatpush1.xpose.msra.mxu0 0.0
    %1584 = vmatprep.subr.mxu0 0.0
    %1585 = vmatpush1.xpose.msra.mxu0 0.0
    %1586 = vmatprep.subr.mxu0 0.0
    %1587 = vmatpush1.xpose.msra.mxu0 0.0
    %1588 = vmatprep.subr.mxu0 0.0
    %1589 = vmatpush1.xpose.msra.mxu0 0.0
    %1590 = vmatprep.subr.mxu0 0.0
    %1591 = vmatpush1.xpose.msra.mxu0 0.0
    %1592 = vmatprep.subr.mxu0 0.0
    %1593 = vmatpush1.xpose.msra.mxu0 0.0
    %1594 = vmatprep.subr.mxu0 0.0
    %1595 = vmatpush1.xpose.msra.mxu0 0.0
    %1596 = vmatprep.subr.mxu0 0.0
    %1597 = vmatpush1.xpose.msra.mxu0 0.0
    %1598 = vmatprep.subr.mxu0 0.0
    %1599 = vmatpush1.xpose.msra.mxu0 0.0
    %1600 = vmatprep.subr.mxu0 0.0
    %1601 = vmatpush1.xpose.msra.mxu0 0.0
    %1602 = vmatprep.subr.mxu0 0.0
    %1603 = vmatpush1.xpose.msra.mxu0 0.0
    %1604 = vmatprep.subr.mxu0 0.0
    %1605 = vmatpush1.xpose.msra.mxu0 0.0
    %1606 = vmatprep.subr.mxu0 0.0
    %1607 = vmatpush1.xpose.msra.mxu0 0.0
    %1608 = vmatprep.subr.mxu0 0.0
    %1609 = vmatpush1.xpose.msra.mxu0 0.0
    %1610 = vmatprep.subr.mxu0 0.0
    %1611 = vmatpush1.xpose.msra.mxu0 0.0
    %1612 = vmatprep.subr.mxu0 0.0
    %1613 = vmatpush1.xpose.msra.mxu0 0.0
    %1614 = vmatprep.subr.mxu0 0.0
    %1615 = vmatpush1.xpose.msra.mxu0 0.0
    %1616 = vmatprep.subr.mxu0 0.0
    %1617 = vmatpush1.xpose.msra.mxu0 0.0
    %1618 = vmatprep.subr.mxu0 0.0
    %1619 = vmatpush1.xpose.msra.mxu0 0.0
    %1620 = vmatprep.subr.mxu0 0.0
    %1621 = vmatpush1.xpose.msra.mxu0 0.0
    %1622 = vmatprep.subr.mxu0 0.0
    %1623 = vmatpush1.xpose.msra.mxu0 0.0
    %1624 = vmatprep.subr.mxu0 0.0
    %1625 = vmatpush1.xpose.msra.mxu0 0.0
    %1626 = vmatprep.subr.mxu0 0.0
    %1627 = vmatpush1.xpose.msra.mxu0 0.0
    %1628 = vmatprep.subr.mxu0 0.0
    %1629 = vmatpush1.xpose.msra.mxu0 0.0
    %1630 = vmatprep.subr.mxu0 0.0
    %1631 = vmatpush1.xpose.msra.mxu0 0.0
    %1632 = vmatprep.subr.mxu0 0.0
    %1633 = vmatpush1.xpose.msra.mxu0 0.0
    %1634 = vmatprep.subr.mxu0 0.0
    %1635 = vmatpush1.xpose.msra.mxu0 0.0
    %1636 = vmatprep.subr.mxu0 0.0
    %1637 = vmatpush1.xpose.msra.mxu0 0.0
    %1638 = vmatprep.subr.mxu0 0.0
    %1639 = vmatpush1.xpose.msra.mxu0 0.0
    %1640 = vmatprep.mubr.f32.mxu0 0.0
    %v1641 = vand.u32 %v70, 4294901760
    %v1642 = vsub.f32 %v70, %v1641
    %1643 = vmatmul.mubr.f32.gmra.mrb[0].mxu0 %v1642
    %v1644 = vpop.f32.mrb[0].mxu0
    %v1645 = vadd.f32 %v1571, %v1644
    %v1646 = vpop.f32.mrb[0].mxu0
    %1647 = vdwg.mxu0
    %1648 = vmatprep.subr.mxu0 0.0
    %v1649 = vand.u32 %v1420, 4294901760
    %1650 = vmatpush1.xpose.msra.mxu0 %v1649
    %1651 = vmatprep.subr.mxu0 0.0
    %1652 = vmatpush1.xpose.msra.mxu0 0.0
    %1653 = vmatprep.subr.mxu0 0.0
    %1654 = vmatpush1.xpose.msra.mxu0 0.0
    %1655 = vmatprep.subr.mxu0 0.0
    %1656 = vmatpush1.xpose.msra.mxu0 0.0
    %1657 = vmatprep.subr.mxu0 0.0
    %1658 = vmatpush1.xpose.msra.mxu0 0.0
    %1659 = vmatprep.subr.mxu0 0.0
    %1660 = vmatpush1.xpose.msra.mxu0 0.0
    %1661 = vmatprep.subr.mxu0 0.0
    %1662 = vmatpush1.xpose.msra.mxu0 0.0
    %1663 = vmatprep.subr.mxu0 0.0
    %1664 = vmatpush1.xpose.msra.mxu0 0.0
    %1665 = vmatprep.subr.mxu0 0.0
    %1666 = vmatpush1.xpose.msra.mxu0 0.0
    %1667 = vmatprep.subr.mxu0 0.0
    %1668 = vmatpush1.xpose.msra.mxu0 0.0
    %1669 = vmatprep.subr.mxu0 0.0
    %1670 = vmatpush1.xpose.msra.mxu0 0.0
    %1671 = vmatprep.subr.mxu0 0.0
    %1672 = vmatpush1.xpose.msra.mxu0 0.0
    %1673 = vmatprep.subr.mxu0 0.0
    %1674 = vmatpush1.xpose.msra.mxu0 0.0
    %1675 = vmatprep.subr.mxu0 0.0
    %1676 = vmatpush1.xpose.msra.mxu0 0.0
    %1677 = vmatprep.subr.mxu0 0.0
    %1678 = vmatpush1.xpose.msra.mxu0 0.0
    %1679 = vmatprep.subr.mxu0 0.0
    %1680 = vmatpush1.xpose.msra.mxu0 0.0
    %1681 = vmatprep.subr.mxu0 0.0
    %1682 = vmatpush1.xpose.msra.mxu0 0.0
    %1683 = vmatprep.subr.mxu0 0.0
    %1684 = vmatpush1.xpose.msra.mxu0 0.0
    %1685 = vmatprep.subr.mxu0 0.0
    %1686 = vmatpush1.xpose.msra.mxu0 0.0
    %1687 = vmatprep.subr.mxu0 0.0
    %1688 = vmatpush1.xpose.msra.mxu0 0.0
    %1689 = vmatprep.subr.mxu0 0.0
    %1690 = vmatpush1.xpose.msra.mxu0 0.0
    %1691 = vmatprep.subr.mxu0 0.0
    %1692 = vmatpush1.xpose.msra.mxu0 0.0
    %1693 = vmatprep.subr.mxu0 0.0
    %1694 = vmatpush1.xpose.msra.mxu0 0.0
    %1695 = vmatprep.subr.mxu0 0.0
    %1696 = vmatpush1.xpose.msra.mxu0 0.0
    %1697 = vmatprep.subr.mxu0 0.0
    %1698 = vmatpush1.xpose.msra.mxu0 0.0
    %1699 = vmatprep.subr.mxu0 0.0
    %1700 = vmatpush1.xpose.msra.mxu0 0.0
    %1701 = vmatprep.subr.mxu0 0.0
    %1702 = vmatpush1.xpose.msra.mxu0 0.0
    %1703 = vmatprep.subr.mxu0 0.0
    %1704 = vmatpush1.xpose.msra.mxu0 0.0
    %1705 = vmatprep.subr.mxu0 0.0
    %1706 = vmatpush1.xpose.msra.mxu0 0.0
    %1707 = vmatprep.subr.mxu0 0.0
    %1708 = vmatpush1.xpose.msra.mxu0 0.0
    %1709 = vmatprep.subr.mxu0 0.0
    %1710 = vmatpush1.xpose.msra.mxu0 0.0
    %1711 = vmatprep.subr.mxu0 0.0
    %1712 = vmatpush1.xpose.msra.mxu0 0.0
    %1713 = vmatprep.mubr.f32.mxu0 0.0
    %v1714 = vand.u32 %v70, 4294901760
    %v1715 = vsub.f32 %v70, %v1714
    %v1716 = vand.u32 %v1715, 4294901760
    %1717 = vmatmul.mubr.f32.gmra.mrb[0].mxu0 %v1716
    %v1718 = vpop.f32.mrb[0].mxu0
    %v1719 = vadd.f32 %v1645, %v1718
    %v1720 = vpop.f32.mrb[0].mxu0
    %1721 = vdwg.mxu0
    %1722 = vmatprep.subr.mxu0 0.0
    %v1723 = vand.u32 %v1420, 4294901760
    %v1724 = vsub.f32 %v1420, %v1723
    %v1725 = vand.u32 %v1724, 4294901760
    %1726 = vmatpush1.xpose.msra.mxu0 %v1725
    %1727 = vmatprep.subr.mxu0 0.0
    %1728 = vmatpush1.xpose.msra.mxu0 0.0
    %1729 = vmatprep.subr.mxu0 0.0
    %1730 = vmatpush1.xpose.msra.mxu0 0.0
    %1731 = vmatprep.subr.mxu0 0.0
    %1732 = vmatpush1.xpose.msra.mxu0 0.0
    %1733 = vmatprep.subr.mxu0 0.0
    %1734 = vmatpush1.xpose.msra.mxu0 0.0
    %1735 = vmatprep.subr.mxu0 0.0
    %1736 = vmatpush1.xpose.msra.mxu0 0.0
    %1737 = vmatprep.subr.mxu0 0.0
    %1738 = vmatpush1.xpose.msra.mxu0 0.0
    %1739 = vmatprep.subr.mxu0 0.0
    %1740 = vmatpush1.xpose.msra.mxu0 0.0
    %1741 = vmatprep.subr.mxu0 0.0
    %1742 = vmatpush1.xpose.msra.mxu0 0.0
    %1743 = vmatprep.subr.mxu0 0.0
    %1744 = vmatpush1.xpose.msra.mxu0 0.0
    %1745 = vmatprep.subr.mxu0 0.0
    %1746 = vmatpush1.xpose.msra.mxu0 0.0
    %1747 = vmatprep.subr.mxu0 0.0
    %1748 = vmatpush1.xpose.msra.mxu0 0.0
    %1749 = vmatprep.subr.mxu0 0.0
    %1750 = vmatpush1.xpose.msra.mxu0 0.0
    %1751 = vmatprep.subr.mxu0 0.0
    %1752 = vmatpush1.xpose.msra.mxu0 0.0
    %1753 = vmatprep.subr.mxu0 0.0
    %1754 = vmatpush1.xpose.msra.mxu0 0.0
    %1755 = vmatprep.subr.mxu0 0.0
    %1756 = vmatpush1.xpose.msra.mxu0 0.0
    %1757 = vmatprep.subr.mxu0 0.0
    %1758 = vmatpush1.xpose.msra.mxu0 0.0
    %1759 = vmatprep.subr.mxu0 0.0
    %1760 = vmatpush1.xpose.msra.mxu0 0.0
    %1761 = vmatprep.subr.mxu0 0.0
    %1762 = vmatpush1.xpose.msra.mxu0 0.0
    %1763 = vmatprep.subr.mxu0 0.0
    %1764 = vmatpush1.xpose.msra.mxu0 0.0
    %1765 = vmatprep.subr.mxu0 0.0
    %1766 = vmatpush1.xpose.msra.mxu0 0.0
    %1767 = vmatprep.subr.mxu0 0.0
    %1768 = vmatpush1.xpose.msra.mxu0 0.0
    %1769 = vmatprep.subr.mxu0 0.0
    %1770 = vmatpush1.xpose.msra.mxu0 0.0
    %1771 = vmatprep.subr.mxu0 0.0
    %1772 = vmatpush1.xpose.msra.mxu0 0.0
    %1773 = vmatprep.subr.mxu0 0.0
    %1774 = vmatpush1.xpose.msra.mxu0 0.0
    %1775 = vmatprep.subr.mxu0 0.0
    %1776 = vmatpush1.xpose.msra.mxu0 0.0
    %1777 = vmatprep.subr.mxu0 0.0
    %1778 = vmatpush1.xpose.msra.mxu0 0.0
    %1779 = vmatprep.subr.mxu0 0.0
    %1780 = vmatpush1.xpose.msra.mxu0 0.0
    %1781 = vmatprep.subr.mxu0 0.0
    %1782 = vmatpush1.xpose.msra.mxu0 0.0
    %1783 = vmatprep.subr.mxu0 0.0
    %1784 = vmatpush1.xpose.msra.mxu0 0.0
    %1785 = vmatprep.subr.mxu0 0.0
    %1786 = vmatpush1.xpose.msra.mxu0 0.0
    %1787 = vmatprep.subr.mxu0 0.0
    %1788 = vmatpush1.xpose.msra.mxu0 0.0
    %1789 = vmatprep.mubr.f32.mxu0 0.0
    %v1790 = vand.u32 %v70, 4294901760
    %1791 = vmatmul.mubr.f32.gmra.mrb[0].mxu0 %v1790
    %v1792 = vpop.f32.mrb[0].mxu0
    %v1793 = vadd.f32 %v1719, %v1792
    %v1794 = vpop.f32.mrb[0].mxu0
    %1795 = vdwg.mxu0
    %1796 = vmatprep.subr.mxu0 0.0
    %v1797 = vand.u32 %v1420, 4294901760
    %1798 = vmatpush1.xpose.msra.mxu0 %v1797
    %1799 = vmatprep.subr.mxu0 0.0
    %1800 = vmatpush1.xpose.msra.mxu0 0.0
    %1801 = vmatprep.subr.mxu0 0.0
    %1802 = vmatpush1.xpose.msra.mxu0 0.0
    %1803 = vmatprep.subr.mxu0 0.0
    %1804 = vmatpush1.xpose.msra.mxu0 0.0
    %1805 = vmatprep.subr.mxu0 0.0
    %1806 = vmatpush1.xpose.msra.mxu0 0.0
    %1807 = vmatprep.subr.mxu0 0.0
    %1808 = vmatpush1.xpose.msra.mxu0 0.0
    %1809 = vmatprep.subr.mxu0 0.0
    %1810 = vmatpush1.xpose.msra.mxu0 0.0
    %1811 = vmatprep.subr.mxu0 0.0
    %1812 = vmatpush1.xpose.msra.mxu0 0.0
    %1813 = vmatprep.subr.mxu0 0.0
    %1814 = vmatpush1.xpose.msra.mxu0 0.0
    %1815 = vmatprep.subr.mxu0 0.0
    %1816 = vmatpush1.xpose.msra.mxu0 0.0
    %1817 = vmatprep.subr.mxu0 0.0
    %1818 = vmatpush1.xpose.msra.mxu0 0.0
    %1819 = vmatprep.subr.mxu0 0.0
    %1820 = vmatpush1.xpose.msra.mxu0 0.0
    %1821 = vmatprep.subr.mxu0 0.0
    %1822 = vmatpush1.xpose.msra.mxu0 0.0
    %1823 = vmatprep.subr.mxu0 0.0
    %1824 = vmatpush1.xpose.msra.mxu0 0.0
    %1825 = vmatprep.subr.mxu0 0.0
    %1826 = vmatpush1.xpose.msra.mxu0 0.0
    %1827 = vmatprep.subr.mxu0 0.0
    %1828 = vmatpush1.xpose.msra.mxu0 0.0
    %1829 = vmatprep.subr.mxu0 0.0
    %1830 = vmatpush1.xpose.msra.mxu0 0.0
    %1831 = vmatprep.subr.mxu0 0.0
    %1832 = vmatpush1.xpose.msra.mxu0 0.0
    %1833 = vmatprep.subr.mxu0 0.0
    %1834 = vmatpush1.xpose.msra.mxu0 0.0
    %1835 = vmatprep.subr.mxu0 0.0
    %1836 = vmatpush1.xpose.msra.mxu0 0.0
    %1837 = vmatprep.subr.mxu0 0.0
    %1838 = vmatpush1.xpose.msra.mxu0 0.0
    %1839 = vmatprep.subr.mxu0 0.0
    %1840 = vmatpush1.xpose.msra.mxu0 0.0
    %1841 = vmatprep.subr.mxu0 0.0
    %1842 = vmatpush1.xpose.msra.mxu0 0.0
    %1843 = vmatprep.subr.mxu0 0.0
    %1844 = vmatpush1.xpose.msra.mxu0 0.0
    %1845 = vmatprep.subr.mxu0 0.0
    %1846 = vmatpush1.xpose.msra.mxu0 0.0
    %1847 = vmatprep.subr.mxu0 0.0
    %1848 = vmatpush1.xpose.msra.mxu0 0.0
    %1849 = vmatprep.subr.mxu0 0.0
    %1850 = vmatpush1.xpose.msra.mxu0 0.0
    %1851 = vmatprep.subr.mxu0 0.0
    %1852 = vmatpush1.xpose.msra.mxu0 0.0
    %1853 = vmatprep.subr.mxu0 0.0
    %1854 = vmatpush1.xpose.msra.mxu0 0.0
    %1855 = vmatprep.subr.mxu0 0.0
    %1856 = vmatpush1.xpose.msra.mxu0 0.0
    %1857 = vmatprep.subr.mxu0 0.0
    %1858 = vmatpush1.xpose.msra.mxu0 0.0
    %1859 = vmatprep.subr.mxu0 0.0
    %1860 = vmatpush1.xpose.msra.mxu0 0.0
    %1861 = vmatprep.mubr.f32.mxu0 0.0
    %v1862 = vand.u32 %v70, 4294901760
    %1863 = vmatmul.mubr.f32.gmra.mrb[0].mxu0 %v1862
    %v1864 = vpop.f32.mrb[0].mxu0
    %v1865 = vadd.f32 %v1793, %v1864
    %v1866 = vpop.f32.mrb[0].mxu0
    %1867 = vdwg.mxu0
    %v1869 = vsel %vm68, %v61, 0
    %1871 = vmatprep.subr.mxu0 0.0
    %v1872 = vand.u32 %v1869, 4294901760
    %1873 = vmatpush1.xpose.msra.mxu0 %v1872
    %1874 = vmatprep.subr.mxu0 0.0
    %1875 = vmatpush1.xpose.msra.mxu0 0.0
    %1876 = vmatprep.subr.mxu0 0.0
    %1877 = vmatpush1.xpose.msra.mxu0 0.0
    %1878 = vmatprep.subr.mxu0 0.0
    %1879 = vmatpush1.xpose.msra.mxu0 0.0
    %1880 = vmatprep.subr.mxu0 0.0
    %1881 = vmatpush1.xpose.msra.mxu0 0.0
    %1882 = vmatprep.subr.mxu0 0.0
    %1883 = vmatpush1.xpose.msra.mxu0 0.0
    %1884 = vmatprep.subr.mxu0 0.0
    %1885 = vmatpush1.xpose.msra.mxu0 0.0
    %1886 = vmatprep.subr.mxu0 0.0
    %1887 = vmatpush1.xpose.msra.mxu0 0.0
    %1888 = vmatprep.subr.mxu0 0.0
    %1889 = vmatpush1.xpose.msra.mxu0 0.0
    %1890 = vmatprep.subr.mxu0 0.0
    %1891 = vmatpush1.xpose.msra.mxu0 0.0
    %1892 = vmatprep.subr.mxu0 0.0
    %1893 = vmatpush1.xpose.msra.mxu0 0.0
    %1894 = vmatprep.subr.mxu0 0.0
    %1895 = vmatpush1.xpose.msra.mxu0 0.0
    %1896 = vmatprep.subr.mxu0 0.0
    %1897 = vmatpush1.xpose.msra.mxu0 0.0
    %1898 = vmatprep.subr.mxu0 0.0
    %1899 = vmatpush1.xpose.msra.mxu0 0.0
    %1900 = vmatprep.subr.mxu0 0.0
    %1901 = vmatpush1.xpose.msra.mxu0 0.0
    %1902 = vmatprep.subr.mxu0 0.0
    %1903 = vmatpush1.xpose.msra.mxu0 0.0
    %1904 = vmatprep.subr.mxu0 0.0
    %1905 = vmatpush1.xpose.msra.mxu0 0.0
    %1906 = vmatprep.subr.mxu0 0.0
    %1907 = vmatpush1.xpose.msra.mxu0 0.0
    %1908 = vmatprep.subr.mxu0 0.0
    %1909 = vmatpush1.xpose.msra.mxu0 0.0
    %1910 = vmatprep.subr.mxu0 0.0
    %1911 = vmatpush1.xpose.msra.mxu0 0.0
    %1912 = vmatprep.subr.mxu0 0.0
    %1913 = vmatpush1.xpose.msra.mxu0 0.0
    %1914 = vmatprep.subr.mxu0 0.0
    %1915 = vmatpush1.xpose.msra.mxu0 0.0
    %1916 = vmatprep.subr.mxu0 0.0
    %1917 = vmatpush1.xpose.msra.mxu0 0.0
    %1918 = vmatprep.subr.mxu0 0.0
    %1919 = vmatpush1.xpose.msra.mxu0 0.0
    %1920 = vmatprep.subr.mxu0 0.0
    %1921 = vmatpush1.xpose.msra.mxu0 0.0
    %1922 = vmatprep.subr.mxu0 0.0
    %1923 = vmatpush1.xpose.msra.mxu0 0.0
    %1924 = vmatprep.subr.mxu0 0.0
    %1925 = vmatpush1.xpose.msra.mxu0 0.0
    %1926 = vmatprep.subr.mxu0 0.0
    %1927 = vmatpush1.xpose.msra.mxu0 0.0
    %1928 = vmatprep.subr.mxu0 0.0
    %1929 = vmatpush1.xpose.msra.mxu0 0.0
    %1930 = vmatprep.subr.mxu0 0.0
    %1931 = vmatpush1.xpose.msra.mxu0 0.0
    %1932 = vmatprep.subr.mxu0 0.0
    %1933 = vmatpush1.xpose.msra.mxu0 0.0
    %1934 = vmatprep.subr.mxu0 0.0
    %1935 = vmatpush1.xpose.msra.mxu0 0.0
    %1936 = vmatprep.mubr.f32.mxu0 0.0
    %v1937 = vand.u32 %v70, 4294901760
    %v1938 = vsub.f32 %v70, %v1937
    %v1939 = vand.u32 %v1938, 4294901760
    %v1940 = vsub.f32 %v1938, %v1939
    %v1941 = vand.u32 %v1940, 4294901760
    %1942 = vmatmul.mubr.f32.gmra.mrb[0].mxu0 %v1941
    %v1943 = vpop.f32.mrb[0].mxu0
    %v1944 = vadd.f32 0.0, %v1943
    %v1945 = vpop.f32.mrb[0].mxu0
    %1946 = vdwg.mxu0
    %1947 = vmatprep.subr.mxu0 0.0
    %v1948 = vand.u32 %v1869, 4294901760
    %v1949 = vsub.f32 %v1869, %v1948
    %v1950 = vand.u32 %v1949, 4294901760
    %v1951 = vsub.f32 %v1949, %v1950
    %v1952 = vand.u32 %v1951, 4294901760
    %1953 = vmatpush1.xpose.msra.mxu0 %v1952
    %1954 = vmatprep.subr.mxu0 0.0
    %1955 = vmatpush1.xpose.msra.mxu0 0.0
    %1956 = vmatprep.subr.mxu0 0.0
    %1957 = vmatpush1.xpose.msra.mxu0 0.0
    %1958 = vmatprep.subr.mxu0 0.0
    %1959 = vmatpush1.xpose.msra.mxu0 0.0
    %1960 = vmatprep.subr.mxu0 0.0
    %1961 = vmatpush1.xpose.msra.mxu0 0.0
    %1962 = vmatprep.subr.mxu0 0.0
    %1963 = vmatpush1.xpose.msra.mxu0 0.0
    %1964 = vmatprep.subr.mxu0 0.0
    %1965 = vmatpush1.xpose.msra.mxu0 0.0
    %1966 = vmatprep.subr.mxu0 0.0
    %1967 = vmatpush1.xpose.msra.mxu0 0.0
    %1968 = vmatprep.subr.mxu0 0.0
    %1969 = vmatpush1.xpose.msra.mxu0 0.0
    %1970 = vmatprep.subr.mxu0 0.0
    %1971 = vmatpush1.xpose.msra.mxu0 0.0
    %1972 = vmatprep.subr.mxu0 0.0
    %1973 = vmatpush1.xpose.msra.mxu0 0.0
    %1974 = vmatprep.subr.mxu0 0.0
    %1975 = vmatpush1.xpose.msra.mxu0 0.0
    %1976 = vmatprep.subr.mxu0 0.0
    %1977 = vmatpush1.xpose.msra.mxu0 0.0
    %1978 = vmatprep.subr.mxu0 0.0
    %1979 = vmatpush1.xpose.msra.mxu0 0.0
    %1980 = vmatprep.subr.mxu0 0.0
    %1981 = vmatpush1.xpose.msra.mxu0 0.0
    %1982 = vmatprep.subr.mxu0 0.0
    %1983 = vmatpush1.xpose.msra.mxu0 0.0
    %1984 = vmatprep.subr.mxu0 0.0
    %1985 = vmatpush1.xpose.msra.mxu0 0.0
    %1986 = vmatprep.subr.mxu0 0.0
    %1987 = vmatpush1.xpose.msra.mxu0 0.0
    %1988 = vmatprep.subr.mxu0 0.0
    %1989 = vmatpush1.xpose.msra.mxu0 0.0
    %1990 = vmatprep.subr.mxu0 0.0
    %1991 = vmatpush1.xpose.msra.mxu0 0.0
    %1992 = vmatprep.subr.mxu0 0.0
    %1993 = vmatpush1.xpose.msra.mxu0 0.0
    %1994 = vmatprep.subr.mxu0 0.0
    %1995 = vmatpush1.xpose.msra.mxu0 0.0
    %1996 = vmatprep.subr.mxu0 0.0
    %1997 = vmatpush1.xpose.msra.mxu0 0.0
    %1998 = vmatprep.subr.mxu0 0.0
    %1999 = vmatpush1.xpose.msra.mxu0 0.0
    %2000 = vmatprep.subr.mxu0 0.0
    %2001 = vmatpush1.xpose.msra.mxu0 0.0
    %2002 = vmatprep.subr.mxu0 0.0
    %2003 = vmatpush1.xpose.msra.mxu0 0.0
    %2004 = vmatprep.subr.mxu0 0.0
    %2005 = vmatpush1.xpose.msra.mxu0 0.0
    %2006 = vmatprep.subr.mxu0 0.0
    %2007 = vmatpush1.xpose.msra.mxu0 0.0
    %2008 = vmatprep.subr.mxu0 0.0
    %2009 = vmatpush1.xpose.msra.mxu0 0.0
    %2010 = vmatprep.subr.mxu0 0.0
    %2011 = vmatpush1.xpose.msra.mxu0 0.0
    %2012 = vmatprep.subr.mxu0 0.0
    %2013 = vmatpush1.xpose.msra.mxu0 0.0
    %2014 = vmatprep.subr.mxu0 0.0
    %2015 = vmatpush1.xpose.msra.mxu0 0.0
    %2016 = vmatprep.mubr.f32.mxu0 0.0
    %v2017 = vand.u32 %v70, 4294901760
    %2018 = vmatmul.mubr.f32.gmra.mrb[0].mxu0 %v2017
    %v2019 = vpop.f32.mrb[0].mxu0
    %v2020 = vadd.f32 %v1944, %v2019
    %v2021 = vpop.f32.mrb[0].mxu0
    %2022 = vdwg.mxu0
    %2023 = vmatprep.subr.mxu0 0.0
    %v2024 = vand.u32 %v1869, 4294901760
    %v2025 = vsub.f32 %v1869, %v2024
    %2026 = vmatpush1.xpose.msra.mxu0 %v2025
    %2027 = vmatprep.subr.mxu0 0.0
    %2028 = vmatpush1.xpose.msra.mxu0 0.0
    %2029 = vmatprep.subr.mxu0 0.0
    %2030 = vmatpush1.xpose.msra.mxu0 0.0
    %2031 = vmatprep.subr.mxu0 0.0
    %2032 = vmatpush1.xpose.msra.mxu0 0.0
    %2033 = vmatprep.subr.mxu0 0.0
    %2034 = vmatpush1.xpose.msra.mxu0 0.0
    %2035 = vmatprep.subr.mxu0 0.0
    %2036 = vmatpush1.xpose.msra.mxu0 0.0
    %2037 = vmatprep.subr.mxu0 0.0
    %2038 = vmatpush1.xpose.msra.mxu0 0.0
    %2039 = vmatprep.subr.mxu0 0.0
    %2040 = vmatpush1.xpose.msra.mxu0 0.0
    %2041 = vmatprep.subr.mxu0 0.0
    %2042 = vmatpush1.xpose.msra.mxu0 0.0
    %2043 = vmatprep.subr.mxu0 0.0
    %2044 = vmatpush1.xpose.msra.mxu0 0.0
    %2045 = vmatprep.subr.mxu0 0.0
    %2046 = vmatpush1.xpose.msra.mxu0 0.0
    %2047 = vmatprep.subr.mxu0 0.0
    %2048 = vmatpush1.xpose.msra.mxu0 0.0
    %2049 = vmatprep.subr.mxu0 0.0
    %2050 = vmatpush1.xpose.msra.mxu0 0.0
    %2051 = vmatprep.subr.mxu0 0.0
    %2052 = vmatpush1.xpose.msra.mxu0 0.0
    %2053 = vmatprep.subr.mxu0 0.0
    %2054 = vmatpush1.xpose.msra.mxu0 0.0
    %2055 = vmatprep.subr.mxu0 0.0
    %2056 = vmatpush1.xpose.msra.mxu0 0.0
    %2057 = vmatprep.subr.mxu0 0.0
    %2058 = vmatpush1.xpose.msra.mxu0 0.0
    %2059 = vmatprep.subr.mxu0 0.0
    %2060 = vmatpush1.xpose.msra.mxu0 0.0
    %2061 = vmatprep.subr.mxu0 0.0
    %2062 = vmatpush1.xpose.msra.mxu0 0.0
    %2063 = vmatprep.subr.mxu0 0.0
    %2064 = vmatpush1.xpose.msra.mxu0 0.0
    %2065 = vmatprep.subr.mxu0 0.0
    %2066 = vmatpush1.xpose.msra.mxu0 0.0
    %2067 = vmatprep.subr.mxu0 0.0
    %2068 = vmatpush1.xpose.msra.mxu0 0.0
    %2069 = vmatprep.subr.mxu0 0.0
    %2070 = vmatpush1.xpose.msra.mxu0 0.0
    %2071 = vmatprep.subr.mxu0 0.0
    %2072 = vmatpush1.xpose.msra.mxu0 0.0
    %2073 = vmatprep.subr.mxu0 0.0
    %2074 = vmatpush1.xpose.msra.mxu0 0.0
    %2075 = vmatprep.subr.mxu0 0.0
    %2076 = vmatpush1.xpose.msra.mxu0 0.0
    %2077 = vmatprep.subr.mxu0 0.0
    %2078 = vmatpush1.xpose.msra.mxu0 0.0
    %2079 = vmatprep.subr.mxu0 0.0
    %2080 = vmatpush1.xpose.msra.mxu0 0.0
    %2081 = vmatprep.subr.mxu0 0.0
    %2082 = vmatpush1.xpose.msra.mxu0 0.0
    %2083 = vmatprep.subr.mxu0 0.0
    %2084 = vmatpush1.xpose.msra.mxu0 0.0
    %2085 = vmatprep.subr.mxu0 0.0
    %2086 = vmatpush1.xpose.msra.mxu0 0.0
    %2087 = vmatprep.subr.mxu0 0.0
    %2088 = vmatpush1.xpose.msra.mxu0 0.0
    %2089 = vmatprep.mubr.f32.mxu0 0.0
    %v2090 = vand.u32 %v70, 4294901760
    %v2091 = vsub.f32 %v70, %v2090
    %2092 = vmatmul.mubr.f32.gmra.mrb[0].mxu0 %v2091
    %v2093 = vpop.f32.mrb[0].mxu0
    %v2094 = vadd.f32 %v2020, %v2093
    %v2095 = vpop.f32.mrb[0].mxu0
    %2096 = vdwg.mxu0
    %2097 = vmatprep.subr.mxu0 0.0
    %v2098 = vand.u32 %v1869, 4294901760
    %2099 = vmatpush1.xpose.msra.mxu0 %v2098
    %2100 = vmatprep.subr.mxu0 0.0
    %2101 = vmatpush1.xpose.msra.mxu0 0.0
    %2102 = vmatprep.subr.mxu0 0.0
    %2103 = vmatpush1.xpose.msra.mxu0 0.0
    %2104 = vmatprep.subr.mxu0 0.0
    %2105 = vmatpush1.xpose.msra.mxu0 0.0
    %2106 = vmatprep.subr.mxu0 0.0
    %2107 = vmatpush1.xpose.msra.mxu0 0.0
    %2108 = vmatprep.subr.mxu0 0.0
    %2109 = vmatpush1.xpose.msra.mxu0 0.0
    %2110 = vmatprep.subr.mxu0 0.0
    %2111 = vmatpush1.xpose.msra.mxu0 0.0
    %2112 = vmatprep.subr.mxu0 0.0
    %2113 = vmatpush1.xpose.msra.mxu0 0.0
    %2114 = vmatprep.subr.mxu0 0.0
    %2115 = vmatpush1.xpose.msra.mxu0 0.0
    %2116 = vmatprep.subr.mxu0 0.0
    %2117 = vmatpush1.xpose.msra.mxu0 0.0
    %2118 = vmatprep.subr.mxu0 0.0
    %2119 = vmatpush1.xpose.msra.mxu0 0.0
    %2120 = vmatprep.subr.mxu0 0.0
    %2121 = vmatpush1.xpose.msra.mxu0 0.0
    %2122 = vmatprep.subr.mxu0 0.0
    %2123 = vmatpush1.xpose.msra.mxu0 0.0
    %2124 = vmatprep.subr.mxu0 0.0
    %2125 = vmatpush1.xpose.msra.mxu0 0.0
    %2126 = vmatprep.subr.mxu0 0.0
    %2127 = vmatpush1.xpose.msra.mxu0 0.0
    %2128 = vmatprep.subr.mxu0 0.0
    %2129 = vmatpush1.xpose.msra.mxu0 0.0
    %2130 = vmatprep.subr.mxu0 0.0
    %2131 = vmatpush1.xpose.msra.mxu0 0.0
    %2132 = vmatprep.subr.mxu0 0.0
    %2133 = vmatpush1.xpose.msra.mxu0 0.0
    %2134 = vmatprep.subr.mxu0 0.0
    %2135 = vmatpush1.xpose.msra.mxu0 0.0
    %2136 = vmatprep.subr.mxu0 0.0
    %2137 = vmatpush1.xpose.msra.mxu0 0.0
    %2138 = vmatprep.subr.mxu0 0.0
    %2139 = vmatpush1.xpose.msra.mxu0 0.0
    %2140 = vmatprep.subr.mxu0 0.0
    %2141 = vmatpush1.xpose.msra.mxu0 0.0
    %2142 = vmatprep.subr.mxu0 0.0
    %2143 = vmatpush1.xpose.msra.mxu0 0.0
    %2144 = vmatprep.subr.mxu0 0.0
    %2145 = vmatpush1.xpose.msra.mxu0 0.0
    %2146 = vmatprep.subr.mxu0 0.0
    %2147 = vmatpush1.xpose.msra.mxu0 0.0
    %2148 = vmatprep.subr.mxu0 0.0
    %2149 = vmatpush1.xpose.msra.mxu0 0.0
    %2150 = vmatprep.subr.mxu0 0.0
    %2151 = vmatpush1.xpose.msra.mxu0 0.0
    %2152 = vmatprep.subr.mxu0 0.0
    %2153 = vmatpush1.xpose.msra.mxu0 0.0
    %2154 = vmatprep.subr.mxu0 0.0
    %2155 = vmatpush1.xpose.msra.mxu0 0.0
    %2156 = vmatprep.subr.mxu0 0.0
    %2157 = vmatpush1.xpose.msra.mxu0 0.0
    %2158 = vmatprep.subr.mxu0 0.0
    %2159 = vmatpush1.xpose.msra.mxu0 0.0
    %2160 = vmatprep.subr.mxu0 0.0
    %2161 = vmatpush1.xpose.msra.mxu0 0.0
    %2162 = vmatprep.mubr.f32.mxu0 0.0
    %v2163 = vand.u32 %v70, 4294901760
    %v2164 = vsub.f32 %v70, %v2163
    %v2165 = vand.u32 %v2164, 4294901760
    %2166 = vmatmul.mubr.f32.gmra.mrb[0].mxu0 %v2165
    %v2167 = vpop.f32.mrb[0].mxu0
    %v2168 = vadd.f32 %v2094, %v2167
    %v2169 = vpop.f32.mrb[0].mxu0
    %2170 = vdwg.mxu0
    %2171 = vmatprep.subr.mxu0 0.0
    %v2172 = vand.u32 %v1869, 4294901760
    %v2173 = vsub.f32 %v1869, %v2172
    %v2174 = vand.u32 %v2173, 4294901760
    %2175 = vmatpush1.xpose.msra.mxu0 %v2174
    %2176 = vmatprep.subr.mxu0 0.0
    %2177 = vmatpush1.xpose.msra.mxu0 0.0
    %2178 = vmatprep.subr.mxu0 0.0
    %2179 = vmatpush1.xpose.msra.mxu0 0.0
    %2180 = vmatprep.subr.mxu0 0.0
    %2181 = vmatpush1.xpose.msra.mxu0 0.0
    %2182 = vmatprep.subr.mxu0 0.0
    %2183 = vmatpush1.xpose.msra.mxu0 0.0
    %2184 = vmatprep.subr.mxu0 0.0
    %2185 = vmatpush1.xpose.msra.mxu0 0.0
    %2186 = vmatprep.subr.mxu0 0.0
    %2187 = vmatpush1.xpose.msra.mxu0 0.0
    %2188 = vmatprep.subr.mxu0 0.0
    %2189 = vmatpush1.xpose.msra.mxu0 0.0
    %2190 = vmatprep.subr.mxu0 0.0
    %2191 = vmatpush1.xpose.msra.mxu0 0.0
    %2192 = vmatprep.subr.mxu0 0.0
    %2193 = vmatpush1.xpose.msra.mxu0 0.0
    %2194 = vmatprep.subr.mxu0 0.0
    %2195 = vmatpush1.xpose.msra.mxu0 0.0
    %2196 = vmatprep.subr.mxu0 0.0
    %2197 = vmatpush1.xpose.msra.mxu0 0.0
    %2198 = vmatprep.subr.mxu0 0.0
    %2199 = vmatpush1.xpose.msra.mxu0 0.0
    %2200 = vmatprep.subr.mxu0 0.0
    %2201 = vmatpush1.xpose.msra.mxu0 0.0
    %2202 = vmatprep.subr.mxu0 0.0
    %2203 = vmatpush1.xpose.msra.mxu0 0.0
    %2204 = vmatprep.subr.mxu0 0.0
    %2205 = vmatpush1.xpose.msra.mxu0 0.0
    %2206 = vmatprep.subr.mxu0 0.0
    %2207 = vmatpush1.xpose.msra.mxu0 0.0
    %2208 = vmatprep.subr.mxu0 0.0
    %2209 = vmatpush1.xpose.msra.mxu0 0.0
    %2210 = vmatprep.subr.mxu0 0.0
    %2211 = vmatpush1.xpose.msra.mxu0 0.0
    %2212 = vmatprep.subr.mxu0 0.0
    %2213 = vmatpush1.xpose.msra.mxu0 0.0
    %2214 = vmatprep.subr.mxu0 0.0
    %2215 = vmatpush1.xpose.msra.mxu0 0.0
    %2216 = vmatprep.subr.mxu0 0.0
    %2217 = vmatpush1.xpose.msra.mxu0 0.0
    %2218 = vmatprep.subr.mxu0 0.0
    %2219 = vmatpush1.xpose.msra.mxu0 0.0
    %2220 = vmatprep.subr.mxu0 0.0
    %2221 = vmatpush1.xpose.msra.mxu0 0.0
    %2222 = vmatprep.subr.mxu0 0.0
    %2223 = vmatpush1.xpose.msra.mxu0 0.0
    %2224 = vmatprep.subr.mxu0 0.0
    %2225 = vmatpush1.xpose.msra.mxu0 0.0
    %2226 = vmatprep.subr.mxu0 0.0
    %2227 = vmatpush1.xpose.msra.mxu0 0.0
    %2228 = vmatprep.subr.mxu0 0.0
    %2229 = vmatpush1.xpose.msra.mxu0 0.0
    %2230 = vmatprep.subr.mxu0 0.0
    %2231 = vmatpush1.xpose.msra.mxu0 0.0
    %2232 = vmatprep.subr.mxu0 0.0
    %2233 = vmatpush1.xpose.msra.mxu0 0.0
    %2234 = vmatprep.subr.mxu0 0.0
    %2235 = vmatpush1.xpose.msra.mxu0 0.0
    %2236 = vmatprep.subr.mxu0 0.0
    %2237 = vmatpush1.xpose.msra.mxu0 0.0
    %2238 = vmatprep.mubr.f32.mxu0 0.0
    %v2239 = vand.u32 %v70, 4294901760
    %2240 = vmatmul.mubr.f32.gmra.mrb[0].mxu0 %v2239
    %v2241 = vpop.f32.mrb[0].mxu0
    %v2242 = vadd.f32 %v2168, %v2241
    %v2243 = vpop.f32.mrb[0].mxu0
    %2244 = vdwg.mxu0
    %2245 = vmatprep.subr.mxu0 0.0
    %v2246 = vand.u32 %v1869, 4294901760
    %2247 = vmatpush1.xpose.msra.mxu0 %v2246
    %2248 = vmatprep.subr.mxu0 0.0
    %2249 = vmatpush1.xpose.msra.mxu0 0.0
    %2250 = vmatprep.subr.mxu0 0.0
    %2251 = vmatpush1.xpose.msra.mxu0 0.0
    %2252 = vmatprep.subr.mxu0 0.0
    %2253 = vmatpush1.xpose.msra.mxu0 0.0
    %2254 = vmatprep.subr.mxu0 0.0
    %2255 = vmatpush1.xpose.msra.mxu0 0.0
    %2256 = vmatprep.subr.mxu0 0.0
    %2257 = vmatpush1.xpose.msra.mxu0 0.0
    %2258 = vmatprep.subr.mxu0 0.0
    %2259 = vmatpush1.xpose.msra.mxu0 0.0
    %2260 = vmatprep.subr.mxu0 0.0
    %2261 = vmatpush1.xpose.msra.mxu0 0.0
    %2262 = vmatprep.subr.mxu0 0.0
    %2263 = vmatpush1.xpose.msra.mxu0 0.0
    %2264 = vmatprep.subr.mxu0 0.0
    %2265 = vmatpush1.xpose.msra.mxu0 0.0
    %2266 = vmatprep.subr.mxu0 0.0
    %2267 = vmatpush1.xpose.msra.mxu0 0.0
    %2268 = vmatprep.subr.mxu0 0.0
    %2269 = vmatpush1.xpose.msra.mxu0 0.0
    %2270 = vmatprep.subr.mxu0 0.0
    %2271 = vmatpush1.xpose.msra.mxu0 0.0
    %2272 = vmatprep.subr.mxu0 0.0
    %2273 = vmatpush1.xpose.msra.mxu0 0.0
    %2274 = vmatprep.subr.mxu0 0.0
    %2275 = vmatpush1.xpose.msra.mxu0 0.0
    %2276 = vmatprep.subr.mxu0 0.0
    %2277 = vmatpush1.xpose.msra.mxu0 0.0
    %2278 = vmatprep.subr.mxu0 0.0
    %2279 = vmatpush1.xpose.msra.mxu0 0.0
    %2280 = vmatprep.subr.mxu0 0.0
    %2281 = vmatpush1.xpose.msra.mxu0 0.0
    %2282 = vmatprep.subr.mxu0 0.0
    %2283 = vmatpush1.xpose.msra.mxu0 0.0
    %2284 = vmatprep.subr.mxu0 0.0
    %2285 = vmatpush1.xpose.msra.mxu0 0.0
    %2286 = vmatprep.subr.mxu0 0.0
    %2287 = vmatpush1.xpose.msra.mxu0 0.0
    %2288 = vmatprep.subr.mxu0 0.0
    %2289 = vmatpush1.xpose.msra.mxu0 0.0
    %2290 = vmatprep.subr.mxu0 0.0
    %2291 = vmatpush1.xpose.msra.mxu0 0.0
    %2292 = vmatprep.subr.mxu0 0.0
    %2293 = vmatpush1.xpose.msra.mxu0 0.0
    %2294 = vmatprep.subr.mxu0 0.0
    %2295 = vmatpush1.xpose.msra.mxu0 0.0
    %2296 = vmatprep.subr.mxu0 0.0
    %2297 = vmatpush1.xpose.msra.mxu0 0.0
    %2298 = vmatprep.subr.mxu0 0.0
    %2299 = vmatpush1.xpose.msra.mxu0 0.0
    %2300 = vmatprep.subr.mxu0 0.0
    %2301 = vmatpush1.xpose.msra.mxu0 0.0
    %2302 = vmatprep.subr.mxu0 0.0
    %2303 = vmatpush1.xpose.msra.mxu0 0.0
    %2304 = vmatprep.subr.mxu0 0.0
    %2305 = vmatpush1.xpose.msra.mxu0 0.0
    %2306 = vmatprep.subr.mxu0 0.0
    %2307 = vmatpush1.xpose.msra.mxu0 0.0
    %2308 = vmatprep.subr.mxu0 0.0
    %2309 = vmatpush1.xpose.msra.mxu0 0.0
    %2310 = vmatprep.mubr.f32.mxu0 0.0
    %v2311 = vand.u32 %v70, 4294901760
    %2312 = vmatmul.mubr.f32.gmra.mrb[0].mxu0 %v2311
    %v2313 = vpop.f32.mrb[0].mxu0
    %v2314 = vadd.f32 %v2242, %v2313
    %v2315 = vpop.f32.mrb[0].mxu0
    %2316 = vdwg.mxu0
    %v2318 = vsel %vm68, %v62, 0
    %2320 = vmatprep.subr.mxu0 0.0
    %v2321 = vand.u32 %v2318, 4294901760
    %2322 = vmatpush1.xpose.msra.mxu0 %v2321
    %2323 = vmatprep.subr.mxu0 0.0
    %2324 = vmatpush1.xpose.msra.mxu0 0.0
    %2325 = vmatprep.subr.mxu0 0.0
    %2326 = vmatpush1.xpose.msra.mxu0 0.0
    %2327 = vmatprep.subr.mxu0 0.0
    %2328 = vmatpush1.xpose.msra.mxu0 0.0
    %2329 = vmatprep.subr.mxu0 0.0
    %2330 = vmatpush1.xpose.msra.mxu0 0.0
    %2331 = vmatprep.subr.mxu0 0.0
    %2332 = vmatpush1.xpose.msra.mxu0 0.0
    %2333 = vmatprep.subr.mxu0 0.0
    %2334 = vmatpush1.xpose.msra.mxu0 0.0
    %2335 = vmatprep.subr.mxu0 0.0
    %2336 = vmatpush1.xpose.msra.mxu0 0.0
    %2337 = vmatprep.subr.mxu0 0.0
    %2338 = vmatpush1.xpose.msra.mxu0 0.0
    %2339 = vmatprep.subr.mxu0 0.0
    %2340 = vmatpush1.xpose.msra.mxu0 0.0
    %2341 = vmatprep.subr.mxu0 0.0
    %2342 = vmatpush1.xpose.msra.mxu0 0.0
    %2343 = vmatprep.subr.mxu0 0.0
    %2344 = vmatpush1.xpose.msra.mxu0 0.0
    %2345 = vmatprep.subr.mxu0 0.0
    %2346 = vmatpush1.xpose.msra.mxu0 0.0
    %2347 = vmatprep.subr.mxu0 0.0
    %2348 = vmatpush1.xpose.msra.mxu0 0.0
    %2349 = vmatprep.subr.mxu0 0.0
    %2350 = vmatpush1.xpose.msra.mxu0 0.0
    %2351 = vmatprep.subr.mxu0 0.0
    %2352 = vmatpush1.xpose.msra.mxu0 0.0
    %2353 = vmatprep.subr.mxu0 0.0
    %2354 = vmatpush1.xpose.msra.mxu0 0.0
    %2355 = vmatprep.subr.mxu0 0.0
    %2356 = vmatpush1.xpose.msra.mxu0 0.0
    %2357 = vmatprep.subr.mxu0 0.0
    %2358 = vmatpush1.xpose.msra.mxu0 0.0
    %2359 = vmatprep.subr.mxu0 0.0
    %2360 = vmatpush1.xpose.msra.mxu0 0.0
    %2361 = vmatprep.subr.mxu0 0.0
    %2362 = vmatpush1.xpose.msra.mxu0 0.0
    %2363 = vmatprep.subr.mxu0 0.0
    %2364 = vmatpush1.xpose.msra.mxu0 0.0
    %2365 = vmatprep.subr.mxu0 0.0
    %2366 = vmatpush1.xpose.msra.mxu0 0.0
    %2367 = vmatprep.subr.mxu0 0.0
    %2368 = vmatpush1.xpose.msra.mxu0 0.0
    %2369 = vmatprep.subr.mxu0 0.0
    %2370 = vmatpush1.xpose.msra.mxu0 0.0
    %2371 = vmatprep.subr.mxu0 0.0
    %2372 = vmatpush1.xpose.msra.mxu0 0.0
    %2373 = vmatprep.subr.mxu0 0.0
    %2374 = vmatpush1.xpose.msra.mxu0 0.0
    %2375 = vmatprep.subr.mxu0 0.0
    %2376 = vmatpush1.xpose.msra.mxu0 0.0
    %2377 = vmatprep.subr.mxu0 0.0
    %2378 = vmatpush1.xpose.msra.mxu0 0.0
    %2379 = vmatprep.subr.mxu0 0.0
    %2380 = vmatpush1.xpose.msra.mxu0 0.0
    %2381 = vmatprep.subr.mxu0 0.0
    %2382 = vmatpush1.xpose.msra.mxu0 0.0
    %2383 = vmatprep.subr.mxu0 0.0
    %2384 = vmatpush1.xpose.msra.mxu0 0.0
    %2385 = vmatprep.mubr.f32.mxu0 0.0
    %v2386 = vand.u32 %v70, 4294901760
    %v2387 = vsub.f32 %v70, %v2386
    %v2388 = vand.u32 %v2387, 4294901760
    %v2389 = vsub.f32 %v2387, %v2388
    %v2390 = vand.u32 %v2389, 4294901760
    %2391 = vmatmul.mubr.f32.gmra.mrb[0].mxu0 %v2390
    %v2392 = vpop.f32.mrb[0].mxu0
    %v2393 = vadd.f32 0.0, %v2392
    %v2394 = vpop.f32.mrb[0].mxu0
    %2395 = vdwg.mxu0
    %2396 = vmatprep.subr.mxu0 0.0
    %v2397 = vand.u32 %v2318, 4294901760
    %v2398 = vsub.f32 %v2318, %v2397
    %v2399 = vand.u32 %v2398, 4294901760
    %v2400 = vsub.f32 %v2398, %v2399
    %v2401 = vand.u32 %v2400, 4294901760
    %2402 = vmatpush1.xpose.msra.mxu0 %v2401
    %2403 = vmatprep.subr.mxu0 0.0
    %2404 = vmatpush1.xpose.msra.mxu0 0.0
    %2405 = vmatprep.subr.mxu0 0.0
    %2406 = vmatpush1.xpose.msra.mxu0 0.0
    %2407 = vmatprep.subr.mxu0 0.0
    %2408 = vmatpush1.xpose.msra.mxu0 0.0
    %2409 = vmatprep.subr.mxu0 0.0
    %2410 = vmatpush1.xpose.msra.mxu0 0.0
    %2411 = vmatprep.subr.mxu0 0.0
    %2412 = vmatpush1.xpose.msra.mxu0 0.0
    %2413 = vmatprep.subr.mxu0 0.0
    %2414 = vmatpush1.xpose.msra.mxu0 0.0
    %2415 = vmatprep.subr.mxu0 0.0
    %2416 = vmatpush1.xpose.msra.mxu0 0.0
    %2417 = vmatprep.subr.mxu0 0.0
    %2418 = vmatpush1.xpose.msra.mxu0 0.0
    %2419 = vmatprep.subr.mxu0 0.0
    %2420 = vmatpush1.xpose.msra.mxu0 0.0
    %2421 = vmatprep.subr.mxu0 0.0
    %2422 = vmatpush1.xpose.msra.mxu0 0.0
    %2423 = vmatprep.subr.mxu0 0.0
    %2424 = vmatpush1.xpose.msra.mxu0 0.0
    %2425 = vmatprep.subr.mxu0 0.0
    %2426 = vmatpush1.xpose.msra.mxu0 0.0
    %2427 = vmatprep.subr.mxu0 0.0
    %2428 = vmatpush1.xpose.msra.mxu0 0.0
    %2429 = vmatprep.subr.mxu0 0.0
    %2430 = vmatpush1.xpose.msra.mxu0 0.0
    %2431 = vmatprep.subr.mxu0 0.0
    %2432 = vmatpush1.xpose.msra.mxu0 0.0
    %2433 = vmatprep.subr.mxu0 0.0
    %2434 = vmatpush1.xpose.msra.mxu0 0.0
    %2435 = vmatprep.subr.mxu0 0.0
    %2436 = vmatpush1.xpose.msra.mxu0 0.0
    %2437 = vmatprep.subr.mxu0 0.0
    %2438 = vmatpush1.xpose.msra.mxu0 0.0
    %2439 = vmatprep.subr.mxu0 0.0
    %2440 = vmatpush1.xpose.msra.mxu0 0.0
    %2441 = vmatprep.subr.mxu0 0.0
    %2442 = vmatpush1.xpose.msra.mxu0 0.0
    %2443 = vmatprep.subr.mxu0 0.0
    %2444 = vmatpush1.xpose.msra.mxu0 0.0
    %2445 = vmatprep.subr.mxu0 0.0
    %2446 = vmatpush1.xpose.msra.mxu0 0.0
    %2447 = vmatprep.subr.mxu0 0.0
    %2448 = vmatpush1.xpose.msra.mxu0 0.0
    %2449 = vmatprep.subr.mxu0 0.0
    %2450 = vmatpush1.xpose.msra.mxu0 0.0
    %2451 = vmatprep.subr.mxu0 0.0
    %2452 = vmatpush1.xpose.msra.mxu0 0.0
    %2453 = vmatprep.subr.mxu0 0.0
    %2454 = vmatpush1.xpose.msra.mxu0 0.0
    %2455 = vmatprep.subr.mxu0 0.0
    %2456 = vmatpush1.xpose.msra.mxu0 0.0
    %2457 = vmatprep.subr.mxu0 0.0
    %2458 = vmatpush1.xpose.msra.mxu0 0.0
    %2459 = vmatprep.subr.mxu0 0.0
    %2460 = vmatpush1.xpose.msra.mxu0 0.0
    %2461 = vmatprep.subr.mxu0 0.0
    %2462 = vmatpush1.xpose.msra.mxu0 0.0
    %2463 = vmatprep.subr.mxu0 0.0
    %2464 = vmatpush1.xpose.msra.mxu0 0.0
    %2465 = vmatprep.mubr.f32.mxu0 0.0
    %v2466 = vand.u32 %v70, 4294901760
    %2467 = vmatmul.mubr.f32.gmra.mrb[0].mxu0 %v2466
    %v2468 = vpop.f32.mrb[0].mxu0
    %v2469 = vadd.f32 %v2393, %v2468
    %v2470 = vpop.f32.mrb[0].mxu0
    %2471 = vdwg.mxu0
    %2472 = vmatprep.subr.mxu0 0.0
    %v2473 = vand.u32 %v2318, 4294901760
    %v2474 = vsub.f32 %v2318, %v2473
    %2475 = vmatpush1.xpose.msra.mxu0 %v2474
    %2476 = vmatprep.subr.mxu0 0.0
    %2477 = vmatpush1.xpose.msra.mxu0 0.0
    %2478 = vmatprep.subr.mxu0 0.0
    %2479 = vmatpush1.xpose.msra.mxu0 0.0
    %2480 = vmatprep.subr.mxu0 0.0
    %2481 = vmatpush1.xpose.msra.mxu0 0.0
    %2482 = vmatprep.subr.mxu0 0.0
    %2483 = vmatpush1.xpose.msra.mxu0 0.0
    %2484 = vmatprep.subr.mxu0 0.0
    %2485 = vmatpush1.xpose.msra.mxu0 0.0
    %2486 = vmatprep.subr.mxu0 0.0
    %2487 = vmatpush1.xpose.msra.mxu0 0.0
    %2488 = vmatprep.subr.mxu0 0.0
    %2489 = vmatpush1.xpose.msra.mxu0 0.0
    %2490 = vmatprep.subr.mxu0 0.0
    %2491 = vmatpush1.xpose.msra.mxu0 0.0
    %2492 = vmatprep.subr.mxu0 0.0
    %2493 = vmatpush1.xpose.msra.mxu0 0.0
    %2494 = vmatprep.subr.mxu0 0.0
    %2495 = vmatpush1.xpose.msra.mxu0 0.0
    %2496 = vmatprep.subr.mxu0 0.0
    %2497 = vmatpush1.xpose.msra.mxu0 0.0
    %2498 = vmatprep.subr.mxu0 0.0
    %2499 = vmatpush1.xpose.msra.mxu0 0.0
    %2500 = vmatprep.subr.mxu0 0.0
    %2501 = vmatpush1.xpose.msra.mxu0 0.0
    %2502 = vmatprep.subr.mxu0 0.0
    %2503 = vmatpush1.xpose.msra.mxu0 0.0
    %2504 = vmatprep.subr.mxu0 0.0
    %2505 = vmatpush1.xpose.msra.mxu0 0.0
    %2506 = vmatprep.subr.mxu0 0.0
    %2507 = vmatpush1.xpose.msra.mxu0 0.0
    %2508 = vmatprep.subr.mxu0 0.0
    %2509 = vmatpush1.xpose.msra.mxu0 0.0
    %2510 = vmatprep.subr.mxu0 0.0
    %2511 = vmatpush1.xpose.msra.mxu0 0.0
    %2512 = vmatprep.subr.mxu0 0.0
    %2513 = vmatpush1.xpose.msra.mxu0 0.0
    %2514 = vmatprep.subr.mxu0 0.0
    %2515 = vmatpush1.xpose.msra.mxu0 0.0
    %2516 = vmatprep.subr.mxu0 0.0
    %2517 = vmatpush1.xpose.msra.mxu0 0.0
    %2518 = vmatprep.subr.mxu0 0.0
    %2519 = vmatpush1.xpose.msra.mxu0 0.0
    %2520 = vmatprep.subr.mxu0 0.0
    %2521 = vmatpush1.xpose.msra.mxu0 0.0
    %2522 = vmatprep.subr.mxu0 0.0
    %2523 = vmatpush1.xpose.msra.mxu0 0.0
    %2524 = vmatprep.subr.mxu0 0.0
    %2525 = vmatpush1.xpose.msra.mxu0 0.0
    %2526 = vmatprep.subr.mxu0 0.0
    %2527 = vmatpush1.xpose.msra.mxu0 0.0
    %2528 = vmatprep.subr.mxu0 0.0
    %2529 = vmatpush1.xpose.msra.mxu0 0.0
    %2530 = vmatprep.subr.mxu0 0.0
    %2531 = vmatpush1.xpose.msra.mxu0 0.0
    %2532 = vmatprep.subr.mxu0 0.0
    %2533 = vmatpush1.xpose.msra.mxu0 0.0
    %2534 = vmatprep.subr.mxu0 0.0
    %2535 = vmatpush1.xpose.msra.mxu0 0.0
    %2536 = vmatprep.subr.mxu0 0.0
    %2537 = vmatpush1.xpose.msra.mxu0 0.0
    %2538 = vmatprep.mubr.f32.mxu0 0.0
    %v2539 = vand.u32 %v70, 4294901760
    %v2540 = vsub.f32 %v70, %v2539
    %2541 = vmatmul.mubr.f32.gmra.mrb[0].mxu0 %v2540
    %v2542 = vpop.f32.mrb[0].mxu0
    %v2543 = vadd.f32 %v2469, %v2542
    %v2544 = vpop.f32.mrb[0].mxu0
    %2545 = vdwg.mxu0
    %2546 = vmatprep.subr.mxu0 0.0
    %v2547 = vand.u32 %v2318, 4294901760
    %2548 = vmatpush1.xpose.msra.mxu0 %v2547
    %2549 = vmatprep.subr.mxu0 0.0
    %2550 = vmatpush1.xpose.msra.mxu0 0.0
    %2551 = vmatprep.subr.mxu0 0.0
    %2552 = vmatpush1.xpose.msra.mxu0 0.0
    %2553 = vmatprep.subr.mxu0 0.0
    %2554 = vmatpush1.xpose.msra.mxu0 0.0
    %2555 = vmatprep.subr.mxu0 0.0
    %2556 = vmatpush1.xpose.msra.mxu0 0.0
    %2557 = vmatprep.subr.mxu0 0.0
    %2558 = vmatpush1.xpose.msra.mxu0 0.0
    %2559 = vmatprep.subr.mxu0 0.0
    %2560 = vmatpush1.xpose.msra.mxu0 0.0
    %2561 = vmatprep.subr.mxu0 0.0
    %2562 = vmatpush1.xpose.msra.mxu0 0.0
    %2563 = vmatprep.subr.mxu0 0.0
    %2564 = vmatpush1.xpose.msra.mxu0 0.0
    %2565 = vmatprep.subr.mxu0 0.0
    %2566 = vmatpush1.xpose.msra.mxu0 0.0
    %2567 = vmatprep.subr.mxu0 0.0
    %2568 = vmatpush1.xpose.msra.mxu0 0.0
    %2569 = vmatprep.subr.mxu0 0.0
    %2570 = vmatpush1.xpose.msra.mxu0 0.0
    %2571 = vmatprep.subr.mxu0 0.0
    %2572 = vmatpush1.xpose.msra.mxu0 0.0
    %2573 = vmatprep.subr.mxu0 0.0
    %2574 = vmatpush1.xpose.msra.mxu0 0.0
    %2575 = vmatprep.subr.mxu0 0.0
    %2576 = vmatpush1.xpose.msra.mxu0 0.0
    %2577 = vmatprep.subr.mxu0 0.0
    %2578 = vmatpush1.xpose.msra.mxu0 0.0
    %2579 = vmatprep.subr.mxu0 0.0
    %2580 = vmatpush1.xpose.msra.mxu0 0.0
    %2581 = vmatprep.subr.mxu0 0.0
    %2582 = vmatpush1.xpose.msra.mxu0 0.0
    %2583 = vmatprep.subr.mxu0 0.0
    %2584 = vmatpush1.xpose.msra.mxu0 0.0
    %2585 = vmatprep.subr.mxu0 0.0
    %2586 = vmatpush1.xpose.msra.mxu0 0.0
    %2587 = vmatprep.subr.mxu0 0.0
    %2588 = vmatpush1.xpose.msra.mxu0 0.0
    %2589 = vmatprep.subr.mxu0 0.0
    %2590 = vmatpush1.xpose.msra.mxu0 0.0
    %2591 = vmatprep.subr.mxu0 0.0
    %2592 = vmatpush1.xpose.msra.mxu0 0.0
    %2593 = vmatprep.subr.mxu0 0.0
    %2594 = vmatpush1.xpose.msra.mxu0 0.0
    %2595 = vmatprep.subr.mxu0 0.0
    %2596 = vmatpush1.xpose.msra.mxu0 0.0
    %2597 = vmatprep.subr.mxu0 0.0
    %2598 = vmatpush1.xpose.msra.mxu0 0.0
    %2599 = vmatprep.subr.mxu0 0.0
    %2600 = vmatpush1.xpose.msra.mxu0 0.0
    %2601 = vmatprep.subr.mxu0 0.0
    %2602 = vmatpush1.xpose.msra.mxu0 0.0
    %2603 = vmatprep.subr.mxu0 0.0
    %2604 = vmatpush1.xpose.msra.mxu0 0.0
    %2605 = vmatprep.subr.mxu0 0.0
    %2606 = vmatpush1.xpose.msra.mxu0 0.0
    %2607 = vmatprep.subr.mxu0 0.0
    %2608 = vmatpush1.xpose.msra.mxu0 0.0
    %2609 = vmatprep.subr.mxu0 0.0
    %2610 = vmatpush1.xpose.msra.mxu0 0.0
    %2611 = vmatprep.mubr.f32.mxu0 0.0
    %v2612 = vand.u32 %v70, 4294901760
    %v2613 = vsub.f32 %v70, %v2612
    %v2614 = vand.u32 %v2613, 4294901760
    %2615 = vmatmul.mubr.f32.gmra.mrb[0].mxu0 %v2614
    %v2616 = vpop.f32.mrb[0].mxu0
    %v2617 = vadd.f32 %v2543, %v2616
    %v2618 = vpop.f32.mrb[0].mxu0
    %2619 = vdwg.mxu0
    %2620 = vmatprep.subr.mxu0 0.0
    %v2621 = vand.u32 %v2318, 4294901760
    %v2622 = vsub.f32 %v2318, %v2621
    %v2623 = vand.u32 %v2622, 4294901760
    %2624 = vmatpush1.xpose.msra.mxu0 %v2623
    %2625 = vmatprep.subr.mxu0 0.0
    %2626 = vmatpush1.xpose.msra.mxu0 0.0
    %2627 = vmatprep.subr.mxu0 0.0
    %2628 = vmatpush1.xpose.msra.mxu0 0.0
    %2629 = vmatprep.subr.mxu0 0.0
    %2630 = vmatpush1.xpose.msra.mxu0 0.0
    %2631 = vmatprep.subr.mxu0 0.0
    %2632 = vmatpush1.xpose.msra.mxu0 0.0
    %2633 = vmatprep.subr.mxu0 0.0
    %2634 = vmatpush1.xpose.msra.mxu0 0.0
    %2635 = vmatprep.subr.mxu0 0.0
    %2636 = vmatpush1.xpose.msra.mxu0 0.0
    %2637 = vmatprep.subr.mxu0 0.0
    %2638 = vmatpush1.xpose.msra.mxu0 0.0
    %2639 = vmatprep.subr.mxu0 0.0
    %2640 = vmatpush1.xpose.msra.mxu0 0.0
    %2641 = vmatprep.subr.mxu0 0.0
    %2642 = vmatpush1.xpose.msra.mxu0 0.0
    %2643 = vmatprep.subr.mxu0 0.0
    %2644 = vmatpush1.xpose.msra.mxu0 0.0
    %2645 = vmatprep.subr.mxu0 0.0
    %2646 = vmatpush1.xpose.msra.mxu0 0.0
    %2647 = vmatprep.subr.mxu0 0.0
    %2648 = vmatpush1.xpose.msra.mxu0 0.0
    %2649 = vmatprep.subr.mxu0 0.0
    %2650 = vmatpush1.xpose.msra.mxu0 0.0
    %2651 = vmatprep.subr.mxu0 0.0
    %2652 = vmatpush1.xpose.msra.mxu0 0.0
    %2653 = vmatprep.subr.mxu0 0.0
    %2654 = vmatpush1.xpose.msra.mxu0 0.0
    %2655 = vmatprep.subr.mxu0 0.0
    %2656 = vmatpush1.xpose.msra.mxu0 0.0
    %2657 = vmatprep.subr.mxu0 0.0
    %2658 = vmatpush1.xpose.msra.mxu0 0.0
    %2659 = vmatprep.subr.mxu0 0.0
    %2660 = vmatpush1.xpose.msra.mxu0 0.0
    %2661 = vmatprep.subr.mxu0 0.0
    %2662 = vmatpush1.xpose.msra.mxu0 0.0
    %2663 = vmatprep.subr.mxu0 0.0
    %2664 = vmatpush1.xpose.msra.mxu0 0.0
    %2665 = vmatprep.subr.mxu0 0.0
    %2666 = vmatpush1.xpose.msra.mxu0 0.0
    %2667 = vmatprep.subr.mxu0 0.0
    %2668 = vmatpush1.xpose.msra.mxu0 0.0
    %2669 = vmatprep.subr.mxu0 0.0
    %2670 = vmatpush1.xpose.msra.mxu0 0.0
    %2671 = vmatprep.subr.mxu0 0.0
    %2672 = vmatpush1.xpose.msra.mxu0 0.0
    %2673 = vmatprep.subr.mxu0 0.0
    %2674 = vmatpush1.xpose.msra.mxu0 0.0
    %2675 = vmatprep.subr.mxu0 0.0
    %2676 = vmatpush1.xpose.msra.mxu0 0.0
    %2677 = vmatprep.subr.mxu0 0.0
    %2678 = vmatpush1.xpose.msra.mxu0 0.0
    %2679 = vmatprep.subr.mxu0 0.0
    %2680 = vmatpush1.xpose.msra.mxu0 0.0
    %2681 = vmatprep.subr.mxu0 0.0
    %2682 = vmatpush1.xpose.msra.mxu0 0.0
    %2683 = vmatprep.subr.mxu0 0.0
    %2684 = vmatpush1.xpose.msra.mxu0 0.0
    %2685 = vmatprep.subr.mxu0 0.0
    %2686 = vmatpush1.xpose.msra.mxu0 0.0
    %2687 = vmatprep.mubr.f32.mxu0 0.0
    %v2688 = vand.u32 %v70, 4294901760
    %2689 = vmatmul.mubr.f32.gmra.mrb[0].mxu0 %v2688
    %v2690 = vpop.f32.mrb[0].mxu0
    %v2691 = vadd.f32 %v2617, %v2690
    %v2692 = vpop.f32.mrb[0].mxu0
    %2693 = vdwg.mxu0
    %2694 = vmatprep.subr.mxu0 0.0
    %v2695 = vand.u32 %v2318, 4294901760
    %2696 = vmatpush1.xpose.msra.mxu0 %v2695
    %2697 = vmatprep.subr.mxu0 0.0
    %2698 = vmatpush1.xpose.msra.mxu0 0.0
    %2699 = vmatprep.subr.mxu0 0.0
    %2700 = vmatpush1.xpose.msra.mxu0 0.0
    %2701 = vmatprep.subr.mxu0 0.0
    %2702 = vmatpush1.xpose.msra.mxu0 0.0
    %2703 = vmatprep.subr.mxu0 0.0
    %2704 = vmatpush1.xpose.msra.mxu0 0.0
    %2705 = vmatprep.subr.mxu0 0.0
    %2706 = vmatpush1.xpose.msra.mxu0 0.0
    %2707 = vmatprep.subr.mxu0 0.0
    %2708 = vmatpush1.xpose.msra.mxu0 0.0
    %2709 = vmatprep.subr.mxu0 0.0
    %2710 = vmatpush1.xpose.msra.mxu0 0.0
    %2711 = vmatprep.subr.mxu0 0.0
    %2712 = vmatpush1.xpose.msra.mxu0 0.0
    %2713 = vmatprep.subr.mxu0 0.0
    %2714 = vmatpush1.xpose.msra.mxu0 0.0
    %2715 = vmatprep.subr.mxu0 0.0
    %2716 = vmatpush1.xpose.msra.mxu0 0.0
    %2717 = vmatprep.subr.mxu0 0.0
    %2718 = vmatpush1.xpose.msra.mxu0 0.0
    %2719 = vmatprep.subr.mxu0 0.0
    %2720 = vmatpush1.xpose.msra.mxu0 0.0
    %2721 = vmatprep.subr.mxu0 0.0
    %2722 = vmatpush1.xpose.msra.mxu0 0.0
    %2723 = vmatprep.subr.mxu0 0.0
    %2724 = vmatpush1.xpose.msra.mxu0 0.0
    %2725 = vmatprep.subr.mxu0 0.0
    %2726 = vmatpush1.xpose.msra.mxu0 0.0
    %2727 = vmatprep.subr.mxu0 0.0
    %2728 = vmatpush1.xpose.msra.mxu0 0.0
    %2729 = vmatprep.subr.mxu0 0.0
    %2730 = vmatpush1.xpose.msra.mxu0 0.0
    %2731 = vmatprep.subr.mxu0 0.0
    %2732 = vmatpush1.xpose.msra.mxu0 0.0
    %2733 = vmatprep.subr.mxu0 0.0
    %2734 = vmatpush1.xpose.msra.mxu0 0.0
    %2735 = vmatprep.subr.mxu0 0.0
    %2736 = vmatpush1.xpose.msra.mxu0 0.0
    %2737 = vmatprep.subr.mxu0 0.0
    %2738 = vmatpush1.xpose.msra.mxu0 0.0
    %2739 = vmatprep.subr.mxu0 0.0
    %2740 = vmatpush1.xpose.msra.mxu0 0.0
    %2741 = vmatprep.subr.mxu0 0.0
    %2742 = vmatpush1.xpose.msra.mxu0 0.0
    %2743 = vmatprep.subr.mxu0 0.0
    %2744 = vmatpush1.xpose.msra.mxu0 0.0
    %2745 = vmatprep.subr.mxu0 0.0
    %2746 = vmatpush1.xpose.msra.mxu0 0.0
    %2747 = vmatprep.subr.mxu0 0.0
    %2748 = vmatpush1.xpose.msra.mxu0 0.0
    %2749 = vmatprep.subr.mxu0 0.0
    %2750 = vmatpush1.xpose.msra.mxu0 0.0
    %2751 = vmatprep.subr.mxu0 0.0
    %2752 = vmatpush1.xpose.msra.mxu0 0.0
    %2753 = vmatprep.subr.mxu0 0.0
    %2754 = vmatpush1.xpose.msra.mxu0 0.0
    %2755 = vmatprep.subr.mxu0 0.0
    %2756 = vmatpush1.xpose.msra.mxu0 0.0
    %2757 = vmatprep.subr.mxu0 0.0
    %2758 = vmatpush1.xpose.msra.mxu0 0.0
    %2759 = vmatprep.mubr.f32.mxu0 0.0
    %v2760 = vand.u32 %v70, 4294901760
    %2761 = vmatmul.mubr.f32.gmra.mrb[0].mxu0 %v2760
    %v2762 = vpop.f32.mrb[0].mxu0
    %v2763 = vadd.f32 %v2691, %v2762
    %v2764 = vpop.f32.mrb[0].mxu0
    %2765 = vdwg.mxu0
    %v2767 = vsel %vm68, %v63, 0
    %2769 = vmatprep.subr.mxu0 0.0
    %v2770 = vand.u32 %v2767, 4294901760
    %2771 = vmatpush1.xpose.msra.mxu0 %v2770
    %2772 = vmatprep.subr.mxu0 0.0
    %2773 = vmatpush1.xpose.msra.mxu0 0.0
    %2774 = vmatprep.subr.mxu0 0.0
    %2775 = vmatpush1.xpose.msra.mxu0 0.0
    %2776 = vmatprep.subr.mxu0 0.0
    %2777 = vmatpush1.xpose.msra.mxu0 0.0
    %2778 = vmatprep.subr.mxu0 0.0
    %2779 = vmatpush1.xpose.msra.mxu0 0.0
    %2780 = vmatprep.subr.mxu0 0.0
    %2781 = vmatpush1.xpose.msra.mxu0 0.0
    %2782 = vmatprep.subr.mxu0 0.0
    %2783 = vmatpush1.xpose.msra.mxu0 0.0
    %2784 = vmatprep.subr.mxu0 0.0
    %2785 = vmatpush1.xpose.msra.mxu0 0.0
    %2786 = vmatprep.subr.mxu0 0.0
    %2787 = vmatpush1.xpose.msra.mxu0 0.0
    %2788 = vmatprep.subr.mxu0 0.0
    %2789 = vmatpush1.xpose.msra.mxu0 0.0
    %2790 = vmatprep.subr.mxu0 0.0
    %2791 = vmatpush1.xpose.msra.mxu0 0.0
    %2792 = vmatprep.subr.mxu0 0.0
    %2793 = vmatpush1.xpose.msra.mxu0 0.0
    %2794 = vmatprep.subr.mxu0 0.0
    %2795 = vmatpush1.xpose.msra.mxu0 0.0
    %2796 = vmatprep.subr.mxu0 0.0
    %2797 = vmatpush1.xpose.msra.mxu0 0.0
    %2798 = vmatprep.subr.mxu0 0.0
    %2799 = vmatpush1.xpose.msra.mxu0 0.0
    %2800 = vmatprep.subr.mxu0 0.0
    %2801 = vmatpush1.xpose.msra.mxu0 0.0
    %2802 = vmatprep.subr.mxu0 0.0
    %2803 = vmatpush1.xpose.msra.mxu0 0.0
    %2804 = vmatprep.subr.mxu0 0.0
    %2805 = vmatpush1.xpose.msra.mxu0 0.0
    %2806 = vmatprep.subr.mxu0 0.0
    %2807 = vmatpush1.xpose.msra.mxu0 0.0
    %2808 = vmatprep.subr.mxu0 0.0
    %2809 = vmatpush1.xpose.msra.mxu0 0.0
    %2810 = vmatprep.subr.mxu0 0.0
    %2811 = vmatpush1.xpose.msra.mxu0 0.0
    %2812 = vmatprep.subr.mxu0 0.0
    %2813 = vmatpush1.xpose.msra.mxu0 0.0
    %2814 = vmatprep.subr.mxu0 0.0
    %2815 = vmatpush1.xpose.msra.mxu0 0.0
    %2816 = vmatprep.subr.mxu0 0.0
    %2817 = vmatpush1.xpose.msra.mxu0 0.0
    %2818 = vmatprep.subr.mxu0 0.0
    %2819 = vmatpush1.xpose.msra.mxu0 0.0
    %2820 = vmatprep.subr.mxu0 0.0
    %2821 = vmatpush1.xpose.msra.mxu0 0.0
    %2822 = vmatprep.subr.mxu0 0.0
    %2823 = vmatpush1.xpose.msra.mxu0 0.0
    %2824 = vmatprep.subr.mxu0 0.0
    %2825 = vmatpush1.xpose.msra.mxu0 0.0
    %2826 = vmatprep.subr.mxu0 0.0
    %2827 = vmatpush1.xpose.msra.mxu0 0.0
    %2828 = vmatprep.subr.mxu0 0.0
    %2829 = vmatpush1.xpose.msra.mxu0 0.0
    %2830 = vmatprep.subr.mxu0 0.0
    %2831 = vmatpush1.xpose.msra.mxu0 0.0
    %2832 = vmatprep.subr.mxu0 0.0
    %2833 = vmatpush1.xpose.msra.mxu0 0.0
    %2834 = vmatprep.mubr.f32.mxu0 0.0
    %v2835 = vand.u32 %v70, 4294901760
    %v2836 = vsub.f32 %v70, %v2835
    %v2837 = vand.u32 %v2836, 4294901760
    %v2838 = vsub.f32 %v2836, %v2837
    %v2839 = vand.u32 %v2838, 4294901760
    %2840 = vmatmul.mubr.f32.gmra.mrb[0].mxu0 %v2839
    %v2841 = vpop.f32.mrb[0].mxu0
    %v2842 = vadd.f32 0.0, %v2841
    %v2843 = vpop.f32.mrb[0].mxu0
    %2844 = vdwg.mxu0
    %2845 = vmatprep.subr.mxu0 0.0
    %v2846 = vand.u32 %v2767, 4294901760
    %v2847 = vsub.f32 %v2767, %v2846
    %v2848 = vand.u32 %v2847, 4294901760
    %v2849 = vsub.f32 %v2847, %v2848
    %v2850 = vand.u32 %v2849, 4294901760
    %2851 = vmatpush1.xpose.msra.mxu0 %v2850
    %2852 = vmatprep.subr.mxu0 0.0
    %2853 = vmatpush1.xpose.msra.mxu0 0.0
    %2854 = vmatprep.subr.mxu0 0.0
    %2855 = vmatpush1.xpose.msra.mxu0 0.0
    %2856 = vmatprep.subr.mxu0 0.0
    %2857 = vmatpush1.xpose.msra.mxu0 0.0
    %2858 = vmatprep.subr.mxu0 0.0
    %2859 = vmatpush1.xpose.msra.mxu0 0.0
    %2860 = vmatprep.subr.mxu0 0.0
    %2861 = vmatpush1.xpose.msra.mxu0 0.0
    %2862 = vmatprep.subr.mxu0 0.0
    %2863 = vmatpush1.xpose.msra.mxu0 0.0
    %2864 = vmatprep.subr.mxu0 0.0
    %2865 = vmatpush1.xpose.msra.mxu0 0.0
    %2866 = vmatprep.subr.mxu0 0.0
    %2867 = vmatpush1.xpose.msra.mxu0 0.0
    %2868 = vmatprep.subr.mxu0 0.0
    %2869 = vmatpush1.xpose.msra.mxu0 0.0
    %2870 = vmatprep.subr.mxu0 0.0
    %2871 = vmatpush1.xpose.msra.mxu0 0.0
    %2872 = vmatprep.subr.mxu0 0.0
    %2873 = vmatpush1.xpose.msra.mxu0 0.0
    %2874 = vmatprep.subr.mxu0 0.0
    %2875 = vmatpush1.xpose.msra.mxu0 0.0
    %2876 = vmatprep.subr.mxu0 0.0
    %2877 = vmatpush1.xpose.msra.mxu0 0.0
    %2878 = vmatprep.subr.mxu0 0.0
    %2879 = vmatpush1.xpose.msra.mxu0 0.0
    %2880 = vmatprep.subr.mxu0 0.0
    %2881 = vmatpush1.xpose.msra.mxu0 0.0
    %2882 = vmatprep.subr.mxu0 0.0
    %2883 = vmatpush1.xpose.msra.mxu0 0.0
    %2884 = vmatprep.subr.mxu0 0.0
    %2885 = vmatpush1.xpose.msra.mxu0 0.0
    %2886 = vmatprep.subr.mxu0 0.0
    %2887 = vmatpush1.xpose.msra.mxu0 0.0
    %2888 = vmatprep.subr.mxu0 0.0
    %2889 = vmatpush1.xpose.msra.mxu0 0.0
    %2890 = vmatprep.subr.mxu0 0.0
    %2891 = vmatpush1.xpose.msra.mxu0 0.0
    %2892 = vmatprep.subr.mxu0 0.0
    %2893 = vmatpush1.xpose.msra.mxu0 0.0
    %2894 = vmatprep.subr.mxu0 0.0
    %2895 = vmatpush1.xpose.msra.mxu0 0.0
    %2896 = vmatprep.subr.mxu0 0.0
    %2897 = vmatpush1.xpose.msra.mxu0 0.0
    %2898 = vmatprep.subr.mxu0 0.0
    %2899 = vmatpush1.xpose.msra.mxu0 0.0
    %2900 = vmatprep.subr.mxu0 0.0
    %2901 = vmatpush1.xpose.msra.mxu0 0.0
    %2902 = vmatprep.subr.mxu0 0.0
    %2903 = vmatpush1.xpose.msra.mxu0 0.0
    %2904 = vmatprep.subr.mxu0 0.0
    %2905 = vmatpush1.xpose.msra.mxu0 0.0
    %2906 = vmatprep.subr.mxu0 0.0
    %2907 = vmatpush1.xpose.msra.mxu0 0.0
    %2908 = vmatprep.subr.mxu0 0.0
    %2909 = vmatpush1.xpose.msra.mxu0 0.0
    %2910 = vmatprep.subr.mxu0 0.0
    %2911 = vmatpush1.xpose.msra.mxu0 0.0
    %2912 = vmatprep.subr.mxu0 0.0
    %2913 = vmatpush1.xpose.msra.mxu0 0.0
    %2914 = vmatprep.mubr.f32.mxu0 0.0
    %v2915 = vand.u32 %v70, 4294901760
    %2916 = vmatmul.mubr.f32.gmra.mrb[0].mxu0 %v2915
    %v2917 = vpop.f32.mrb[0].mxu0
    %v2918 = vadd.f32 %v2842, %v2917
    %v2919 = vpop.f32.mrb[0].mxu0
    %2920 = vdwg.mxu0
    %2921 = vmatprep.subr.mxu0 0.0
    %v2922 = vand.u32 %v2767, 4294901760
    %v2923 = vsub.f32 %v2767, %v2922
    %2924 = vmatpush1.xpose.msra.mxu0 %v2923
    %2925 = vmatprep.subr.mxu0 0.0
    %2926 = vmatpush1.xpose.msra.mxu0 0.0
    %2927 = vmatprep.subr.mxu0 0.0
    %2928 = vmatpush1.xpose.msra.mxu0 0.0
    %2929 = vmatprep.subr.mxu0 0.0
    %2930 = vmatpush1.xpose.msra.mxu0 0.0
    %2931 = vmatprep.subr.mxu0 0.0
    %2932 = vmatpush1.xpose.msra.mxu0 0.0
    %2933 = vmatprep.subr.mxu0 0.0
    %2934 = vmatpush1.xpose.msra.mxu0 0.0
    %2935 = vmatprep.subr.mxu0 0.0
    %2936 = vmatpush1.xpose.msra.mxu0 0.0
    %2937 = vmatprep.subr.mxu0 0.0
    %2938 = vmatpush1.xpose.msra.mxu0 0.0
    %2939 = vmatprep.subr.mxu0 0.0
    %2940 = vmatpush1.xpose.msra.mxu0 0.0
    %2941 = vmatprep.subr.mxu0 0.0
    %2942 = vmatpush1.xpose.msra.mxu0 0.0
    %2943 = vmatprep.subr.mxu0 0.0
    %2944 = vmatpush1.xpose.msra.mxu0 0.0
    %2945 = vmatprep.subr.mxu0 0.0
    %2946 = vmatpush1.xpose.msra.mxu0 0.0
    %2947 = vmatprep.subr.mxu0 0.0
    %2948 = vmatpush1.xpose.msra.mxu0 0.0
    %2949 = vmatprep.subr.mxu0 0.0
    %2950 = vmatpush1.xpose.msra.mxu0 0.0
    %2951 = vmatprep.subr.mxu0 0.0
    %2952 = vmatpush1.xpose.msra.mxu0 0.0
    %2953 = vmatprep.subr.mxu0 0.0
    %2954 = vmatpush1.xpose.msra.mxu0 0.0
    %2955 = vmatprep.subr.mxu0 0.0
    %2956 = vmatpush1.xpose.msra.mxu0 0.0
    %2957 = vmatprep.subr.mxu0 0.0
    %2958 = vmatpush1.xpose.msra.mxu0 0.0
    %2959 = vmatprep.subr.mxu0 0.0
    %2960 = vmatpush1.xpose.msra.mxu0 0.0
    %2961 = vmatprep.subr.mxu0 0.0
    %2962 = vmatpush1.xpose.msra.mxu0 0.0
    %2963 = vmatprep.subr.mxu0 0.0
    %2964 = vmatpush1.xpose.msra.mxu0 0.0
    %2965 = vmatprep.subr.mxu0 0.0
    %2966 = vmatpush1.xpose.msra.mxu0 0.0
    %2967 = vmatprep.subr.mxu0 0.0
    %2968 = vmatpush1.xpose.msra.mxu0 0.0
    %2969 = vmatprep.subr.mxu0 0.0
    %2970 = vmatpush1.xpose.msra.mxu0 0.0
    %2971 = vmatprep.subr.mxu0 0.0
    %2972 = vmatpush1.xpose.msra.mxu0 0.0
    %2973 = vmatprep.subr.mxu0 0.0
    %2974 = vmatpush1.xpose.msra.mxu0 0.0
    %2975 = vmatprep.subr.mxu0 0.0
    %2976 = vmatpush1.xpose.msra.mxu0 0.0
    %2977 = vmatprep.subr.mxu0 0.0
    %2978 = vmatpush1.xpose.msra.mxu0 0.0
    %2979 = vmatprep.subr.mxu0 0.0
    %2980 = vmatpush1.xpose.msra.mxu0 0.0
    %2981 = vmatprep.subr.mxu0 0.0
    %2982 = vmatpush1.xpose.msra.mxu0 0.0
    %2983 = vmatprep.subr.mxu0 0.0
    %2984 = vmatpush1.xpose.msra.mxu0 0.0
    %2985 = vmatprep.subr.mxu0 0.0
    %2986 = vmatpush1.xpose.msra.mxu0 0.0
    %2987 = vmatprep.mubr.f32.mxu0 0.0
    %v2988 = vand.u32 %v70, 4294901760
    %v2989 = vsub.f32 %v70, %v2988
    %2990 = vmatmul.mubr.f32.gmra.mrb[0].mxu0 %v2989
    %v2991 = vpop.f32.mrb[0].mxu0
    %v2992 = vadd.f32 %v2918, %v2991
    %v2993 = vpop.f32.mrb[0].mxu0
    %2994 = vdwg.mxu0
    %2995 = vmatprep.subr.mxu0 0.0
    %v2996 = vand.u32 %v2767, 4294901760
    %2997 = vmatpush1.xpose.msra.mxu0 %v2996
    %2998 = vmatprep.subr.mxu0 0.0
    %2999 = vmatpush1.xpose.msra.mxu0 0.0
    %3000 = vmatprep.subr.mxu0 0.0
    %3001 = vmatpush1.xpose.msra.mxu0 0.0
    %3002 = vmatprep.subr.mxu0 0.0
    %3003 = vmatpush1.xpose.msra.mxu0 0.0
    %3004 = vmatprep.subr.mxu0 0.0
    %3005 = vmatpush1.xpose.msra.mxu0 0.0
    %3006 = vmatprep.subr.mxu0 0.0
    %3007 = vmatpush1.xpose.msra.mxu0 0.0
    %3008 = vmatprep.subr.mxu0 0.0
    %3009 = vmatpush1.xpose.msra.mxu0 0.0
    %3010 = vmatprep.subr.mxu0 0.0
    %3011 = vmatpush1.xpose.msra.mxu0 0.0
    %3012 = vmatprep.subr.mxu0 0.0
    %3013 = vmatpush1.xpose.msra.mxu0 0.0
    %3014 = vmatprep.subr.mxu0 0.0
    %3015 = vmatpush1.xpose.msra.mxu0 0.0
    %3016 = vmatprep.subr.mxu0 0.0
    %3017 = vmatpush1.xpose.msra.mxu0 0.0
    %3018 = vmatprep.subr.mxu0 0.0
    %3019 = vmatpush1.xpose.msra.mxu0 0.0
    %3020 = vmatprep.subr.mxu0 0.0
    %3021 = vmatpush1.xpose.msra.mxu0 0.0
    %3022 = vmatprep.subr.mxu0 0.0
    %3023 = vmatpush1.xpose.msra.mxu0 0.0
    %3024 = vmatprep.subr.mxu0 0.0
    %3025 = vmatpush1.xpose.msra.mxu0 0.0
    %3026 = vmatprep.subr.mxu0 0.0
    %3027 = vmatpush1.xpose.msra.mxu0 0.0
    %3028 = vmatprep.subr.mxu0 0.0
    %3029 = vmatpush1.xpose.msra.mxu0 0.0
    %3030 = vmatprep.subr.mxu0 0.0
    %3031 = vmatpush1.xpose.msra.mxu0 0.0
    %3032 = vmatprep.subr.mxu0 0.0
    %3033 = vmatpush1.xpose.msra.mxu0 0.0
    %3034 = vmatprep.subr.mxu0 0.0
    %3035 = vmatpush1.xpose.msra.mxu0 0.0
    %3036 = vmatprep.subr.mxu0 0.0
    %3037 = vmatpush1.xpose.msra.mxu0 0.0
    %3038 = vmatprep.subr.mxu0 0.0
    %3039 = vmatpush1.xpose.msra.mxu0 0.0
    %3040 = vmatprep.subr.mxu0 0.0
    %3041 = vmatpush1.xpose.msra.mxu0 0.0
    %3042 = vmatprep.subr.mxu0 0.0
    %3043 = vmatpush1.xpose.msra.mxu0 0.0
    %3044 = vmatprep.subr.mxu0 0.0
    %3045 = vmatpush1.xpose.msra.mxu0 0.0
    %3046 = vmatprep.subr.mxu0 0.0
    %3047 = vmatpush1.xpose.msra.mxu0 0.0
    %3048 = vmatprep.subr.mxu0 0.0
    %3049 = vmatpush1.xpose.msra.mxu0 0.0
    %3050 = vmatprep.subr.mxu0 0.0
    %3051 = vmatpush1.xpose.msra.mxu0 0.0
    %3052 = vmatprep.subr.mxu0 0.0
    %3053 = vmatpush1.xpose.msra.mxu0 0.0
    %3054 = vmatprep.subr.mxu0 0.0
    %3055 = vmatpush1.xpose.msra.mxu0 0.0
    %3056 = vmatprep.subr.mxu0 0.0
    %3057 = vmatpush1.xpose.msra.mxu0 0.0
    %3058 = vmatprep.subr.mxu0 0.0
    %3059 = vmatpush1.xpose.msra.mxu0 0.0
    %3060 = vmatprep.mubr.f32.mxu0 0.0
    %v3061 = vand.u32 %v70, 4294901760
    %v3062 = vsub.f32 %v70, %v3061
    %v3063 = vand.u32 %v3062, 4294901760
    %3064 = vmatmul.mubr.f32.gmra.mrb[0].mxu0 %v3063
    %v3065 = vpop.f32.mrb[0].mxu0
    %v3066 = vadd.f32 %v2992, %v3065
    %v3067 = vpop.f32.mrb[0].mxu0
    %3068 = vdwg.mxu0
    %3069 = vmatprep.subr.mxu0 0.0
    %v3070 = vand.u32 %v2767, 4294901760
    %v3071 = vsub.f32 %v2767, %v3070
    %v3072 = vand.u32 %v3071, 4294901760
    %3073 = vmatpush1.xpose.msra.mxu0 %v3072
    %3074 = vmatprep.subr.mxu0 0.0
    %3075 = vmatpush1.xpose.msra.mxu0 0.0
    %3076 = vmatprep.subr.mxu0 0.0
    %3077 = vmatpush1.xpose.msra.mxu0 0.0
    %3078 = vmatprep.subr.mxu0 0.0
    %3079 = vmatpush1.xpose.msra.mxu0 0.0
    %3080 = vmatprep.subr.mxu0 0.0
    %3081 = vmatpush1.xpose.msra.mxu0 0.0
    %3082 = vmatprep.subr.mxu0 0.0
    %3083 = vmatpush1.xpose.msra.mxu0 0.0
    %3084 = vmatprep.subr.mxu0 0.0
    %3085 = vmatpush1.xpose.msra.mxu0 0.0
    %3086 = vmatprep.subr.mxu0 0.0
    %3087 = vmatpush1.xpose.msra.mxu0 0.0
    %3088 = vmatprep.subr.mxu0 0.0
    %3089 = vmatpush1.xpose.msra.mxu0 0.0
    %3090 = vmatprep.subr.mxu0 0.0
    %3091 = vmatpush1.xpose.msra.mxu0 0.0
    %3092 = vmatprep.subr.mxu0 0.0
    %3093 = vmatpush1.xpose.msra.mxu0 0.0
    %3094 = vmatprep.subr.mxu0 0.0
    %3095 = vmatpush1.xpose.msra.mxu0 0.0
    %3096 = vmatprep.subr.mxu0 0.0
    %3097 = vmatpush1.xpose.msra.mxu0 0.0
    %3098 = vmatprep.subr.mxu0 0.0
    %3099 = vmatpush1.xpose.msra.mxu0 0.0
    %3100 = vmatprep.subr.mxu0 0.0
    %3101 = vmatpush1.xpose.msra.mxu0 0.0
    %3102 = vmatprep.subr.mxu0 0.0
    %3103 = vmatpush1.xpose.msra.mxu0 0.0
    %3104 = vmatprep.subr.mxu0 0.0
    %3105 = vmatpush1.xpose.msra.mxu0 0.0
    %3106 = vmatprep.subr.mxu0 0.0
    %3107 = vmatpush1.xpose.msra.mxu0 0.0
    %3108 = vmatprep.subr.mxu0 0.0
    %3109 = vmatpush1.xpose.msra.mxu0 0.0
    %3110 = vmatprep.subr.mxu0 0.0
    %3111 = vmatpush1.xpose.msra.mxu0 0.0
    %3112 = vmatprep.subr.mxu0 0.0
    %3113 = vmatpush1.xpose.msra.mxu0 0.0
    %3114 = vmatprep.subr.mxu0 0.0
    %3115 = vmatpush1.xpose.msra.mxu0 0.0
    %3116 = vmatprep.subr.mxu0 0.0
    %3117 = vmatpush1.xpose.msra.mxu0 0.0
    %3118 = vmatprep.subr.mxu0 0.0
    %3119 = vmatpush1.xpose.msra.mxu0 0.0
    %3120 = vmatprep.subr.mxu0 0.0
    %3121 = vmatpush1.xpose.msra.mxu0 0.0
    %3122 = vmatprep.subr.mxu0 0.0
    %3123 = vmatpush1.xpose.msra.mxu0 0.0
    %3124 = vmatprep.subr.mxu0 0.0
    %3125 = vmatpush1.xpose.msra.mxu0 0.0
    %3126 = vmatprep.subr.mxu0 0.0
    %3127 = vmatpush1.xpose.msra.mxu0 0.0
    %3128 = vmatprep.subr.mxu0 0.0
    %3129 = vmatpush1.xpose.msra.mxu0 0.0
    %3130 = vmatprep.subr.mxu0 0.0
    %3131 = vmatpush1.xpose.msra.mxu0 0.0
    %3132 = vmatprep.subr.mxu0 0.0
    %3133 = vmatpush1.xpose.msra.mxu0 0.0
    %3134 = vmatprep.subr.mxu0 0.0
    %3135 = vmatpush1.xpose.msra.mxu0 0.0
    %3136 = vmatprep.mubr.f32.mxu0 0.0
    %v3137 = vand.u32 %v70, 4294901760
    %3138 = vmatmul.mubr.f32.gmra.mrb[0].mxu0 %v3137
    %v3139 = vpop.f32.mrb[0].mxu0
    %v3140 = vadd.f32 %v3066, %v3139
    %v3141 = vpop.f32.mrb[0].mxu0
    %3142 = vdwg.mxu0
    %3143 = vmatprep.subr.mxu0 0.0
    %v3144 = vand.u32 %v2767, 4294901760
    %3145 = vmatpush1.xpose.msra.mxu0 %v3144
    %3146 = vmatprep.subr.mxu0 0.0
    %3147 = vmatpush1.xpose.msra.mxu0 0.0
    %3148 = vmatprep.subr.mxu0 0.0
    %3149 = vmatpush1.xpose.msra.mxu0 0.0
    %3150 = vmatprep.subr.mxu0 0.0
    %3151 = vmatpush1.xpose.msra.mxu0 0.0
    %3152 = vmatprep.subr.mxu0 0.0
    %3153 = vmatpush1.xpose.msra.mxu0 0.0
    %3154 = vmatprep.subr.mxu0 0.0
    %3155 = vmatpush1.xpose.msra.mxu0 0.0
    %3156 = vmatprep.subr.mxu0 0.0
    %3157 = vmatpush1.xpose.msra.mxu0 0.0
    %3158 = vmatprep.subr.mxu0 0.0
    %3159 = vmatpush1.xpose.msra.mxu0 0.0
    %3160 = vmatprep.subr.mxu0 0.0
    %3161 = vmatpush1.xpose.msra.mxu0 0.0
    %3162 = vmatprep.subr.mxu0 0.0
    %3163 = vmatpush1.xpose.msra.mxu0 0.0
    %3164 = vmatprep.subr.mxu0 0.0
    %3165 = vmatpush1.xpose.msra.mxu0 0.0
    %3166 = vmatprep.subr.mxu0 0.0
    %3167 = vmatpush1.xpose.msra.mxu0 0.0
    %3168 = vmatprep.subr.mxu0 0.0
    %3169 = vmatpush1.xpose.msra.mxu0 0.0
    %3170 = vmatprep.subr.mxu0 0.0
    %3171 = vmatpush1.xpose.msra.mxu0 0.0
    %3172 = vmatprep.subr.mxu0 0.0
    %3173 = vmatpush1.xpose.msra.mxu0 0.0
    %3174 = vmatprep.subr.mxu0 0.0
    %3175 = vmatpush1.xpose.msra.mxu0 0.0
    %3176 = vmatprep.subr.mxu0 0.0
    %3177 = vmatpush1.xpose.msra.mxu0 0.0
    %3178 = vmatprep.subr.mxu0 0.0
    %3179 = vmatpush1.xpose.msra.mxu0 0.0
    %3180 = vmatprep.subr.mxu0 0.0
    %3181 = vmatpush1.xpose.msra.mxu0 0.0
    %3182 = vmatprep.subr.mxu0 0.0
    %3183 = vmatpush1.xpose.msra.mxu0 0.0
    %3184 = vmatprep.subr.mxu0 0.0
    %3185 = vmatpush1.xpose.msra.mxu0 0.0
    %3186 = vmatprep.subr.mxu0 0.0
    %3187 = vmatpush1.xpose.msra.mxu0 0.0
    %3188 = vmatprep.subr.mxu0 0.0
    %3189 = vmatpush1.xpose.msra.mxu0 0.0
    %3190 = vmatprep.subr.mxu0 0.0
    %3191 = vmatpush1.xpose.msra.mxu0 0.0
    %3192 = vmatprep.subr.mxu0 0.0
    %3193 = vmatpush1.xpose.msra.mxu0 0.0
    %3194 = vmatprep.subr.mxu0 0.0
    %3195 = vmatpush1.xpose.msra.mxu0 0.0
    %3196 = vmatprep.subr.mxu0 0.0
    %3197 = vmatpush1.xpose.msra.mxu0 0.0
    %3198 = vmatprep.subr.mxu0 0.0
    %3199 = vmatpush1.xpose.msra.mxu0 0.0
    %3200 = vmatprep.subr.mxu0 0.0
    %3201 = vmatpush1.xpose.msra.mxu0 0.0
    %3202 = vmatprep.subr.mxu0 0.0
    %3203 = vmatpush1.xpose.msra.mxu0 0.0
    %3204 = vmatprep.subr.mxu0 0.0
    %3205 = vmatpush1.xpose.msra.mxu0 0.0
    %3206 = vmatprep.subr.mxu0 0.0
    %3207 = vmatpush1.xpose.msra.mxu0 0.0
    %3208 = vmatprep.mubr.f32.mxu0 0.0
    %v3209 = vand.u32 %v70, 4294901760
    %3210 = vmatmul.mubr.f32.gmra.mrb[0].mxu0 %v3209
    %v3211 = vpop.f32.mrb[0].mxu0
    %v3212 = vadd.f32 %v3140, %v3211
    %v3213 = vpop.f32.mrb[0].mxu0
    %3214 = vdwg.mxu0
    %v3216 = vsel %vm68, %v64, 0
    %3218 = vmatprep.subr.mxu0 0.0
    %v3219 = vand.u32 %v3216, 4294901760
    %3220 = vmatpush1.xpose.msra.mxu0 %v3219
    %3221 = vmatprep.subr.mxu0 0.0
    %3222 = vmatpush1.xpose.msra.mxu0 0.0
    %3223 = vmatprep.subr.mxu0 0.0
    %3224 = vmatpush1.xpose.msra.mxu0 0.0
    %3225 = vmatprep.subr.mxu0 0.0
    %3226 = vmatpush1.xpose.msra.mxu0 0.0
    %3227 = vmatprep.subr.mxu0 0.0
    %3228 = vmatpush1.xpose.msra.mxu0 0.0
    %3229 = vmatprep.subr.mxu0 0.0
    %3230 = vmatpush1.xpose.msra.mxu0 0.0
    %3231 = vmatprep.subr.mxu0 0.0
    %3232 = vmatpush1.xpose.msra.mxu0 0.0
    %3233 = vmatprep.subr.mxu0 0.0
    %3234 = vmatpush1.xpose.msra.mxu0 0.0
    %3235 = vmatprep.subr.mxu0 0.0
    %3236 = vmatpush1.xpose.msra.mxu0 0.0
    %3237 = vmatprep.subr.mxu0 0.0
    %3238 = vmatpush1.xpose.msra.mxu0 0.0
    %3239 = vmatprep.subr.mxu0 0.0
    %3240 = vmatpush1.xpose.msra.mxu0 0.0
    %3241 = vmatprep.subr.mxu0 0.0
    %3242 = vmatpush1.xpose.msra.mxu0 0.0
    %3243 = vmatprep.subr.mxu0 0.0
    %3244 = vmatpush1.xpose.msra.mxu0 0.0
    %3245 = vmatprep.subr.mxu0 0.0
    %3246 = vmatpush1.xpose.msra.mxu0 0.0
    %3247 = vmatprep.subr.mxu0 0.0
    %3248 = vmatpush1.xpose.msra.mxu0 0.0
    %3249 = vmatprep.subr.mxu0 0.0
    %3250 = vmatpush1.xpose.msra.mxu0 0.0
    %3251 = vmatprep.subr.mxu0 0.0
    %3252 = vmatpush1.xpose.msra.mxu0 0.0
    %3253 = vmatprep.subr.mxu0 0.0
    %3254 = vmatpush1.xpose.msra.mxu0 0.0
    %3255 = vmatprep.subr.mxu0 0.0
    %3256 = vmatpush1.xpose.msra.mxu0 0.0
    %3257 = vmatprep.subr.mxu0 0.0
    %3258 = vmatpush1.xpose.msra.mxu0 0.0
    %3259 = vmatprep.subr.mxu0 0.0
    %3260 = vmatpush1.xpose.msra.mxu0 0.0
    %3261 = vmatprep.subr.mxu0 0.0
    %3262 = vmatpush1.xpose.msra.mxu0 0.0
    %3263 = vmatprep.subr.mxu0 0.0
    %3264 = vmatpush1.xpose.msra.mxu0 0.0
    %3265 = vmatprep.subr.mxu0 0.0
    %3266 = vmatpush1.xpose.msra.mxu0 0.0
    %3267 = vmatprep.subr.mxu0 0.0
    %3268 = vmatpush1.xpose.msra.mxu0 0.0
    %3269 = vmatprep.subr.mxu0 0.0
    %3270 = vmatpush1.xpose.msra.mxu0 0.0
    %3271 = vmatprep.subr.mxu0 0.0
    %3272 = vmatpush1.xpose.msra.mxu0 0.0
    %3273 = vmatprep.subr.mxu0 0.0
    %3274 = vmatpush1.xpose.msra.mxu0 0.0
    %3275 = vmatprep.subr.mxu0 0.0
    %3276 = vmatpush1.xpose.msra.mxu0 0.0
    %3277 = vmatprep.subr.mxu0 0.0
    %3278 = vmatpush1.xpose.msra.mxu0 0.0
    %3279 = vmatprep.subr.mxu0 0.0
    %3280 = vmatpush1.xpose.msra.mxu0 0.0
    %3281 = vmatprep.subr.mxu0 0.0
    %3282 = vmatpush1.xpose.msra.mxu0 0.0
    %3283 = vmatprep.mubr.f32.mxu0 0.0
    %v3284 = vand.u32 %v70, 4294901760
    %v3285 = vsub.f32 %v70, %v3284
    %v3286 = vand.u32 %v3285, 4294901760
    %v3287 = vsub.f32 %v3285, %v3286
    %v3288 = vand.u32 %v3287, 4294901760
    %3289 = vmatmul.mubr.f32.gmra.mrb[0].mxu0 %v3288
    %v3290 = vpop.f32.mrb[0].mxu0
    %v3291 = vadd.f32 0.0, %v3290
    %v3292 = vpop.f32.mrb[0].mxu0
    %3293 = vdwg.mxu0
    %3294 = vmatprep.subr.mxu0 0.0
    %v3295 = vand.u32 %v3216, 4294901760
    %v3296 = vsub.f32 %v3216, %v3295
    %v3297 = vand.u32 %v3296, 4294901760
    %v3298 = vsub.f32 %v3296, %v3297
    %v3299 = vand.u32 %v3298, 4294901760
    %3300 = vmatpush1.xpose.msra.mxu0 %v3299
    %3301 = vmatprep.subr.mxu0 0.0
    %3302 = vmatpush1.xpose.msra.mxu0 0.0
    %3303 = vmatprep.subr.mxu0 0.0
    %3304 = vmatpush1.xpose.msra.mxu0 0.0
    %3305 = vmatprep.subr.mxu0 0.0
    %3306 = vmatpush1.xpose.msra.mxu0 0.0
    %3307 = vmatprep.subr.mxu0 0.0
    %3308 = vmatpush1.xpose.msra.mxu0 0.0
    %3309 = vmatprep.subr.mxu0 0.0
    %3310 = vmatpush1.xpose.msra.mxu0 0.0
    %3311 = vmatprep.subr.mxu0 0.0
    %3312 = vmatpush1.xpose.msra.mxu0 0.0
    %3313 = vmatprep.subr.mxu0 0.0
    %3314 = vmatpush1.xpose.msra.mxu0 0.0
    %3315 = vmatprep.subr.mxu0 0.0
    %3316 = vmatpush1.xpose.msra.mxu0 0.0
    %3317 = vmatprep.subr.mxu0 0.0
    %3318 = vmatpush1.xpose.msra.mxu0 0.0
    %3319 = vmatprep.subr.mxu0 0.0
    %3320 = vmatpush1.xpose.msra.mxu0 0.0
    %3321 = vmatprep.subr.mxu0 0.0
    %3322 = vmatpush1.xpose.msra.mxu0 0.0
    %3323 = vmatprep.subr.mxu0 0.0
    %3324 = vmatpush1.xpose.msra.mxu0 0.0
    %3325 = vmatprep.subr.mxu0 0.0
    %3326 = vmatpush1.xpose.msra.mxu0 0.0
    %3327 = vmatprep.subr.mxu0 0.0
    %3328 = vmatpush1.xpose.msra.mxu0 0.0
    %3329 = vmatprep.subr.mxu0 0.0
    %3330 = vmatpush1.xpose.msra.mxu0 0.0
    %3331 = vmatprep.subr.mxu0 0.0
    %3332 = vmatpush1.xpose.msra.mxu0 0.0
    %3333 = vmatprep.subr.mxu0 0.0
    %3334 = vmatpush1.xpose.msra.mxu0 0.0
    %3335 = vmatprep.subr.mxu0 0.0
    %3336 = vmatpush1.xpose.msra.mxu0 0.0
    %3337 = vmatprep.subr.mxu0 0.0
    %3338 = vmatpush1.xpose.msra.mxu0 0.0
    %3339 = vmatprep.subr.mxu0 0.0
    %3340 = vmatpush1.xpose.msra.mxu0 0.0
    %3341 = vmatprep.subr.mxu0 0.0
    %3342 = vmatpush1.xpose.msra.mxu0 0.0
    %3343 = vmatprep.subr.mxu0 0.0
    %3344 = vmatpush1.xpose.msra.mxu0 0.0
    %3345 = vmatprep.subr.mxu0 0.0
    %3346 = vmatpush1.xpose.msra.mxu0 0.0
    %3347 = vmatprep.subr.mxu0 0.0
    %3348 = vmatpush1.xpose.msra.mxu0 0.0
    %3349 = vmatprep.subr.mxu0 0.0
    %3350 = vmatpush1.xpose.msra.mxu0 0.0
    %3351 = vmatprep.subr.mxu0 0.0
    %3352 = vmatpush1.xpose.msra.mxu0 0.0
    %3353 = vmatprep.subr.mxu0 0.0
    %3354 = vmatpush1.xpose.msra.mxu0 0.0
    %3355 = vmatprep.subr.mxu0 0.0
    %3356 = vmatpush1.xpose.msra.mxu0 0.0
    %3357 = vmatprep.subr.mxu0 0.0
    %3358 = vmatpush1.xpose.msra.mxu0 0.0
    %3359 = vmatprep.subr.mxu0 0.0
    %3360 = vmatpush1.xpose.msra.mxu0 0.0
    %3361 = vmatprep.subr.mxu0 0.0
    %3362 = vmatpush1.xpose.msra.mxu0 0.0
    %3363 = vmatprep.mubr.f32.mxu0 0.0
    %v3364 = vand.u32 %v70, 4294901760
    %3365 = vmatmul.mubr.f32.gmra.mrb[0].mxu0 %v3364
    %v3366 = vpop.f32.mrb[0].mxu0
    %v3367 = vadd.f32 %v3291, %v3366
    %v3368 = vpop.f32.mrb[0].mxu0
    %3369 = vdwg.mxu0
    %3370 = vmatprep.subr.mxu0 0.0
    %v3371 = vand.u32 %v3216, 4294901760
    %v3372 = vsub.f32 %v3216, %v3371
    %3373 = vmatpush1.xpose.msra.mxu0 %v3372
    %3374 = vmatprep.subr.mxu0 0.0
    %3375 = vmatpush1.xpose.msra.mxu0 0.0
    %3376 = vmatprep.subr.mxu0 0.0
    %3377 = vmatpush1.xpose.msra.mxu0 0.0
    %3378 = vmatprep.subr.mxu0 0.0
    %3379 = vmatpush1.xpose.msra.mxu0 0.0
    %3380 = vmatprep.subr.mxu0 0.0
    %3381 = vmatpush1.xpose.msra.mxu0 0.0
    %3382 = vmatprep.subr.mxu0 0.0
    %3383 = vmatpush1.xpose.msra.mxu0 0.0
    %3384 = vmatprep.subr.mxu0 0.0
    %3385 = vmatpush1.xpose.msra.mxu0 0.0
    %3386 = vmatprep.subr.mxu0 0.0
    %3387 = vmatpush1.xpose.msra.mxu0 0.0
    %3388 = vmatprep.subr.mxu0 0.0
    %3389 = vmatpush1.xpose.msra.mxu0 0.0
    %3390 = vmatprep.subr.mxu0 0.0
    %3391 = vmatpush1.xpose.msra.mxu0 0.0
    %3392 = vmatprep.subr.mxu0 0.0
    %3393 = vmatpush1.xpose.msra.mxu0 0.0
    %3394 = vmatprep.subr.mxu0 0.0
    %3395 = vmatpush1.xpose.msra.mxu0 0.0
    %3396 = vmatprep.subr.mxu0 0.0
    %3397 = vmatpush1.xpose.msra.mxu0 0.0
    %3398 = vmatprep.subr.mxu0 0.0
    %3399 = vmatpush1.xpose.msra.mxu0 0.0
    %3400 = vmatprep.subr.mxu0 0.0
    %3401 = vmatpush1.xpose.msra.mxu0 0.0
    %3402 = vmatprep.subr.mxu0 0.0
    %3403 = vmatpush1.xpose.msra.mxu0 0.0
    %3404 = vmatprep.subr.mxu0 0.0
    %3405 = vmatpush1.xpose.msra.mxu0 0.0
    %3406 = vmatprep.subr.mxu0 0.0
    %3407 = vmatpush1.xpose.msra.mxu0 0.0
    %3408 = vmatprep.subr.mxu0 0.0
    %3409 = vmatpush1.xpose.msra.mxu0 0.0
    %3410 = vmatprep.subr.mxu0 0.0
    %3411 = vmatpush1.xpose.msra.mxu0 0.0
    %3412 = vmatprep.subr.mxu0 0.0
    %3413 = vmatpush1.xpose.msra.mxu0 0.0
    %3414 = vmatprep.subr.mxu0 0.0
    %3415 = vmatpush1.xpose.msra.mxu0 0.0
    %3416 = vmatprep.subr.mxu0 0.0
    %3417 = vmatpush1.xpose.msra.mxu0 0.0
    %3418 = vmatprep.subr.mxu0 0.0
    %3419 = vmatpush1.xpose.msra.mxu0 0.0
    %3420 = vmatprep.subr.mxu0 0.0
    %3421 = vmatpush1.xpose.msra.mxu0 0.0
    %3422 = vmatprep.subr.mxu0 0.0
    %3423 = vmatpush1.xpose.msra.mxu0 0.0
    %3424 = vmatprep.subr.mxu0 0.0
    %3425 = vmatpush1.xpose.msra.mxu0 0.0
    %3426 = vmatprep.subr.mxu0 0.0
    %3427 = vmatpush1.xpose.msra.mxu0 0.0
    %3428 = vmatprep.subr.mxu0 0.0
    %3429 = vmatpush1.xpose.msra.mxu0 0.0
    %3430 = vmatprep.subr.mxu0 0.0
    %3431 = vmatpush1.xpose.msra.mxu0 0.0
    %3432 = vmatprep.subr.mxu0 0.0
    %3433 = vmatpush1.xpose.msra.mxu0 0.0
    %3434 = vmatprep.subr.mxu0 0.0
    %3435 = vmatpush1.xpose.msra.mxu0 0.0
    %3436 = vmatprep.mubr.f32.mxu0 0.0
    %v3437 = vand.u32 %v70, 4294901760
    %v3438 = vsub.f32 %v70, %v3437
    %3439 = vmatmul.mubr.f32.gmra.mrb[0].mxu0 %v3438
    %v3440 = vpop.f32.mrb[0].mxu0
    %v3441 = vadd.f32 %v3367, %v3440
    %v3442 = vpop.f32.mrb[0].mxu0
    %3443 = vdwg.mxu0
    %3444 = vmatprep.subr.mxu0 0.0
    %v3445 = vand.u32 %v3216, 4294901760
    %3446 = vmatpush1.xpose.msra.mxu0 %v3445
    %3447 = vmatprep.subr.mxu0 0.0
    %3448 = vmatpush1.xpose.msra.mxu0 0.0
    %3449 = vmatprep.subr.mxu0 0.0
    %3450 = vmatpush1.xpose.msra.mxu0 0.0
    %3451 = vmatprep.subr.mxu0 0.0
    %3452 = vmatpush1.xpose.msra.mxu0 0.0
    %3453 = vmatprep.subr.mxu0 0.0
    %3454 = vmatpush1.xpose.msra.mxu0 0.0
    %3455 = vmatprep.subr.mxu0 0.0
    %3456 = vmatpush1.xpose.msra.mxu0 0.0
    %3457 = vmatprep.subr.mxu0 0.0
    %3458 = vmatpush1.xpose.msra.mxu0 0.0
    %3459 = vmatprep.subr.mxu0 0.0
    %3460 = vmatpush1.xpose.msra.mxu0 0.0
    %3461 = vmatprep.subr.mxu0 0.0
    %3462 = vmatpush1.xpose.msra.mxu0 0.0
    %3463 = vmatprep.subr.mxu0 0.0
    %3464 = vmatpush1.xpose.msra.mxu0 0.0
    %3465 = vmatprep.subr.mxu0 0.0
    %3466 = vmatpush1.xpose.msra.mxu0 0.0
    %3467 = vmatprep.subr.mxu0 0.0
    %3468 = vmatpush1.xpose.msra.mxu0 0.0
    %3469 = vmatprep.subr.mxu0 0.0
    %3470 = vmatpush1.xpose.msra.mxu0 0.0
    %3471 = vmatprep.subr.mxu0 0.0
    %3472 = vmatpush1.xpose.msra.mxu0 0.0
    %3473 = vmatprep.subr.mxu0 0.0
    %3474 = vmatpush1.xpose.msra.mxu0 0.0
    %3475 = vmatprep.subr.mxu0 0.0
    %3476 = vmatpush1.xpose.msra.mxu0 0.0
    %3477 = vmatprep.subr.mxu0 0.0
    %3478 = vmatpush1.xpose.msra.mxu0 0.0
    %3479 = vmatprep.subr.mxu0 0.0
    %3480 = vmatpush1.xpose.msra.mxu0 0.0
    %3481 = vmatprep.subr.mxu0 0.0
    %3482 = vmatpush1.xpose.msra.mxu0 0.0
    %3483 = vmatprep.subr.mxu0 0.0
    %3484 = vmatpush1.xpose.msra.mxu0 0.0
    %3485 = vmatprep.subr.mxu0 0.0
    %3486 = vmatpush1.xpose.msra.mxu0 0.0
    %3487 = vmatprep.subr.mxu0 0.0
    %3488 = vmatpush1.xpose.msra.mxu0 0.0
    %3489 = vmatprep.subr.mxu0 0.0
    %3490 = vmatpush1.xpose.msra.mxu0 0.0
    %3491 = vmatprep.subr.mxu0 0.0
    %3492 = vmatpush1.xpose.msra.mxu0 0.0
    %3493 = vmatprep.subr.mxu0 0.0
    %3494 = vmatpush1.xpose.msra.mxu0 0.0
    %3495 = vmatprep.subr.mxu0 0.0
    %3496 = vmatpush1.xpose.msra.mxu0 0.0
    %3497 = vmatprep.subr.mxu0 0.0
    %3498 = vmatpush1.xpose.msra.mxu0 0.0
    %3499 = vmatprep.subr.mxu0 0.0
    %3500 = vmatpush1.xpose.msra.mxu0 0.0
    %3501 = vmatprep.subr.mxu0 0.0
    %3502 = vmatpush1.xpose.msra.mxu0 0.0
    %3503 = vmatprep.subr.mxu0 0.0
    %3504 = vmatpush1.xpose.msra.mxu0 0.0
    %3505 = vmatprep.subr.mxu0 0.0
    %3506 = vmatpush1.xpose.msra.mxu0 0.0
    %3507 = vmatprep.subr.mxu0 0.0
    %3508 = vmatpush1.xpose.msra.mxu0 0.0
    %3509 = vmatprep.mubr.f32.mxu0 0.0
    %v3510 = vand.u32 %v70, 4294901760
    %v3511 = vsub.f32 %v70, %v3510
    %v3512 = vand.u32 %v3511, 4294901760
    %3513 = vmatmul.mubr.f32.gmra.mrb[0].mxu0 %v3512
    %v3514 = vpop.f32.mrb[0].mxu0
    %v3515 = vadd.f32 %v3441, %v3514
    %v3516 = vpop.f32.mrb[0].mxu0
    %3517 = vdwg.mxu0
    %3518 = vmatprep.subr.mxu0 0.0
    %v3519 = vand.u32 %v3216, 4294901760
    %v3520 = vsub.f32 %v3216, %v3519
    %v3521 = vand.u32 %v3520, 4294901760
    %3522 = vmatpush1.xpose.msra.mxu0 %v3521
    %3523 = vmatprep.subr.mxu0 0.0
    %3524 = vmatpush1.xpose.msra.mxu0 0.0
    %3525 = vmatprep.subr.mxu0 0.0
    %3526 = vmatpush1.xpose.msra.mxu0 0.0
    %3527 = vmatprep.subr.mxu0 0.0
    %3528 = vmatpush1.xpose.msra.mxu0 0.0
    %3529 = vmatprep.subr.mxu0 0.0
    %3530 = vmatpush1.xpose.msra.mxu0 0.0
    %3531 = vmatprep.subr.mxu0 0.0
    %3532 = vmatpush1.xpose.msra.mxu0 0.0
    %3533 = vmatprep.subr.mxu0 0.0
    %3534 = vmatpush1.xpose.msra.mxu0 0.0
    %3535 = vmatprep.subr.mxu0 0.0
    %3536 = vmatpush1.xpose.msra.mxu0 0.0
    %3537 = vmatprep.subr.mxu0 0.0
    %3538 = vmatpush1.xpose.msra.mxu0 0.0
    %3539 = vmatprep.subr.mxu0 0.0
    %3540 = vmatpush1.xpose.msra.mxu0 0.0
    %3541 = vmatprep.subr.mxu0 0.0
    %3542 = vmatpush1.xpose.msra.mxu0 0.0
    %3543 = vmatprep.subr.mxu0 0.0
    %3544 = vmatpush1.xpose.msra.mxu0 0.0
    %3545 = vmatprep.subr.mxu0 0.0
    %3546 = vmatpush1.xpose.msra.mxu0 0.0
    %3547 = vmatprep.subr.mxu0 0.0
    %3548 = vmatpush1.xpose.msra.mxu0 0.0
    %3549 = vmatprep.subr.mxu0 0.0
    %3550 = vmatpush1.xpose.msra.mxu0 0.0
    %3551 = vmatprep.subr.mxu0 0.0
    %3552 = vmatpush1.xpose.msra.mxu0 0.0
    %3553 = vmatprep.subr.mxu0 0.0
    %3554 = vmatpush1.xpose.msra.mxu0 0.0
    %3555 = vmatprep.subr.mxu0 0.0
    %3556 = vmatpush1.xpose.msra.mxu0 0.0
    %3557 = vmatprep.subr.mxu0 0.0
    %3558 = vmatpush1.xpose.msra.mxu0 0.0
    %3559 = vmatprep.subr.mxu0 0.0
    %3560 = vmatpush1.xpose.msra.mxu0 0.0
    %3561 = vmatprep.subr.mxu0 0.0
    %3562 = vmatpush1.xpose.msra.mxu0 0.0
    %3563 = vmatprep.subr.mxu0 0.0
    %3564 = vmatpush1.xpose.msra.mxu0 0.0
    %3565 = vmatprep.subr.mxu0 0.0
    %3566 = vmatpush1.xpose.msra.mxu0 0.0
    %3567 = vmatprep.subr.mxu0 0.0
    %3568 = vmatpush1.xpose.msra.mxu0 0.0
    %3569 = vmatprep.subr.mxu0 0.0
    %3570 = vmatpush1.xpose.msra.mxu0 0.0
    %3571 = vmatprep.subr.mxu0 0.0
    %3572 = vmatpush1.xpose.msra.mxu0 0.0
    %3573 = vmatprep.subr.mxu0 0.0
    %3574 = vmatpush1.xpose.msra.mxu0 0.0
    %3575 = vmatprep.subr.mxu0 0.0
    %3576 = vmatpush1.xpose.msra.mxu0 0.0
    %3577 = vmatprep.subr.mxu0 0.0
    %3578 = vmatpush1.xpose.msra.mxu0 0.0
    %3579 = vmatprep.subr.mxu0 0.0
    %3580 = vmatpush1.xpose.msra.mxu0 0.0
    %3581 = vmatprep.subr.mxu0 0.0
    %3582 = vmatpush1.xpose.msra.mxu0 0.0
    %3583 = vmatprep.subr.mxu0 0.0
    %3584 = vmatpush1.xpose.msra.mxu0 0.0
    %3585 = vmatprep.mubr.f32.mxu0 0.0
    %v3586 = vand.u32 %v70, 4294901760
    %3587 = vmatmul.mubr.f32.gmra.mrb[0].mxu0 %v3586
    %v3588 = vpop.f32.mrb[0].mxu0
    %v3589 = vadd.f32 %v3515, %v3588
    %v3590 = vpop.f32.mrb[0].mxu0
    %3591 = vdwg.mxu0
    %3592 = vmatprep.subr.mxu0 0.0
    %v3593 = vand.u32 %v3216, 4294901760
    %3594 = vmatpush1.xpose.msra.mxu0 %v3593
    %3595 = vmatprep.subr.mxu0 0.0
    %3596 = vmatpush1.xpose.msra.mxu0 0.0
    %3597 = vmatprep.subr.mxu0 0.0
    %3598 = vmatpush1.xpose.msra.mxu0 0.0
    %3599 = vmatprep.subr.mxu0 0.0
    %3600 = vmatpush1.xpose.msra.mxu0 0.0
    %3601 = vmatprep.subr.mxu0 0.0
    %3602 = vmatpush1.xpose.msra.mxu0 0.0
    %3603 = vmatprep.subr.mxu0 0.0
    %3604 = vmatpush1.xpose.msra.mxu0 0.0
    %3605 = vmatprep.subr.mxu0 0.0
    %3606 = vmatpush1.xpose.msra.mxu0 0.0
    %3607 = vmatprep.subr.mxu0 0.0
    %3608 = vmatpush1.xpose.msra.mxu0 0.0
    %3609 = vmatprep.subr.mxu0 0.0
    %3610 = vmatpush1.xpose.msra.mxu0 0.0
    %3611 = vmatprep.subr.mxu0 0.0
    %3612 = vmatpush1.xpose.msra.mxu0 0.0
    %3613 = vmatprep.subr.mxu0 0.0
    %3614 = vmatpush1.xpose.msra.mxu0 0.0
    %3615 = vmatprep.subr.mxu0 0.0
    %3616 = vmatpush1.xpose.msra.mxu0 0.0
    %3617 = vmatprep.subr.mxu0 0.0
    %3618 = vmatpush1.xpose.msra.mxu0 0.0
    %3619 = vmatprep.subr.mxu0 0.0
    %3620 = vmatpush1.xpose.msra.mxu0 0.0
    %3621 = vmatprep.subr.mxu0 0.0
    %3622 = vmatpush1.xpose.msra.mxu0 0.0
    %3623 = vmatprep.subr.mxu0 0.0
    %3624 = vmatpush1.xpose.msra.mxu0 0.0
    %3625 = vmatprep.subr.mxu0 0.0
    %3626 = vmatpush1.xpose.msra.mxu0 0.0
    %3627 = vmatprep.subr.mxu0 0.0
    %3628 = vmatpush1.xpose.msra.mxu0 0.0
    %3629 = vmatprep.subr.mxu0 0.0
    %3630 = vmatpush1.xpose.msra.mxu0 0.0
    %3631 = vmatprep.subr.mxu0 0.0
    %3632 = vmatpush1.xpose.msra.mxu0 0.0
    %3633 = vmatprep.subr.mxu0 0.0
    %3634 = vmatpush1.xpose.msra.mxu0 0.0
    %3635 = vmatprep.subr.mxu0 0.0
    %3636 = vmatpush1.xpose.msra.mxu0 0.0
    %3637 = vmatprep.subr.mxu0 0.0
    %3638 = vmatpush1.xpose.msra.mxu0 0.0
    %3639 = vmatprep.subr.mxu0 0.0
    %3640 = vmatpush1.xpose.msra.mxu0 0.0
    %3641 = vmatprep.subr.mxu0 0.0
    %3642 = vmatpush1.xpose.msra.mxu0 0.0
    %3643 = vmatprep.subr.mxu0 0.0
    %3644 = vmatpush1.xpose.msra.mxu0 0.0
    %3645 = vmatprep.subr.mxu0 0.0
    %3646 = vmatpush1.xpose.msra.mxu0 0.0
    %3647 = vmatprep.subr.mxu0 0.0
    %3648 = vmatpush1.xpose.msra.mxu0 0.0
    %3649 = vmatprep.subr.mxu0 0.0
    %3650 = vmatpush1.xpose.msra.mxu0 0.0
    %3651 = vmatprep.subr.mxu0 0.0
    %3652 = vmatpush1.xpose.msra.mxu0 0.0
    %3653 = vmatprep.subr.mxu0 0.0
    %3654 = vmatpush1.xpose.msra.mxu0 0.0
    %3655 = vmatprep.subr.mxu0 0.0
    %3656 = vmatpush1.xpose.msra.mxu0 0.0
    %3657 = vmatprep.mubr.f32.mxu0 0.0
    %v3658 = vand.u32 %v70, 4294901760
    %3659 = vmatmul.mubr.f32.gmra.mrb[0].mxu0 %v3658
    %v3660 = vpop.f32.mrb[0].mxu0
    %v3661 = vadd.f32 %v3589, %v3660
    %v3662 = vpop.f32.mrb[0].mxu0
    %3663 = vdwg.mxu0
    %v3664 = vmul.f32 %v518, 0.17677669
    %v3665 = vmul.f32 %v967, 0.17677669
    %v3666 = vmul.f32 %v1416, 0.17677669
    %v3667 = vmul.f32 %v1865, 0.17677669
    %v3668 = vmul.f32 %v2314, 0.17677669
    %v3669 = vmul.f32 %v2763, 0.17677669
    %v3670 = vmul.f32 %v3212, 0.17677669
    %v3671 = vmul.f32 %v3661, 0.17677669
    %v3672 = vld [vmem:[#allocation7] sm:$0x1]
    %v3673 = vld [vmem:[#allocation7 + $0x1] sm:$0x1]
    %v3674 = vld [vmem:[#allocation7 + $0x2] sm:$0x1]
    %v3675 = vld [vmem:[#allocation7 + $0x3] sm:$0x1]
    %v3676 = vld [vmem:[#allocation7 + $0x4] sm:$0x1]
    %v3677 = vld [vmem:[#allocation7 + $0x5] sm:$0x1]
    %v3678 = vld [vmem:[#allocation7 + $0x6] sm:$0x1]
    %v3679 = vld [vmem:[#allocation7 + $0x7] sm:$0x1]
    %vm3680 = vcmp.eq.f32.partialorder %v3672, 0.0
    %vm3681 = vcmp.eq.f32.partialorder %v3673, 0.0
    %vm3682 = vcmp.eq.f32.partialorder %v3674, 0.0
    %vm3683 = vcmp.eq.f32.partialorder %v3675, 0.0
    %vm3684 = vcmp.eq.f32.partialorder %v3676, 0.0
    %vm3685 = vcmp.eq.f32.partialorder %v3677, 0.0
    %vm3686 = vcmp.eq.f32.partialorder %v3678, 0.0
    %vm3687 = vcmp.eq.f32.partialorder %v3679, 0.0
    %v3688 = vsel %vm3680, -1e+09, %v3664
    %v3689 = vsel %vm3681, -1e+09, %v3665
    %v3690 = vsel %vm3682, -1e+09, %v3666
    %v3691 = vsel %vm3683, -1e+09, %v3667
    %v3692 = vsel %vm3684, -1e+09, %v3668
    %v3693 = vsel %vm3685, -1e+09, %v3669
    %v3694 = vsel %vm3686, -1e+09, %v3670
    %v3695 = vsel %vm3687, -1e+09, %v3671
    %vm3696 = vcmask 57344
    %v3697 = vsel %vm3696, %v3688, -inf
    %3698 = vmax.xlane.f32.xlu0 %v3697
    %v3699 = vpop.xlane.xlu0 %3698
    %v3700 = vsel %vm3696, %v3689, -inf
    %3701 = vmax.xlane.f32.xlu0 %v3700
    %v3702 = vpop.xlane.xlu0 %3701
    %v3703 = vsel %vm3696, %v3690, -inf
    %3704 = vmax.xlane.f32.xlu0 %v3703
    %v3705 = vpop.xlane.xlu0 %3704
    %v3706 = vsel %vm3696, %v3691, -inf
    %3707 = vmax.xlane.f32.xlu0 %v3706
    %v3708 = vpop.xlane.xlu0 %3707
    %v3709 = vsel %vm3696, %v3692, -inf
    %3710 = vmax.xlane.f32.xlu0 %v3709
    %v3711 = vpop.xlane.xlu0 %3710
    %v3712 = vsel %vm3696, %v3693, -inf
    %3713 = vmax.xlane.f32.xlu0 %v3712
    %v3714 = vpop.xlane.xlu0 %3713
    %v3715 = vsel %vm3696, %v3694, -inf
    %3716 = vmax.xlane.f32.xlu0 %v3715
    %v3717 = vpop.xlane.xlu0 %3716
    %v3718 = vsel %vm3696, %v3695, -inf
    %3719 = vmax.xlane.f32.xlu0 %v3718
    %v3720 = vpop.xlane.xlu0 %3719
    %v3721 = vsub.f32 %v3688, %v3699
    %v3722 = vsub.f32 %v3689, %v3702
    %v3723 = vsub.f32 %v3690, %v3705
    %v3724 = vsub.f32 %v3691, %v3708
    %v3725 = vsub.f32 %v3692, %v3711
    %v3726 = vsub.f32 %v3693, %v3714
    %v3727 = vsub.f32 %v3694, %v3717
    %v3728 = vsub.f32 %v3695, %v3720
    %v3729 = vmul.f32 %v3721, 1.442695
    %v3730 = vpow.pop %v3729
    %v3731 = vmul.f32 %v3722, 1.442695
    %v3732 = vpow.pop %v3731
    %v3733 = vmul.f32 %v3723, 1.442695
    %v3734 = vpow.pop %v3733
    %v3735 = vmul.f32 %v3724, 1.442695
    %v3736 = vpow.pop %v3735
    %v3737 = vmul.f32 %v3725, 1.442695
    %v3738 = vpow.pop %v3737
    %v3739 = vmul.f32 %v3726, 1.442695
    %v3740 = vpow.pop %v3739
    %v3741 = vmul.f32 %v3727, 1.442695
    %v3742 = vpow.pop %v3741
    %v3743 = vmul.f32 %v3728, 1.442695
    %v3744 = vpow.pop %v3743
    %v3745 = vsel %vm3696, %v3730, 0.0
    %3746 = vadd.xlane.f32.xlu0 %v3745
    %v3747 = vpop.xlane.xlu0 %3746
    %v3748 = vsel %vm3696, %v3732, 0.0
    %3749 = vadd.xlane.f32.xlu0 %v3748
    %v3750 = vpop.xlane.xlu0 %3749
    %v3751 = vsel %vm3696, %v3734, 0.0
    %3752 = vadd.xlane.f32.xlu0 %v3751
    %v3753 = vpop.xlane.xlu0 %3752
    %v3754 = vsel %vm3696, %v3736, 0.0
    %3755 = vadd.xlane.f32.xlu0 %v3754
    %v3756 = vpop.xlane.xlu0 %3755
    %v3757 = vsel %vm3696, %v3738, 0.0
    %3758 = vadd.xlane.f32.xlu0 %v3757
    %v3759 = vpop.xlane.xlu0 %3758
    %v3760 = vsel %vm3696, %v3740, 0.0
    %3761 = vadd.xlane.f32.xlu0 %v3760
    %v3762 = vpop.xlane.xlu0 %3761
    %v3763 = vsel %vm3696, %v3742, 0.0
    %3764 = vadd.xlane.f32.xlu0 %v3763
    %v3765 = vpop.xlane.xlu0 %3764
    %v3766 = vsel %vm3696, %v3744, 0.0
    %3767 = vadd.xlane.f32.xlu0 %v3766
    %v3768 = vpop.xlane.xlu0 %3767
    %v3769 = vrcp.pop %v3747
    %v3770 = vrcp.pop %v3750
    %v3771 = vrcp.pop %v3753
    %v3772 = vrcp.pop %v3756
    %v3773 = vrcp.pop %v3759
    %v3774 = vrcp.pop %v3762
    %v3775 = vrcp.pop %v3765
    %v3776 = vrcp.pop %v3768
    %v3777 = vmul.f32 %v3730, %v3769
    %v3778 = vmul.f32 %v3732, %v3770
    %v3779 = vmul.f32 %v3734, %v3771
    %v3780 = vmul.f32 %v3736, %v3772
    %v3781 = vmul.f32 %v3738, %v3773
    %v3782 = vmul.f32 %v3740, %v3774
    %v3783 = vmul.f32 %v3742, %v3775
    %v3784 = vmul.f32 %v3744, %v3776
    %3785 = vst.msk [vmem:[#allocation9] sm:$0x1] %vm3696, %v3777
    %3786 = vst.msk [vmem:[#allocation9 + $0x1] sm:$0x1] %vm3696, %v3778
    %3787 = vst.msk [vmem:[#allocation9 + $0x2] sm:$0x1] %vm3696, %v3779
    %3788 = vst.msk [vmem:[#allocation9 + $0x3] sm:$0x1] %vm3696, %v3780
    %3789 = vst.msk [vmem:[#allocation9 + $0x4] sm:$0x1] %vm3696, %v3781
    %3790 = vst.msk [vmem:[#allocation9 + $0x5] sm:$0x1] %vm3696, %v3782
    %3791 = vst.msk [vmem:[#allocation9 + $0x6] sm:$0x1] %vm3696, %v3783
    %3792 = vst.msk [vmem:[#allocation9 + $0x7] sm:$0x1] %vm3696, %v3784
    %vm3793 = vcmask 64512
    %v3795 = vsel %vm3793, %v3777, 0
    %3797 = vmatprep.subr.mxu0 0.0
    %v3798 = vand.u32 %v57, 4294901760
    %3799 = vmatpush1.msra.mxu0 %v3798
    %3800 = vmatprep.subr.mxu0 0.0
    %3801 = vmatpush1.msra.mxu0 0.0
    %3802 = vmatprep.subr.mxu0 0.0
    %3803 = vmatpush1.msra.mxu0 0.0
    %3804 = vmatprep.subr.mxu0 0.0
    %3805 = vmatpush1.msra.mxu0 0.0
    %3806 = vmatprep.subr.mxu0 0.0
    %3807 = vmatpush1.msra.mxu0 0.0
    %3808 = vmatprep.subr.mxu0 0.0
    %3809 = vmatpush1.msra.mxu0 0.0
    %3810 = vmatprep.subr.mxu0 0.0
    %3811 = vmatpush1.msra.mxu0 0.0
    %3812 = vmatprep.subr.mxu0 0.0
    %3813 = vmatpush1.msra.mxu0 0.0
    %3814 = vmatprep.subr.mxu0 0.0
    %3815 = vmatpush1.msra.mxu0 0.0
    %3816 = vmatprep.subr.mxu0 0.0
    %3817 = vmatpush1.msra.mxu0 0.0
    %3818 = vmatprep.subr.mxu0 0.0
    %3819 = vmatpush1.msra.mxu0 0.0
    %3820 = vmatprep.subr.mxu0 0.0
    %3821 = vmatpush1.msra.mxu0 0.0
    %3822 = vmatprep.subr.mxu0 0.0
    %3823 = vmatpush1.msra.mxu0 0.0
    %3824 = vmatprep.subr.mxu0 0.0
    %3825 = vmatpush1.msra.mxu0 0.0
    %3826 = vmatprep.subr.mxu0 0.0
    %3827 = vmatpush1.msra.mxu0 0.0
    %3828 = vmatprep.subr.mxu0 0.0
    %3829 = vmatpush1.msra.mxu0 0.0
    %3830 = vmatprep.subr.mxu0 0.0
    %3831 = vmatpush1.msra.mxu0 0.0
    %3832 = vmatprep.subr.mxu0 0.0
    %3833 = vmatpush1.msra.mxu0 0.0
    %3834 = vmatprep.subr.mxu0 0.0
    %3835 = vmatpush1.msra.mxu0 0.0
    %3836 = vmatprep.subr.mxu0 0.0
    %3837 = vmatpush1.msra.mxu0 0.0
    %3838 = vmatprep.subr.mxu0 0.0
    %3839 = vmatpush1.msra.mxu0 0.0
    %3840 = vmatprep.subr.mxu0 0.0
    %3841 = vmatpush1.msra.mxu0 0.0
    %3842 = vmatprep.subr.mxu0 0.0
    %3843 = vmatpush1.msra.mxu0 0.0
    %3844 = vmatprep.subr.mxu0 0.0
    %3845 = vmatpush1.msra.mxu0 0.0
    %3846 = vmatprep.subr.mxu0 0.0
    %3847 = vmatpush1.msra.mxu0 0.0
    %3848 = vmatprep.subr.mxu0 0.0
    %3849 = vmatpush1.msra.mxu0 0.0
    %3850 = vmatprep.subr.mxu0 0.0
    %3851 = vmatpush1.msra.mxu0 0.0
    %3852 = vmatprep.subr.mxu0 0.0
    %3853 = vmatpush1.msra.mxu0 0.0
    %3854 = vmatprep.subr.mxu0 0.0
    %3855 = vmatpush1.msra.mxu0 0.0
    %3856 = vmatprep.subr.mxu0 0.0
    %3857 = vmatpush1.msra.mxu0 0.0
    %3858 = vmatprep.subr.mxu0 0.0
    %3859 = vmatpush1.msra.mxu0 0.0
    %3860 = vmatprep.subr.mxu0 0.0
    %3861 = vmatpush1.msra.mxu0 0.0
    %3862 = vmatprep.mubr.f32.mxu0 0.0
    %v3863 = vand.u32 %v3795, 4294901760
    %v3864 = vsub.f32 %v3795, %v3863
    %v3865 = vand.u32 %v3864, 4294901760
    %v3866 = vsub.f32 %v3864, %v3865
    %v3867 = vand.u32 %v3866, 4294901760
    %3868 = vmatmul.mubr.f32.gmra.mrb[0].mxu0 %v3867
    %v3869 = vpop.f32.mrb[0].mxu0
    %v3870 = vadd.f32 0.0, %v3869
    %v3871 = vpop.f32.mrb[0].mxu0
    %3872 = vdwg.mxu0
    %3873 = vmatprep.subr.mxu0 0.0
    %v3874 = vand.u32 %v57, 4294901760
    %v3875 = vsub.f32 %v57, %v3874
    %v3876 = vand.u32 %v3875, 4294901760
    %v3877 = vsub.f32 %v3875, %v3876
    %v3878 = vand.u32 %v3877, 4294901760
    %3879 = vmatpush1.msra.mxu0 %v3878
    %3880 = vmatprep.subr.mxu0 0.0
    %3881 = vmatpush1.msra.mxu0 0.0
    %3882 = vmatprep.subr.mxu0 0.0
    %3883 = vmatpush1.msra.mxu0 0.0
    %3884 = vmatprep.subr.mxu0 0.0
    %3885 = vmatpush1.msra.mxu0 0.0
    %3886 = vmatprep.subr.mxu0 0.0
    %3887 = vmatpush1.msra.mxu0 0.0
    %3888 = vmatprep.subr.mxu0 0.0
    %3889 = vmatpush1.msra.mxu0 0.0
    %3890 = vmatprep.subr.mxu0 0.0
    %3891 = vmatpush1.msra.mxu0 0.0
    %3892 = vmatprep.subr.mxu0 0.0
    %3893 = vmatpush1.msra.mxu0 0.0
    %3894 = vmatprep.subr.mxu0 0.0
    %3895 = vmatpush1.msra.mxu0 0.0
    %3896 = vmatprep.subr.mxu0 0.0
    %3897 = vmatpush1.msra.mxu0 0.0
    %3898 = vmatprep.subr.mxu0 0.0
    %3899 = vmatpush1.msra.mxu0 0.0
    %3900 = vmatprep.subr.mxu0 0.0
    %3901 = vmatpush1.msra.mxu0 0.0
    %3902 = vmatprep.subr.mxu0 0.0
    %3903 = vmatpush1.msra.mxu0 0.0
    %3904 = vmatprep.subr.mxu0 0.0
    %3905 = vmatpush1.msra.mxu0 0.0
    %3906 = vmatprep.subr.mxu0 0.0
    %3907 = vmatpush1.msra.mxu0 0.0
    %3908 = vmatprep.subr.mxu0 0.0
    %3909 = vmatpush1.msra.mxu0 0.0
    %3910 = vmatprep.subr.mxu0 0.0
    %3911 = vmatpush1.msra.mxu0 0.0
    %3912 = vmatprep.subr.mxu0 0.0
    %3913 = vmatpush1.msra.mxu0 0.0
    %3914 = vmatprep.subr.mxu0 0.0
    %3915 = vmatpush1.msra.mxu0 0.0
    %3916 = vmatprep.subr.mxu0 0.0
    %3917 = vmatpush1.msra.mxu0 0.0
    %3918 = vmatprep.subr.mxu0 0.0
    %3919 = vmatpush1.msra.mxu0 0.0
    %3920 = vmatprep.subr.mxu0 0.0
    %3921 = vmatpush1.msra.mxu0 0.0
    %3922 = vmatprep.subr.mxu0 0.0
    %3923 = vmatpush1.msra.mxu0 0.0
    %3924 = vmatprep.subr.mxu0 0.0
    %3925 = vmatpush1.msra.mxu0 0.0
    %3926 = vmatprep.subr.mxu0 0.0
    %3927 = vmatpush1.msra.mxu0 0.0
    %3928 = vmatprep.subr.mxu0 0.0
    %3929 = vmatpush1.msra.mxu0 0.0
    %3930 = vmatprep.subr.mxu0 0.0
    %3931 = vmatpush1.msra.mxu0 0.0
    %3932 = vmatprep.subr.mxu0 0.0
    %3933 = vmatpush1.msra.mxu0 0.0
    %3934 = vmatprep.subr.mxu0 0.0
    %3935 = vmatpush1.msra.mxu0 0.0
    %3936 = vmatprep.subr.mxu0 0.0
    %3937 = vmatpush1.msra.mxu0 0.0
    %3938 = vmatprep.subr.mxu0 0.0
    %3939 = vmatpush1.msra.mxu0 0.0
    %3940 = vmatprep.subr.mxu0 0.0
    %3941 = vmatpush1.msra.mxu0 0.0
    %3942 = vmatprep.mubr.f32.mxu0 0.0
    %v3943 = vand.u32 %v3795, 4294901760
    %3944 = vmatmul.mubr.f32.gmra.mrb[0].mxu0 %v3943
    %v3945 = vpop.f32.mrb[0].mxu0
    %v3946 = vadd.f32 %v3870, %v3945
    %v3947 = vpop.f32.mrb[0].mxu0
    %3948 = vdwg.mxu0
    %3949 = vmatprep.subr.mxu0 0.0
    %v3950 = vand.u32 %v57, 4294901760
    %v3951 = vsub.f32 %v57, %v3950
    %3952 = vmatpush1.msra.mxu0 %v3951
    %3953 = vmatprep.subr.mxu0 0.0
    %3954 = vmatpush1.msra.mxu0 0.0
    %3955 = vmatprep.subr.mxu0 0.0
    %3956 = vmatpush1.msra.mxu0 0.0
    %3957 = vmatprep.subr.mxu0 0.0
    %3958 = vmatpush1.msra.mxu0 0.0
    %3959 = vmatprep.subr.mxu0 0.0
    %3960 = vmatpush1.msra.mxu0 0.0
    %3961 = vmatprep.subr.mxu0 0.0
    %3962 = vmatpush1.msra.mxu0 0.0
    %3963 = vmatprep.subr.mxu0 0.0
    %3964 = vmatpush1.msra.mxu0 0.0
    %3965 = vmatprep.subr.mxu0 0.0
    %3966 = vmatpush1.msra.mxu0 0.0
    %3967 = vmatprep.subr.mxu0 0.0
    %3968 = vmatpush1.msra.mxu0 0.0
    %3969 = vmatprep.subr.mxu0 0.0
    %3970 = vmatpush1.msra.mxu0 0.0
    %3971 = vmatprep.subr.mxu0 0.0
    %3972 = vmatpush1.msra.mxu0 0.0
    %3973 = vmatprep.subr.mxu0 0.0
    %3974 = vmatpush1.msra.mxu0 0.0
    %3975 = vmatprep.subr.mxu0 0.0
    %3976 = vmatpush1.msra.mxu0 0.0
    %3977 = vmatprep.subr.mxu0 0.0
    %3978 = vmatpush1.msra.mxu0 0.0
    %3979 = vmatprep.subr.mxu0 0.0
    %3980 = vmatpush1.msra.mxu0 0.0
    %3981 = vmatprep.subr.mxu0 0.0
    %3982 = vmatpush1.msra.mxu0 0.0
    %3983 = vmatprep.subr.mxu0 0.0
    %3984 = vmatpush1.msra.mxu0 0.0
    %3985 = vmatprep.subr.mxu0 0.0
    %3986 = vmatpush1.msra.mxu0 0.0
    %3987 = vmatprep.subr.mxu0 0.0
    %3988 = vmatpush1.msra.mxu0 0.0
    %3989 = vmatprep.subr.mxu0 0.0
    %3990 = vmatpush1.msra.mxu0 0.0
    %3991 = vmatprep.subr.mxu0 0.0
    %3992 = vmatpush1.msra.mxu0 0.0
    %3993 = vmatprep.subr.mxu0 0.0
    %3994 = vmatpush1.msra.mxu0 0.0
    %3995 = vmatprep.subr.mxu0 0.0
    %3996 = vmatpush1.msra.mxu0 0.0
    %3997 = vmatprep.subr.mxu0 0.0
    %3998 = vmatpush1.msra.mxu0 0.0
    %3999 = vmatprep.subr.mxu0 0.0
    %4000 = vmatpush1.msra.mxu0 0.0
    %4001 = vmatprep.subr.mxu0 0.0
    %4002 = vmatpush1.msra.mxu0 0.0
    %4003 = vmatprep.subr.mxu0 0.0
    %4004 = vmatpush1.msra.mxu0 0.0
    %4005 = vmatprep.subr.mxu0 0.0
    %4006 = vmatpush1.msra.mxu0 0.0
    %4007 = vmatprep.subr.mxu0 0.0
    %4008 = vmatpush1.msra.mxu0 0.0
    %4009 = vmatprep.subr.mxu0 0.0
    %4010 = vmatpush1.msra.mxu0 0.0
    %4011 = vmatprep.subr.mxu0 0.0
    %4012 = vmatpush1.msra.mxu0 0.0
    %4013 = vmatprep.subr.mxu0 0.0
    %4014 = vmatpush1.msra.mxu0 0.0
    %4015 = vmatprep.mubr.f32.mxu0 0.0
    %v4016 = vand.u32 %v3795, 4294901760
    %v4017 = vsub.f32 %v3795, %v4016
    %4018 = vmatmul.mubr.f32.gmra.mrb[0].mxu0 %v4017
    %v4019 = vpop.f32.mrb[0].mxu0
    %v4020 = vadd.f32 %v3946, %v4019
    %v4021 = vpop.f32.mrb[0].mxu0
    %4022 = vdwg.mxu0
    %4023 = vmatprep.subr.mxu0 0.0
    %v4024 = vand.u32 %v57, 4294901760
    %4025 = vmatpush1.msra.mxu0 %v4024
    %4026 = vmatprep.subr.mxu0 0.0
    %4027 = vmatpush1.msra.mxu0 0.0
    %4028 = vmatprep.subr.mxu0 0.0
    %4029 = vmatpush1.msra.mxu0 0.0
    %4030 = vmatprep.subr.mxu0 0.0
    %4031 = vmatpush1.msra.mxu0 0.0
    %4032 = vmatprep.subr.mxu0 0.0
    %4033 = vmatpush1.msra.mxu0 0.0
    %4034 = vmatprep.subr.mxu0 0.0
    %4035 = vmatpush1.msra.mxu0 0.0
    %4036 = vmatprep.subr.mxu0 0.0
    %4037 = vmatpush1.msra.mxu0 0.0
    %4038 = vmatprep.subr.mxu0 0.0
    %4039 = vmatpush1.msra.mxu0 0.0
    %4040 = vmatprep.subr.mxu0 0.0
    %4041 = vmatpush1.msra.mxu0 0.0
    %4042 = vmatprep.subr.mxu0 0.0
    %4043 = vmatpush1.msra.mxu0 0.0
    %4044 = vmatprep.subr.mxu0 0.0
    %4045 = vmatpush1.msra.mxu0 0.0
    %4046 = vmatprep.subr.mxu0 0.0
    %4047 = vmatpush1.msra.mxu0 0.0
    %4048 = vmatprep.subr.mxu0 0.0
    %4049 = vmatpush1.msra.mxu0 0.0
    %4050 = vmatprep.subr.mxu0 0.0
    %4051 = vmatpush1.msra.mxu0 0.0
    %4052 = vmatprep.subr.mxu0 0.0
    %4053 = vmatpush1.msra.mxu0 0.0
    %4054 = vmatprep.subr.mxu0 0.0
    %4055 = vmatpush1.msra.mxu0 0.0
    %4056 = vmatprep.subr.mxu0 0.0
    %4057 = vmatpush1.msra.mxu0 0.0
    %4058 = vmatprep.subr.mxu0 0.0
    %4059 = vmatpush1.msra.mxu0 0.0
    %4060 = vmatprep.subr.mxu0 0.0
    %4061 = vmatpush1.msra.mxu0 0.0
    %4062 = vmatprep.subr.mxu0 0.0
    %4063 = vmatpush1.msra.mxu0 0.0
    %4064 = vmatprep.subr.mxu0 0.0
    %4065 = vmatpush1.msra.mxu0 0.0
    %4066 = vmatprep.subr.mxu0 0.0
    %4067 = vmatpush1.msra.mxu0 0.0
    %4068 = vmatprep.subr.mxu0 0.0
    %4069 = vmatpush1.msra.mxu0 0.0
    %4070 = vmatprep.subr.mxu0 0.0
    %4071 = vmatpush1.msra.mxu0 0.0
    %4072 = vmatprep.subr.mxu0 0.0
    %4073 = vmatpush1.msra.mxu0 0.0
    %4074 = vmatprep.subr.mxu0 0.0
    %4075 = vmatpush1.msra.mxu0 0.0
    %4076 = vmatprep.subr.mxu0 0.0
    %4077 = vmatpush1.msra.mxu0 0.0
    %4078 = vmatprep.subr.mxu0 0.0
    %4079 = vmatpush1.msra.mxu0 0.0
    %4080 = vmatprep.subr.mxu0 0.0
    %4081 = vmatpush1.msra.mxu0 0.0
    %4082 = vmatprep.subr.mxu0 0.0
    %4083 = vmatpush1.msra.mxu0 0.0
    %4084 = vmatprep.subr.mxu0 0.0
    %4085 = vmatpush1.msra.mxu0 0.0
    %4086 = vmatprep.subr.mxu0 0.0
    %4087 = vmatpush1.msra.mxu0 0.0
    %4088 = vmatprep.mubr.f32.mxu0 0.0
    %v4089 = vand.u32 %v3795, 4294901760
    %v4090 = vsub.f32 %v3795, %v4089
    %v4091 = vand.u32 %v4090, 4294901760
    %4092 = vmatmul.mubr.f32.gmra.mrb[0].mxu0 %v4091
    %v4093 = vpop.f32.mrb[0].mxu0
    %v4094 = vadd.f32 %v4020, %v4093
    %v4095 = vpop.f32.mrb[0].mxu0
    %4096 = vdwg.mxu0
    %4097 = vmatprep.subr.mxu0 0.0
    %v4098 = vand.u32 %v57, 4294901760
    %v4099 = vsub.f32 %v57, %v4098
    %v4100 = vand.u32 %v4099, 4294901760
    %4101 = vmatpush1.msra.mxu0 %v4100
    %4102 = vmatprep.subr.mxu0 0.0
    %4103 = vmatpush1.msra.mxu0 0.0
    %4104 = vmatprep.subr.mxu0 0.0
    %4105 = vmatpush1.msra.mxu0 0.0
    %4106 = vmatprep.subr.mxu0 0.0
    %4107 = vmatpush1.msra.mxu0 0.0
    %4108 = vmatprep.subr.mxu0 0.0
    %4109 = vmatpush1.msra.mxu0 0.0
    %4110 = vmatprep.subr.mxu0 0.0
    %4111 = vmatpush1.msra.mxu0 0.0
    %4112 = vmatprep.subr.mxu0 0.0
    %4113 = vmatpush1.msra.mxu0 0.0
    %4114 = vmatprep.subr.mxu0 0.0
    %4115 = vmatpush1.msra.mxu0 0.0
    %4116 = vmatprep.subr.mxu0 0.0
    %4117 = vmatpush1.msra.mxu0 0.0
    %4118 = vmatprep.subr.mxu0 0.0
    %4119 = vmatpush1.msra.mxu0 0.0
    %4120 = vmatprep.subr.mxu0 0.0
    %4121 = vmatpush1.msra.mxu0 0.0
    %4122 = vmatprep.subr.mxu0 0.0
    %4123 = vmatpush1.msra.mxu0 0.0
    %4124 = vmatprep.subr.mxu0 0.0
    %4125 = vmatpush1.msra.mxu0 0.0
    %4126 = vmatprep.subr.mxu0 0.0
    %4127 = vmatpush1.msra.mxu0 0.0
    %4128 = vmatprep.subr.mxu0 0.0
    %4129 = vmatpush1.msra.mxu0 0.0
    %4130 = vmatprep.subr.mxu0 0.0
    %4131 = vmatpush1.msra.mxu0 0.0
    %4132 = vmatprep.subr.mxu0 0.0
    %4133 = vmatpush1.msra.mxu0 0.0
    %4134 = vmatprep.subr.mxu0 0.0
    %4135 = vmatpush1.msra.mxu0 0.0
    %4136 = vmatprep.subr.mxu0 0.0
    %4137 = vmatpush1.msra.mxu0 0.0
    %4138 = vmatprep.subr.mxu0 0.0
    %4139 = vmatpush1.msra.mxu0 0.0
    %4140 = vmatprep.subr.mxu0 0.0
    %4141 = vmatpush1.msra.mxu0 0.0
    %4142 = vmatprep.subr.mxu0 0.0
    %4143 = vmatpush1.msra.mxu0 0.0
    %4144 = vmatprep.subr.mxu0 0.0
    %4145 = vmatpush1.msra.mxu0 0.0
    %4146 = vmatprep.subr.mxu0 0.0
    %4147 = vmatpush1.msra.mxu0 0.0
    %4148 = vmatprep.subr.mxu0 0.0
    %4149 = vmatpush1.msra.mxu0 0.0
    %4150 = vmatprep.subr.mxu0 0.0
    %4151 = vmatpush1.msra.mxu0 0.0
    %4152 = vmatprep.subr.mxu0 0.0
    %4153 = vmatpush1.msra.mxu0 0.0
    %4154 = vmatprep.subr.mxu0 0.0
    %4155 = vmatpush1.msra.mxu0 0.0
    %4156 = vmatprep.subr.mxu0 0.0
    %4157 = vmatpush1.msra.mxu0 0.0
    %4158 = vmatprep.subr.mxu0 0.0
    %4159 = vmatpush1.msra.mxu0 0.0
    %4160 = vmatprep.subr.mxu0 0.0
    %4161 = vmatpush1.msra.mxu0 0.0
    %4162 = vmatprep.subr.mxu0 0.0
    %4163 = vmatpush1.msra.mxu0 0.0
    %4164 = vmatprep.mubr.f32.mxu0 0.0
    %v4165 = vand.u32 %v3795, 4294901760
    %4166 = vmatmul.mubr.f32.gmra.mrb[0].mxu0 %v4165
    %v4167 = vpop.f32.mrb[0].mxu0
    %v4168 = vadd.f32 %v4094, %v4167
    %v4169 = vpop.f32.mrb[0].mxu0
    %4170 = vdwg.mxu0
    %4171 = vmatprep.subr.mxu0 0.0
    %v4172 = vand.u32 %v57, 4294901760
    %4173 = vmatpush1.msra.mxu0 %v4172
    %4174 = vmatprep.subr.mxu0 0.0
    %4175 = vmatpush1.msra.mxu0 0.0
    %4176 = vmatprep.subr.mxu0 0.0
    %4177 = vmatpush1.msra.mxu0 0.0
    %4178 = vmatprep.subr.mxu0 0.0
    %4179 = vmatpush1.msra.mxu0 0.0
    %4180 = vmatprep.subr.mxu0 0.0
    %4181 = vmatpush1.msra.mxu0 0.0
    %4182 = vmatprep.subr.mxu0 0.0
    %4183 = vmatpush1.msra.mxu0 0.0
    %4184 = vmatprep.subr.mxu0 0.0
    %4185 = vmatpush1.msra.mxu0 0.0
    %4186 = vmatprep.subr.mxu0 0.0
    %4187 = vmatpush1.msra.mxu0 0.0
    %4188 = vmatprep.subr.mxu0 0.0
    %4189 = vmatpush1.msra.mxu0 0.0
    %4190 = vmatprep.subr.mxu0 0.0
    %4191 = vmatpush1.msra.mxu0 0.0
    %4192 = vmatprep.subr.mxu0 0.0
    %4193 = vmatpush1.msra.mxu0 0.0
    %4194 = vmatprep.subr.mxu0 0.0
    %4195 = vmatpush1.msra.mxu0 0.0
    %4196 = vmatprep.subr.mxu0 0.0
    %4197 = vmatpush1.msra.mxu0 0.0
    %4198 = vmatprep.subr.mxu0 0.0
    %4199 = vmatpush1.msra.mxu0 0.0
    %4200 = vmatprep.subr.mxu0 0.0
    %4201 = vmatpush1.msra.mxu0 0.0
    %4202 = vmatprep.subr.mxu0 0.0
    %4203 = vmatpush1.msra.mxu0 0.0
    %4204 = vmatprep.subr.mxu0 0.0
    %4205 = vmatpush1.msra.mxu0 0.0
    %4206 = vmatprep.subr.mxu0 0.0
    %4207 = vmatpush1.msra.mxu0 0.0
    %4208 = vmatprep.subr.mxu0 0.0
    %4209 = vmatpush1.msra.mxu0 0.0
    %4210 = vmatprep.subr.mxu0 0.0
    %4211 = vmatpush1.msra.mxu0 0.0
    %4212 = vmatprep.subr.mxu0 0.0
    %4213 = vmatpush1.msra.mxu0 0.0
    %4214 = vmatprep.subr.mxu0 0.0
    %4215 = vmatpush1.msra.mxu0 0.0
    %4216 = vmatprep.subr.mxu0 0.0
    %4217 = vmatpush1.msra.mxu0 0.0
    %4218 = vmatprep.subr.mxu0 0.0
    %4219 = vmatpush1.msra.mxu0 0.0
    %4220 = vmatprep.subr.mxu0 0.0
    %4221 = vmatpush1.msra.mxu0 0.0
    %4222 = vmatprep.subr.mxu0 0.0
    %4223 = vmatpush1.msra.mxu0 0.0
    %4224 = vmatprep.subr.mxu0 0.0
    %4225 = vmatpush1.msra.mxu0 0.0
    %4226 = vmatprep.subr.mxu0 0.0
    %4227 = vmatpush1.msra.mxu0 0.0
    %4228 = vmatprep.subr.mxu0 0.0
    %4229 = vmatpush1.msra.mxu0 0.0
    %4230 = vmatprep.subr.mxu0 0.0
    %4231 = vmatpush1.msra.mxu0 0.0
    %4232 = vmatprep.subr.mxu0 0.0
    %4233 = vmatpush1.msra.mxu0 0.0
    %4234 = vmatprep.subr.mxu0 0.0
    %4235 = vmatpush1.msra.mxu0 0.0
    %4236 = vmatprep.mubr.f32.mxu0 0.0
    %v4237 = vand.u32 %v3795, 4294901760
    %4238 = vmatmul.mubr.f32.gmra.mrb[0].mxu0 %v4237
    %v4239 = vpop.f32.mrb[0].mxu0
    %v4240 = vadd.f32 %v4168, %v4239
    %v4241 = vpop.f32.mrb[0].mxu0
    %4242 = vdwg.mxu0
    %v4244 = vsel %vm3793, %v3778, 0
    %4246 = vmatprep.subr.mxu0 0.0
    %v4247 = vand.u32 %v58, 4294901760
    %4248 = vmatpush1.msra.mxu0 %v4247
    %4249 = vmatprep.subr.mxu0 0.0
    %4250 = vmatpush1.msra.mxu0 0.0
    %4251 = vmatprep.subr.mxu0 0.0
    %4252 = vmatpush1.msra.mxu0 0.0
    %4253 = vmatprep.subr.mxu0 0.0
    %4254 = vmatpush1.msra.mxu0 0.0
    %4255 = vmatprep.subr.mxu0 0.0
    %4256 = vmatpush1.msra.mxu0 0.0
    %4257 = vmatprep.subr.mxu0 0.0
    %4258 = vmatpush1.msra.mxu0 0.0
    %4259 = vmatprep.subr.mxu0 0.0
    %4260 = vmatpush1.msra.mxu0 0.0
    %4261 = vmatprep.subr.mxu0 0.0
    %4262 = vmatpush1.msra.mxu0 0.0
    %4263 = vmatprep.subr.mxu0 0.0
    %4264 = vmatpush1.msra.mxu0 0.0
    %4265 = vmatprep.subr.mxu0 0.0
    %4266 = vmatpush1.msra.mxu0 0.0
    %4267 = vmatprep.subr.mxu0 0.0
    %4268 = vmatpush1.msra.mxu0 0.0
    %4269 = vmatprep.subr.mxu0 0.0
    %4270 = vmatpush1.msra.mxu0 0.0
    %4271 = vmatprep.subr.mxu0 0.0
    %4272 = vmatpush1.msra.mxu0 0.0
    %4273 = vmatprep.subr.mxu0 0.0
    %4274 = vmatpush1.msra.mxu0 0.0
    %4275 = vmatprep.subr.mxu0 0.0
    %4276 = vmatpush1.msra.mxu0 0.0
    %4277 = vmatprep.subr.mxu0 0.0
    %4278 = vmatpush1.msra.mxu0 0.0
    %4279 = vmatprep.subr.mxu0 0.0
    %4280 = vmatpush1.msra.mxu0 0.0
    %4281 = vmatprep.subr.mxu0 0.0
    %4282 = vmatpush1.msra.mxu0 0.0
    %4283 = vmatprep.subr.mxu0 0.0
    %4284 = vmatpush1.msra.mxu0 0.0
    %4285 = vmatprep.subr.mxu0 0.0
    %4286 = vmatpush1.msra.mxu0 0.0
    %4287 = vmatprep.subr.mxu0 0.0
    %4288 = vmatpush1.msra.mxu0 0.0
    %4289 = vmatprep.subr.mxu0 0.0
    %4290 = vmatpush1.msra.mxu0 0.0
    %4291 = vmatprep.subr.mxu0 0.0
    %4292 = vmatpush1.msra.mxu0 0.0
    %4293 = vmatprep.subr.mxu0 0.0
    %4294 = vmatpush1.msra.mxu0 0.0
    %4295 = vmatprep.subr.mxu0 0.0
    %4296 = vmatpush1.msra.mxu0 0.0
    %4297 = vmatprep.subr.mxu0 0.0
    %4298 = vmatpush1.msra.mxu0 0.0
    %4299 = vmatprep.subr.mxu0 0.0
    %4300 = vmatpush1.msra.mxu0 0.0
    %4301 = vmatprep.subr.mxu0 0.0
    %4302 = vmatpush1.msra.mxu0 0.0
    %4303 = vmatprep.subr.mxu0 0.0
    %4304 = vmatpush1.msra.mxu0 0.0
    %4305 = vmatprep.subr.mxu0 0.0
    %4306 = vmatpush1.msra.mxu0 0.0
    %4307 = vmatprep.subr.mxu0 0.0
    %4308 = vmatpush1.msra.mxu0 0.0
    %4309 = vmatprep.subr.mxu0 0.0
    %4310 = vmatpush1.msra.mxu0 0.0
    %4311 = vmatprep.mubr.f32.mxu0 0.0
    %v4312 = vand.u32 %v4244, 4294901760
    %v4313 = vsub.f32 %v4244, %v4312
    %v4314 = vand.u32 %v4313, 4294901760
    %v4315 = vsub.f32 %v4313, %v4314
    %v4316 = vand.u32 %v4315, 4294901760
    %4317 = vmatmul.mubr.f32.gmra.mrb[0].mxu0 %v4316
    %v4318 = vpop.f32.mrb[0].mxu0
    %v4319 = vadd.f32 0.0, %v4318
    %v4320 = vpop.f32.mrb[0].mxu0
    %4321 = vdwg.mxu0
    %4322 = vmatprep.subr.mxu0 0.0
    %v4323 = vand.u32 %v58, 4294901760
    %v4324 = vsub.f32 %v58, %v4323
    %v4325 = vand.u32 %v4324, 4294901760
    %v4326 = vsub.f32 %v4324, %v4325
    %v4327 = vand.u32 %v4326, 4294901760
    %4328 = vmatpush1.msra.mxu0 %v4327
    %4329 = vmatprep.subr.mxu0 0.0
    %4330 = vmatpush1.msra.mxu0 0.0
    %4331 = vmatprep.subr.mxu0 0.0
    %4332 = vmatpush1.msra.mxu0 0.0
    %4333 = vmatprep.subr.mxu0 0.0
    %4334 = vmatpush1.msra.mxu0 0.0
    %4335 = vmatprep.subr.mxu0 0.0
    %4336 = vmatpush1.msra.mxu0 0.0
    %4337 = vmatprep.subr.mxu0 0.0
    %4338 = vmatpush1.msra.mxu0 0.0
    %4339 = vmatprep.subr.mxu0 0.0
    %4340 = vmatpush1.msra.mxu0 0.0
    %4341 = vmatprep.subr.mxu0 0.0
    %4342 = vmatpush1.msra.mxu0 0.0
    %4343 = vmatprep.subr.mxu0 0.0
    %4344 = vmatpush1.msra.mxu0 0.0
    %4345 = vmatprep.subr.mxu0 0.0
    %4346 = vmatpush1.msra.mxu0 0.0
    %4347 = vmatprep.subr.mxu0 0.0
    %4348 = vmatpush1.msra.mxu0 0.0
    %4349 = vmatprep.subr.mxu0 0.0
    %4350 = vmatpush1.msra.mxu0 0.0
    %4351 = vmatprep.subr.mxu0 0.0
    %4352 = vmatpush1.msra.mxu0 0.0
    %4353 = vmatprep.subr.mxu0 0.0
    %4354 = vmatpush1.msra.mxu0 0.0
    %4355 = vmatprep.subr.mxu0 0.0
    %4356 = vmatpush1.msra.mxu0 0.0
    %4357 = vmatprep.subr.mxu0 0.0
    %4358 = vmatpush1.msra.mxu0 0.0
    %4359 = vmatprep.subr.mxu0 0.0
    %4360 = vmatpush1.msra.mxu0 0.0
    %4361 = vmatprep.subr.mxu0 0.0
    %4362 = vmatpush1.msra.mxu0 0.0
    %4363 = vmatprep.subr.mxu0 0.0
    %4364 = vmatpush1.msra.mxu0 0.0
    %4365 = vmatprep.subr.mxu0 0.0
    %4366 = vmatpush1.msra.mxu0 0.0
    %4367 = vmatprep.subr.mxu0 0.0
    %4368 = vmatpush1.msra.mxu0 0.0
    %4369 = vmatprep.subr.mxu0 0.0
    %4370 = vmatpush1.msra.mxu0 0.0
    %4371 = vmatprep.subr.mxu0 0.0
    %4372 = vmatpush1.msra.mxu0 0.0
    %4373 = vmatprep.subr.mxu0 0.0
    %4374 = vmatpush1.msra.mxu0 0.0
    %4375 = vmatprep.subr.mxu0 0.0
    %4376 = vmatpush1.msra.mxu0 0.0
    %4377 = vmatprep.subr.mxu0 0.0
    %4378 = vmatpush1.msra.mxu0 0.0
    %4379 = vmatprep.subr.mxu0 0.0
    %4380 = vmatpush1.msra.mxu0 0.0
    %4381 = vmatprep.subr.mxu0 0.0
    %4382 = vmatpush1.msra.mxu0 0.0
    %4383 = vmatprep.subr.mxu0 0.0
    %4384 = vmatpush1.msra.mxu0 0.0
    %4385 = vmatprep.subr.mxu0 0.0
    %4386 = vmatpush1.msra.mxu0 0.0
    %4387 = vmatprep.subr.mxu0 0.0
    %4388 = vmatpush1.msra.mxu0 0.0
    %4389 = vmatprep.subr.mxu0 0.0
    %4390 = vmatpush1.msra.mxu0 0.0
    %4391 = vmatprep.mubr.f32.mxu0 0.0
    %v4392 = vand.u32 %v4244, 4294901760
    %4393 = vmatmul.mubr.f32.gmra.mrb[0].mxu0 %v4392
    %v4394 = vpop.f32.mrb[0].mxu0
    %v4395 = vadd.f32 %v4319, %v4394
    %v4396 = vpop.f32.mrb[0].mxu0
    %4397 = vdwg.mxu0
    %4398 = vmatprep.subr.mxu0 0.0
    %v4399 = vand.u32 %v58, 4294901760
    %v4400 = vsub.f32 %v58, %v4399
    %4401 = vmatpush1.msra.mxu0 %v4400
    %4402 = vmatprep.subr.mxu0 0.0
    %4403 = vmatpush1.msra.mxu0 0.0
    %4404 = vmatprep.subr.mxu0 0.0
    %4405 = vmatpush1.msra.mxu0 0.0
    %4406 = vmatprep.subr.mxu0 0.0
    %4407 = vmatpush1.msra.mxu0 0.0
    %4408 = vmatprep.subr.mxu0 0.0
    %4409 = vmatpush1.msra.mxu0 0.0
    %4410 = vmatprep.subr.mxu0 0.0
    %4411 = vmatpush1.msra.mxu0 0.0
    %4412 = vmatprep.subr.mxu0 0.0
    %4413 = vmatpush1.msra.mxu0 0.0
    %4414 = vmatprep.subr.mxu0 0.0
    %4415 = vmatpush1.msra.mxu0 0.0
    %4416 = vmatprep.subr.mxu0 0.0
    %4417 = vmatpush1.msra.mxu0 0.0
    %4418 = vmatprep.subr.mxu0 0.0
    %4419 = vmatpush1.msra.mxu0 0.0
    %4420 = vmatprep.subr.mxu0 0.0
    %4421 = vmatpush1.msra.mxu0 0.0
    %4422 = vmatprep.subr.mxu0 0.0
    %4423 = vmatpush1.msra.mxu0 0.0
    %4424 = vmatprep.subr.mxu0 0.0
    %4425 = vmatpush1.msra.mxu0 0.0
    %4426 = vmatprep.subr.mxu0 0.0
    %4427 = vmatpush1.msra.mxu0 0.0
    %4428 = vmatprep.subr.mxu0 0.0
    %4429 = vmatpush1.msra.mxu0 0.0
    %4430 = vmatprep.subr.mxu0 0.0
    %4431 = vmatpush1.msra.mxu0 0.0
    %4432 = vmatprep.subr.mxu0 0.0
    %4433 = vmatpush1.msra.mxu0 0.0
    %4434 = vmatprep.subr.mxu0 0.0
    %4435 = vmatpush1.msra.mxu0 0.0
    %4436 = vmatprep.subr.mxu0 0.0
    %4437 = vmatpush1.msra.mxu0 0.0
    %4438 = vmatprep.subr.mxu0 0.0
    %4439 = vmatpush1.msra.mxu0 0.0
    %4440 = vmatprep.subr.mxu0 0.0
    %4441 = vmatpush1.msra.mxu0 0.0
    %4442 = vmatprep.subr.mxu0 0.0
    %4443 = vmatpush1.msra.mxu0 0.0
    %4444 = vmatprep.subr.mxu0 0.0
    %4445 = vmatpush1.msra.mxu0 0.0
    %4446 = vmatprep.subr.mxu0 0.0
    %4447 = vmatpush1.msra.mxu0 0.0
    %4448 = vmatprep.subr.mxu0 0.0
    %4449 = vmatpush1.msra.mxu0 0.0
    %4450 = vmatprep.subr.mxu0 0.0
    %4451 = vmatpush1.msra.mxu0 0.0
    %4452 = vmatprep.subr.mxu0 0.0
    %4453 = vmatpush1.msra.mxu0 0.0
    %4454 = vmatprep.subr.mxu0 0.0
    %4455 = vmatpush1.msra.mxu0 0.0
    %4456 = vmatprep.subr.mxu0 0.0
    %4457 = vmatpush1.msra.mxu0 0.0
    %4458 = vmatprep.subr.mxu0 0.0
    %4459 = vmatpush1.msra.mxu0 0.0
    %4460 = vmatprep.subr.mxu0 0.0
    %4461 = vmatpush1.msra.mxu0 0.0
    %4462 = vmatprep.subr.mxu0 0.0
    %4463 = vmatpush1.msra.mxu0 0.0
    %4464 = vmatprep.mubr.f32.mxu0 0.0
    %v4465 = vand.u32 %v4244, 4294901760
    %v4466 = vsub.f32 %v4244, %v4465
    %4467 = vmatmul.mubr.f32.gmra.mrb[0].mxu0 %v4466
    %v4468 = vpop.f32.mrb[0].mxu0
    %v4469 = vadd.f32 %v4395, %v4468
    %v4470 = vpop.f32.mrb[0].mxu0
    %4471 = vdwg.mxu0
    %4472 = vmatprep.subr.mxu0 0.0
    %v4473 = vand.u32 %v58, 4294901760
    %4474 = vmatpush1.msra.mxu0 %v4473
    %4475 = vmatprep.subr.mxu0 0.0
    %4476 = vmatpush1.msra.mxu0 0.0
    %4477 = vmatprep.subr.mxu0 0.0
    %4478 = vmatpush1.msra.mxu0 0.0
    %4479 = vmatprep.subr.mxu0 0.0
    %4480 = vmatpush1.msra.mxu0 0.0
    %4481 = vmatprep.subr.mxu0 0.0
    %4482 = vmatpush1.msra.mxu0 0.0
    %4483 = vmatprep.subr.mxu0 0.0
    %4484 = vmatpush1.msra.mxu0 0.0
    %4485 = vmatprep.subr.mxu0 0.0
    %4486 = vmatpush1.msra.mxu0 0.0
    %4487 = vmatprep.subr.mxu0 0.0
    %4488 = vmatpush1.msra.mxu0 0.0
    %4489 = vmatprep.subr.mxu0 0.0
    %4490 = vmatpush1.msra.mxu0 0.0
    %4491 = vmatprep.subr.mxu0 0.0
    %4492 = vmatpush1.msra.mxu0 0.0
    %4493 = vmatprep.subr.mxu0 0.0
    %4494 = vmatpush1.msra.mxu0 0.0
    %4495 = vmatprep.subr.mxu0 0.0
    %4496 = vmatpush1.msra.mxu0 0.0
    %4497 = vmatprep.subr.mxu0 0.0
    %4498 = vmatpush1.msra.mxu0 0.0
    %4499 = vmatprep.subr.mxu0 0.0
    %4500 = vmatpush1.msra.mxu0 0.0
    %4501 = vmatprep.subr.mxu0 0.0
    %4502 = vmatpush1.msra.mxu0 0.0
    %4503 = vmatprep.subr.mxu0 0.0
    %4504 = vmatpush1.msra.mxu0 0.0
    %4505 = vmatprep.subr.mxu0 0.0
    %4506 = vmatpush1.msra.mxu0 0.0
    %4507 = vmatprep.subr.mxu0 0.0
    %4508 = vmatpush1.msra.mxu0 0.0
    %4509 = vmatprep.subr.mxu0 0.0
    %4510 = vmatpush1.msra.mxu0 0.0
    %4511 = vmatprep.subr.mxu0 0.0
    %4512 = vmatpush1.msra.mxu0 0.0
    %4513 = vmatprep.subr.mxu0 0.0
    %4514 = vmatpush1.msra.mxu0 0.0
    %4515 = vmatprep.subr.mxu0 0.0
    %4516 = vmatpush1.msra.mxu0 0.0
    %4517 = vmatprep.subr.mxu0 0.0
    %4518 = vmatpush1.msra.mxu0 0.0
    %4519 = vmatprep.subr.mxu0 0.0
    %4520 = vmatpush1.msra.mxu0 0.0
    %4521 = vmatprep.subr.mxu0 0.0
    %4522 = vmatpush1.msra.mxu0 0.0
    %4523 = vmatprep.subr.mxu0 0.0
    %4524 = vmatpush1.msra.mxu0 0.0
    %4525 = vmatprep.subr.mxu0 0.0
    %4526 = vmatpush1.msra.mxu0 0.0
    %4527 = vmatprep.subr.mxu0 0.0
    %4528 = vmatpush1.msra.mxu0 0.0
    %4529 = vmatprep.subr.mxu0 0.0
    %4530 = vmatpush1.msra.mxu0 0.0
    %4531 = vmatprep.subr.mxu0 0.0
    %4532 = vmatpush1.msra.mxu0 0.0
    %4533 = vmatprep.subr.mxu0 0.0
    %4534 = vmatpush1.msra.mxu0 0.0
    %4535 = vmatprep.subr.mxu0 0.0
    %4536 = vmatpush1.msra.mxu0 0.0
    %4537 = vmatprep.mubr.f32.mxu0 0.0
    %v4538 = vand.u32 %v4244, 4294901760
    %v4539 = vsub.f32 %v4244, %v4538
    %v4540 = vand.u32 %v4539, 4294901760
    %4541 = vmatmul.mubr.f32.gmra.mrb[0].mxu0 %v4540
    %v4542 = vpop.f32.mrb[0].mxu0
    %v4543 = vadd.f32 %v4469, %v4542
    %v4544 = vpop.f32.mrb[0].mxu0
    %4545 = vdwg.mxu0
    %4546 = vmatprep.subr.mxu0 0.0
    %v4547 = vand.u32 %v58, 4294901760
    %v4548 = vsub.f32 %v58, %v4547
    %v4549 = vand.u32 %v4548, 4294901760
    %4550 = vmatpush1.msra.mxu0 %v4549
    %4551 = vmatprep.subr.mxu0 0.0
    %4552 = vmatpush1.msra.mxu0 0.0
    %4553 = vmatprep.subr.mxu0 0.0
    %4554 = vmatpush1.msra.mxu0 0.0
    %4555 = vmatprep.subr.mxu0 0.0
    %4556 = vmatpush1.msra.mxu0 0.0
    %4557 = vmatprep.subr.mxu0 0.0
    %4558 = vmatpush1.msra.mxu0 0.0
    %4559 = vmatprep.subr.mxu0 0.0
    %4560 = vmatpush1.msra.mxu0 0.0
    %4561 = vmatprep.subr.mxu0 0.0
    %4562 = vmatpush1.msra.mxu0 0.0
    %4563 = vmatprep.subr.mxu0 0.0
    %4564 = vmatpush1.msra.mxu0 0.0
    %4565 = vmatprep.subr.mxu0 0.0
    %4566 = vmatpush1.msra.mxu0 0.0
    %4567 = vmatprep.subr.mxu0 0.0
    %4568 = vmatpush1.msra.mxu0 0.0
    %4569 = vmatprep.subr.mxu0 0.0
    %4570 = vmatpush1.msra.mxu0 0.0
    %4571 = vmatprep.subr.mxu0 0.0
    %4572 = vmatpush1.msra.mxu0 0.0
    %4573 = vmatprep.subr.mxu0 0.0
    %4574 = vmatpush1.msra.mxu0 0.0
    %4575 = vmatprep.subr.mxu0 0.0
    %4576 = vmatpush1.msra.mxu0 0.0
    %4577 = vmatprep.subr.mxu0 0.0
    %4578 = vmatpush1.msra.mxu0 0.0
    %4579 = vmatprep.subr.mxu0 0.0
    %4580 = vmatpush1.msra.mxu0 0.0
    %4581 = vmatprep.subr.mxu0 0.0
    %4582 = vmatpush1.msra.mxu0 0.0
    %4583 = vmatprep.subr.mxu0 0.0
    %4584 = vmatpush1.msra.mxu0 0.0
    %4585 = vmatprep.subr.mxu0 0.0
    %4586 = vmatpush1.msra.mxu0 0.0
    %4587 = vmatprep.subr.mxu0 0.0
    %4588 = vmatpush1.msra.mxu0 0.0
    %4589 = vmatprep.subr.mxu0 0.0
    %4590 = vmatpush1.msra.mxu0 0.0
    %4591 = vmatprep.subr.mxu0 0.0
    %4592 = vmatpush1.msra.mxu0 0.0
    %4593 = vmatprep.subr.mxu0 0.0
    %4594 = vmatpush1.msra.mxu0 0.0
    %4595 = vmatprep.subr.mxu0 0.0
    %4596 = vmatpush1.msra.mxu0 0.0
    %4597 = vmatprep.subr.mxu0 0.0
    %4598 = vmatpush1.msra.mxu0 0.0
    %4599 = vmatprep.subr.mxu0 0.0
    %4600 = vmatpush1.msra.mxu0 0.0
    %4601 = vmatprep.subr.mxu0 0.0
    %4602 = vmatpush1.msra.mxu0 0.0
    %4603 = vmatprep.subr.mxu0 0.0
    %4604 = vmatpush1.msra.mxu0 0.0
    %4605 = vmatprep.subr.mxu0 0.0
    %4606 = vmatpush1.msra.mxu0 0.0
    %4607 = vmatprep.subr.mxu0 0.0
    %4608 = vmatpush1.msra.mxu0 0.0
    %4609 = vmatprep.subr.mxu0 0.0
    %4610 = vmatpush1.msra.mxu0 0.0
    %4611 = vmatprep.subr.mxu0 0.0
    %4612 = vmatpush1.msra.mxu0 0.0
    %4613 = vmatprep.mubr.f32.mxu0 0.0
    %v4614 = vand.u32 %v4244, 4294901760
    %4615 = vmatmul.mubr.f32.gmra.mrb[0].mxu0 %v4614
    %v4616 = vpop.f32.mrb[0].mxu0
    %v4617 = vadd.f32 %v4543, %v4616
    %v4618 = vpop.f32.mrb[0].mxu0
    %4619 = vdwg.mxu0
    %4620 = vmatprep.subr.mxu0 0.0
    %v4621 = vand.u32 %v58, 4294901760
    %4622 = vmatpush1.msra.mxu0 %v4621
    %4623 = vmatprep.subr.mxu0 0.0
    %4624 = vmatpush1.msra.mxu0 0.0
    %4625 = vmatprep.subr.mxu0 0.0
    %4626 = vmatpush1.msra.mxu0 0.0
    %4627 = vmatprep.subr.mxu0 0.0
    %4628 = vmatpush1.msra.mxu0 0.0
    %4629 = vmatprep.subr.mxu0 0.0
    %4630 = vmatpush1.msra.mxu0 0.0
    %4631 = vmatprep.subr.mxu0 0.0
    %4632 = vmatpush1.msra.mxu0 0.0
    %4633 = vmatprep.subr.mxu0 0.0
    %4634 = vmatpush1.msra.mxu0 0.0
    %4635 = vmatprep.subr.mxu0 0.0
    %4636 = vmatpush1.msra.mxu0 0.0
    %4637 = vmatprep.subr.mxu0 0.0
    %4638 = vmatpush1.msra.mxu0 0.0
    %4639 = vmatprep.subr.mxu0 0.0
    %4640 = vmatpush1.msra.mxu0 0.0
    %4641 = vmatprep.subr.mxu0 0.0
    %4642 = vmatpush1.msra.mxu0 0.0
    %4643 = vmatprep.subr.mxu0 0.0
    %4644 = vmatpush1.msra.mxu0 0.0
    %4645 = vmatprep.subr.mxu0 0.0
    %4646 = vmatpush1.msra.mxu0 0.0
    %4647 = vmatprep.subr.mxu0 0.0
    %4648 = vmatpush1.msra.mxu0 0.0
    %4649 = vmatprep.subr.mxu0 0.0
    %4650 = vmatpush1.msra.mxu0 0.0
    %4651 = vmatprep.subr.mxu0 0.0
    %4652 = vmatpush1.msra.mxu0 0.0
    %4653 = vmatprep.subr.mxu0 0.0
    %4654 = vmatpush1.msra.mxu0 0.0
    %4655 = vmatprep.subr.mxu0 0.0
    %4656 = vmatpush1.msra.mxu0 0.0
    %4657 = vmatprep.subr.mxu0 0.0
    %4658 = vmatpush1.msra.mxu0 0.0
    %4659 = vmatprep.subr.mxu0 0.0
    %4660 = vmatpush1.msra.mxu0 0.0
    %4661 = vmatprep.subr.mxu0 0.0
    %4662 = vmatpush1.msra.mxu0 0.0
    %4663 = vmatprep.subr.mxu0 0.0
    %4664 = vmatpush1.msra.mxu0 0.0
    %4665 = vmatprep.subr.mxu0 0.0
    %4666 = vmatpush1.msra.mxu0 0.0
    %4667 = vmatprep.subr.mxu0 0.0
    %4668 = vmatpush1.msra.mxu0 0.0
    %4669 = vmatprep.subr.mxu0 0.0
    %4670 = vmatpush1.msra.mxu0 0.0
    %4671 = vmatprep.subr.mxu0 0.0
    %4672 = vmatpush1.msra.mxu0 0.0
    %4673 = vmatprep.subr.mxu0 0.0
    %4674 = vmatpush1.msra.mxu0 0.0
    %4675 = vmatprep.subr.mxu0 0.0
    %4676 = vmatpush1.msra.mxu0 0.0
    %4677 = vmatprep.subr.mxu0 0.0
    %4678 = vmatpush1.msra.mxu0 0.0
    %4679 = vmatprep.subr.mxu0 0.0
    %4680 = vmatpush1.msra.mxu0 0.0
    %4681 = vmatprep.subr.mxu0 0.0
    %4682 = vmatpush1.msra.mxu0 0.0
    %4683 = vmatprep.subr.mxu0 0.0
    %4684 = vmatpush1.msra.mxu0 0.0
    %4685 = vmatprep.mubr.f32.mxu0 0.0
    %v4686 = vand.u32 %v4244, 4294901760
    %4687 = vmatmul.mubr.f32.gmra.mrb[0].mxu0 %v4686
    %v4688 = vpop.f32.mrb[0].mxu0
    %v4689 = vadd.f32 %v4617, %v4688
    %v4690 = vpop.f32.mrb[0].mxu0
    %4691 = vdwg.mxu0
    %v4693 = vsel %vm3793, %v3779, 0
    %4695 = vmatprep.subr.mxu0 0.0
    %v4696 = vand.u32 %v59, 4294901760
    %4697 = vmatpush1.msra.mxu0 %v4696
    %4698 = vmatprep.subr.mxu0 0.0
    %4699 = vmatpush1.msra.mxu0 0.0
    %4700 = vmatprep.subr.mxu0 0.0
    %4701 = vmatpush1.msra.mxu0 0.0
    %4702 = vmatprep.subr.mxu0 0.0
    %4703 = vmatpush1.msra.mxu0 0.0
    %4704 = vmatprep.subr.mxu0 0.0
    %4705 = vmatpush1.msra.mxu0 0.0
    %4706 = vmatprep.subr.mxu0 0.0
    %4707 = vmatpush1.msra.mxu0 0.0
    %4708 = vmatprep.subr.mxu0 0.0
    %4709 = vmatpush1.msra.mxu0 0.0
    %4710 = vmatprep.subr.mxu0 0.0
    %4711 = vmatpush1.msra.mxu0 0.0
    %4712 = vmatprep.subr.mxu0 0.0
    %4713 = vmatpush1.msra.mxu0 0.0
    %4714 = vmatprep.subr.mxu0 0.0
    %4715 = vmatpush1.msra.mxu0 0.0
    %4716 = vmatprep.subr.mxu0 0.0
    %4717 = vmatpush1.msra.mxu0 0.0
    %4718 = vmatprep.subr.mxu0 0.0
    %4719 = vmatpush1.msra.mxu0 0.0
    %4720 = vmatprep.subr.mxu0 0.0
    %4721 = vmatpush1.msra.mxu0 0.0
    %4722 = vmatprep.subr.mxu0 0.0
    %4723 = vmatpush1.msra.mxu0 0.0
    %4724 = vmatprep.subr.mxu0 0.0
    %4725 = vmatpush1.msra.mxu0 0.0
    %4726 = vmatprep.subr.mxu0 0.0
    %4727 = vmatpush1.msra.mxu0 0.0
    %4728 = vmatprep.subr.mxu0 0.0
    %4729 = vmatpush1.msra.mxu0 0.0
    %4730 = vmatprep.subr.mxu0 0.0
    %4731 = vmatpush1.msra.mxu0 0.0
    %4732 = vmatprep.subr.mxu0 0.0
    %4733 = vmatpush1.msra.mxu0 0.0
    %4734 = vmatprep.subr.mxu0 0.0
    %4735 = vmatpush1.msra.mxu0 0.0
    %4736 = vmatprep.subr.mxu0 0.0
    %4737 = vmatpush1.msra.mxu0 0.0
    %4738 = vmatprep.subr.mxu0 0.0
    %4739 = vmatpush1.msra.mxu0 0.0
    %4740 = vmatprep.subr.mxu0 0.0
    %4741 = vmatpush1.msra.mxu0 0.0
    %4742 = vmatprep.subr.mxu0 0.0
    %4743 = vmatpush1.msra.mxu0 0.0
    %4744 = vmatprep.subr.mxu0 0.0
    %4745 = vmatpush1.msra.mxu0 0.0
    %4746 = vmatprep.subr.mxu0 0.0
    %4747 = vmatpush1.msra.mxu0 0.0
    %4748 = vmatprep.subr.mxu0 0.0
    %4749 = vmatpush1.msra.mxu0 0.0
    %4750 = vmatprep.subr.mxu0 0.0
    %4751 = vmatpush1.msra.mxu0 0.0
    %4752 = vmatprep.subr.mxu0 0.0
    %4753 = vmatpush1.msra.mxu0 0.0
    %4754 = vmatprep.subr.mxu0 0.0
    %4755 = vmatpush1.msra.mxu0 0.0
    %4756 = vmatprep.subr.mxu0 0.0
    %4757 = vmatpush1.msra.mxu0 0.0
    %4758 = vmatprep.subr.mxu0 0.0
    %4759 = vmatpush1.msra.mxu0 0.0
    %4760 = vmatprep.mubr.f32.mxu0 0.0
    %v4761 = vand.u32 %v4693, 4294901760
    %v4762 = vsub.f32 %v4693, %v4761
    %v4763 = vand.u32 %v4762, 4294901760
    %v4764 = vsub.f32 %v4762, %v4763
    %v4765 = vand.u32 %v4764, 4294901760
    %4766 = vmatmul.mubr.f32.gmra.mrb[0].mxu0 %v4765
    %v4767 = vpop.f32.mrb[0].mxu0
    %v4768 = vadd.f32 0.0, %v4767
    %v4769 = vpop.f32.mrb[0].mxu0
    %4770 = vdwg.mxu0
    %4771 = vmatprep.subr.mxu0 0.0
    %v4772 = vand.u32 %v59, 4294901760
    %v4773 = vsub.f32 %v59, %v4772
    %v4774 = vand.u32 %v4773, 4294901760
    %v4775 = vsub.f32 %v4773, %v4774
    %v4776 = vand.u32 %v4775, 4294901760
    %4777 = vmatpush1.msra.mxu0 %v4776
    %4778 = vmatprep.subr.mxu0 0.0
    %4779 = vmatpush1.msra.mxu0 0.0
    %4780 = vmatprep.subr.mxu0 0.0
    %4781 = vmatpush1.msra.mxu0 0.0
    %4782 = vmatprep.subr.mxu0 0.0
    %4783 = vmatpush1.msra.mxu0 0.0
    %4784 = vmatprep.subr.mxu0 0.0
    %4785 = vmatpush1.msra.mxu0 0.0
    %4786 = vmatprep.subr.mxu0 0.0
    %4787 = vmatpush1.msra.mxu0 0.0
    %4788 = vmatprep.subr.mxu0 0.0
    %4789 = vmatpush1.msra.mxu0 0.0
    %4790 = vmatprep.subr.mxu0 0.0
    %4791 = vmatpush1.msra.mxu0 0.0
    %4792 = vmatprep.subr.mxu0 0.0
    %4793 = vmatpush1.msra.mxu0 0.0
    %4794 = vmatprep.subr.mxu0 0.0
    %4795 = vmatpush1.msra.mxu0 0.0
    %4796 = vmatprep.subr.mxu0 0.0
    %4797 = vmatpush1.msra.mxu0 0.0
    %4798 = vmatprep.subr.mxu0 0.0
    %4799 = vmatpush1.msra.mxu0 0.0
    %4800 = vmatprep.subr.mxu0 0.0
    %4801 = vmatpush1.msra.mxu0 0.0
    %4802 = vmatprep.subr.mxu0 0.0
    %4803 = vmatpush1.msra.mxu0 0.0
    %4804 = vmatprep.subr.mxu0 0.0
    %4805 = vmatpush1.msra.mxu0 0.0
    %4806 = vmatprep.subr.mxu0 0.0
    %4807 = vmatpush1.msra.mxu0 0.0
    %4808 = vmatprep.subr.mxu0 0.0
    %4809 = vmatpush1.msra.mxu0 0.0
    %4810 = vmatprep.subr.mxu0 0.0
    %4811 = vmatpush1.msra.mxu0 0.0
    %4812 = vmatprep.subr.mxu0 0.0
    %4813 = vmatpush1.msra.mxu0 0.0
    %4814 = vmatprep.subr.mxu0 0.0
    %4815 = vmatpush1.msra.mxu0 0.0
    %4816 = vmatprep.subr.mxu0 0.0
    %4817 = vmatpush1.msra.mxu0 0.0
    %4818 = vmatprep.subr.mxu0 0.0
    %4819 = vmatpush1.msra.mxu0 0.0
    %4820 = vmatprep.subr.mxu0 0.0
    %4821 = vmatpush1.msra.mxu0 0.0
    %4822 = vmatprep.subr.mxu0 0.0
    %4823 = vmatpush1.msra.mxu0 0.0
    %4824 = vmatprep.subr.mxu0 0.0
    %4825 = vmatpush1.msra.mxu0 0.0
    %4826 = vmatprep.subr.mxu0 0.0
    %4827 = vmatpush1.msra.mxu0 0.0
    %4828 = vmatprep.subr.mxu0 0.0
    %4829 = vmatpush1.msra.mxu0 0.0
    %4830 = vmatprep.subr.mxu0 0.0
    %4831 = vmatpush1.msra.mxu0 0.0
    %4832 = vmatprep.subr.mxu0 0.0
    %4833 = vmatpush1.msra.mxu0 0.0
    %4834 = vmatprep.subr.mxu0 0.0
    %4835 = vmatpush1.msra.mxu0 0.0
    %4836 = vmatprep.subr.mxu0 0.0
    %4837 = vmatpush1.msra.mxu0 0.0
    %4838 = vmatprep.subr.mxu0 0.0
    %4839 = vmatpush1.msra.mxu0 0.0
    %4840 = vmatprep.mubr.f32.mxu0 0.0
    %v4841 = vand.u32 %v4693, 4294901760
    %4842 = vmatmul.mubr.f32.gmra.mrb[0].mxu0 %v4841
    %v4843 = vpop.f32.mrb[0].mxu0
    %v4844 = vadd.f32 %v4768, %v4843
    %v4845 = vpop.f32.mrb[0].mxu0
    %4846 = vdwg.mxu0
    %4847 = vmatprep.subr.mxu0 0.0
    %v4848 = vand.u32 %v59, 4294901760
    %v4849 = vsub.f32 %v59, %v4848
    %4850 = vmatpush1.msra.mxu0 %v4849
    %4851 = vmatprep.subr.mxu0 0.0
    %4852 = vmatpush1.msra.mxu0 0.0
    %4853 = vmatprep.subr.mxu0 0.0
    %4854 = vmatpush1.msra.mxu0 0.0
    %4855 = vmatprep.subr.mxu0 0.0
    %4856 = vmatpush1.msra.mxu0 0.0
    %4857 = vmatprep.subr.mxu0 0.0
    %4858 = vmatpush1.msra.mxu0 0.0
    %4859 = vmatprep.subr.mxu0 0.0
    %4860 = vmatpush1.msra.mxu0 0.0
    %4861 = vmatprep.subr.mxu0 0.0
    %4862 = vmatpush1.msra.mxu0 0.0
    %4863 = vmatprep.subr.mxu0 0.0
    %4864 = vmatpush1.msra.mxu0 0.0
    %4865 = vmatprep.subr.mxu0 0.0
    %4866 = vmatpush1.msra.mxu0 0.0
    %4867 = vmatprep.subr.mxu0 0.0
    %4868 = vmatpush1.msra.mxu0 0.0
    %4869 = vmatprep.subr.mxu0 0.0
    %4870 = vmatpush1.msra.mxu0 0.0
    %4871 = vmatprep.subr.mxu0 0.0
    %4872 = vmatpush1.msra.mxu0 0.0
    %4873 = vmatprep.subr.mxu0 0.0
    %4874 = vmatpush1.msra.mxu0 0.0
    %4875 = vmatprep.subr.mxu0 0.0
    %4876 = vmatpush1.msra.mxu0 0.0
    %4877 = vmatprep.subr.mxu0 0.0
    %4878 = vmatpush1.msra.mxu0 0.0
    %4879 = vmatprep.subr.mxu0 0.0
    %4880 = vmatpush1.msra.mxu0 0.0
    %4881 = vmatprep.subr.mxu0 0.0
    %4882 = vmatpush1.msra.mxu0 0.0
    %4883 = vmatprep.subr.mxu0 0.0
    %4884 = vmatpush1.msra.mxu0 0.0
    %4885 = vmatprep.subr.mxu0 0.0
    %4886 = vmatpush1.msra.mxu0 0.0
    %4887 = vmatprep.subr.mxu0 0.0
    %4888 = vmatpush1.msra.mxu0 0.0
    %4889 = vmatprep.subr.mxu0 0.0
    %4890 = vmatpush1.msra.mxu0 0.0
    %4891 = vmatprep.subr.mxu0 0.0
    %4892 = vmatpush1.msra.mxu0 0.0
    %4893 = vmatprep.subr.mxu0 0.0
    %4894 = vmatpush1.msra.mxu0 0.0
    %4895 = vmatprep.subr.mxu0 0.0
    %4896 = vmatpush1.msra.mxu0 0.0
    %4897 = vmatprep.subr.mxu0 0.0
    %4898 = vmatpush1.msra.mxu0 0.0
    %4899 = vmatprep.subr.mxu0 0.0
    %4900 = vmatpush1.msra.mxu0 0.0
    %4901 = vmatprep.subr.mxu0 0.0
    %4902 = vmatpush1.msra.mxu0 0.0
    %4903 = vmatprep.subr.mxu0 0.0
    %4904 = vmatpush1.msra.mxu0 0.0
    %4905 = vmatprep.subr.mxu0 0.0
    %4906 = vmatpush1.msra.mxu0 0.0
    %4907 = vmatprep.subr.mxu0 0.0
    %4908 = vmatpush1.msra.mxu0 0.0
    %4909 = vmatprep.subr.mxu0 0.0
    %4910 = vmatpush1.msra.mxu0 0.0
    %4911 = vmatprep.subr.mxu0 0.0
    %4912 = vmatpush1.msra.mxu0 0.0
    %4913 = vmatprep.mubr.f32.mxu0 0.0
    %v4914 = vand.u32 %v4693, 4294901760
    %v4915 = vsub.f32 %v4693, %v4914
    %4916 = vmatmul.mubr.f32.gmra.mrb[0].mxu0 %v4915
    %v4917 = vpop.f32.mrb[0].mxu0
    %v4918 = vadd.f32 %v4844, %v4917
    %v4919 = vpop.f32.mrb[0].mxu0
    %4920 = vdwg.mxu0
    %4921 = vmatprep.subr.mxu0 0.0
    %v4922 = vand.u32 %v59, 4294901760
    %4923 = vmatpush1.msra.mxu0 %v4922
    %4924 = vmatprep.subr.mxu0 0.0
    %4925 = vmatpush1.msra.mxu0 0.0
    %4926 = vmatprep.subr.mxu0 0.0
    %4927 = vmatpush1.msra.mxu0 0.0
    %4928 = vmatprep.subr.mxu0 0.0
    %4929 = vmatpush1.msra.mxu0 0.0
    %4930 = vmatprep.subr.mxu0 0.0
    %4931 = vmatpush1.msra.mxu0 0.0
    %4932 = vmatprep.subr.mxu0 0.0
    %4933 = vmatpush1.msra.mxu0 0.0
    %4934 = vmatprep.subr.mxu0 0.0
    %4935 = vmatpush1.msra.mxu0 0.0
    %4936 = vmatprep.subr.mxu0 0.0
    %4937 = vmatpush1.msra.mxu0 0.0
    %4938 = vmatprep.subr.mxu0 0.0
    %4939 = vmatpush1.msra.mxu0 0.0
    %4940 = vmatprep.subr.mxu0 0.0
    %4941 = vmatpush1.msra.mxu0 0.0
    %4942 = vmatprep.subr.mxu0 0.0
    %4943 = vmatpush1.msra.mxu0 0.0
    %4944 = vmatprep.subr.mxu0 0.0
    %4945 = vmatpush1.msra.mxu0 0.0
    %4946 = vmatprep.subr.mxu0 0.0
    %4947 = vmatpush1.msra.mxu0 0.0
    %4948 = vmatprep.subr.mxu0 0.0
    %4949 = vmatpush1.msra.mxu0 0.0
    %4950 = vmatprep.subr.mxu0 0.0
    %4951 = vmatpush1.msra.mxu0 0.0
    %4952 = vmatprep.subr.mxu0 0.0
    %4953 = vmatpush1.msra.mxu0 0.0
    %4954 = vmatprep.subr.mxu0 0.0
    %4955 = vmatpush1.msra.mxu0 0.0
    %4956 = vmatprep.subr.mxu0 0.0
    %4957 = vmatpush1.msra.mxu0 0.0
    %4958 = vmatprep.subr.mxu0 0.0
    %4959 = vmatpush1.msra.mxu0 0.0
    %4960 = vmatprep.subr.mxu0 0.0
    %4961 = vmatpush1.msra.mxu0 0.0
    %4962 = vmatprep.subr.mxu0 0.0
    %4963 = vmatpush1.msra.mxu0 0.0
    %4964 = vmatprep.subr.mxu0 0.0
    %4965 = vmatpush1.msra.mxu0 0.0
    %4966 = vmatprep.subr.mxu0 0.0
    %4967 = vmatpush1.msra.mxu0 0.0
    %4968 = vmatprep.subr.mxu0 0.0
    %4969 = vmatpush1.msra.mxu0 0.0
    %4970 = vmatprep.subr.mxu0 0.0
    %4971 = vmatpush1.msra.mxu0 0.0
    %4972 = vmatprep.subr.mxu0 0.0
    %4973 = vmatpush1.msra.mxu0 0.0
    %4974 = vmatprep.subr.mxu0 0.0
    %4975 = vmatpush1.msra.mxu0 0.0
    %4976 = vmatprep.subr.mxu0 0.0
    %4977 = vmatpush1.msra.mxu0 0.0
    %4978 = vmatprep.subr.mxu0 0.0
    %4979 = vmatpush1.msra.mxu0 0.0
    %4980 = vmatprep.subr.mxu0 0.0
    %4981 = vmatpush1.msra.mxu0 0.0
    %4982 = vmatprep.subr.mxu0 0.0
    %4983 = vmatpush1.msra.mxu0 0.0
    %4984 = vmatprep.subr.mxu0 0.0
    %4985 = vmatpush1.msra.mxu0 0.0
    %4986 = vmatprep.mubr.f32.mxu0 0.0
    %v4987 = vand.u32 %v4693, 4294901760
    %v4988 = vsub.f32 %v4693, %v4987
    %v4989 = vand.u32 %v4988, 4294901760
    %4990 = vmatmul.mubr.f32.gmra.mrb[0].mxu0 %v4989
    %v4991 = vpop.f32.mrb[0].mxu0
    %v4992 = vadd.f32 %v4918, %v4991
    %v4993 = vpop.f32.mrb[0].mxu0
    %4994 = vdwg.mxu0
    %4995 = vmatprep.subr.mxu0 0.0
    %v4996 = vand.u32 %v59, 4294901760
    %v4997 = vsub.f32 %v59, %v4996
    %v4998 = vand.u32 %v4997, 4294901760
    %4999 = vmatpush1.msra.mxu0 %v4998
    %5000 = vmatprep.subr.mxu0 0.0
    %5001 = vmatpush1.msra.mxu0 0.0
    %5002 = vmatprep.subr.mxu0 0.0
    %5003 = vmatpush1.msra.mxu0 0.0
    %5004 = vmatprep.subr.mxu0 0.0
    %5005 = vmatpush1.msra.mxu0 0.0
    %5006 = vmatprep.subr.mxu0 0.0
    %5007 = vmatpush1.msra.mxu0 0.0
    %5008 = vmatprep.subr.mxu0 0.0
    %5009 = vmatpush1.msra.mxu0 0.0
    %5010 = vmatprep.subr.mxu0 0.0
    %5011 = vmatpush1.msra.mxu0 0.0
    %5012 = vmatprep.subr.mxu0 0.0
    %5013 = vmatpush1.msra.mxu0 0.0
    %5014 = vmatprep.subr.mxu0 0.0
    %5015 = vmatpush1.msra.mxu0 0.0
    %5016 = vmatprep.subr.mxu0 0.0
    %5017 = vmatpush1.msra.mxu0 0.0
    %5018 = vmatprep.subr.mxu0 0.0
    %5019 = vmatpush1.msra.mxu0 0.0
    %5020 = vmatprep.subr.mxu0 0.0
    %5021 = vmatpush1.msra.mxu0 0.0
    %5022 = vmatprep.subr.mxu0 0.0
    %5023 = vmatpush1.msra.mxu0 0.0
    %5024 = vmatprep.subr.mxu0 0.0
    %5025 = vmatpush1.msra.mxu0 0.0
    %5026 = vmatprep.subr.mxu0 0.0
    %5027 = vmatpush1.msra.mxu0 0.0
    %5028 = vmatprep.subr.mxu0 0.0
    %5029 = vmatpush1.msra.mxu0 0.0
    %5030 = vmatprep.subr.mxu0 0.0
    %5031 = vmatpush1.msra.mxu0 0.0
    %5032 = vmatprep.subr.mxu0 0.0
    %5033 = vmatpush1.msra.mxu0 0.0
    %5034 = vmatprep.subr.mxu0 0.0
    %5035 = vmatpush1.msra.mxu0 0.0
    %5036 = vmatprep.subr.mxu0 0.0
    %5037 = vmatpush1.msra.mxu0 0.0
    %5038 = vmatprep.subr.mxu0 0.0
    %5039 = vmatpush1.msra.mxu0 0.0
    %5040 = vmatprep.subr.mxu0 0.0
    %5041 = vmatpush1.msra.mxu0 0.0
    %5042 = vmatprep.subr.mxu0 0.0
    %5043 = vmatpush1.msra.mxu0 0.0
    %5044 = vmatprep.subr.mxu0 0.0
    %5045 = vmatpush1.msra.mxu0 0.0
    %5046 = vmatprep.subr.mxu0 0.0
    %5047 = vmatpush1.msra.mxu0 0.0
    %5048 = vmatprep.subr.mxu0 0.0
    %5049 = vmatpush1.msra.mxu0 0.0
    %5050 = vmatprep.subr.mxu0 0.0
    %5051 = vmatpush1.msra.mxu0 0.0
    %5052 = vmatprep.subr.mxu0 0.0
    %5053 = vmatpush1.msra.mxu0 0.0
    %5054 = vmatprep.subr.mxu0 0.0
    %5055 = vmatpush1.msra.mxu0 0.0
    %5056 = vmatprep.subr.mxu0 0.0
    %5057 = vmatpush1.msra.mxu0 0.0
    %5058 = vmatprep.subr.mxu0 0.0
    %5059 = vmatpush1.msra.mxu0 0.0
    %5060 = vmatprep.subr.mxu0 0.0
    %5061 = vmatpush1.msra.mxu0 0.0
    %5062 = vmatprep.mubr.f32.mxu0 0.0
    %v5063 = vand.u32 %v4693, 4294901760
    %5064 = vmatmul.mubr.f32.gmra.mrb[0].mxu0 %v5063
    %v5065 = vpop.f32.mrb[0].mxu0
    %v5066 = vadd.f32 %v4992, %v5065
    %v5067 = vpop.f32.mrb[0].mxu0
    %5068 = vdwg.mxu0
    %5069 = vmatprep.subr.mxu0 0.0
    %v5070 = vand.u32 %v59, 4294901760
    %5071 = vmatpush1.msra.mxu0 %v5070
    %5072 = vmatprep.subr.mxu0 0.0
    %5073 = vmatpush1.msra.mxu0 0.0
    %5074 = vmatprep.subr.mxu0 0.0
    %5075 = vmatpush1.msra.mxu0 0.0
    %5076 = vmatprep.subr.mxu0 0.0
    %5077 = vmatpush1.msra.mxu0 0.0
    %5078 = vmatprep.subr.mxu0 0.0
    %5079 = vmatpush1.msra.mxu0 0.0
    %5080 = vmatprep.subr.mxu0 0.0
    %5081 = vmatpush1.msra.mxu0 0.0
    %5082 = vmatprep.subr.mxu0 0.0
    %5083 = vmatpush1.msra.mxu0 0.0
    %5084 = vmatprep.subr.mxu0 0.0
    %5085 = vmatpush1.msra.mxu0 0.0
    %5086 = vmatprep.subr.mxu0 0.0
    %5087 = vmatpush1.msra.mxu0 0.0
    %5088 = vmatprep.subr.mxu0 0.0
    %5089 = vmatpush1.msra.mxu0 0.0
    %5090 = vmatprep.subr.mxu0 0.0
    %5091 = vmatpush1.msra.mxu0 0.0
    %5092 = vmatprep.subr.mxu0 0.0
    %5093 = vmatpush1.msra.mxu0 0.0
    %5094 = vmatprep.subr.mxu0 0.0
    %5095 = vmatpush1.msra.mxu0 0.0
    %5096 = vmatprep.subr.mxu0 0.0
    %5097 = vmatpush1.msra.mxu0 0.0
    %5098 = vmatprep.subr.mxu0 0.0
    %5099 = vmatpush1.msra.mxu0 0.0
    %5100 = vmatprep.subr.mxu0 0.0
    %5101 = vmatpush1.msra.mxu0 0.0
    %5102 = vmatprep.subr.mxu0 0.0
    %5103 = vmatpush1.msra.mxu0 0.0
    %5104 = vmatprep.subr.mxu0 0.0
    %5105 = vmatpush1.msra.mxu0 0.0
    %5106 = vmatprep.subr.mxu0 0.0
    %5107 = vmatpush1.msra.mxu0 0.0
    %5108 = vmatprep.subr.mxu0 0.0
    %5109 = vmatpush1.msra.mxu0 0.0
    %5110 = vmatprep.subr.mxu0 0.0
    %5111 = vmatpush1.msra.mxu0 0.0
    %5112 = vmatprep.subr.mxu0 0.0
    %5113 = vmatpush1.msra.mxu0 0.0
    %5114 = vmatprep.subr.mxu0 0.0
    %5115 = vmatpush1.msra.mxu0 0.0
    %5116 = vmatprep.subr.mxu0 0.0
    %5117 = vmatpush1.msra.mxu0 0.0
    %5118 = vmatprep.subr.mxu0 0.0
    %5119 = vmatpush1.msra.mxu0 0.0
    %5120 = vmatprep.subr.mxu0 0.0
    %5121 = vmatpush1.msra.mxu0 0.0
    %5122 = vmatprep.subr.mxu0 0.0
    %5123 = vmatpush1.msra.mxu0 0.0
    %5124 = vmatprep.subr.mxu0 0.0
    %5125 = vmatpush1.msra.mxu0 0.0
    %5126 = vmatprep.subr.mxu0 0.0
    %5127 = vmatpush1.msra.mxu0 0.0
    %5128 = vmatprep.subr.mxu0 0.0
    %5129 = vmatpush1.msra.mxu0 0.0
    %5130 = vmatprep.subr.mxu0 0.0
    %5131 = vmatpush1.msra.mxu0 0.0
    %5132 = vmatprep.subr.mxu0 0.0
    %5133 = vmatpush1.msra.mxu0 0.0
    %5134 = vmatprep.mubr.f32.mxu0 0.0
    %v5135 = vand.u32 %v4693, 4294901760
    %5136 = vmatmul.mubr.f32.gmra.mrb[0].mxu0 %v5135
    %v5137 = vpop.f32.mrb[0].mxu0
    %v5138 = vadd.f32 %v5066, %v5137
    %v5139 = vpop.f32.mrb[0].mxu0
    %5140 = vdwg.mxu0
    %v5142 = vsel %vm3793, %v3780, 0
    %5144 = vmatprep.subr.mxu0 0.0
    %v5145 = vand.u32 %v60, 4294901760
    %5146 = vmatpush1.msra.mxu0 %v5145
    %5147 = vmatprep.subr.mxu0 0.0
    %5148 = vmatpush1.msra.mxu0 0.0
    %5149 = vmatprep.subr.mxu0 0.0
    %5150 = vmatpush1.msra.mxu0 0.0
    %5151 = vmatprep.subr.mxu0 0.0
    %5152 = vmatpush1.msra.mxu0 0.0
    %5153 = vmatprep.subr.mxu0 0.0
    %5154 = vmatpush1.msra.mxu0 0.0
    %5155 = vmatprep.subr.mxu0 0.0
    %5156 = vmatpush1.msra.mxu0 0.0
    %5157 = vmatprep.subr.mxu0 0.0
    %5158 = vmatpush1.msra.mxu0 0.0
    %5159 = vmatprep.subr.mxu0 0.0
    %5160 = vmatpush1.msra.mxu0 0.0
    %5161 = vmatprep.subr.mxu0 0.0
    %5162 = vmatpush1.msra.mxu0 0.0
    %5163 = vmatprep.subr.mxu0 0.0
    %5164 = vmatpush1.msra.mxu0 0.0
    %5165 = vmatprep.subr.mxu0 0.0
    %5166 = vmatpush1.msra.mxu0 0.0
    %5167 = vmatprep.subr.mxu0 0.0
    %5168 = vmatpush1.msra.mxu0 0.0
    %5169 = vmatprep.subr.mxu0 0.0
    %5170 = vmatpush1.msra.mxu0 0.0
    %5171 = vmatprep.subr.mxu0 0.0
    %5172 = vmatpush1.msra.mxu0 0.0
    %5173 = vmatprep.subr.mxu0 0.0
    %5174 = vmatpush1.msra.mxu0 0.0
    %5175 = vmatprep.subr.mxu0 0.0
    %5176 = vmatpush1.msra.mxu0 0.0
    %5177 = vmatprep.subr.mxu0 0.0
    %5178 = vmatpush1.msra.mxu0 0.0
    %5179 = vmatprep.subr.mxu0 0.0
    %5180 = vmatpush1.msra.mxu0 0.0
    %5181 = vmatprep.subr.mxu0 0.0
    %5182 = vmatpush1.msra.mxu0 0.0
    %5183 = vmatprep.subr.mxu0 0.0
    %5184 = vmatpush1.msra.mxu0 0.0
    %5185 = vmatprep.subr.mxu0 0.0
    %5186 = vmatpush1.msra.mxu0 0.0
    %5187 = vmatprep.subr.mxu0 0.0
    %5188 = vmatpush1.msra.mxu0 0.0
    %5189 = vmatprep.subr.mxu0 0.0
    %5190 = vmatpush1.msra.mxu0 0.0
    %5191 = vmatprep.subr.mxu0 0.0
    %5192 = vmatpush1.msra.mxu0 0.0
    %5193 = vmatprep.subr.mxu0 0.0
    %5194 = vmatpush1.msra.mxu0 0.0
    %5195 = vmatprep.subr.mxu0 0.0
    %5196 = vmatpush1.msra.mxu0 0.0
    %5197 = vmatprep.subr.mxu0 0.0
    %5198 = vmatpush1.msra.mxu0 0.0
    %5199 = vmatprep.subr.mxu0 0.0
    %5200 = vmatpush1.msra.mxu0 0.0
    %5201 = vmatprep.subr.mxu0 0.0
    %5202 = vmatpush1.msra.mxu0 0.0
    %5203 = vmatprep.subr.mxu0 0.0
    %5204 = vmatpush1.msra.mxu0 0.0
    %5205 = vmatprep.subr.mxu0 0.0
    %5206 = vmatpush1.msra.mxu0 0.0
    %5207 = vmatprep.subr.mxu0 0.0
    %5208 = vmatpush1.msra.mxu0 0.0
    %5209 = vmatprep.mubr.f32.mxu0 0.0
    %v5210 = vand.u32 %v5142, 4294901760
    %v5211 = vsub.f32 %v5142, %v5210
    %v5212 = vand.u32 %v5211, 4294901760
    %v5213 = vsub.f32 %v5211, %v5212
    %v5214 = vand.u32 %v5213, 4294901760
    %5215 = vmatmul.mubr.f32.gmra.mrb[0].mxu0 %v5214
    %v5216 = vpop.f32.mrb[0].mxu0
    %v5217 = vadd.f32 0.0, %v5216
    %v5218 = vpop.f32.mrb[0].mxu0
    %5219 = vdwg.mxu0
    %5220 = vmatprep.subr.mxu0 0.0
    %v5221 = vand.u32 %v60, 4294901760
    %v5222 = vsub.f32 %v60, %v5221
    %v5223 = vand.u32 %v5222, 4294901760
    %v5224 = vsub.f32 %v5222, %v5223
    %v5225 = vand.u32 %v5224, 4294901760
    %5226 = vmatpush1.msra.mxu0 %v5225
    %5227 = vmatprep.subr.mxu0 0.0
    %5228 = vmatpush1.msra.mxu0 0.0
    %5229 = vmatprep.subr.mxu0 0.0
    %5230 = vmatpush1.msra.mxu0 0.0
    %5231 = vmatprep.subr.mxu0 0.0
    %5232 = vmatpush1.msra.mxu0 0.0
    %5233 = vmatprep.subr.mxu0 0.0
    %5234 = vmatpush1.msra.mxu0 0.0
    %5235 = vmatprep.subr.mxu0 0.0
    %5236 = vmatpush1.msra.mxu0 0.0
    %5237 = vmatprep.subr.mxu0 0.0
    %5238 = vmatpush1.msra.mxu0 0.0
    %5239 = vmatprep.subr.mxu0 0.0
    %5240 = vmatpush1.msra.mxu0 0.0
    %5241 = vmatprep.subr.mxu0 0.0
    %5242 = vmatpush1.msra.mxu0 0.0
    %5243 = vmatprep.subr.mxu0 0.0
    %5244 = vmatpush1.msra.mxu0 0.0
    %5245 = vmatprep.subr.mxu0 0.0
    %5246 = vmatpush1.msra.mxu0 0.0
    %5247 = vmatprep.subr.mxu0 0.0
    %5248 = vmatpush1.msra.mxu0 0.0
    %5249 = vmatprep.subr.mxu0 0.0
    %5250 = vmatpush1.msra.mxu0 0.0
    %5251 = vmatprep.subr.mxu0 0.0
    %5252 = vmatpush1.msra.mxu0 0.0
    %5253 = vmatprep.subr.mxu0 0.0
    %5254 = vmatpush1.msra.mxu0 0.0
    %5255 = vmatprep.subr.mxu0 0.0
    %5256 = vmatpush1.msra.mxu0 0.0
    %5257 = vmatprep.subr.mxu0 0.0
    %5258 = vmatpush1.msra.mxu0 0.0
    %5259 = vmatprep.subr.mxu0 0.0
    %5260 = vmatpush1.msra.mxu0 0.0
    %5261 = vmatprep.subr.mxu0 0.0
    %5262 = vmatpush1.msra.mxu0 0.0
    %5263 = vmatprep.subr.mxu0 0.0
    %5264 = vmatpush1.msra.mxu0 0.0
    %5265 = vmatprep.subr.mxu0 0.0
    %5266 = vmatpush1.msra.mxu0 0.0
    %5267 = vmatprep.subr.mxu0 0.0
    %5268 = vmatpush1.msra.mxu0 0.0
    %5269 = vmatprep.subr.mxu0 0.0
    %5270 = vmatpush1.msra.mxu0 0.0
    %5271 = vmatprep.subr.mxu0 0.0
    %5272 = vmatpush1.msra.mxu0 0.0
    %5273 = vmatprep.subr.mxu0 0.0
    %5274 = vmatpush1.msra.mxu0 0.0
    %5275 = vmatprep.subr.mxu0 0.0
    %5276 = vmatpush1.msra.mxu0 0.0
    %5277 = vmatprep.subr.mxu0 0.0
    %5278 = vmatpush1.msra.mxu0 0.0
    %5279 = vmatprep.subr.mxu0 0.0
    %5280 = vmatpush1.msra.mxu0 0.0
    %5281 = vmatprep.subr.mxu0 0.0
    %5282 = vmatpush1.msra.mxu0 0.0
    %5283 = vmatprep.subr.mxu0 0.0
    %5284 = vmatpush1.msra.mxu0 0.0
    %5285 = vmatprep.subr.mxu0 0.0
    %5286 = vmatpush1.msra.mxu0 0.0
    %5287 = vmatprep.subr.mxu0 0.0
    %5288 = vmatpush1.msra.mxu0 0.0
    %5289 = vmatprep.mubr.f32.mxu0 0.0
    %v5290 = vand.u32 %v5142, 4294901760
    %5291 = vmatmul.mubr.f32.gmra.mrb[0].mxu0 %v5290
    %v5292 = vpop.f32.mrb[0].mxu0
    %v5293 = vadd.f32 %v5217, %v5292
    %v5294 = vpop.f32.mrb[0].mxu0
    %5295 = vdwg.mxu0
    %5296 = vmatprep.subr.mxu0 0.0
    %v5297 = vand.u32 %v60, 4294901760
    %v5298 = vsub.f32 %v60, %v5297
    %5299 = vmatpush1.msra.mxu0 %v5298
    %5300 = vmatprep.subr.mxu0 0.0
    %5301 = vmatpush1.msra.mxu0 0.0
    %5302 = vmatprep.subr.mxu0 0.0
    %5303 = vmatpush1.msra.mxu0 0.0
    %5304 = vmatprep.subr.mxu0 0.0
    %5305 = vmatpush1.msra.mxu0 0.0
    %5306 = vmatprep.subr.mxu0 0.0
    %5307 = vmatpush1.msra.mxu0 0.0
    %5308 = vmatprep.subr.mxu0 0.0
    %5309 = vmatpush1.msra.mxu0 0.0
    %5310 = vmatprep.subr.mxu0 0.0
    %5311 = vmatpush1.msra.mxu0 0.0
    %5312 = vmatprep.subr.mxu0 0.0
    %5313 = vmatpush1.msra.mxu0 0.0
    %5314 = vmatprep.subr.mxu0 0.0
    %5315 = vmatpush1.msra.mxu0 0.0
    %5316 = vmatprep.subr.mxu0 0.0
    %5317 = vmatpush1.msra.mxu0 0.0
    %5318 = vmatprep.subr.mxu0 0.0
    %5319 = vmatpush1.msra.mxu0 0.0
    %5320 = vmatprep.subr.mxu0 0.0
    %5321 = vmatpush1.msra.mxu0 0.0
    %5322 = vmatprep.subr.mxu0 0.0
    %5323 = vmatpush1.msra.mxu0 0.0
    %5324 = vmatprep.subr.mxu0 0.0
    %5325 = vmatpush1.msra.mxu0 0.0
    %5326 = vmatprep.subr.mxu0 0.0
    %5327 = vmatpush1.msra.mxu0 0.0
    %5328 = vmatprep.subr.mxu0 0.0
    %5329 = vmatpush1.msra.mxu0 0.0
    %5330 = vmatprep.subr.mxu0 0.0
    %5331 = vmatpush1.msra.mxu0 0.0
    %5332 = vmatprep.subr.mxu0 0.0
    %5333 = vmatpush1.msra.mxu0 0.0
    %5334 = vmatprep.subr.mxu0 0.0
    %5335 = vmatpush1.msra.mxu0 0.0
    %5336 = vmatprep.subr.mxu0 0.0
    %5337 = vmatpush1.msra.mxu0 0.0
    %5338 = vmatprep.subr.mxu0 0.0
    %5339 = vmatpush1.msra.mxu0 0.0
    %5340 = vmatprep.subr.mxu0 0.0
    %5341 = vmatpush1.msra.mxu0 0.0
    %5342 = vmatprep.subr.mxu0 0.0
    %5343 = vmatpush1.msra.mxu0 0.0
    %5344 = vmatprep.subr.mxu0 0.0
    %5345 = vmatpush1.msra.mxu0 0.0
    %5346 = vmatprep.subr.mxu0 0.0
    %5347 = vmatpush1.msra.mxu0 0.0
    %5348 = vmatprep.subr.mxu0 0.0
    %5349 = vmatpush1.msra.mxu0 0.0
    %5350 = vmatprep.subr.mxu0 0.0
    %5351 = vmatpush1.msra.mxu0 0.0
    %5352 = vmatprep.subr.mxu0 0.0
    %5353 = vmatpush1.msra.mxu0 0.0
    %5354 = vmatprep.subr.mxu0 0.0
    %5355 = vmatpush1.msra.mxu0 0.0
    %5356 = vmatprep.subr.mxu0 0.0
    %5357 = vmatpush1.msra.mxu0 0.0
    %5358 = vmatprep.subr.mxu0 0.0
    %5359 = vmatpush1.msra.mxu0 0.0
    %5360 = vmatprep.subr.mxu0 0.0
    %5361 = vmatpush1.msra.mxu0 0.0
    %5362 = vmatprep.mubr.f32.mxu0 0.0
    %v5363 = vand.u32 %v5142, 4294901760
    %v5364 = vsub.f32 %v5142, %v5363
    %5365 = vmatmul.mubr.f32.gmra.mrb[0].mxu0 %v5364
    %v5366 = vpop.f32.mrb[0].mxu0
    %v5367 = vadd.f32 %v5293, %v5366
    %v5368 = vpop.f32.mrb[0].mxu0
    %5369 = vdwg.mxu0
    %5370 = vmatprep.subr.mxu0 0.0
    %v5371 = vand.u32 %v60, 4294901760
    %5372 = vmatpush1.msra.mxu0 %v5371
    %5373 = vmatprep.subr.mxu0 0.0
    %5374 = vmatpush1.msra.mxu0 0.0
    %5375 = vmatprep.subr.mxu0 0.0
    %5376 = vmatpush1.msra.mxu0 0.0
    %5377 = vmatprep.subr.mxu0 0.0
    %5378 = vmatpush1.msra.mxu0 0.0
    %5379 = vmatprep.subr.mxu0 0.0
    %5380 = vmatpush1.msra.mxu0 0.0
    %5381 = vmatprep.subr.mxu0 0.0
    %5382 = vmatpush1.msra.mxu0 0.0
    %5383 = vmatprep.subr.mxu0 0.0
    %5384 = vmatpush1.msra.mxu0 0.0
    %5385 = vmatprep.subr.mxu0 0.0
    %5386 = vmatpush1.msra.mxu0 0.0
    %5387 = vmatprep.subr.mxu0 0.0
    %5388 = vmatpush1.msra.mxu0 0.0
    %5389 = vmatprep.subr.mxu0 0.0
    %5390 = vmatpush1.msra.mxu0 0.0
    %5391 = vmatprep.subr.mxu0 0.0
    %5392 = vmatpush1.msra.mxu0 0.0
    %5393 = vmatprep.subr.mxu0 0.0
    %5394 = vmatpush1.msra.mxu0 0.0
    %5395 = vmatprep.subr.mxu0 0.0
    %5396 = vmatpush1.msra.mxu0 0.0
    %5397 = vmatprep.subr.mxu0 0.0
    %5398 = vmatpush1.msra.mxu0 0.0
    %5399 = vmatprep.subr.mxu0 0.0
    %5400 = vmatpush1.msra.mxu0 0.0
    %5401 = vmatprep.subr.mxu0 0.0
    %5402 = vmatpush1.msra.mxu0 0.0
    %5403 = vmatprep.subr.mxu0 0.0
    %5404 = vmatpush1.msra.mxu0 0.0
    %5405 = vmatprep.subr.mxu0 0.0
    %5406 = vmatpush1.msra.mxu0 0.0
    %5407 = vmatprep.subr.mxu0 0.0
    %5408 = vmatpush1.msra.mxu0 0.0
    %5409 = vmatprep.subr.mxu0 0.0
    %5410 = vmatpush1.msra.mxu0 0.0
    %5411 = vmatprep.subr.mxu0 0.0
    %5412 = vmatpush1.msra.mxu0 0.0
    %5413 = vmatprep.subr.mxu0 0.0
    %5414 = vmatpush1.msra.mxu0 0.0
    %5415 = vmatprep.subr.mxu0 0.0
    %5416 = vmatpush1.msra.mxu0 0.0
    %5417 = vmatprep.subr.mxu0 0.0
    %5418 = vmatpush1.msra.mxu0 0.0
    %5419 = vmatprep.subr.mxu0 0.0
    %5420 = vmatpush1.msra.mxu0 0.0
    %5421 = vmatprep.subr.mxu0 0.0
    %5422 = vmatpush1.msra.mxu0 0.0
    %5423 = vmatprep.subr.mxu0 0.0
    %5424 = vmatpush1.msra.mxu0 0.0
    %5425 = vmatprep.subr.mxu0 0.0
    %5426 = vmatpush1.msra.mxu0 0.0
    %5427 = vmatprep.subr.mxu0 0.0
    %5428 = vmatpush1.msra.mxu0 0.0
    %5429 = vmatprep.subr.mxu0 0.0
    %5430 = vmatpush1.msra.mxu0 0.0
    %5431 = vmatprep.subr.mxu0 0.0
    %5432 = vmatpush1.msra.mxu0 0.0
    %5433 = vmatprep.subr.mxu0 0.0
    %5434 = vmatpush1.msra.mxu0 0.0
    %5435 = vmatprep.mubr.f32.mxu0 0.0
    %v5436 = vand.u32 %v5142, 4294901760
    %v5437 = vsub.f32 %v5142, %v5436
    %v5438 = vand.u32 %v5437, 4294901760
    %5439 = vmatmul.mubr.f32.gmra.mrb[0].mxu0 %v5438
    %v5440 = vpop.f32.mrb[0].mxu0
    %v5441 = vadd.f32 %v5367, %v5440
    %v5442 = vpop.f32.mrb[0].mxu0
    %5443 = vdwg.mxu0
    %5444 = vmatprep.subr.mxu0 0.0
    %v5445 = vand.u32 %v60, 4294901760
    %v5446 = vsub.f32 %v60, %v5445
    %v5447 = vand.u32 %v5446, 4294901760
    %5448 = vmatpush1.msra.mxu0 %v5447
    %5449 = vmatprep.subr.mxu0 0.0
    %5450 = vmatpush1.msra.mxu0 0.0
    %5451 = vmatprep.subr.mxu0 0.0
    %5452 = vmatpush1.msra.mxu0 0.0
    %5453 = vmatprep.subr.mxu0 0.0
    %5454 = vmatpush1.msra.mxu0 0.0
    %5455 = vmatprep.subr.mxu0 0.0
    %5456 = vmatpush1.msra.mxu0 0.0
    %5457 = vmatprep.subr.mxu0 0.0
    %5458 = vmatpush1.msra.mxu0 0.0
    %5459 = vmatprep.subr.mxu0 0.0
    %5460 = vmatpush1.msra.mxu0 0.0
    %5461 = vmatprep.subr.mxu0 0.0
    %5462 = vmatpush1.msra.mxu0 0.0
    %5463 = vmatprep.subr.mxu0 0.0
    %5464 = vmatpush1.msra.mxu0 0.0
    %5465 = vmatprep.subr.mxu0 0.0
    %5466 = vmatpush1.msra.mxu0 0.0
    %5467 = vmatprep.subr.mxu0 0.0
    %5468 = vmatpush1.msra.mxu0 0.0
    %5469 = vmatprep.subr.mxu0 0.0
    %5470 = vmatpush1.msra.mxu0 0.0
    %5471 = vmatprep.subr.mxu0 0.0
    %5472 = vmatpush1.msra.mxu0 0.0
    %5473 = vmatprep.subr.mxu0 0.0
    %5474 = vmatpush1.msra.mxu0 0.0
    %5475 = vmatprep.subr.mxu0 0.0
    %5476 = vmatpush1.msra.mxu0 0.0
    %5477 = vmatprep.subr.mxu0 0.0
    %5478 = vmatpush1.msra.mxu0 0.0
    %5479 = vmatprep.subr.mxu0 0.0
    %5480 = vmatpush1.msra.mxu0 0.0
    %5481 = vmatprep.subr.mxu0 0.0
    %5482 = vmatpush1.msra.mxu0 0.0
    %5483 = vmatprep.subr.mxu0 0.0
    %5484 = vmatpush1.msra.mxu0 0.0
    %5485 = vmatprep.subr.mxu0 0.0
    %5486 = vmatpush1.msra.mxu0 0.0
    %5487 = vmatprep.subr.mxu0 0.0
    %5488 = vmatpush1.msra.mxu0 0.0
    %5489 = vmatprep.subr.mxu0 0.0
    %5490 = vmatpush1.msra.mxu0 0.0
    %5491 = vmatprep.subr.mxu0 0.0
    %5492 = vmatpush1.msra.mxu0 0.0
    %5493 = vmatprep.subr.mxu0 0.0
    %5494 = vmatpush1.msra.mxu0 0.0
    %5495 = vmatprep.subr.mxu0 0.0
    %5496 = vmatpush1.msra.mxu0 0.0
    %5497 = vmatprep.subr.mxu0 0.0
    %5498 = vmatpush1.msra.mxu0 0.0
    %5499 = vmatprep.subr.mxu0 0.0
    %5500 = vmatpush1.msra.mxu0 0.0
    %5501 = vmatprep.subr.mxu0 0.0
    %5502 = vmatpush1.msra.mxu0 0.0
    %5503 = vmatprep.subr.mxu0 0.0
    %5504 = vmatpush1.msra.mxu0 0.0
    %5505 = vmatprep.subr.mxu0 0.0
    %5506 = vmatpush1.msra.mxu0 0.0
    %5507 = vmatprep.subr.mxu0 0.0
    %5508 = vmatpush1.msra.mxu0 0.0
    %5509 = vmatprep.subr.mxu0 0.0
    %5510 = vmatpush1.msra.mxu0 0.0
    %5511 = vmatprep.mubr.f32.mxu0 0.0
    %v5512 = vand.u32 %v5142, 4294901760
    %5513 = vmatmul.mubr.f32.gmra.mrb[0].mxu0 %v5512
    %v5514 = vpop.f32.mrb[0].mxu0
    %v5515 = vadd.f32 %v5441, %v5514
    %v5516 = vpop.f32.mrb[0].mxu0
    %5517 = vdwg.mxu0
    %5518 = vmatprep.subr.mxu0 0.0
    %v5519 = vand.u32 %v60, 4294901760
    %5520 = vmatpush1.msra.mxu0 %v5519
    %5521 = vmatprep.subr.mxu0 0.0
    %5522 = vmatpush1.msra.mxu0 0.0
    %5523 = vmatprep.subr.mxu0 0.0
    %5524 = vmatpush1.msra.mxu0 0.0
    %5525 = vmatprep.subr.mxu0 0.0
    %5526 = vmatpush1.msra.mxu0 0.0
    %5527 = vmatprep.subr.mxu0 0.0
    %5528 = vmatpush1.msra.mxu0 0.0
    %5529 = vmatprep.subr.mxu0 0.0
    %5530 = vmatpush1.msra.mxu0 0.0
    %5531 = vmatprep.subr.mxu0 0.0
    %5532 = vmatpush1.msra.mxu0 0.0
    %5533 = vmatprep.subr.mxu0 0.0
    %5534 = vmatpush1.msra.mxu0 0.0
    %5535 = vmatprep.subr.mxu0 0.0
    %5536 = vmatpush1.msra.mxu0 0.0
    %5537 = vmatprep.subr.mxu0 0.0
    %5538 = vmatpush1.msra.mxu0 0.0
    %5539 = vmatprep.subr.mxu0 0.0
    %5540 = vmatpush1.msra.mxu0 0.0
    %5541 = vmatprep.subr.mxu0 0.0
    %5542 = vmatpush1.msra.mxu0 0.0
    %5543 = vmatprep.subr.mxu0 0.0
    %5544 = vmatpush1.msra.mxu0 0.0
    %5545 = vmatprep.subr.mxu0 0.0
    %5546 = vmatpush1.msra.mxu0 0.0
    %5547 = vmatprep.subr.mxu0 0.0
    %5548 = vmatpush1.msra.mxu0 0.0
    %5549 = vmatprep.subr.mxu0 0.0
    %5550 = vmatpush1.msra.mxu0 0.0
    %5551 = vmatprep.subr.mxu0 0.0
    %5552 = vmatpush1.msra.mxu0 0.0
    %5553 = vmatprep.subr.mxu0 0.0
    %5554 = vmatpush1.msra.mxu0 0.0
    %5555 = vmatprep.subr.mxu0 0.0
    %5556 = vmatpush1.msra.mxu0 0.0
    %5557 = vmatprep.subr.mxu0 0.0
    %5558 = vmatpush1.msra.mxu0 0.0
    %5559 = vmatprep.subr.mxu0 0.0
    %5560 = vmatpush1.msra.mxu0 0.0
    %5561 = vmatprep.subr.mxu0 0.0
    %5562 = vmatpush1.msra.mxu0 0.0
    %5563 = vmatprep.subr.mxu0 0.0
    %5564 = vmatpush1.msra.mxu0 0.0
    %5565 = vmatprep.subr.mxu0 0.0
    %5566 = vmatpush1.msra.mxu0 0.0
    %5567 = vmatprep.subr.mxu0 0.0
    %5568 = vmatpush1.msra.mxu0 0.0
    %5569 = vmatprep.subr.mxu0 0.0
    %5570 = vmatpush1.msra.mxu0 0.0
    %5571 = vmatprep.subr.mxu0 0.0
    %5572 = vmatpush1.msra.mxu0 0.0
    %5573 = vmatprep.subr.mxu0 0.0
    %5574 = vmatpush1.msra.mxu0 0.0
    %5575 = vmatprep.subr.mxu0 0.0
    %5576 = vmatpush1.msra.mxu0 0.0
    %5577 = vmatprep.subr.mxu0 0.0
    %5578 = vmatpush1.msra.mxu0 0.0
    %5579 = vmatprep.subr.mxu0 0.0
    %5580 = vmatpush1.msra.mxu0 0.0
    %5581 = vmatprep.subr.mxu0 0.0
    %5582 = vmatpush1.msra.mxu0 0.0
    %5583 = vmatprep.mubr.f32.mxu0 0.0
    %v5584 = vand.u32 %v5142, 4294901760
    %5585 = vmatmul.mubr.f32.gmra.mrb[0].mxu0 %v5584
    %v5586 = vpop.f32.mrb[0].mxu0
    %v5587 = vadd.f32 %v5515, %v5586
    %v5588 = vpop.f32.mrb[0].mxu0
    %5589 = vdwg.mxu0
    %v5591 = vsel %vm3793, %v3781, 0
    %5593 = vmatprep.subr.mxu0 0.0
    %v5594 = vand.u32 %v61, 4294901760
    %5595 = vmatpush1.msra.mxu0 %v5594
    %5596 = vmatprep.subr.mxu0 0.0
    %5597 = vmatpush1.msra.mxu0 0.0
    %5598 = vmatprep.subr.mxu0 0.0
    %5599 = vmatpush1.msra.mxu0 0.0
    %5600 = vmatprep.subr.mxu0 0.0
    %5601 = vmatpush1.msra.mxu0 0.0
    %5602 = vmatprep.subr.mxu0 0.0
    %5603 = vmatpush1.msra.mxu0 0.0
    %5604 = vmatprep.subr.mxu0 0.0
    %5605 = vmatpush1.msra.mxu0 0.0
    %5606 = vmatprep.subr.mxu0 0.0
    %5607 = vmatpush1.msra.mxu0 0.0
    %5608 = vmatprep.subr.mxu0 0.0
    %5609 = vmatpush1.msra.mxu0 0.0
    %5610 = vmatprep.subr.mxu0 0.0
    %5611 = vmatpush1.msra.mxu0 0.0
    %5612 = vmatprep.subr.mxu0 0.0
    %5613 = vmatpush1.msra.mxu0 0.0
    %5614 = vmatprep.subr.mxu0 0.0
    %5615 = vmatpush1.msra.mxu0 0.0
    %5616 = vmatprep.subr.mxu0 0.0
    %5617 = vmatpush1.msra.mxu0 0.0
    %5618 = vmatprep.subr.mxu0 0.0
    %5619 = vmatpush1.msra.mxu0 0.0
    %5620 = vmatprep.subr.mxu0 0.0
    %5621 = vmatpush1.msra.mxu0 0.0
    %5622 = vmatprep.subr.mxu0 0.0
    %5623 = vmatpush1.msra.mxu0 0.0
    %5624 = vmatprep.subr.mxu0 0.0
    %5625 = vmatpush1.msra.mxu0 0.0
    %5626 = vmatprep.subr.mxu0 0.0
    %5627 = vmatpush1.msra.mxu0 0.0
    %5628 = vmatprep.subr.mxu0 0.0
    %5629 = vmatpush1.msra.mxu0 0.0
    %5630 = vmatprep.subr.mxu0 0.0
    %5631 = vmatpush1.msra.mxu0 0.0
    %5632 = vmatprep.subr.mxu0 0.0
    %5633 = vmatpush1.msra.mxu0 0.0
    %5634 = vmatprep.subr.mxu0 0.0
    %5635 = vmatpush1.msra.mxu0 0.0
    %5636 = vmatprep.subr.mxu0 0.0
    %5637 = vmatpush1.msra.mxu0 0.0
    %5638 = vmatprep.subr.mxu0 0.0
    %5639 = vmatpush1.msra.mxu0 0.0
    %5640 = vmatprep.subr.mxu0 0.0
    %5641 = vmatpush1.msra.mxu0 0.0
    %5642 = vmatprep.subr.mxu0 0.0
    %5643 = vmatpush1.msra.mxu0 0.0
    %5644 = vmatprep.subr.mxu0 0.0
    %5645 = vmatpush1.msra.mxu0 0.0
    %5646 = vmatprep.subr.mxu0 0.0
    %5647 = vmatpush1.msra.mxu0 0.0
    %5648 = vmatprep.subr.mxu0 0.0
    %5649 = vmatpush1.msra.mxu0 0.0
    %5650 = vmatprep.subr.mxu0 0.0
    %5651 = vmatpush1.msra.mxu0 0.0
    %5652 = vmatprep.subr.mxu0 0.0
    %5653 = vmatpush1.msra.mxu0 0.0
    %5654 = vmatprep.subr.mxu0 0.0
    %5655 = vmatpush1.msra.mxu0 0.0
    %5656 = vmatprep.subr.mxu0 0.0
    %5657 = vmatpush1.msra.mxu0 0.0
    %5658 = vmatprep.mubr.f32.mxu0 0.0
    %v5659 = vand.u32 %v5591, 4294901760
    %v5660 = vsub.f32 %v5591, %v5659
    %v5661 = vand.u32 %v5660, 4294901760
    %v5662 = vsub.f32 %v5660, %v5661
    %v5663 = vand.u32 %v5662, 4294901760
    %5664 = vmatmul.mubr.f32.gmra.mrb[0].mxu0 %v5663
    %v5665 = vpop.f32.mrb[0].mxu0
    %v5666 = vadd.f32 0.0, %v5665
    %v5667 = vpop.f32.mrb[0].mxu0
    %5668 = vdwg.mxu0
    %5669 = vmatprep.subr.mxu0 0.0
    %v5670 = vand.u32 %v61, 4294901760
    %v5671 = vsub.f32 %v61, %v5670
    %v5672 = vand.u32 %v5671, 4294901760
    %v5673 = vsub.f32 %v5671, %v5672
    %v5674 = vand.u32 %v5673, 4294901760
    %5675 = vmatpush1.msra.mxu0 %v5674
    %5676 = vmatprep.subr.mxu0 0.0
    %5677 = vmatpush1.msra.mxu0 0.0
    %5678 = vmatprep.subr.mxu0 0.0
    %5679 = vmatpush1.msra.mxu0 0.0
    %5680 = vmatprep.subr.mxu0 0.0
    %5681 = vmatpush1.msra.mxu0 0.0
    %5682 = vmatprep.subr.mxu0 0.0
    %5683 = vmatpush1.msra.mxu0 0.0
    %5684 = vmatprep.subr.mxu0 0.0
    %5685 = vmatpush1.msra.mxu0 0.0
    %5686 = vmatprep.subr.mxu0 0.0
    %5687 = vmatpush1.msra.mxu0 0.0
    %5688 = vmatprep.subr.mxu0 0.0
    %5689 = vmatpush1.msra.mxu0 0.0
    %5690 = vmatprep.subr.mxu0 0.0
    %5691 = vmatpush1.msra.mxu0 0.0
    %5692 = vmatprep.subr.mxu0 0.0
    %5693 = vmatpush1.msra.mxu0 0.0
    %5694 = vmatprep.subr.mxu0 0.0
    %5695 = vmatpush1.msra.mxu0 0.0
    %5696 = vmatprep.subr.mxu0 0.0
    %5697 = vmatpush1.msra.mxu0 0.0
    %5698 = vmatprep.subr.mxu0 0.0
    %5699 = vmatpush1.msra.mxu0 0.0
    %5700 = vmatprep.subr.mxu0 0.0
    %5701 = vmatpush1.msra.mxu0 0.0
    %5702 = vmatprep.subr.mxu0 0.0
    %5703 = vmatpush1.msra.mxu0 0.0
    %5704 = vmatprep.subr.mxu0 0.0
    %5705 = vmatpush1.msra.mxu0 0.0
    %5706 = vmatprep.subr.mxu0 0.0
    %5707 = vmatpush1.msra.mxu0 0.0
    %5708 = vmatprep.subr.mxu0 0.0
    %5709 = vmatpush1.msra.mxu0 0.0
    %5710 = vmatprep.subr.mxu0 0.0
    %5711 = vmatpush1.msra.mxu0 0.0
    %5712 = vmatprep.subr.mxu0 0.0
    %5713 = vmatpush1.msra.mxu0 0.0
    %5714 = vmatprep.subr.mxu0 0.0
    %5715 = vmatpush1.msra.mxu0 0.0
    %5716 = vmatprep.subr.mxu0 0.0
    %5717 = vmatpush1.msra.mxu0 0.0
    %5718 = vmatprep.subr.mxu0 0.0
    %5719 = vmatpush1.msra.mxu0 0.0
    %5720 = vmatprep.subr.mxu0 0.0
    %5721 = vmatpush1.msra.mxu0 0.0
    %5722 = vmatprep.subr.mxu0 0.0
    %5723 = vmatpush1.msra.mxu0 0.0
    %5724 = vmatprep.subr.mxu0 0.0
    %5725 = vmatpush1.msra.mxu0 0.0
    %5726 = vmatprep.subr.mxu0 0.0
    %5727 = vmatpush1.msra.mxu0 0.0
    %5728 = vmatprep.subr.mxu0 0.0
    %5729 = vmatpush1.msra.mxu0 0.0
    %5730 = vmatprep.subr.mxu0 0.0
    %5731 = vmatpush1.msra.mxu0 0.0
    %5732 = vmatprep.subr.mxu0 0.0
    %5733 = vmatpush1.msra.mxu0 0.0
    %5734 = vmatprep.subr.mxu0 0.0
    %5735 = vmatpush1.msra.mxu0 0.0
    %5736 = vmatprep.subr.mxu0 0.0
    %5737 = vmatpush1.msra.mxu0 0.0
    %5738 = vmatprep.mubr.f32.mxu0 0.0
    %v5739 = vand.u32 %v5591, 4294901760
    %5740 = vmatmul.mubr.f32.gmra.mrb[0].mxu0 %v5739
    %v5741 = vpop.f32.mrb[0].mxu0
    %v5742 = vadd.f32 %v5666, %v5741
    %v5743 = vpop.f32.mrb[0].mxu0
    %5744 = vdwg.mxu0
    %5745 = vmatprep.subr.mxu0 0.0
    %v5746 = vand.u32 %v61, 4294901760
    %v5747 = vsub.f32 %v61, %v5746
    %5748 = vmatpush1.msra.mxu0 %v5747
    %5749 = vmatprep.subr.mxu0 0.0
    %5750 = vmatpush1.msra.mxu0 0.0
    %5751 = vmatprep.subr.mxu0 0.0
    %5752 = vmatpush1.msra.mxu0 0.0
    %5753 = vmatprep.subr.mxu0 0.0
    %5754 = vmatpush1.msra.mxu0 0.0
    %5755 = vmatprep.subr.mxu0 0.0
    %5756 = vmatpush1.msra.mxu0 0.0
    %5757 = vmatprep.subr.mxu0 0.0
    %5758 = vmatpush1.msra.mxu0 0.0
    %5759 = vmatprep.subr.mxu0 0.0
    %5760 = vmatpush1.msra.mxu0 0.0
    %5761 = vmatprep.subr.mxu0 0.0
    %5762 = vmatpush1.msra.mxu0 0.0
    %5763 = vmatprep.subr.mxu0 0.0
    %5764 = vmatpush1.msra.mxu0 0.0
    %5765 = vmatprep.subr.mxu0 0.0
    %5766 = vmatpush1.msra.mxu0 0.0
    %5767 = vmatprep.subr.mxu0 0.0
    %5768 = vmatpush1.msra.mxu0 0.0
    %5769 = vmatprep.subr.mxu0 0.0
    %5770 = vmatpush1.msra.mxu0 0.0
    %5771 = vmatprep.subr.mxu0 0.0
    %5772 = vmatpush1.msra.mxu0 0.0
    %5773 = vmatprep.subr.mxu0 0.0
    %5774 = vmatpush1.msra.mxu0 0.0
    %5775 = vmatprep.subr.mxu0 0.0
    %5776 = vmatpush1.msra.mxu0 0.0
    %5777 = vmatprep.subr.mxu0 0.0
    %5778 = vmatpush1.msra.mxu0 0.0
    %5779 = vmatprep.subr.mxu0 0.0
    %5780 = vmatpush1.msra.mxu0 0.0
    %5781 = vmatprep.subr.mxu0 0.0
    %5782 = vmatpush1.msra.mxu0 0.0
    %5783 = vmatprep.subr.mxu0 0.0
    %5784 = vmatpush1.msra.mxu0 0.0
    %5785 = vmatprep.subr.mxu0 0.0
    %5786 = vmatpush1.msra.mxu0 0.0
    %5787 = vmatprep.subr.mxu0 0.0
    %5788 = vmatpush1.msra.mxu0 0.0
    %5789 = vmatprep.subr.mxu0 0.0
    %5790 = vmatpush1.msra.mxu0 0.0
    %5791 = vmatprep.subr.mxu0 0.0
    %5792 = vmatpush1.msra.mxu0 0.0
    %5793 = vmatprep.subr.mxu0 0.0
    %5794 = vmatpush1.msra.mxu0 0.0
    %5795 = vmatprep.subr.mxu0 0.0
    %5796 = vmatpush1.msra.mxu0 0.0
    %5797 = vmatprep.subr.mxu0 0.0
    %5798 = vmatpush1.msra.mxu0 0.0
    %5799 = vmatprep.subr.mxu0 0.0
    %5800 = vmatpush1.msra.mxu0 0.0
    %5801 = vmatprep.subr.mxu0 0.0
    %5802 = vmatpush1.msra.mxu0 0.0
    %5803 = vmatprep.subr.mxu0 0.0
    %5804 = vmatpush1.msra.mxu0 0.0
    %5805 = vmatprep.subr.mxu0 0.0
    %5806 = vmatpush1.msra.mxu0 0.0
    %5807 = vmatprep.subr.mxu0 0.0
    %5808 = vmatpush1.msra.mxu0 0.0
    %5809 = vmatprep.subr.mxu0 0.0
    %5810 = vmatpush1.msra.mxu0 0.0
    %5811 = vmatprep.mubr.f32.mxu0 0.0
    %v5812 = vand.u32 %v5591, 4294901760
    %v5813 = vsub.f32 %v5591, %v5812
    %5814 = vmatmul.mubr.f32.gmra.mrb[0].mxu0 %v5813
    %v5815 = vpop.f32.mrb[0].mxu0
    %v5816 = vadd.f32 %v5742, %v5815
    %v5817 = vpop.f32.mrb[0].mxu0
    %5818 = vdwg.mxu0
    %5819 = vmatprep.subr.mxu0 0.0
    %v5820 = vand.u32 %v61, 4294901760
    %5821 = vmatpush1.msra.mxu0 %v5820
    %5822 = vmatprep.subr.mxu0 0.0
    %5823 = vmatpush1.msra.mxu0 0.0
    %5824 = vmatprep.subr.mxu0 0.0
    %5825 = vmatpush1.msra.mxu0 0.0
    %5826 = vmatprep.subr.mxu0 0.0
    %5827 = vmatpush1.msra.mxu0 0.0
    %5828 = vmatprep.subr.mxu0 0.0
    %5829 = vmatpush1.msra.mxu0 0.0
    %5830 = vmatprep.subr.mxu0 0.0
    %5831 = vmatpush1.msra.mxu0 0.0
    %5832 = vmatprep.subr.mxu0 0.0
    %5833 = vmatpush1.msra.mxu0 0.0
    %5834 = vmatprep.subr.mxu0 0.0
    %5835 = vmatpush1.msra.mxu0 0.0
    %5836 = vmatprep.subr.mxu0 0.0
    %5837 = vmatpush1.msra.mxu0 0.0
    %5838 = vmatprep.subr.mxu0 0.0
    %5839 = vmatpush1.msra.mxu0 0.0
    %5840 = vmatprep.subr.mxu0 0.0
    %5841 = vmatpush1.msra.mxu0 0.0
    %5842 = vmatprep.subr.mxu0 0.0
    %5843 = vmatpush1.msra.mxu0 0.0
    %5844 = vmatprep.subr.mxu0 0.0
    %5845 = vmatpush1.msra.mxu0 0.0
    %5846 = vmatprep.subr.mxu0 0.0
    %5847 = vmatpush1.msra.mxu0 0.0
    %5848 = vmatprep.subr.mxu0 0.0
    %5849 = vmatpush1.msra.mxu0 0.0
    %5850 = vmatprep.subr.mxu0 0.0
    %5851 = vmatpush1.msra.mxu0 0.0
    %5852 = vmatprep.subr.mxu0 0.0
    %5853 = vmatpush1.msra.mxu0 0.0
    %5854 = vmatprep.subr.mxu0 0.0
    %5855 = vmatpush1.msra.mxu0 0.0
    %5856 = vmatprep.subr.mxu0 0.0
    %5857 = vmatpush1.msra.mxu0 0.0
    %5858 = vmatprep.subr.mxu0 0.0
    %5859 = vmatpush1.msra.mxu0 0.0
    %5860 = vmatprep.subr.mxu0 0.0
    %5861 = vmatpush1.msra.mxu0 0.0
    %5862 = vmatprep.subr.mxu0 0.0
    %5863 = vmatpush1.msra.mxu0 0.0
    %5864 = vmatprep.subr.mxu0 0.0
    %5865 = vmatpush1.msra.mxu0 0.0
    %5866 = vmatprep.subr.mxu0 0.0
    %5867 = vmatpush1.msra.mxu0 0.0
    %5868 = vmatprep.subr.mxu0 0.0
    %5869 = vmatpush1.msra.mxu0 0.0
    %5870 = vmatprep.subr.mxu0 0.0
    %5871 = vmatpush1.msra.mxu0 0.0
    %5872 = vmatprep.subr.mxu0 0.0
    %5873 = vmatpush1.msra.mxu0 0.0
    %5874 = vmatprep.subr.mxu0 0.0
    %5875 = vmatpush1.msra.mxu0 0.0
    %5876 = vmatprep.subr.mxu0 0.0
    %5877 = vmatpush1.msra.mxu0 0.0
    %5878 = vmatprep.subr.mxu0 0.0
    %5879 = vmatpush1.msra.mxu0 0.0
    %5880 = vmatprep.subr.mxu0 0.0
    %5881 = vmatpush1.msra.mxu0 0.0
    %5882 = vmatprep.subr.mxu0 0.0
    %5883 = vmatpush1.msra.mxu0 0.0
    %5884 = vmatprep.mubr.f32.mxu0 0.0
    %v5885 = vand.u32 %v5591, 4294901760
    %v5886 = vsub.f32 %v5591, %v5885
    %v5887 = vand.u32 %v5886, 4294901760
    %5888 = vmatmul.mubr.f32.gmra.mrb[0].mxu0 %v5887
    %v5889 = vpop.f32.mrb[0].mxu0
    %v5890 = vadd.f32 %v5816, %v5889
    %v5891 = vpop.f32.mrb[0].mxu0
    %5892 = vdwg.mxu0
    %5893 = vmatprep.subr.mxu0 0.0
    %v5894 = vand.u32 %v61, 4294901760
    %v5895 = vsub.f32 %v61, %v5894
    %v5896 = vand.u32 %v5895, 4294901760
    %5897 = vmatpush1.msra.mxu0 %v5896
    %5898 = vmatprep.subr.mxu0 0.0
    %5899 = vmatpush1.msra.mxu0 0.0
    %5900 = vmatprep.subr.mxu0 0.0
    %5901 = vmatpush1.msra.mxu0 0.0
    %5902 = vmatprep.subr.mxu0 0.0
    %5903 = vmatpush1.msra.mxu0 0.0
    %5904 = vmatprep.subr.mxu0 0.0
    %5905 = vmatpush1.msra.mxu0 0.0
    %5906 = vmatprep.subr.mxu0 0.0
    %5907 = vmatpush1.msra.mxu0 0.0
    %5908 = vmatprep.subr.mxu0 0.0
    %5909 = vmatpush1.msra.mxu0 0.0
    %5910 = vmatprep.subr.mxu0 0.0
    %5911 = vmatpush1.msra.mxu0 0.0
    %5912 = vmatprep.subr.mxu0 0.0
    %5913 = vmatpush1.msra.mxu0 0.0
    %5914 = vmatprep.subr.mxu0 0.0
    %5915 = vmatpush1.msra.mxu0 0.0
    %5916 = vmatprep.subr.mxu0 0.0
    %5917 = vmatpush1.msra.mxu0 0.0
    %5918 = vmatprep.subr.mxu0 0.0
    %5919 = vmatpush1.msra.mxu0 0.0
    %5920 = vmatprep.subr.mxu0 0.0
    %5921 = vmatpush1.msra.mxu0 0.0
    %5922 = vmatprep.subr.mxu0 0.0
    %5923 = vmatpush1.msra.mxu0 0.0
    %5924 = vmatprep.subr.mxu0 0.0
    %5925 = vmatpush1.msra.mxu0 0.0
    %5926 = vmatprep.subr.mxu0 0.0
    %5927 = vmatpush1.msra.mxu0 0.0
    %5928 = vmatprep.subr.mxu0 0.0
    %5929 = vmatpush1.msra.mxu0 0.0
    %5930 = vmatprep.subr.mxu0 0.0
    %5931 = vmatpush1.msra.mxu0 0.0
    %5932 = vmatprep.subr.mxu0 0.0
    %5933 = vmatpush1.msra.mxu0 0.0
    %5934 = vmatprep.subr.mxu0 0.0
    %5935 = vmatpush1.msra.mxu0 0.0
    %5936 = vmatprep.subr.mxu0 0.0
    %5937 = vmatpush1.msra.mxu0 0.0
    %5938 = vmatprep.subr.mxu0 0.0
    %5939 = vmatpush1.msra.mxu0 0.0
    %5940 = vmatprep.subr.mxu0 0.0
    %5941 = vmatpush1.msra.mxu0 0.0
    %5942 = vmatprep.subr.mxu0 0.0
    %5943 = vmatpush1.msra.mxu0 0.0
    %5944 = vmatprep.subr.mxu0 0.0
    %5945 = vmatpush1.msra.mxu0 0.0
    %5946 = vmatprep.subr.mxu0 0.0
    %5947 = vmatpush1.msra.mxu0 0.0
    %5948 = vmatprep.subr.mxu0 0.0
    %5949 = vmatpush1.msra.mxu0 0.0
    %5950 = vmatprep.subr.mxu0 0.0
    %5951 = vmatpush1.msra.mxu0 0.0
    %5952 = vmatprep.subr.mxu0 0.0
    %5953 = vmatpush1.msra.mxu0 0.0
    %5954 = vmatprep.subr.mxu0 0.0
    %5955 = vmatpush1.msra.mxu0 0.0
    %5956 = vmatprep.subr.mxu0 0.0
    %5957 = vmatpush1.msra.mxu0 0.0
    %5958 = vmatprep.subr.mxu0 0.0
    %5959 = vmatpush1.msra.mxu0 0.0
    %5960 = vmatprep.mubr.f32.mxu0 0.0
    %v5961 = vand.u32 %v5591, 4294901760
    %5962 = vmatmul.mubr.f32.gmra.mrb[0].mxu0 %v5961
    %v5963 = vpop.f32.mrb[0].mxu0
    %v5964 = vadd.f32 %v5890, %v5963
    %v5965 = vpop.f32.mrb[0].mxu0
    %5966 = vdwg.mxu0
    %5967 = vmatprep.subr.mxu0 0.0
    %v5968 = vand.u32 %v61, 4294901760
    %5969 = vmatpush1.msra.mxu0 %v5968
    %5970 = vmatprep.subr.mxu0 0.0
    %5971 = vmatpush1.msra.mxu0 0.0
    %5972 = vmatprep.subr.mxu0 0.0
    %5973 = vmatpush1.msra.mxu0 0.0
    %5974 = vmatprep.subr.mxu0 0.0
    %5975 = vmatpush1.msra.mxu0 0.0
    %5976 = vmatprep.subr.mxu0 0.0
    %5977 = vmatpush1.msra.mxu0 0.0
    %5978 = vmatprep.subr.mxu0 0.0
    %5979 = vmatpush1.msra.mxu0 0.0
    %5980 = vmatprep.subr.mxu0 0.0
    %5981 = vmatpush1.msra.mxu0 0.0
    %5982 = vmatprep.subr.mxu0 0.0
    %5983 = vmatpush1.msra.mxu0 0.0
    %5984 = vmatprep.subr.mxu0 0.0
    %5985 = vmatpush1.msra.mxu0 0.0
    %5986 = vmatprep.subr.mxu0 0.0
    %5987 = vmatpush1.msra.mxu0 0.0
    %5988 = vmatprep.subr.mxu0 0.0
    %5989 = vmatpush1.msra.mxu0 0.0
    %5990 = vmatprep.subr.mxu0 0.0
    %5991 = vmatpush1.msra.mxu0 0.0
    %5992 = vmatprep.subr.mxu0 0.0
    %5993 = vmatpush1.msra.mxu0 0.0
    %5994 = vmatprep.subr.mxu0 0.0
    %5995 = vmatpush1.msra.mxu0 0.0
    %5996 = vmatprep.subr.mxu0 0.0
    %5997 = vmatpush1.msra.mxu0 0.0
    %5998 = vmatprep.subr.mxu0 0.0
    %5999 = vmatpush1.msra.mxu0 0.0
    %6000 = vmatprep.subr.mxu0 0.0
    %6001 = vmatpush1.msra.mxu0 0.0
    %6002 = vmatprep.subr.mxu0 0.0
    %6003 = vmatpush1.msra.mxu0 0.0
    %6004 = vmatprep.subr.mxu0 0.0
    %6005 = vmatpush1.msra.mxu0 0.0
    %6006 = vmatprep.subr.mxu0 0.0
    %6007 = vmatpush1.msra.mxu0 0.0
    %6008 = vmatprep.subr.mxu0 0.0
    %6009 = vmatpush1.msra.mxu0 0.0
    %6010 = vmatprep.subr.mxu0 0.0
    %6011 = vmatpush1.msra.mxu0 0.0
    %6012 = vmatprep.subr.mxu0 0.0
    %6013 = vmatpush1.msra.mxu0 0.0
    %6014 = vmatprep.subr.mxu0 0.0
    %6015 = vmatpush1.msra.mxu0 0.0
    %6016 = vmatprep.subr.mxu0 0.0
    %6017 = vmatpush1.msra.mxu0 0.0
    %6018 = vmatprep.subr.mxu0 0.0
    %6019 = vmatpush1.msra.mxu0 0.0
    %6020 = vmatprep.subr.mxu0 0.0
    %6021 = vmatpush1.msra.mxu0 0.0
    %6022 = vmatprep.subr.mxu0 0.0
    %6023 = vmatpush1.msra.mxu0 0.0
    %6024 = vmatprep.subr.mxu0 0.0
    %6025 = vmatpush1.msra.mxu0 0.0
    %6026 = vmatprep.subr.mxu0 0.0
    %6027 = vmatpush1.msra.mxu0 0.0
    %6028 = vmatprep.subr.mxu0 0.0
    %6029 = vmatpush1.msra.mxu0 0.0
    %6030 = vmatprep.subr.mxu0 0.0
    %6031 = vmatpush1.msra.mxu0 0.0
    %6032 = vmatprep.mubr.f32.mxu0 0.0
    %v6033 = vand.u32 %v5591, 4294901760
    %6034 = vmatmul.mubr.f32.gmra.mrb[0].mxu0 %v6033
    %v6035 = vpop.f32.mrb[0].mxu0
    %v6036 = vadd.f32 %v5964, %v6035
    %v6037 = vpop.f32.mrb[0].mxu0
    %6038 = vdwg.mxu0
    %v6040 = vsel %vm3793, %v3782, 0
    %6042 = vmatprep.subr.mxu0 0.0
    %v6043 = vand.u32 %v62, 4294901760
    %6044 = vmatpush1.msra.mxu0 %v6043
    %6045 = vmatprep.subr.mxu0 0.0
    %6046 = vmatpush1.msra.mxu0 0.0
    %6047 = vmatprep.subr.mxu0 0.0
    %6048 = vmatpush1.msra.mxu0 0.0
    %6049 = vmatprep.subr.mxu0 0.0
    %6050 = vmatpush1.msra.mxu0 0.0
    %6051 = vmatprep.subr.mxu0 0.0
    %6052 = vmatpush1.msra.mxu0 0.0
    %6053 = vmatprep.subr.mxu0 0.0
    %6054 = vmatpush1.msra.mxu0 0.0
    %6055 = vmatprep.subr.mxu0 0.0
    %6056 = vmatpush1.msra.mxu0 0.0
    %6057 = vmatprep.subr.mxu0 0.0
    %6058 = vmatpush1.msra.mxu0 0.0
    %6059 = vmatprep.subr.mxu0 0.0
    %6060 = vmatpush1.msra.mxu0 0.0
    %6061 = vmatprep.subr.mxu0 0.0
    %6062 = vmatpush1.msra.mxu0 0.0
    %6063 = vmatprep.subr.mxu0 0.0
    %6064 = vmatpush1.msra.mxu0 0.0
    %6065 = vmatprep.subr.mxu0 0.0
    %6066 = vmatpush1.msra.mxu0 0.0
    %6067 = vmatprep.subr.mxu0 0.0
    %6068 = vmatpush1.msra.mxu0 0.0
    %6069 = vmatprep.subr.mxu0 0.0
    %6070 = vmatpush1.msra.mxu0 0.0
    %6071 = vmatprep.subr.mxu0 0.0
    %6072 = vmatpush1.msra.mxu0 0.0
    %6073 = vmatprep.subr.mxu0 0.0
    %6074 = vmatpush1.msra.mxu0 0.0
    %6075 = vmatprep.subr.mxu0 0.0
    %6076 = vmatpush1.msra.mxu0 0.0
    %6077 = vmatprep.subr.mxu0 0.0
    %6078 = vmatpush1.msra.mxu0 0.0
    %6079 = vmatprep.subr.mxu0 0.0
    %6080 = vmatpush1.msra.mxu0 0.0
    %6081 = vmatprep.subr.mxu0 0.0
    %6082 = vmatpush1.msra.mxu0 0.0
    %6083 = vmatprep.subr.mxu0 0.0
    %6084 = vmatpush1.msra.mxu0 0.0
    %6085 = vmatprep.subr.mxu0 0.0
    %6086 = vmatpush1.msra.mxu0 0.0
    %6087 = vmatprep.subr.mxu0 0.0
    %6088 = vmatpush1.msra.mxu0 0.0
    %6089 = vmatprep.subr.mxu0 0.0
    %6090 = vmatpush1.msra.mxu0 0.0
    %6091 = vmatprep.subr.mxu0 0.0
    %6092 = vmatpush1.msra.mxu0 0.0
    %6093 = vmatprep.subr.mxu0 0.0
    %6094 = vmatpush1.msra.mxu0 0.0
    %6095 = vmatprep.subr.mxu0 0.0
    %6096 = vmatpush1.msra.mxu0 0.0
    %6097 = vmatprep.subr.mxu0 0.0
    %6098 = vmatpush1.msra.mxu0 0.0
    %6099 = vmatprep.subr.mxu0 0.0
    %6100 = vmatpush1.msra.mxu0 0.0
    %6101 = vmatprep.subr.mxu0 0.0
    %6102 = vmatpush1.msra.mxu0 0.0
    %6103 = vmatprep.subr.mxu0 0.0
    %6104 = vmatpush1.msra.mxu0 0.0
    %6105 = vmatprep.subr.mxu0 0.0
    %6106 = vmatpush1.msra.mxu0 0.0
    %6107 = vmatprep.mubr.f32.mxu0 0.0
    %v6108 = vand.u32 %v6040, 4294901760
    %v6109 = vsub.f32 %v6040, %v6108
    %v6110 = vand.u32 %v6109, 4294901760
    %v6111 = vsub.f32 %v6109, %v6110
    %v6112 = vand.u32 %v6111, 4294901760
    %6113 = vmatmul.mubr.f32.gmra.mrb[0].mxu0 %v6112
    %v6114 = vpop.f32.mrb[0].mxu0
    %v6115 = vadd.f32 0.0, %v6114
    %v6116 = vpop.f32.mrb[0].mxu0
    %6117 = vdwg.mxu0
    %6118 = vmatprep.subr.mxu0 0.0
    %v6119 = vand.u32 %v62, 4294901760
    %v6120 = vsub.f32 %v62, %v6119
    %v6121 = vand.u32 %v6120, 4294901760
    %v6122 = vsub.f32 %v6120, %v6121
    %v6123 = vand.u32 %v6122, 4294901760
    %6124 = vmatpush1.msra.mxu0 %v6123
    %6125 = vmatprep.subr.mxu0 0.0
    %6126 = vmatpush1.msra.mxu0 0.0
    %6127 = vmatprep.subr.mxu0 0.0
    %6128 = vmatpush1.msra.mxu0 0.0
    %6129 = vmatprep.subr.mxu0 0.0
    %6130 = vmatpush1.msra.mxu0 0.0
    %6131 = vmatprep.subr.mxu0 0.0
    %6132 = vmatpush1.msra.mxu0 0.0
    %6133 = vmatprep.subr.mxu0 0.0
    %6134 = vmatpush1.msra.mxu0 0.0
    %6135 = vmatprep.subr.mxu0 0.0
    %6136 = vmatpush1.msra.mxu0 0.0
    %6137 = vmatprep.subr.mxu0 0.0
    %6138 = vmatpush1.msra.mxu0 0.0
    %6139 = vmatprep.subr.mxu0 0.0
    %6140 = vmatpush1.msra.mxu0 0.0
    %6141 = vmatprep.subr.mxu0 0.0
    %6142 = vmatpush1.msra.mxu0 0.0
    %6143 = vmatprep.subr.mxu0 0.0
    %6144 = vmatpush1.msra.mxu0 0.0
    %6145 = vmatprep.subr.mxu0 0.0
    %6146 = vmatpush1.msra.mxu0 0.0
    %6147 = vmatprep.subr.mxu0 0.0
    %6148 = vmatpush1.msra.mxu0 0.0
    %6149 = vmatprep.subr.mxu0 0.0
    %6150 = vmatpush1.msra.mxu0 0.0
    %6151 = vmatprep.subr.mxu0 0.0
    %6152 = vmatpush1.msra.mxu0 0.0
    %6153 = vmatprep.subr.mxu0 0.0
    %6154 = vmatpush1.msra.mxu0 0.0
    %6155 = vmatprep.subr.mxu0 0.0
    %6156 = vmatpush1.msra.mxu0 0.0
    %6157 = vmatprep.subr.mxu0 0.0
    %6158 = vmatpush1.msra.mxu0 0.0
    %6159 = vmatprep.subr.mxu0 0.0
    %6160 = vmatpush1.msra.mxu0 0.0
    %6161 = vmatprep.subr.mxu0 0.0
    %6162 = vmatpush1.msra.mxu0 0.0
    %6163 = vmatprep.subr.mxu0 0.0
    %6164 = vmatpush1.msra.mxu0 0.0
    %6165 = vmatprep.subr.mxu0 0.0
    %6166 = vmatpush1.msra.mxu0 0.0
    %6167 = vmatprep.subr.mxu0 0.0
    %6168 = vmatpush1.msra.mxu0 0.0
    %6169 = vmatprep.subr.mxu0 0.0
    %6170 = vmatpush1.msra.mxu0 0.0
    %6171 = vmatprep.subr.mxu0 0.0
    %6172 = vmatpush1.msra.mxu0 0.0
    %6173 = vmatprep.subr.mxu0 0.0
    %6174 = vmatpush1.msra.mxu0 0.0
    %6175 = vmatprep.subr.mxu0 0.0
    %6176 = vmatpush1.msra.mxu0 0.0
    %6177 = vmatprep.subr.mxu0 0.0
    %6178 = vmatpush1.msra.mxu0 0.0
    %6179 = vmatprep.subr.mxu0 0.0
    %6180 = vmatpush1.msra.mxu0 0.0
    %6181 = vmatprep.subr.mxu0 0.0
    %6182 = vmatpush1.msra.mxu0 0.0
    %6183 = vmatprep.subr.mxu0 0.0
    %6184 = vmatpush1.msra.mxu0 0.0
    %6185 = vmatprep.subr.mxu0 0.0
    %6186 = vmatpush1.msra.mxu0 0.0
    %6187 = vmatprep.mubr.f32.mxu0 0.0
    %v6188 = vand.u32 %v6040, 4294901760
    %6189 = vmatmul.mubr.f32.gmra.mrb[0].mxu0 %v6188
    %v6190 = vpop.f32.mrb[0].mxu0
    %v6191 = vadd.f32 %v6115, %v6190
    %v6192 = vpop.f32.mrb[0].mxu0
    %6193 = vdwg.mxu0
    %6194 = vmatprep.subr.mxu0 0.0
    %v6195 = vand.u32 %v62, 4294901760
    %v6196 = vsub.f32 %v62, %v6195
    %6197 = vmatpush1.msra.mxu0 %v6196
    %6198 = vmatprep.subr.mxu0 0.0
    %6199 = vmatpush1.msra.mxu0 0.0
    %6200 = vmatprep.subr.mxu0 0.0
    %6201 = vmatpush1.msra.mxu0 0.0
    %6202 = vmatprep.subr.mxu0 0.0
    %6203 = vmatpush1.msra.mxu0 0.0
    %6204 = vmatprep.subr.mxu0 0.0
    %6205 = vmatpush1.msra.mxu0 0.0
    %6206 = vmatprep.subr.mxu0 0.0
    %6207 = vmatpush1.msra.mxu0 0.0
    %6208 = vmatprep.subr.mxu0 0.0
    %6209 = vmatpush1.msra.mxu0 0.0
    %6210 = vmatprep.subr.mxu0 0.0
    %6211 = vmatpush1.msra.mxu0 0.0
    %6212 = vmatprep.subr.mxu0 0.0
    %6213 = vmatpush1.msra.mxu0 0.0
    %6214 = vmatprep.subr.mxu0 0.0
    %6215 = vmatpush1.msra.mxu0 0.0
    %6216 = vmatprep.subr.mxu0 0.0
    %6217 = vmatpush1.msra.mxu0 0.0
    %6218 = vmatprep.subr.mxu0 0.0
    %6219 = vmatpush1.msra.mxu0 0.0
    %6220 = vmatprep.subr.mxu0 0.0
    %6221 = vmatpush1.msra.mxu0 0.0
    %6222 = vmatprep.subr.mxu0 0.0
    %6223 = vmatpush1.msra.mxu0 0.0
    %6224 = vmatprep.subr.mxu0 0.0
    %6225 = vmatpush1.msra.mxu0 0.0
    %6226 = vmatprep.subr.mxu0 0.0
    %6227 = vmatpush1.msra.mxu0 0.0
    %6228 = vmatprep.subr.mxu0 0.0
    %6229 = vmatpush1.msra.mxu0 0.0
    %6230 = vmatprep.subr.mxu0 0.0
    %6231 = vmatpush1.msra.mxu0 0.0
    %6232 = vmatprep.subr.mxu0 0.0
    %6233 = vmatpush1.msra.mxu0 0.0
    %6234 = vmatprep.subr.mxu0 0.0
    %6235 = vmatpush1.msra.mxu0 0.0
    %6236 = vmatprep.subr.mxu0 0.0
    %6237 = vmatpush1.msra.mxu0 0.0
    %6238 = vmatprep.subr.mxu0 0.0
    %6239 = vmatpush1.msra.mxu0 0.0
    %6240 = vmatprep.subr.mxu0 0.0
    %6241 = vmatpush1.msra.mxu0 0.0
    %6242 = vmatprep.subr.mxu0 0.0
    %6243 = vmatpush1.msra.mxu0 0.0
    %6244 = vmatprep.subr.mxu0 0.0
    %6245 = vmatpush1.msra.mxu0 0.0
    %6246 = vmatprep.subr.mxu0 0.0
    %6247 = vmatpush1.msra.mxu0 0.0
    %6248 = vmatprep.subr.mxu0 0.0
    %6249 = vmatpush1.msra.mxu0 0.0
    %6250 = vmatprep.subr.mxu0 0.0
    %6251 = vmatpush1.msra.mxu0 0.0
    %6252 = vmatprep.subr.mxu0 0.0
    %6253 = vmatpush1.msra.mxu0 0.0
    %6254 = vmatprep.subr.mxu0 0.0
    %6255 = vmatpush1.msra.mxu0 0.0
    %6256 = vmatprep.subr.mxu0 0.0
    %6257 = vmatpush1.msra.mxu0 0.0
    %6258 = vmatprep.subr.mxu0 0.0
    %6259 = vmatpush1.msra.mxu0 0.0
    %6260 = vmatprep.mubr.f32.mxu0 0.0
    %v6261 = vand.u32 %v6040, 4294901760
    %v6262 = vsub.f32 %v6040, %v6261
    %6263 = vmatmul.mubr.f32.gmra.mrb[0].mxu0 %v6262
    %v6264 = vpop.f32.mrb[0].mxu0
    %v6265 = vadd.f32 %v6191, %v6264
    %v6266 = vpop.f32.mrb[0].mxu0
    %6267 = vdwg.mxu0
    %6268 = vmatprep.subr.mxu0 0.0
    %v6269 = vand.u32 %v62, 4294901760
    %6270 = vmatpush1.msra.mxu0 %v6269
    %6271 = vmatprep.subr.mxu0 0.0
    %6272 = vmatpush1.msra.mxu0 0.0
    %6273 = vmatprep.subr.mxu0 0.0
    %6274 = vmatpush1.msra.mxu0 0.0
    %6275 = vmatprep.subr.mxu0 0.0
    %6276 = vmatpush1.msra.mxu0 0.0
    %6277 = vmatprep.subr.mxu0 0.0
    %6278 = vmatpush1.msra.mxu0 0.0
    %6279 = vmatprep.subr.mxu0 0.0
    %6280 = vmatpush1.msra.mxu0 0.0
    %6281 = vmatprep.subr.mxu0 0.0
    %6282 = vmatpush1.msra.mxu0 0.0
    %6283 = vmatprep.subr.mxu0 0.0
    %6284 = vmatpush1.msra.mxu0 0.0
    %6285 = vmatprep.subr.mxu0 0.0
    %6286 = vmatpush1.msra.mxu0 0.0
    %6287 = vmatprep.subr.mxu0 0.0
    %6288 = vmatpush1.msra.mxu0 0.0
    %6289 = vmatprep.subr.mxu0 0.0
    %6290 = vmatpush1.msra.mxu0 0.0
    %6291 = vmatprep.subr.mxu0 0.0
    %6292 = vmatpush1.msra.mxu0 0.0
    %6293 = vmatprep.subr.mxu0 0.0
    %6294 = vmatpush1.msra.mxu0 0.0
    %6295 = vmatprep.subr.mxu0 0.0
    %6296 = vmatpush1.msra.mxu0 0.0
    %6297 = vmatprep.subr.mxu0 0.0
    %6298 = vmatpush1.msra.mxu0 0.0
    %6299 = vmatprep.subr.mxu0 0.0
    %6300 = vmatpush1.msra.mxu0 0.0
    %6301 = vmatprep.subr.mxu0 0.0
    %6302 = vmatpush1.msra.mxu0 0.0
    %6303 = vmatprep.subr.mxu0 0.0
    %6304 = vmatpush1.msra.mxu0 0.0
    %6305 = vmatprep.subr.mxu0 0.0
    %6306 = vmatpush1.msra.mxu0 0.0
    %6307 = vmatprep.subr.mxu0 0.0
    %6308 = vmatpush1.msra.mxu0 0.0
    %6309 = vmatprep.subr.mxu0 0.0
    %6310 = vmatpush1.msra.mxu0 0.0
    %6311 = vmatprep.subr.mxu0 0.0
    %6312 = vmatpush1.msra.mxu0 0.0
    %6313 = vmatprep.subr.mxu0 0.0
    %6314 = vmatpush1.msra.mxu0 0.0
    %6315 = vmatprep.subr.mxu0 0.0
    %6316 = vmatpush1.msra.mxu0 0.0
    %6317 = vmatprep.subr.mxu0 0.0
    %6318 = vmatpush1.msra.mxu0 0.0
    %6319 = vmatprep.subr.mxu0 0.0
    %6320 = vmatpush1.msra.mxu0 0.0
    %6321 = vmatprep.subr.mxu0 0.0
    %6322 = vmatpush1.msra.mxu0 0.0
    %6323 = vmatprep.subr.mxu0 0.0
    %6324 = vmatpush1.msra.mxu0 0.0
    %6325 = vmatprep.subr.mxu0 0.0
    %6326 = vmatpush1.msra.mxu0 0.0
    %6327 = vmatprep.subr.mxu0 0.0
    %6328 = vmatpush1.msra.mxu0 0.0
    %6329 = vmatprep.subr.mxu0 0.0
    %6330 = vmatpush1.msra.mxu0 0.0
    %6331 = vmatprep.subr.mxu0 0.0
    %6332 = vmatpush1.msra.mxu0 0.0
    %6333 = vmatprep.mubr.f32.mxu0 0.0
    %v6334 = vand.u32 %v6040, 4294901760
    %v6335 = vsub.f32 %v6040, %v6334
    %v6336 = vand.u32 %v6335, 4294901760
    %6337 = vmatmul.mubr.f32.gmra.mrb[0].mxu0 %v6336
    %v6338 = vpop.f32.mrb[0].mxu0
    %v6339 = vadd.f32 %v6265, %v6338
    %v6340 = vpop.f32.mrb[0].mxu0
    %6341 = vdwg.mxu0
    %6342 = vmatprep.subr.mxu0 0.0
    %v6343 = vand.u32 %v62, 4294901760
    %v6344 = vsub.f32 %v62, %v6343
    %v6345 = vand.u32 %v6344, 4294901760
    %6346 = vmatpush1.msra.mxu0 %v6345
    %6347 = vmatprep.subr.mxu0 0.0
    %6348 = vmatpush1.msra.mxu0 0.0
    %6349 = vmatprep.subr.mxu0 0.0
    %6350 = vmatpush1.msra.mxu0 0.0
    %6351 = vmatprep.subr.mxu0 0.0
    %6352 = vmatpush1.msra.mxu0 0.0
    %6353 = vmatprep.subr.mxu0 0.0
    %6354 = vmatpush1.msra.mxu0 0.0
    %6355 = vmatprep.subr.mxu0 0.0
    %6356 = vmatpush1.msra.mxu0 0.0
    %6357 = vmatprep.subr.mxu0 0.0
    %6358 = vmatpush1.msra.mxu0 0.0
    %6359 = vmatprep.subr.mxu0 0.0
    %6360 = vmatpush1.msra.mxu0 0.0
    %6361 = vmatprep.subr.mxu0 0.0
    %6362 = vmatpush1.msra.mxu0 0.0
    %6363 = vmatprep.subr.mxu0 0.0
    %6364 = vmatpush1.msra.mxu0 0.0
    %6365 = vmatprep.subr.mxu0 0.0
    %6366 = vmatpush1.msra.mxu0 0.0
    %6367 = vmatprep.subr.mxu0 0.0
    %6368 = vmatpush1.msra.mxu0 0.0
    %6369 = vmatprep.subr.mxu0 0.0
    %6370 = vmatpush1.msra.mxu0 0.0
    %6371 = vmatprep.subr.mxu0 0.0
    %6372 = vmatpush1.msra.mxu0 0.0
    %6373 = vmatprep.subr.mxu0 0.0
    %6374 = vmatpush1.msra.mxu0 0.0
    %6375 = vmatprep.subr.mxu0 0.0
    %6376 = vmatpush1.msra.mxu0 0.0
    %6377 = vmatprep.subr.mxu0 0.0
    %6378 = vmatpush1.msra.mxu0 0.0
    %6379 = vmatprep.subr.mxu0 0.0
    %6380 = vmatpush1.msra.mxu0 0.0
    %6381 = vmatprep.subr.mxu0 0.0
    %6382 = vmatpush1.msra.mxu0 0.0
    %6383 = vmatprep.subr.mxu0 0.0
    %6384 = vmatpush1.msra.mxu0 0.0
    %6385 = vmatprep.subr.mxu0 0.0
    %6386 = vmatpush1.msra.mxu0 0.0
    %6387 = vmatprep.subr.mxu0 0.0
    %6388 = vmatpush1.msra.mxu0 0.0
    %6389 = vmatprep.subr.mxu0 0.0
    %6390 = vmatpush1.msra.mxu0 0.0
    %6391 = vmatprep.subr.mxu0 0.0
    %6392 = vmatpush1.msra.mxu0 0.0
    %6393 = vmatprep.subr.mxu0 0.0
    %6394 = vmatpush1.msra.mxu0 0.0
    %6395 = vmatprep.subr.mxu0 0.0
    %6396 = vmatpush1.msra.mxu0 0.0
    %6397 = vmatprep.subr.mxu0 0.0
    %6398 = vmatpush1.msra.mxu0 0.0
    %6399 = vmatprep.subr.mxu0 0.0
    %6400 = vmatpush1.msra.mxu0 0.0
    %6401 = vmatprep.subr.mxu0 0.0
    %6402 = vmatpush1.msra.mxu0 0.0
    %6403 = vmatprep.subr.mxu0 0.0
    %6404 = vmatpush1.msra.mxu0 0.0
    %6405 = vmatprep.subr.mxu0 0.0
    %6406 = vmatpush1.msra.mxu0 0.0
    %6407 = vmatprep.subr.mxu0 0.0
    %6408 = vmatpush1.msra.mxu0 0.0
    %6409 = vmatprep.mubr.f32.mxu0 0.0
    %v6410 = vand.u32 %v6040, 4294901760
    %6411 = vmatmul.mubr.f32.gmra.mrb[0].mxu0 %v6410
    %v6412 = vpop.f32.mrb[0].mxu0
    %v6413 = vadd.f32 %v6339, %v6412
    %v6414 = vpop.f32.mrb[0].mxu0
    %6415 = vdwg.mxu0
    %6416 = vmatprep.subr.mxu0 0.0
    %v6417 = vand.u32 %v62, 4294901760
    %6418 = vmatpush1.msra.mxu0 %v6417
    %6419 = vmatprep.subr.mxu0 0.0
    %6420 = vmatpush1.msra.mxu0 0.0
    %6421 = vmatprep.subr.mxu0 0.0
    %6422 = vmatpush1.msra.mxu0 0.0
    %6423 = vmatprep.subr.mxu0 0.0
    %6424 = vmatpush1.msra.mxu0 0.0
    %6425 = vmatprep.subr.mxu0 0.0
    %6426 = vmatpush1.msra.mxu0 0.0
    %6427 = vmatprep.subr.mxu0 0.0
    %6428 = vmatpush1.msra.mxu0 0.0
    %6429 = vmatprep.subr.mxu0 0.0
    %6430 = vmatpush1.msra.mxu0 0.0
    %6431 = vmatprep.subr.mxu0 0.0
    %6432 = vmatpush1.msra.mxu0 0.0
    %6433 = vmatprep.subr.mxu0 0.0
    %6434 = vmatpush1.msra.mxu0 0.0
    %6435 = vmatprep.subr.mxu0 0.0
    %6436 = vmatpush1.msra.mxu0 0.0
    %6437 = vmatprep.subr.mxu0 0.0
    %6438 = vmatpush1.msra.mxu0 0.0
    %6439 = vmatprep.subr.mxu0 0.0
    %6440 = vmatpush1.msra.mxu0 0.0
    %6441 = vmatprep.subr.mxu0 0.0
    %6442 = vmatpush1.msra.mxu0 0.0
    %6443 = vmatprep.subr.mxu0 0.0
    %6444 = vmatpush1.msra.mxu0 0.0
    %6445 = vmatprep.subr.mxu0 0.0
    %6446 = vmatpush1.msra.mxu0 0.0
    %6447 = vmatprep.subr.mxu0 0.0
    %6448 = vmatpush1.msra.mxu0 0.0
    %6449 = vmatprep.subr.mxu0 0.0
    %6450 = vmatpush1.msra.mxu0 0.0
    %6451 = vmatprep.subr.mxu0 0.0
    %6452 = vmatpush1.msra.mxu0 0.0
    %6453 = vmatprep.subr.mxu0 0.0
    %6454 = vmatpush1.msra.mxu0 0.0
    %6455 = vmatprep.subr.mxu0 0.0
    %6456 = vmatpush1.msra.mxu0 0.0
    %6457 = vmatprep.subr.mxu0 0.0
    %6458 = vmatpush1.msra.mxu0 0.0
    %6459 = vmatprep.subr.mxu0 0.0
    %6460 = vmatpush1.msra.mxu0 0.0
    %6461 = vmatprep.subr.mxu0 0.0
    %6462 = vmatpush1.msra.mxu0 0.0
    %6463 = vmatprep.subr.mxu0 0.0
    %6464 = vmatpush1.msra.mxu0 0.0
    %6465 = vmatprep.subr.mxu0 0.0
    %6466 = vmatpush1.msra.mxu0 0.0
    %6467 = vmatprep.subr.mxu0 0.0
    %6468 = vmatpush1.msra.mxu0 0.0
    %6469 = vmatprep.subr.mxu0 0.0
    %6470 = vmatpush1.msra.mxu0 0.0
    %6471 = vmatprep.subr.mxu0 0.0
    %6472 = vmatpush1.msra.mxu0 0.0
    %6473 = vmatprep.subr.mxu0 0.0
    %6474 = vmatpush1.msra.mxu0 0.0
    %6475 = vmatprep.subr.mxu0 0.0
    %6476 = vmatpush1.msra.mxu0 0.0
    %6477 = vmatprep.subr.mxu0 0.0
    %6478 = vmatpush1.msra.mxu0 0.0
    %6479 = vmatprep.subr.mxu0 0.0
    %6480 = vmatpush1.msra.mxu0 0.0
    %6481 = vmatprep.mubr.f32.mxu0 0.0
    %v6482 = vand.u32 %v6040, 4294901760
    %6483 = vmatmul.mubr.f32.gmra.mrb[0].mxu0 %v6482
    %v6484 = vpop.f32.mrb[0].mxu0
    %v6485 = vadd.f32 %v6413, %v6484
    %v6486 = vpop.f32.mrb[0].mxu0
    %6487 = vdwg.mxu0
    %v6489 = vsel %vm3793, %v3783, 0
    %6491 = vmatprep.subr.mxu0 0.0
    %v6492 = vand.u32 %v63, 4294901760
    %6493 = vmatpush1.msra.mxu0 %v6492
    %6494 = vmatprep.subr.mxu0 0.0
    %6495 = vmatpush1.msra.mxu0 0.0
    %6496 = vmatprep.subr.mxu0 0.0
    %6497 = vmatpush1.msra.mxu0 0.0
    %6498 = vmatprep.subr.mxu0 0.0
    %6499 = vmatpush1.msra.mxu0 0.0
    %6500 = vmatprep.subr.mxu0 0.0
    %6501 = vmatpush1.msra.mxu0 0.0
    %6502 = vmatprep.subr.mxu0 0.0
    %6503 = vmatpush1.msra.mxu0 0.0
    %6504 = vmatprep.subr.mxu0 0.0
    %6505 = vmatpush1.msra.mxu0 0.0
    %6506 = vmatprep.subr.mxu0 0.0
    %6507 = vmatpush1.msra.mxu0 0.0
    %6508 = vmatprep.subr.mxu0 0.0
    %6509 = vmatpush1.msra.mxu0 0.0
    %6510 = vmatprep.subr.mxu0 0.0
    %6511 = vmatpush1.msra.mxu0 0.0
    %6512 = vmatprep.subr.mxu0 0.0
    %6513 = vmatpush1.msra.mxu0 0.0
    %6514 = vmatprep.subr.mxu0 0.0
    %6515 = vmatpush1.msra.mxu0 0.0
    %6516 = vmatprep.subr.mxu0 0.0
    %6517 = vmatpush1.msra.mxu0 0.0
    %6518 = vmatprep.subr.mxu0 0.0
    %6519 = vmatpush1.msra.mxu0 0.0
    %6520 = vmatprep.subr.mxu0 0.0
    %6521 = vmatpush1.msra.mxu0 0.0
    %6522 = vmatprep.subr.mxu0 0.0
    %6523 = vmatpush1.msra.mxu0 0.0
    %6524 = vmatprep.subr.mxu0 0.0
    %6525 = vmatpush1.msra.mxu0 0.0
    %6526 = vmatprep.subr.mxu0 0.0
    %6527 = vmatpush1.msra.mxu0 0.0
    %6528 = vmatprep.subr.mxu0 0.0
    %6529 = vmatpush1.msra.mxu0 0.0
    %6530 = vmatprep.subr.mxu0 0.0
    %6531 = vmatpush1.msra.mxu0 0.0
    %6532 = vmatprep.subr.mxu0 0.0
    %6533 = vmatpush1.msra.mxu0 0.0
    %6534 = vmatprep.subr.mxu0 0.0
    %6535 = vmatpush1.msra.mxu0 0.0
    %6536 = vmatprep.subr.mxu0 0.0
    %6537 = vmatpush1.msra.mxu0 0.0
    %6538 = vmatprep.subr.mxu0 0.0
    %6539 = vmatpush1.msra.mxu0 0.0
    %6540 = vmatprep.subr.mxu0 0.0
    %6541 = vmatpush1.msra.mxu0 0.0
    %6542 = vmatprep.subr.mxu0 0.0
    %6543 = vmatpush1.msra.mxu0 0.0
    %6544 = vmatprep.subr.mxu0 0.0
    %6545 = vmatpush1.msra.mxu0 0.0
    %6546 = vmatprep.subr.mxu0 0.0
    %6547 = vmatpush1.msra.mxu0 0.0
    %6548 = vmatprep.subr.mxu0 0.0
    %6549 = vmatpush1.msra.mxu0 0.0
    %6550 = vmatprep.subr.mxu0 0.0
    %6551 = vmatpush1.msra.mxu0 0.0
    %6552 = vmatprep.subr.mxu0 0.0
    %6553 = vmatpush1.msra.mxu0 0.0
    %6554 = vmatprep.subr.mxu0 0.0
    %6555 = vmatpush1.msra.mxu0 0.0
    %6556 = vmatprep.mubr.f32.mxu0 0.0
    %v6557 = vand.u32 %v6489, 4294901760
    %v6558 = vsub.f32 %v6489, %v6557
    %v6559 = vand.u32 %v6558, 4294901760
    %v6560 = vsub.f32 %v6558, %v6559
    %v6561 = vand.u32 %v6560, 4294901760
    %6562 = vmatmul.mubr.f32.gmra.mrb[0].mxu0 %v6561
    %v6563 = vpop.f32.mrb[0].mxu0
    %v6564 = vadd.f32 0.0, %v6563
    %v6565 = vpop.f32.mrb[0].mxu0
    %6566 = vdwg.mxu0
    %6567 = vmatprep.subr.mxu0 0.0
    %v6568 = vand.u32 %v63, 4294901760
    %v6569 = vsub.f32 %v63, %v6568
    %v6570 = vand.u32 %v6569, 4294901760
    %v6571 = vsub.f32 %v6569, %v6570
    %v6572 = vand.u32 %v6571, 4294901760
    %6573 = vmatpush1.msra.mxu0 %v6572
    %6574 = vmatprep.subr.mxu0 0.0
    %6575 = vmatpush1.msra.mxu0 0.0
    %6576 = vmatprep.subr.mxu0 0.0
    %6577 = vmatpush1.msra.mxu0 0.0
    %6578 = vmatprep.subr.mxu0 0.0
    %6579 = vmatpush1.msra.mxu0 0.0
    %6580 = vmatprep.subr.mxu0 0.0
    %6581 = vmatpush1.msra.mxu0 0.0
    %6582 = vmatprep.subr.mxu0 0.0
    %6583 = vmatpush1.msra.mxu0 0.0
    %6584 = vmatprep.subr.mxu0 0.0
    %6585 = vmatpush1.msra.mxu0 0.0
    %6586 = vmatprep.subr.mxu0 0.0
    %6587 = vmatpush1.msra.mxu0 0.0
    %6588 = vmatprep.subr.mxu0 0.0
    %6589 = vmatpush1.msra.mxu0 0.0
    %6590 = vmatprep.subr.mxu0 0.0
    %6591 = vmatpush1.msra.mxu0 0.0
    %6592 = vmatprep.subr.mxu0 0.0
    %6593 = vmatpush1.msra.mxu0 0.0
    %6594 = vmatprep.subr.mxu0 0.0
    %6595 = vmatpush1.msra.mxu0 0.0
    %6596 = vmatprep.subr.mxu0 0.0
    %6597 = vmatpush1.msra.mxu0 0.0
    %6598 = vmatprep.subr.mxu0 0.0
    %6599 = vmatpush1.msra.mxu0 0.0
    %6600 = vmatprep.subr.mxu0 0.0
    %6601 = vmatpush1.msra.mxu0 0.0
    %6602 = vmatprep.subr.mxu0 0.0
    %6603 = vmatpush1.msra.mxu0 0.0
    %6604 = vmatprep.subr.mxu0 0.0
    %6605 = vmatpush1.msra.mxu0 0.0
    %6606 = vmatprep.subr.mxu0 0.0
    %6607 = vmatpush1.msra.mxu0 0.0
    %6608 = vmatprep.subr.mxu0 0.0
    %6609 = vmatpush1.msra.mxu0 0.0
    %6610 = vmatprep.subr.mxu0 0.0
    %6611 = vmatpush1.msra.mxu0 0.0
    %6612 = vmatprep.subr.mxu0 0.0
    %6613 = vmatpush1.msra.mxu0 0.0
    %6614 = vmatprep.subr.mxu0 0.0
    %6615 = vmatpush1.msra.mxu0 0.0
    %6616 = vmatprep.subr.mxu0 0.0
    %6617 = vmatpush1.msra.mxu0 0.0
    %6618 = vmatprep.subr.mxu0 0.0
    %6619 = vmatpush1.msra.mxu0 0.0
    %6620 = vmatprep.subr.mxu0 0.0
    %6621 = vmatpush1.msra.mxu0 0.0
    %6622 = vmatprep.subr.mxu0 0.0
    %6623 = vmatpush1.msra.mxu0 0.0
    %6624 = vmatprep.subr.mxu0 0.0
    %6625 = vmatpush1.msra.mxu0 0.0
    %6626 = vmatprep.subr.mxu0 0.0
    %6627 = vmatpush1.msra.mxu0 0.0
    %6628 = vmatprep.subr.mxu0 0.0
    %6629 = vmatpush1.msra.mxu0 0.0
    %6630 = vmatprep.subr.mxu0 0.0
    %6631 = vmatpush1.msra.mxu0 0.0
    %6632 = vmatprep.subr.mxu0 0.0
    %6633 = vmatpush1.msra.mxu0 0.0
    %6634 = vmatprep.subr.mxu0 0.0
    %6635 = vmatpush1.msra.mxu0 0.0
    %6636 = vmatprep.mubr.f32.mxu0 0.0
    %v6637 = vand.u32 %v6489, 4294901760
    %6638 = vmatmul.mubr.f32.gmra.mrb[0].mxu0 %v6637
    %v6639 = vpop.f32.mrb[0].mxu0
    %v6640 = vadd.f32 %v6564, %v6639
    %v6641 = vpop.f32.mrb[0].mxu0
    %6642 = vdwg.mxu0
    %6643 = vmatprep.subr.mxu0 0.0
    %v6644 = vand.u32 %v63, 4294901760
    %v6645 = vsub.f32 %v63, %v6644
    %6646 = vmatpush1.msra.mxu0 %v6645
    %6647 = vmatprep.subr.mxu0 0.0
    %6648 = vmatpush1.msra.mxu0 0.0
    %6649 = vmatprep.subr.mxu0 0.0
    %6650 = vmatpush1.msra.mxu0 0.0
    %6651 = vmatprep.subr.mxu0 0.0
    %6652 = vmatpush1.msra.mxu0 0.0
    %6653 = vmatprep.subr.mxu0 0.0
    %6654 = vmatpush1.msra.mxu0 0.0
    %6655 = vmatprep.subr.mxu0 0.0
    %6656 = vmatpush1.msra.mxu0 0.0
    %6657 = vmatprep.subr.mxu0 0.0
    %6658 = vmatpush1.msra.mxu0 0.0
    %6659 = vmatprep.subr.mxu0 0.0
    %6660 = vmatpush1.msra.mxu0 0.0
    %6661 = vmatprep.subr.mxu0 0.0
    %6662 = vmatpush1.msra.mxu0 0.0
    %6663 = vmatprep.subr.mxu0 0.0
    %6664 = vmatpush1.msra.mxu0 0.0
    %6665 = vmatprep.subr.mxu0 0.0
    %6666 = vmatpush1.msra.mxu0 0.0
    %6667 = vmatprep.subr.mxu0 0.0
    %6668 = vmatpush1.msra.mxu0 0.0
    %6669 = vmatprep.subr.mxu0 0.0
    %6670 = vmatpush1.msra.mxu0 0.0
    %6671 = vmatprep.subr.mxu0 0.0
    %6672 = vmatpush1.msra.mxu0 0.0
    %6673 = vmatprep.subr.mxu0 0.0
    %6674 = vmatpush1.msra.mxu0 0.0
    %6675 = vmatprep.subr.mxu0 0.0
    %6676 = vmatpush1.msra.mxu0 0.0
    %6677 = vmatprep.subr.mxu0 0.0
    %6678 = vmatpush1.msra.mxu0 0.0
    %6679 = vmatprep.subr.mxu0 0.0
    %6680 = vmatpush1.msra.mxu0 0.0
    %6681 = vmatprep.subr.mxu0 0.0
    %6682 = vmatpush1.msra.mxu0 0.0
    %6683 = vmatprep.subr.mxu0 0.0
    %6684 = vmatpush1.msra.mxu0 0.0
    %6685 = vmatprep.subr.mxu0 0.0
    %6686 = vmatpush1.msra.mxu0 0.0
    %6687 = vmatprep.subr.mxu0 0.0
    %6688 = vmatpush1.msra.mxu0 0.0
    %6689 = vmatprep.subr.mxu0 0.0
    %6690 = vmatpush1.msra.mxu0 0.0
    %6691 = vmatprep.subr.mxu0 0.0
    %6692 = vmatpush1.msra.mxu0 0.0
    %6693 = vmatprep.subr.mxu0 0.0
    %6694 = vmatpush1.msra.mxu0 0.0
    %6695 = vmatprep.subr.mxu0 0.0
    %6696 = vmatpush1.msra.mxu0 0.0
    %6697 = vmatprep.subr.mxu0 0.0
    %6698 = vmatpush1.msra.mxu0 0.0
    %6699 = vmatprep.subr.mxu0 0.0
    %6700 = vmatpush1.msra.mxu0 0.0
    %6701 = vmatprep.subr.mxu0 0.0
    %6702 = vmatpush1.msra.mxu0 0.0
    %6703 = vmatprep.subr.mxu0 0.0
    %6704 = vmatpush1.msra.mxu0 0.0
    %6705 = vmatprep.subr.mxu0 0.0
    %6706 = vmatpush1.msra.mxu0 0.0
    %6707 = vmatprep.subr.mxu0 0.0
    %6708 = vmatpush1.msra.mxu0 0.0
    %6709 = vmatprep.mubr.f32.mxu0 0.0
    %v6710 = vand.u32 %v6489, 4294901760
    %v6711 = vsub.f32 %v6489, %v6710
    %6712 = vmatmul.mubr.f32.gmra.mrb[0].mxu0 %v6711
    %v6713 = vpop.f32.mrb[0].mxu0
    %v6714 = vadd.f32 %v6640, %v6713
    %v6715 = vpop.f32.mrb[0].mxu0
    %6716 = vdwg.mxu0
    %6717 = vmatprep.subr.mxu0 0.0
    %v6718 = vand.u32 %v63, 4294901760
    %6719 = vmatpush1.msra.mxu0 %v6718
    %6720 = vmatprep.subr.mxu0 0.0
    %6721 = vmatpush1.msra.mxu0 0.0
    %6722 = vmatprep.subr.mxu0 0.0
    %6723 = vmatpush1.msra.mxu0 0.0
    %6724 = vmatprep.subr.mxu0 0.0
    %6725 = vmatpush1.msra.mxu0 0.0
    %6726 = vmatprep.subr.mxu0 0.0
    %6727 = vmatpush1.msra.mxu0 0.0
    %6728 = vmatprep.subr.mxu0 0.0
    %6729 = vmatpush1.msra.mxu0 0.0
    %6730 = vmatprep.subr.mxu0 0.0
    %6731 = vmatpush1.msra.mxu0 0.0
    %6732 = vmatprep.subr.mxu0 0.0
    %6733 = vmatpush1.msra.mxu0 0.0
    %6734 = vmatprep.subr.mxu0 0.0
    %6735 = vmatpush1.msra.mxu0 0.0
    %6736 = vmatprep.subr.mxu0 0.0
    %6737 = vmatpush1.msra.mxu0 0.0
    %6738 = vmatprep.subr.mxu0 0.0
    %6739 = vmatpush1.msra.mxu0 0.0
    %6740 = vmatprep.subr.mxu0 0.0
    %6741 = vmatpush1.msra.mxu0 0.0
    %6742 = vmatprep.subr.mxu0 0.0
    %6743 = vmatpush1.msra.mxu0 0.0
    %6744 = vmatprep.subr.mxu0 0.0
    %6745 = vmatpush1.msra.mxu0 0.0
    %6746 = vmatprep.subr.mxu0 0.0
    %6747 = vmatpush1.msra.mxu0 0.0
    %6748 = vmatprep.subr.mxu0 0.0
    %6749 = vmatpush1.msra.mxu0 0.0
    %6750 = vmatprep.subr.mxu0 0.0
    %6751 = vmatpush1.msra.mxu0 0.0
    %6752 = vmatprep.subr.mxu0 0.0
    %6753 = vmatpush1.msra.mxu0 0.0
    %6754 = vmatprep.subr.mxu0 0.0
    %6755 = vmatpush1.msra.mxu0 0.0
    %6756 = vmatprep.subr.mxu0 0.0
    %6757 = vmatpush1.msra.mxu0 0.0
    %6758 = vmatprep.subr.mxu0 0.0
    %6759 = vmatpush1.msra.mxu0 0.0
    %6760 = vmatprep.subr.mxu0 0.0
    %6761 = vmatpush1.msra.mxu0 0.0
    %6762 = vmatprep.subr.mxu0 0.0
    %6763 = vmatpush1.msra.mxu0 0.0
    %6764 = vmatprep.subr.mxu0 0.0
    %6765 = vmatpush1.msra.mxu0 0.0
    %6766 = vmatprep.subr.mxu0 0.0
    %6767 = vmatpush1.msra.mxu0 0.0
    %6768 = vmatprep.subr.mxu0 0.0
    %6769 = vmatpush1.msra.mxu0 0.0
    %6770 = vmatprep.subr.mxu0 0.0
    %6771 = vmatpush1.msra.mxu0 0.0
    %6772 = vmatprep.subr.mxu0 0.0
    %6773 = vmatpush1.msra.mxu0 0.0
    %6774 = vmatprep.subr.mxu0 0.0
    %6775 = vmatpush1.msra.mxu0 0.0
    %6776 = vmatprep.subr.mxu0 0.0
    %6777 = vmatpush1.msra.mxu0 0.0
    %6778 = vmatprep.subr.mxu0 0.0
    %6779 = vmatpush1.msra.mxu0 0.0
    %6780 = vmatprep.subr.mxu0 0.0
    %6781 = vmatpush1.msra.mxu0 0.0
    %6782 = vmatprep.mubr.f32.mxu0 0.0
    %v6783 = vand.u32 %v6489, 4294901760
    %v6784 = vsub.f32 %v6489, %v6783
    %v6785 = vand.u32 %v6784, 4294901760
    %6786 = vmatmul.mubr.f32.gmra.mrb[0].mxu0 %v6785
    %v6787 = vpop.f32.mrb[0].mxu0
    %v6788 = vadd.f32 %v6714, %v6787
    %v6789 = vpop.f32.mrb[0].mxu0
    %6790 = vdwg.mxu0
    %6791 = vmatprep.subr.mxu0 0.0
    %v6792 = vand.u32 %v63, 4294901760
    %v6793 = vsub.f32 %v63, %v6792
    %v6794 = vand.u32 %v6793, 4294901760
    %6795 = vmatpush1.msra.mxu0 %v6794
    %6796 = vmatprep.subr.mxu0 0.0
    %6797 = vmatpush1.msra.mxu0 0.0
    %6798 = vmatprep.subr.mxu0 0.0
    %6799 = vmatpush1.msra.mxu0 0.0
    %6800 = vmatprep.subr.mxu0 0.0
    %6801 = vmatpush1.msra.mxu0 0.0
    %6802 = vmatprep.subr.mxu0 0.0
    %6803 = vmatpush1.msra.mxu0 0.0
    %6804 = vmatprep.subr.mxu0 0.0
    %6805 = vmatpush1.msra.mxu0 0.0
    %6806 = vmatprep.subr.mxu0 0.0
    %6807 = vmatpush1.msra.mxu0 0.0
    %6808 = vmatprep.subr.mxu0 0.0
    %6809 = vmatpush1.msra.mxu0 0.0
    %6810 = vmatprep.subr.mxu0 0.0
    %6811 = vmatpush1.msra.mxu0 0.0
    %6812 = vmatprep.subr.mxu0 0.0
    %6813 = vmatpush1.msra.mxu0 0.0
    %6814 = vmatprep.subr.mxu0 0.0
    %6815 = vmatpush1.msra.mxu0 0.0
    %6816 = vmatprep.subr.mxu0 0.0
    %6817 = vmatpush1.msra.mxu0 0.0
    %6818 = vmatprep.subr.mxu0 0.0
    %6819 = vmatpush1.msra.mxu0 0.0
    %6820 = vmatprep.subr.mxu0 0.0
    %6821 = vmatpush1.msra.mxu0 0.0
    %6822 = vmatprep.subr.mxu0 0.0
    %6823 = vmatpush1.msra.mxu0 0.0
    %6824 = vmatprep.subr.mxu0 0.0
    %6825 = vmatpush1.msra.mxu0 0.0
    %6826 = vmatprep.subr.mxu0 0.0
    %6827 = vmatpush1.msra.mxu0 0.0
    %6828 = vmatprep.subr.mxu0 0.0
    %6829 = vmatpush1.msra.mxu0 0.0
    %6830 = vmatprep.subr.mxu0 0.0
    %6831 = vmatpush1.msra.mxu0 0.0
    %6832 = vmatprep.subr.mxu0 0.0
    %6833 = vmatpush1.msra.mxu0 0.0
    %6834 = vmatprep.subr.mxu0 0.0
    %6835 = vmatpush1.msra.mxu0 0.0
    %6836 = vmatprep.subr.mxu0 0.0
    %6837 = vmatpush1.msra.mxu0 0.0
    %6838 = vmatprep.subr.mxu0 0.0
    %6839 = vmatpush1.msra.mxu0 0.0
    %6840 = vmatprep.subr.mxu0 0.0
    %6841 = vmatpush1.msra.mxu0 0.0
    %6842 = vmatprep.subr.mxu0 0.0
    %6843 = vmatpush1.msra.mxu0 0.0
    %6844 = vmatprep.subr.mxu0 0.0
    %6845 = vmatpush1.msra.mxu0 0.0
    %6846 = vmatprep.subr.mxu0 0.0
    %6847 = vmatpush1.msra.mxu0 0.0
    %6848 = vmatprep.subr.mxu0 0.0
    %6849 = vmatpush1.msra.mxu0 0.0
    %6850 = vmatprep.subr.mxu0 0.0
    %6851 = vmatpush1.msra.mxu0 0.0
    %6852 = vmatprep.subr.mxu0 0.0
    %6853 = vmatpush1.msra.mxu0 0.0
    %6854 = vmatprep.subr.mxu0 0.0
    %6855 = vmatpush1.msra.mxu0 0.0
    %6856 = vmatprep.subr.mxu0 0.0
    %6857 = vmatpush1.msra.mxu0 0.0
    %6858 = vmatprep.mubr.f32.mxu0 0.0
    %v6859 = vand.u32 %v6489, 4294901760
    %6860 = vmatmul.mubr.f32.gmra.mrb[0].mxu0 %v6859
    %v6861 = vpop.f32.mrb[0].mxu0
    %v6862 = vadd.f32 %v6788, %v6861
    %v6863 = vpop.f32.mrb[0].mxu0
    %6864 = vdwg.mxu0
    %6865 = vmatprep.subr.mxu0 0.0
    %v6866 = vand.u32 %v63, 4294901760
    %6867 = vmatpush1.msra.mxu0 %v6866
    %6868 = vmatprep.subr.mxu0 0.0
    %6869 = vmatpush1.msra.mxu0 0.0
    %6870 = vmatprep.subr.mxu0 0.0
    %6871 = vmatpush1.msra.mxu0 0.0
    %6872 = vmatprep.subr.mxu0 0.0
    %6873 = vmatpush1.msra.mxu0 0.0
    %6874 = vmatprep.subr.mxu0 0.0
    %6875 = vmatpush1.msra.mxu0 0.0
    %6876 = vmatprep.subr.mxu0 0.0
    %6877 = vmatpush1.msra.mxu0 0.0
    %6878 = vmatprep.subr.mxu0 0.0
    %6879 = vmatpush1.msra.mxu0 0.0
    %6880 = vmatprep.subr.mxu0 0.0
    %6881 = vmatpush1.msra.mxu0 0.0
    %6882 = vmatprep.subr.mxu0 0.0
    %6883 = vmatpush1.msra.mxu0 0.0
    %6884 = vmatprep.subr.mxu0 0.0
    %6885 = vmatpush1.msra.mxu0 0.0
    %6886 = vmatprep.subr.mxu0 0.0
    %6887 = vmatpush1.msra.mxu0 0.0
    %6888 = vmatprep.subr.mxu0 0.0
    %6889 = vmatpush1.msra.mxu0 0.0
    %6890 = vmatprep.subr.mxu0 0.0
    %6891 = vmatpush1.msra.mxu0 0.0
    %6892 = vmatprep.subr.mxu0 0.0
    %6893 = vmatpush1.msra.mxu0 0.0
    %6894 = vmatprep.subr.mxu0 0.0
    %6895 = vmatpush1.msra.mxu0 0.0
    %6896 = vmatprep.subr.mxu0 0.0
    %6897 = vmatpush1.msra.mxu0 0.0
    %6898 = vmatprep.subr.mxu0 0.0
    %6899 = vmatpush1.msra.mxu0 0.0
    %6900 = vmatprep.subr.mxu0 0.0
    %6901 = vmatpush1.msra.mxu0 0.0
    %6902 = vmatprep.subr.mxu0 0.0
    %6903 = vmatpush1.msra.mxu0 0.0
    %6904 = vmatprep.subr.mxu0 0.0
    %6905 = vmatpush1.msra.mxu0 0.0
    %6906 = vmatprep.subr.mxu0 0.0
    %6907 = vmatpush1.msra.mxu0 0.0
    %6908 = vmatprep.subr.mxu0 0.0
    %6909 = vmatpush1.msra.mxu0 0.0
    %6910 = vmatprep.subr.mxu0 0.0
    %6911 = vmatpush1.msra.mxu0 0.0
    %6912 = vmatprep.subr.mxu0 0.0
    %6913 = vmatpush1.msra.mxu0 0.0
    %6914 = vmatprep.subr.mxu0 0.0
    %6915 = vmatpush1.msra.mxu0 0.0
    %6916 = vmatprep.subr.mxu0 0.0
    %6917 = vmatpush1.msra.mxu0 0.0
    %6918 = vmatprep.subr.mxu0 0.0
    %6919 = vmatpush1.msra.mxu0 0.0
    %6920 = vmatprep.subr.mxu0 0.0
    %6921 = vmatpush1.msra.mxu0 0.0
    %6922 = vmatprep.subr.mxu0 0.0
    %6923 = vmatpush1.msra.mxu0 0.0
    %6924 = vmatprep.subr.mxu0 0.0
    %6925 = vmatpush1.msra.mxu0 0.0
    %6926 = vmatprep.subr.mxu0 0.0
    %6927 = vmatpush1.msra.mxu0 0.0
    %6928 = vmatprep.subr.mxu0 0.0
    %6929 = vmatpush1.msra.mxu0 0.0
    %6930 = vmatprep.mubr.f32.mxu0 0.0
    %v6931 = vand.u32 %v6489, 4294901760
    %6932 = vmatmul.mubr.f32.gmra.mrb[0].mxu0 %v6931
    %v6933 = vpop.f32.mrb[0].mxu0
    %v6934 = vadd.f32 %v6862, %v6933
    %v6935 = vpop.f32.mrb[0].mxu0
    %6936 = vdwg.mxu0
    %v6938 = vsel %vm3793, %v3784, 0
    %6940 = vmatprep.subr.mxu0 0.0
    %v6941 = vand.u32 %v64, 4294901760
    %6942 = vmatpush1.msra.mxu0 %v6941
    %6943 = vmatprep.subr.mxu0 0.0
    %6944 = vmatpush1.msra.mxu0 0.0
    %6945 = vmatprep.subr.mxu0 0.0
    %6946 = vmatpush1.msra.mxu0 0.0
    %6947 = vmatprep.subr.mxu0 0.0
    %6948 = vmatpush1.msra.mxu0 0.0
    %6949 = vmatprep.subr.mxu0 0.0
    %6950 = vmatpush1.msra.mxu0 0.0
    %6951 = vmatprep.subr.mxu0 0.0
    %6952 = vmatpush1.msra.mxu0 0.0
    %6953 = vmatprep.subr.mxu0 0.0
    %6954 = vmatpush1.msra.mxu0 0.0
    %6955 = vmatprep.subr.mxu0 0.0
    %6956 = vmatpush1.msra.mxu0 0.0
    %6957 = vmatprep.subr.mxu0 0.0
    %6958 = vmatpush1.msra.mxu0 0.0
    %6959 = vmatprep.subr.mxu0 0.0
    %6960 = vmatpush1.msra.mxu0 0.0
    %6961 = vmatprep.subr.mxu0 0.0
    %6962 = vmatpush1.msra.mxu0 0.0
    %6963 = vmatprep.subr.mxu0 0.0
    %6964 = vmatpush1.msra.mxu0 0.0
    %6965 = vmatprep.subr.mxu0 0.0
    %6966 = vmatpush1.msra.mxu0 0.0
    %6967 = vmatprep.subr.mxu0 0.0
    %6968 = vmatpush1.msra.mxu0 0.0
    %6969 = vmatprep.subr.mxu0 0.0
    %6970 = vmatpush1.msra.mxu0 0.0
    %6971 = vmatprep.subr.mxu0 0.0
    %6972 = vmatpush1.msra.mxu0 0.0
    %6973 = vmatprep.subr.mxu0 0.0
    %6974 = vmatpush1.msra.mxu0 0.0
    %6975 = vmatprep.subr.mxu0 0.0
    %6976 = vmatpush1.msra.mxu0 0.0
    %6977 = vmatprep.subr.mxu0 0.0
    %6978 = vmatpush1.msra.mxu0 0.0
    %6979 = vmatprep.subr.mxu0 0.0
    %6980 = vmatpush1.msra.mxu0 0.0
    %6981 = vmatprep.subr.mxu0 0.0
    %6982 = vmatpush1.msra.mxu0 0.0
    %6983 = vmatprep.subr.mxu0 0.0
    %6984 = vmatpush1.msra.mxu0 0.0
    %6985 = vmatprep.subr.mxu0 0.0
    %6986 = vmatpush1.msra.mxu0 0.0
    %6987 = vmatprep.subr.mxu0 0.0
    %6988 = vmatpush1.msra.mxu0 0.0
    %6989 = vmatprep.subr.mxu0 0.0
    %6990 = vmatpush1.msra.mxu0 0.0
    %6991 = vmatprep.subr.mxu0 0.0
    %6992 = vmatpush1.msra.mxu0 0.0
    %6993 = vmatprep.subr.mxu0 0.0
    %6994 = vmatpush1.msra.mxu0 0.0
    %6995 = vmatprep.subr.mxu0 0.0
    %6996 = vmatpush1.msra.mxu0 0.0
    %6997 = vmatprep.subr.mxu0 0.0
    %6998 = vmatpush1.msra.mxu0 0.0
    %6999 = vmatprep.subr.mxu0 0.0
    %7000 = vmatpush1.msra.mxu0 0.0
    %7001 = vmatprep.subr.mxu0 0.0
    %7002 = vmatpush1.msra.mxu0 0.0
    %7003 = vmatprep.subr.mxu0 0.0
    %7004 = vmatpush1.msra.mxu0 0.0
    %7005 = vmatprep.mubr.f32.mxu0 0.0
    %v7006 = vand.u32 %v6938, 4294901760
    %v7007 = vsub.f32 %v6938, %v7006
    %v7008 = vand.u32 %v7007, 4294901760
    %v7009 = vsub.f32 %v7007, %v7008
    %v7010 = vand.u32 %v7009, 4294901760
    %7011 = vmatmul.mubr.f32.gmra.mrb[0].mxu0 %v7010
    %v7012 = vpop.f32.mrb[0].mxu0
    %v7013 = vadd.f32 0.0, %v7012
    %v7014 = vpop.f32.mrb[0].mxu0
    %7015 = vdwg.mxu0
    %7016 = vmatprep.subr.mxu0 0.0
    %v7017 = vand.u32 %v64, 4294901760
    %v7018 = vsub.f32 %v64, %v7017
    %v7019 = vand.u32 %v7018, 4294901760
    %v7020 = vsub.f32 %v7018, %v7019
    %v7021 = vand.u32 %v7020, 4294901760
    %7022 = vmatpush1.msra.mxu0 %v7021
    %7023 = vmatprep.subr.mxu0 0.0
    %7024 = vmatpush1.msra.mxu0 0.0
    %7025 = vmatprep.subr.mxu0 0.0
    %7026 = vmatpush1.msra.mxu0 0.0
    %7027 = vmatprep.subr.mxu0 0.0
    %7028 = vmatpush1.msra.mxu0 0.0
    %7029 = vmatprep.subr.mxu0 0.0
    %7030 = vmatpush1.msra.mxu0 0.0
    %7031 = vmatprep.subr.mxu0 0.0
    %7032 = vmatpush1.msra.mxu0 0.0
    %7033 = vmatprep.subr.mxu0 0.0
    %7034 = vmatpush1.msra.mxu0 0.0
    %7035 = vmatprep.subr.mxu0 0.0
    %7036 = vmatpush1.msra.mxu0 0.0
    %7037 = vmatprep.subr.mxu0 0.0
    %7038 = vmatpush1.msra.mxu0 0.0
    %7039 = vmatprep.subr.mxu0 0.0
    %7040 = vmatpush1.msra.mxu0 0.0
    %7041 = vmatprep.subr.mxu0 0.0
    %7042 = vmatpush1.msra.mxu0 0.0
    %7043 = vmatprep.subr.mxu0 0.0
    %7044 = vmatpush1.msra.mxu0 0.0
    %7045 = vmatprep.subr.mxu0 0.0
    %7046 = vmatpush1.msra.mxu0 0.0
    %7047 = vmatprep.subr.mxu0 0.0
    %7048 = vmatpush1.msra.mxu0 0.0
    %7049 = vmatprep.subr.mxu0 0.0
    %7050 = vmatpush1.msra.mxu0 0.0
    %7051 = vmatprep.subr.mxu0 0.0
    %7052 = vmatpush1.msra.mxu0 0.0
    %7053 = vmatprep.subr.mxu0 0.0
    %7054 = vmatpush1.msra.mxu0 0.0
    %7055 = vmatprep.subr.mxu0 0.0
    %7056 = vmatpush1.msra.mxu0 0.0
    %7057 = vmatprep.subr.mxu0 0.0
    %7058 = vmatpush1.msra.mxu0 0.0
    %7059 = vmatprep.subr.mxu0 0.0
    %7060 = vmatpush1.msra.mxu0 0.0
    %7061 = vmatprep.subr.mxu0 0.0
    %7062 = vmatpush1.msra.mxu0 0.0
    %7063 = vmatprep.subr.mxu0 0.0
    %7064 = vmatpush1.msra.mxu0 0.0
    %7065 = vmatprep.subr.mxu0 0.0
    %7066 = vmatpush1.msra.mxu0 0.0
    %7067 = vmatprep.subr.mxu0 0.0
    %7068 = vmatpush1.msra.mxu0 0.0
    %7069 = vmatprep.subr.mxu0 0.0
    %7070 = vmatpush1.msra.mxu0 0.0
    %7071 = vmatprep.subr.mxu0 0.0
    %7072 = vmatpush1.msra.mxu0 0.0
    %7073 = vmatprep.subr.mxu0 0.0
    %7074 = vmatpush1.msra.mxu0 0.0
    %7075 = vmatprep.subr.mxu0 0.0
    %7076 = vmatpush1.msra.mxu0 0.0
    %7077 = vmatprep.subr.mxu0 0.0
    %7078 = vmatpush1.msra.mxu0 0.0
    %7079 = vmatprep.subr.mxu0 0.0
    %7080 = vmatpush1.msra.mxu0 0.0
    %7081 = vmatprep.subr.mxu0 0.0
    %7082 = vmatpush1.msra.mxu0 0.0
    %7083 = vmatprep.subr.mxu0 0.0
    %7084 = vmatpush1.msra.mxu0 0.0
    %7085 = vmatprep.mubr.f32.mxu0 0.0
    %v7086 = vand.u32 %v6938, 4294901760
    %7087 = vmatmul.mubr.f32.gmra.mrb[0].mxu0 %v7086
    %v7088 = vpop.f32.mrb[0].mxu0
    %v7089 = vadd.f32 %v7013, %v7088
    %v7090 = vpop.f32.mrb[0].mxu0
    %7091 = vdwg.mxu0
    %7092 = vmatprep.subr.mxu0 0.0
    %v7093 = vand.u32 %v64, 4294901760
    %v7094 = vsub.f32 %v64, %v7093
    %7095 = vmatpush1.msra.mxu0 %v7094
    %7096 = vmatprep.subr.mxu0 0.0
    %7097 = vmatpush1.msra.mxu0 0.0
    %7098 = vmatprep.subr.mxu0 0.0
    %7099 = vmatpush1.msra.mxu0 0.0
    %7100 = vmatprep.subr.mxu0 0.0
    %7101 = vmatpush1.msra.mxu0 0.0
    %7102 = vmatprep.subr.mxu0 0.0
    %7103 = vmatpush1.msra.mxu0 0.0
    %7104 = vmatprep.subr.mxu0 0.0
    %7105 = vmatpush1.msra.mxu0 0.0
    %7106 = vmatprep.subr.mxu0 0.0
    %7107 = vmatpush1.msra.mxu0 0.0
    %7108 = vmatprep.subr.mxu0 0.0
    %7109 = vmatpush1.msra.mxu0 0.0
    %7110 = vmatprep.subr.mxu0 0.0
    %7111 = vmatpush1.msra.mxu0 0.0
    %7112 = vmatprep.subr.mxu0 0.0
    %7113 = vmatpush1.msra.mxu0 0.0
    %7114 = vmatprep.subr.mxu0 0.0
    %7115 = vmatpush1.msra.mxu0 0.0
    %7116 = vmatprep.subr.mxu0 0.0
    %7117 = vmatpush1.msra.mxu0 0.0
    %7118 = vmatprep.subr.mxu0 0.0
    %7119 = vmatpush1.msra.mxu0 0.0
    %7120 = vmatprep.subr.mxu0 0.0
    %7121 = vmatpush1.msra.mxu0 0.0
    %7122 = vmatprep.subr.mxu0 0.0
    %7123 = vmatpush1.msra.mxu0 0.0
    %7124 = vmatprep.subr.mxu0 0.0
    %7125 = vmatpush1.msra.mxu0 0.0
    %7126 = vmatprep.subr.mxu0 0.0
    %7127 = vmatpush1.msra.mxu0 0.0
    %7128 = vmatprep.subr.mxu0 0.0
    %7129 = vmatpush1.msra.mxu0 0.0
    %7130 = vmatprep.subr.mxu0 0.0
    %7131 = vmatpush1.msra.mxu0 0.0
    %7132 = vmatprep.subr.mxu0 0.0
    %7133 = vmatpush1.msra.mxu0 0.0
    %7134 = vmatprep.subr.mxu0 0.0
    %7135 = vmatpush1.msra.mxu0 0.0
    %7136 = vmatprep.subr.mxu0 0.0
    %7137 = vmatpush1.msra.mxu0 0.0
    %7138 = vmatprep.subr.mxu0 0.0
    %7139 = vmatpush1.msra.mxu0 0.0
    %7140 = vmatprep.subr.mxu0 0.0
    %7141 = vmatpush1.msra.mxu0 0.0
    %7142 = vmatprep.subr.mxu0 0.0
    %7143 = vmatpush1.msra.mxu0 0.0
    %7144 = vmatprep.subr.mxu0 0.0
    %7145 = vmatpush1.msra.mxu0 0.0
    %7146 = vmatprep.subr.mxu0 0.0
    %7147 = vmatpush1.msra.mxu0 0.0
    %7148 = vmatprep.subr.mxu0 0.0
    %7149 = vmatpush1.msra.mxu0 0.0
    %7150 = vmatprep.subr.mxu0 0.0
    %7151 = vmatpush1.msra.mxu0 0.0
    %7152 = vmatprep.subr.mxu0 0.0
    %7153 = vmatpush1.msra.mxu0 0.0
    %7154 = vmatprep.subr.mxu0 0.0
    %7155 = vmatpush1.msra.mxu0 0.0
    %7156 = vmatprep.subr.mxu0 0.0
    %7157 = vmatpush1.msra.mxu0 0.0
    %7158 = vmatprep.mubr.f32.mxu0 0.0
    %v7159 = vand.u32 %v6938, 4294901760
    %v7160 = vsub.f32 %v6938, %v7159
    %7161 = vmatmul.mubr.f32.gmra.mrb[0].mxu0 %v7160
    %v7162 = vpop.f32.mrb[0].mxu0
    %v7163 = vadd.f32 %v7089, %v7162
    %v7164 = vpop.f32.mrb[0].mxu0
    %7165 = vdwg.mxu0
    %7166 = vmatprep.subr.mxu0 0.0
    %v7167 = vand.u32 %v64, 4294901760
    %7168 = vmatpush1.msra.mxu0 %v7167
    %7169 = vmatprep.subr.mxu0 0.0
    %7170 = vmatpush1.msra.mxu0 0.0
    %7171 = vmatprep.subr.mxu0 0.0
    %7172 = vmatpush1.msra.mxu0 0.0
    %7173 = vmatprep.subr.mxu0 0.0
    %7174 = vmatpush1.msra.mxu0 0.0
    %7175 = vmatprep.subr.mxu0 0.0
    %7176 = vmatpush1.msra.mxu0 0.0
    %7177 = vmatprep.subr.mxu0 0.0
    %7178 = vmatpush1.msra.mxu0 0.0
    %7179 = vmatprep.subr.mxu0 0.0
    %7180 = vmatpush1.msra.mxu0 0.0
    %7181 = vmatprep.subr.mxu0 0.0
    %7182 = vmatpush1.msra.mxu0 0.0
    %7183 = vmatprep.subr.mxu0 0.0
    %7184 = vmatpush1.msra.mxu0 0.0
    %7185 = vmatprep.subr.mxu0 0.0
    %7186 = vmatpush1.msra.mxu0 0.0
    %7187 = vmatprep.subr.mxu0 0.0
    %7188 = vmatpush1.msra.mxu0 0.0
    %7189 = vmatprep.subr.mxu0 0.0
    %7190 = vmatpush1.msra.mxu0 0.0
    %7191 = vmatprep.subr.mxu0 0.0
    %7192 = vmatpush1.msra.mxu0 0.0
    %7193 = vmatprep.subr.mxu0 0.0
    %7194 = vmatpush1.msra.mxu0 0.0
    %7195 = vmatprep.subr.mxu0 0.0
    %7196 = vmatpush1.msra.mxu0 0.0
    %7197 = vmatprep.subr.mxu0 0.0
    %7198 = vmatpush1.msra.mxu0 0.0
    %7199 = vmatprep.subr.mxu0 0.0
    %7200 = vmatpush1.msra.mxu0 0.0
    %7201 = vmatprep.subr.mxu0 0.0
    %7202 = vmatpush1.msra.mxu0 0.0
    %7203 = vmatprep.subr.mxu0 0.0
    %7204 = vmatpush1.msra.mxu0 0.0
    %7205 = vmatprep.subr.mxu0 0.0
    %7206 = vmatpush1.msra.mxu0 0.0
    %7207 = vmatprep.subr.mxu0 0.0
    %7208 = vmatpush1.msra.mxu0 0.0
    %7209 = vmatprep.subr.mxu0 0.0
    %7210 = vmatpush1.msra.mxu0 0.0
    %7211 = vmatprep.subr.mxu0 0.0
    %7212 = vmatpush1.msra.mxu0 0.0
    %7213 = vmatprep.subr.mxu0 0.0
    %7214 = vmatpush1.msra.mxu0 0.0
    %7215 = vmatprep.subr.mxu0 0.0
    %7216 = vmatpush1.msra.mxu0 0.0
    %7217 = vmatprep.subr.mxu0 0.0
    %7218 = vmatpush1.msra.mxu0 0.0
    %7219 = vmatprep.subr.mxu0 0.0
    %7220 = vmatpush1.msra.mxu0 0.0
    %7221 = vmatprep.subr.mxu0 0.0
    %7222 = vmatpush1.msra.mxu0 0.0
    %7223 = vmatprep.subr.mxu0 0.0
    %7224 = vmatpush1.msra.mxu0 0.0
    %7225 = vmatprep.subr.mxu0 0.0
    %7226 = vmatpush1.msra.mxu0 0.0
    %7227 = vmatprep.subr.mxu0 0.0
    %7228 = vmatpush1.msra.mxu0 0.0
    %7229 = vmatprep.subr.mxu0 0.0
    %7230 = vmatpush1.msra.mxu0 0.0
    %7231 = vmatprep.mubr.f32.mxu0 0.0
    %v7232 = vand.u32 %v6938, 4294901760
    %v7233 = vsub.f32 %v6938, %v7232
    %v7234 = vand.u32 %v7233, 4294901760
    %7235 = vmatmul.mubr.f32.gmra.mrb[0].mxu0 %v7234
    %v7236 = vpop.f32.mrb[0].mxu0
    %v7237 = vadd.f32 %v7163, %v7236
    %v7238 = vpop.f32.mrb[0].mxu0
    %7239 = vdwg.mxu0
    %7240 = vmatprep.subr.mxu0 0.0
    %v7241 = vand.u32 %v64, 4294901760
    %v7242 = vsub.f32 %v64, %v7241
    %v7243 = vand.u32 %v7242, 4294901760
    %7244 = vmatpush1.msra.mxu0 %v7243
    %7245 = vmatprep.subr.mxu0 0.0
    %7246 = vmatpush1.msra.mxu0 0.0
    %7247 = vmatprep.subr.mxu0 0.0
    %7248 = vmatpush1.msra.mxu0 0.0
    %7249 = vmatprep.subr.mxu0 0.0
    %7250 = vmatpush1.msra.mxu0 0.0
    %7251 = vmatprep.subr.mxu0 0.0
    %7252 = vmatpush1.msra.mxu0 0.0
    %7253 = vmatprep.subr.mxu0 0.0
    %7254 = vmatpush1.msra.mxu0 0.0
    %7255 = vmatprep.subr.mxu0 0.0
    %7256 = vmatpush1.msra.mxu0 0.0
    %7257 = vmatprep.subr.mxu0 0.0
    %7258 = vmatpush1.msra.mxu0 0.0
    %7259 = vmatprep.subr.mxu0 0.0
    %7260 = vmatpush1.msra.mxu0 0.0
    %7261 = vmatprep.subr.mxu0 0.0
    %7262 = vmatpush1.msra.mxu0 0.0
    %7263 = vmatprep.subr.mxu0 0.0
    %7264 = vmatpush1.msra.mxu0 0.0
    %7265 = vmatprep.subr.mxu0 0.0
    %7266 = vmatpush1.msra.mxu0 0.0
    %7267 = vmatprep.subr.mxu0 0.0
    %7268 = vmatpush1.msra.mxu0 0.0
    %7269 = vmatprep.subr.mxu0 0.0
    %7270 = vmatpush1.msra.mxu0 0.0
    %7271 = vmatprep.subr.mxu0 0.0
    %7272 = vmatpush1.msra.mxu0 0.0
    %7273 = vmatprep.subr.mxu0 0.0
    %7274 = vmatpush1.msra.mxu0 0.0
    %7275 = vmatprep.subr.mxu0 0.0
    %7276 = vmatpush1.msra.mxu0 0.0
    %7277 = vmatprep.subr.mxu0 0.0
    %7278 = vmatpush1.msra.mxu0 0.0
    %7279 = vmatprep.subr.mxu0 0.0
    %7280 = vmatpush1.msra.mxu0 0.0
    %7281 = vmatprep.subr.mxu0 0.0
    %7282 = vmatpush1.msra.mxu0 0.0
    %7283 = vmatprep.subr.mxu0 0.0
    %7284 = vmatpush1.msra.mxu0 0.0
    %7285 = vmatprep.subr.mxu0 0.0
    %7286 = vmatpush1.msra.mxu0 0.0
    %7287 = vmatprep.subr.mxu0 0.0
    %7288 = vmatpush1.msra.mxu0 0.0
    %7289 = vmatprep.subr.mxu0 0.0
    %7290 = vmatpush1.msra.mxu0 0.0
    %7291 = vmatprep.subr.mxu0 0.0
    %7292 = vmatpush1.msra.mxu0 0.0
    %7293 = vmatprep.subr.mxu0 0.0
    %7294 = vmatpush1.msra.mxu0 0.0
    %7295 = vmatprep.subr.mxu0 0.0
    %7296 = vmatpush1.msra.mxu0 0.0
    %7297 = vmatprep.subr.mxu0 0.0
    %7298 = vmatpush1.msra.mxu0 0.0
    %7299 = vmatprep.subr.mxu0 0.0
    %7300 = vmatpush1.msra.mxu0 0.0
    %7301 = vmatprep.subr.mxu0 0.0
    %7302 = vmatpush1.msra.mxu0 0.0
    %7303 = vmatprep.subr.mxu0 0.0
    %7304 = vmatpush1.msra.mxu0 0.0
    %7305 = vmatprep.subr.mxu0 0.0
    %7306 = vmatpush1.msra.mxu0 0.0
    %7307 = vmatprep.mubr.f32.mxu0 0.0
    %v7308 = vand.u32 %v6938, 4294901760
    %7309 = vmatmul.mubr.f32.gmra.mrb[0].mxu0 %v7308
    %v7310 = vpop.f32.mrb[0].mxu0
    %v7311 = vadd.f32 %v7237, %v7310
    %v7312 = vpop.f32.mrb[0].mxu0
    %7313 = vdwg.mxu0
    %7314 = vmatprep.subr.mxu0 0.0
    %v7315 = vand.u32 %v64, 4294901760
    %7316 = vmatpush1.msra.mxu0 %v7315
    %7317 = vmatprep.subr.mxu0 0.0
    %7318 = vmatpush1.msra.mxu0 0.0
    %7319 = vmatprep.subr.mxu0 0.0
    %7320 = vmatpush1.msra.mxu0 0.0
    %7321 = vmatprep.subr.mxu0 0.0
    %7322 = vmatpush1.msra.mxu0 0.0
    %7323 = vmatprep.subr.mxu0 0.0
    %7324 = vmatpush1.msra.mxu0 0.0
    %7325 = vmatprep.subr.mxu0 0.0
    %7326 = vmatpush1.msra.mxu0 0.0
    %7327 = vmatprep.subr.mxu0 0.0
    %7328 = vmatpush1.msra.mxu0 0.0
    %7329 = vmatprep.subr.mxu0 0.0
    %7330 = vmatpush1.msra.mxu0 0.0
    %7331 = vmatprep.subr.mxu0 0.0
    %7332 = vmatpush1.msra.mxu0 0.0
    %7333 = vmatprep.subr.mxu0 0.0
    %7334 = vmatpush1.msra.mxu0 0.0
    %7335 = vmatprep.subr.mxu0 0.0
    %7336 = vmatpush1.msra.mxu0 0.0
    %7337 = vmatprep.subr.mxu0 0.0
    %7338 = vmatpush1.msra.mxu0 0.0
    %7339 = vmatprep.subr.mxu0 0.0
    %7340 = vmatpush1.msra.mxu0 0.0
    %7341 = vmatprep.subr.mxu0 0.0
    %7342 = vmatpush1.msra.mxu0 0.0
    %7343 = vmatprep.subr.mxu0 0.0
    %7344 = vmatpush1.msra.mxu0 0.0
    %7345 = vmatprep.subr.mxu0 0.0
    %7346 = vmatpush1.msra.mxu0 0.0
    %7347 = vmatprep.subr.mxu0 0.0
    %7348 = vmatpush1.msra.mxu0 0.0
    %7349 = vmatprep.subr.mxu0 0.0
    %7350 = vmatpush1.msra.mxu0 0.0
    %7351 = vmatprep.subr.mxu0 0.0
    %7352 = vmatpush1.msra.mxu0 0.0
    %7353 = vmatprep.subr.mxu0 0.0
    %7354 = vmatpush1.msra.mxu0 0.0
    %7355 = vmatprep.subr.mxu0 0.0
    %7356 = vmatpush1.msra.mxu0 0.0
    %7357 = vmatprep.subr.mxu0 0.0
    %7358 = vmatpush1.msra.mxu0 0.0
    %7359 = vmatprep.subr.mxu0 0.0
    %7360 = vmatpush1.msra.mxu0 0.0
    %7361 = vmatprep.subr.mxu0 0.0
    %7362 = vmatpush1.msra.mxu0 0.0
    %7363 = vmatprep.subr.mxu0 0.0
    %7364 = vmatpush1.msra.mxu0 0.0
    %7365 = vmatprep.subr.mxu0 0.0
    %7366 = vmatpush1.msra.mxu0 0.0
    %7367 = vmatprep.subr.mxu0 0.0
    %7368 = vmatpush1.msra.mxu0 0.0
    %7369 = vmatprep.subr.mxu0 0.0
    %7370 = vmatpush1.msra.mxu0 0.0
    %7371 = vmatprep.subr.mxu0 0.0
    %7372 = vmatpush1.msra.mxu0 0.0
    %7373 = vmatprep.subr.mxu0 0.0
    %7374 = vmatpush1.msra.mxu0 0.0
    %7375 = vmatprep.subr.mxu0 0.0
    %7376 = vmatpush1.msra.mxu0 0.0
    %7377 = vmatprep.subr.mxu0 0.0
    %7378 = vmatpush1.msra.mxu0 0.0
    %7379 = vmatprep.mubr.f32.mxu0 0.0
    %v7380 = vand.u32 %v6938, 4294901760
    %7381 = vmatmul.mubr.f32.gmra.mrb[0].mxu0 %v7380
    %v7382 = vpop.f32.mrb[0].mxu0
    %v7383 = vadd.f32 %v7311, %v7382
    %v7384 = vpop.f32.mrb[0].mxu0
    %7385 = vdwg.mxu0
    %vm7386 = vcmask 253952
    %v7387 = vsel %vm7386, %v4240, 0.0
    %7388 = vadd.xlane.f32.xlu0 %v7387
    %v7389 = vpop.xlane.xlu0 %7388
    %v7390 = vsel %vm7386, %v4689, 0.0
    %7391 = vadd.xlane.f32.xlu0 %v7390
    %v7392 = vpop.xlane.xlu0 %7391
    %v7393 = vsel %vm7386, %v5138, 0.0
    %7394 = vadd.xlane.f32.xlu0 %v7393
    %v7395 = vpop.xlane.xlu0 %7394
    %v7396 = vsel %vm7386, %v5587, 0.0
    %7397 = vadd.xlane.f32.xlu0 %v7396
    %v7398 = vpop.xlane.xlu0 %7397
    %v7399 = vsel %vm7386, %v6036, 0.0
    %7400 = vadd.xlane.f32.xlu0 %v7399
    %v7401 = vpop.xlane.xlu0 %7400
    %v7402 = vsel %vm7386, %v6485, 0.0
    %7403 = vadd.xlane.f32.xlu0 %v7402
    %v7404 = vpop.xlane.xlu0 %7403
    %v7405 = vsel %vm7386, %v6934, 0.0
    %7406 = vadd.xlane.f32.xlu0 %v7405
    %v7407 = vpop.xlane.xlu0 %7406
    %v7408 = vsel %vm7386, %v7383, 0.0
    %7409 = vadd.xlane.f32.xlu0 %v7408
    %v7410 = vpop.xlane.xlu0 %7409
    %v7411 = vrcp.pop 32.0
    %v7412 = vmul.f32 %v7389, %v7411
    %v7413 = vmul.f32 %v7392, %v7411
    %v7414 = vmul.f32 %v7395, %v7411
    %v7415 = vmul.f32 %v7398, %v7411
    %v7416 = vmul.f32 %v7401, %v7411
    %v7417 = vmul.f32 %v7404, %v7411
    %v7418 = vmul.f32 %v7407, %v7411
    %v7419 = vmul.f32 %v7410, %v7411
    %v7420 = vsub.f32 %v4240, %v7412
    %v7421 = vsub.f32 %v4689, %v7413
    %v7422 = vsub.f32 %v5138, %v7414
    %v7423 = vsub.f32 %v5587, %v7415
    %v7424 = vsub.f32 %v6036, %v7416
    %v7425 = vsub.f32 %v6485, %v7417
    %v7426 = vsub.f32 %v6934, %v7418
    %v7427 = vsub.f32 %v7383, %v7419
    %v7428 = vmul.f32 %v7420, %v7420
    %v7429 = vmul.f32 %v7421, %v7421
    %v7430 = vmul.f32 %v7422, %v7422
    %v7431 = vmul.f32 %v7423, %v7423
    %v7432 = vmul.f32 %v7424, %v7424
    %v7433 = vmul.f32 %v7425, %v7425
    %v7434 = vmul.f32 %v7426, %v7426
    %v7435 = vmul.f32 %v7427, %v7427
    %v7436 = vsel %vm7386, %v7428, 0.0
    %7437 = vadd.xlane.f32.xlu0 %v7436
    %v7438 = vpop.xlane.xlu0 %7437
    %v7439 = vsel %vm7386, %v7429, 0.0
    %7440 = vadd.xlane.f32.xlu0 %v7439
    %v7441 = vpop.xlane.xlu0 %7440
    %v7442 = vsel %vm7386, %v7430, 0.0
    %7443 = vadd.xlane.f32.xlu0 %v7442
    %v7444 = vpop.xlane.xlu0 %7443
    %v7445 = vsel %vm7386, %v7431, 0.0
    %7446 = vadd.xlane.f32.xlu0 %v7445
    %v7447 = vpop.xlane.xlu0 %7446
    %v7448 = vsel %vm7386, %v7432, 0.0
    %7449 = vadd.xlane.f32.xlu0 %v7448
    %v7450 = vpop.xlane.xlu0 %7449
    %v7451 = vsel %vm7386, %v7433, 0.0
    %7452 = vadd.xlane.f32.xlu0 %v7451
    %v7453 = vpop.xlane.xlu0 %7452
    %v7454 = vsel %vm7386, %v7434, 0.0
    %7455 = vadd.xlane.f32.xlu0 %v7454
    %v7456 = vpop.xlane.xlu0 %7455
    %v7457 = vsel %vm7386, %v7435, 0.0
    %7458 = vadd.xlane.f32.xlu0 %v7457
    %v7459 = vpop.xlane.xlu0 %7458
    %v7460 = vmul.f32 %v7438, 0.032258064
    %v7461 = vmul.f32 %v7441, 0.032258064
    %v7462 = vmul.f32 %v7444, 0.032258064
    %v7463 = vmul.f32 %v7447, 0.032258064
    %v7464 = vmul.f32 %v7450, 0.032258064
    %v7465 = vmul.f32 %v7453, 0.032258064
    %v7466 = vmul.f32 %v7456, 0.032258064
    %v7467 = vmul.f32 %v7459, 0.032258064
    %v7468 = vrsqrt.pop %v7460
    %v7469 = vmul.f32 %v7460, %v7468
    %vm7470 = vcmp.eq.f32.partialorder %v7460, inf
    %v7471 = vsel %vm7470, %v7460, %v7469
    %vm7472 = vcmp.eq.f32.partialorder %v7460, 0.0
    %v7473 = vand.u32 %v7460, 2147483648
    %v7474 = vsel %vm7472, %v7473, %v7471
    %v7475 = vrsqrt.pop %v7461
    %v7476 = vmul.f32 %v7461, %v7475
    %vm7477 = vcmp.eq.f32.partialorder %v7461, inf
    %v7478 = vsel %vm7477, %v7461, %v7476
    %vm7479 = vcmp.eq.f32.partialorder %v7461, 0.0
    %v7480 = vand.u32 %v7461, 2147483648
    %v7481 = vsel %vm7479, %v7480, %v7478
    %v7482 = vrsqrt.pop %v7462
    %v7483 = vmul.f32 %v7462, %v7482
    %vm7484 = vcmp.eq.f32.partialorder %v7462, inf
    %v7485 = vsel %vm7484, %v7462, %v7483
    %vm7486 = vcmp.eq.f32.partialorder %v7462, 0.0
    %v7487 = vand.u32 %v7462, 2147483648
    %v7488 = vsel %vm7486, %v7487, %v7485
    %v7489 = vrsqrt.pop %v7463
    %v7490 = vmul.f32 %v7463, %v7489
    %vm7491 = vcmp.eq.f32.partialorder %v7463, inf
    %v7492 = vsel %vm7491, %v7463, %v7490
    %vm7493 = vcmp.eq.f32.partialorder %v7463, 0.0
    %v7494 = vand.u32 %v7463, 2147483648
    %v7495 = vsel %vm7493, %v7494, %v7492
    %v7496 = vrsqrt.pop %v7464
    %v7497 = vmul.f32 %v7464, %v7496
    %vm7498 = vcmp.eq.f32.partialorder %v7464, inf
    %v7499 = vsel %vm7498, %v7464, %v7497
    %vm7500 = vcmp.eq.f32.partialorder %v7464, 0.0
    %v7501 = vand.u32 %v7464, 2147483648
    %v7502 = vsel %vm7500, %v7501, %v7499
    %v7503 = vrsqrt.pop %v7465
    %v7504 = vmul.f32 %v7465, %v7503
    %vm7505 = vcmp.eq.f32.partialorder %v7465, inf
    %v7506 = vsel %vm7505, %v7465, %v7504
    %vm7507 = vcmp.eq.f32.partialorder %v7465, 0.0
    %v7508 = vand.u32 %v7465, 2147483648
    %v7509 = vsel %vm7507, %v7508, %v7506
    %v7510 = vrsqrt.pop %v7466
    %v7511 = vmul.f32 %v7466, %v7510
    %vm7512 = vcmp.eq.f32.partialorder %v7466, inf
    %v7513 = vsel %vm7512, %v7466, %v7511
    %vm7514 = vcmp.eq.f32.partialorder %v7466, 0.0
    %v7515 = vand.u32 %v7466, 2147483648
    %v7516 = vsel %vm7514, %v7515, %v7513
    %v7517 = vrsqrt.pop %v7467
    %v7518 = vmul.f32 %v7467, %v7517
    %vm7519 = vcmp.eq.f32.partialorder %v7467, inf
    %v7520 = vsel %vm7519, %v7467, %v7518
    %vm7521 = vcmp.eq.f32.partialorder %v7467, 0.0
    %v7522 = vand.u32 %v7467, 2147483648
    %v7523 = vsel %vm7521, %v7522, %v7520
    %v7524 = vadd.f32 %v7474, 1e-06
    %v7525 = vadd.f32 %v7481, 1e-06
    %v7526 = vadd.f32 %v7488, 1e-06
    %v7527 = vadd.f32 %v7495, 1e-06
    %v7528 = vadd.f32 %v7502, 1e-06
    %v7529 = vadd.f32 %v7509, 1e-06
    %v7530 = vadd.f32 %v7516, 1e-06
    %v7531 = vadd.f32 %v7523, 1e-06
    %v7532 = vrcp.pop %v7524
    %v7533 = vrcp.pop %v7525
    %v7534 = vrcp.pop %v7526
    %v7535 = vrcp.pop %v7527
    %v7536 = vrcp.pop %v7528
    %v7537 = vrcp.pop %v7529
    %v7538 = vrcp.pop %v7530
    %v7539 = vrcp.pop %v7531
    %v7540 = vmul.f32 %v66, %v7420
    %v7541 = vmul.f32 %v66, %v7421
    %v7542 = vmul.f32 %v66, %v7422
    %v7543 = vmul.f32 %v66, %v7423
    %v7544 = vmul.f32 %v66, %v7424
    %v7545 = vmul.f32 %v66, %v7425
    %v7546 = vmul.f32 %v66, %v7426
    %v7547 = vmul.f32 %v66, %v7427
    %v7548 = vmul.f32 %v7540, %v7532
    %v7549 = vmul.f32 %v7541, %v7533
    %v7550 = vmul.f32 %v7542, %v7534
    %v7551 = vmul.f32 %v7543, %v7535
    %v7552 = vmul.f32 %v7544, %v7536
    %v7553 = vmul.f32 %v7545, %v7537
    %v7554 = vmul.f32 %v7546, %v7538
    %v7555 = vmul.f32 %v7547, %v7539
    %v7556 = vadd.f32 %v7548, %v67
    %v7557 = vadd.f32 %v7549, %v67
    %v7558 = vadd.f32 %v7550, %v67
    %v7559 = vadd.f32 %v7551, %v67
    %v7560 = vadd.f32 %v7552, %v67
    %v7561 = vadd.f32 %v7553, %v67
    %v7562 = vadd.f32 %v7554, %v67
    %v7563 = vadd.f32 %v7555, %v67
    %7564 = vst.msk [vmem:[#allocation8] sm:$0x1] %vm7386, %v7556
    %7565 = vst.msk [vmem:[#allocation8 + $0x1] sm:$0x1] %vm7386, %v7557
    %7566 = vst.msk [vmem:[#allocation8 + $0x2] sm:$0x1] %vm7386, %v7558
    %7567 = vst.msk [vmem:[#allocation8 + $0x3] sm:$0x1] %vm7386, %v7559
    %7568 = vst.msk [vmem:[#allocation8 + $0x4] sm:$0x1] %vm7386, %v7560
    %7569 = vst.msk [vmem:[#allocation8 + $0x5] sm:$0x1] %vm7386, %v7561
    %7570 = vst.msk [vmem:[#allocation8 + $0x6] sm:$0x1] %vm7386, %v7562
    %7571 = vst.msk [vmem:[#allocation8 + $0x7] sm:$0x1] %vm7386, %v7563
    // Predicated region
    $region26: #{tpu_custom_call.1} parent=1 // pred_check
      _
    $region27: #{tpu_custom_call.1} parent=1 // pred_check_branch
      %7573 = sbr.rel (0) target = $region29
    $region28: #{tpu_custom_call.1} parent=1 // pred_region
      %s7575 = ssub.s32 128, 128
      %7576 = vsyncadd [#allocation4], %s7575
      %s7577 = sshll.u32 [#allocation8], 4
      %s7578 = int_to_ptr.vmem [resolvable:$true] %s7577
      %7583 = dma.vmem_to_hbm [thread:$0]  %s7578, 128, %s3, [#allocation4], 16, 16, 1
    $region29: #{tpu_custom_call.1} parent=1 // pred_fallthru
      _
    // Predicated region
    $region30: #{tpu_custom_call.1} parent=1 // pred_check
      _
    $region31: #{tpu_custom_call.1} parent=1 // pred_check_branch
      %7585 = sbr.rel (0) target = $region33
    $region32: #{tpu_custom_call.1} parent=1 // pred_region
      %s7587 = ssub.s32 128, 128
      %7588 = vsyncadd [#allocation10], %s7587
      %s7589 = sshll.u32 [#allocation9], 4
      %s7590 = int_to_ptr.vmem [resolvable:$true] %s7589
      %7595 = dma.vmem_to_hbm [thread:$0]  %s7590, 128, %s4, [#allocation10], 16, 16, 1
    $region33: #{tpu_custom_call.1} parent=1 // pred_fallthru
      _
    // Predicated region
    $region34: #{tpu_custom_call.1} parent=1 // pred_check
      _
    $region35: #{tpu_custom_call.1} parent=1 // pred_check_branch
      %7597 = sbr.rel (0) target = $region37
    $region36: #{tpu_custom_call.1} parent=1 // pred_region
      %7598 = dma.done [#allocation4], 128
    $region37: #{tpu_custom_call.1} parent=1 // pred_fallthru
      _
    // Predicated region
    $region38: #{tpu_custom_call.1} parent=1 // pred_check
      _
    $region39: #{tpu_custom_call.1} parent=1 // pred_check_branch
      %7600 = sbr.rel (0) target = $region41
    $region40: #{tpu_custom_call.1} parent=1 // pred_region
      %7601 = dma.done [#allocation10], 128
    $region41: #{tpu_custom_call.1} parent=1 // pred_fallthru
      _
    %7602 = vsyncpa [#allocation3], 1
    %7603 = vsyncpa [#allocation6], 1
    %7604 = vsyncpa [#allocation4], 1
    %7605 = vsyncpa [#allocation10], 1

</llo_original>
